<compile_context>
chip_gen: v7x
topology: tpu7x:2x2x1
jax: 0.10.0
libtpu: 0.0.40
codegen_flags: <defaults>
</compile_context>

<pallas_src>
import jax
import jax.numpy as jnp
from jax.experimental import pallas as pl
from jax.experimental.pallas import tpu as pltpu


# Static architecture of the synthetic small VGG-style model.
#   features  : conv3x3(3->8)+ReLU, conv3x3(8->8)+ReLU, maxpool2x2,
#               conv3x3(8->16)+ReLU, conv3x3(16->16)+ReLU, maxpool2x2
#   classifier: Linear(256->64)+ReLU, Linear(64->64)+ReLU, Linear(64->10)
H0 = W0 = 16
C_IN = 3
CONV_CH = [(3, 8), (8, 8), (8, 16), (16, 16)]
FEAT_H = FEAT_W = 4          # spatial size after two 2x2 pools
FEAT_C = 16
N_CLASSES = 10


def _fused_vgg_kernel(
    x_ref,
    w1_ref, b1_ref, w2_ref, b2_ref, w3_ref, b3_ref, w4_ref, b4_ref,
    f1w_ref, f1b_ref, f2w_ref, f2b_ref, f3w_ref, f3b_ref,
    o_ref,
    pad1_ref, pad2_ref, pad3_ref, pad4_ref, act2_ref, act4_ref, feat_ref,
):
    """Full forward pass for one image; every intermediate stays in VMEM."""

    def conv3x3_relu(x, w_ref, b_ref, pad_ref):
        # x: (H, W, Cin) f32 value.  w_ref: (3, 3, Cin, Cout) bf16.
        H, W, Cin = x.shape
        Cout = w_ref.shape[-1]
        # Zero-pad inside VMEM scratch (no host jnp.pad, no HBM traffic).
        # Valid data lives at rows [1, H] and sublanes [8, 8+W) so the interior
        # store is sublane-tile aligned; columns 7 and 8+W stay zero and act as
        # the pad=1 border.
        pad_ref[...] = jnp.zeros(pad_ref.shape, jnp.float32)
        pad_ref[1:H + 1, 8:8 + W, :] = x
        acc = jnp.zeros((H * W, Cout), jnp.float32)
        for kh in range(3):
            for kw in range(3):
                tap = pad_ref[kh:kh + H, kw + 7:kw + 7 + W, :]
                tap = tap.reshape(H * W, Cin).astype(jnp.bfloat16)
                acc += jnp.dot(tap, w_ref[kh, kw],
                               preferred_element_type=jnp.float32)
        acc = jnp.maximum(acc + b_ref[...], 0.0)        # bias + ReLU in f32
        return acc.reshape(H, W, Cout)

    def maxpool2x2(act_ref):
        # act_ref: (H, W, C) scratch holding the previous conv's output.
        H, W, C = act_ref.shape
        Ho, Wo = H // 2, W // 2
        # Pool along W from two strided views (sublane stride 2).
        a = act_ref[:, pl.ds(0, Wo, 2), :]
        b = act_ref[:, pl.ds(1, Wo, 2), :]
        xw = jnp.maximum(a, b)                          # (H, Wo, C)
        # Pool along H: split the leading dim (layout no-op) + elementwise max.
        xw = xw.reshape(Ho, 2, Wo, C)
        return jnp.maximum(xw[:, 0], xw[:, 1])          # (Ho, Wo, C)

    # ------------------------------ features ------------------------------ #
    x = x_ref[0]                                        # (16, 16, 3) f32 NHWC
    x = conv3x3_relu(x, w1_ref, b1_ref, pad1_ref)       # (16, 16, 8)
    x = conv3x3_relu(x, w2_ref, b2_ref, pad2_ref)       # (16, 16, 8)
    act2_ref[...] = x
    x = maxpool2x2(act2_ref)                            # (8, 8, 8)
    x = conv3x3_relu(x, w3_ref, b3_ref, pad3_ref)       # (8, 8, 16)
    x = conv3x3_relu(x, w4_ref, b4_ref, pad4_ref)       # (8, 8, 16)
    act4_ref[...] = x
    x = maxpool2x2(act4_ref)                            # (4, 4, 16)

    # ------------------------- flatten + classifier ----------------------- #
    # torch.flatten(X, 1) flattens in (C, H, W) order; that permutation is
    # folded into f1w's layout at init time, so the kernel contracts the
    # pooled (h, w, c) feature directly -- no runtime transpose/reshape.
    feat_ref[...] = x                                   # (4, 4, 16) f32
    acc = jnp.zeros((1, f1w_ref.shape[-1]), jnp.float32)
    for h in range(FEAT_H):
        for w in range(FEAT_W):
            row = feat_ref[h, w:w + 1, :].astype(jnp.bfloat16)   # (1, 16)
            acc += jnp.dot(row, f1w_ref[h * FEAT_W + w],
                           preferred_element_type=jnp.float32)
    # nn.Dropout between linears is identity in eval mode.
    h1 = jnp.maximum(acc + f1b_ref[...], 0.0)           # (1, 64)
    h2 = jnp.dot(h1.astype(jnp.bfloat16), f2w_ref[...],
                 preferred_element_type=jnp.float32) + f2b_ref[...]
    h2 = jnp.maximum(h2, 0.0)                           # (1, 64)
    y = jnp.dot(h2.astype(jnp.bfloat16), f3w_ref[...],
                preferred_element_type=jnp.float32) + f3b_ref[...]
    o_ref[0] = y.astype(o_ref.dtype)                    # (1, 10)


def vgg16_finetune_forward(params, x_nchw):
    """Equivalent of VGG16FineTuneGeneric.forward: features -> flatten -> classifier."""
    N = x_nchw.shape[0]
    # NCHW -> NHWC once at the boundary; everything else runs in one kernel.
    x = jnp.transpose(x_nchw, (0, 2, 3, 1)).astype(jnp.float32)

    (w1, b1), (w2, b2), (w3, b3), (w4, b4) = params["convs"]
    (f1w, f1b), (f2w, f2b), (f3w, f3b) = params["fcs"]

    def rep(arr):
        nd = arr.ndim
        return pl.BlockSpec(arr.shape, lambda n, _nd=nd: (0,) * _nd)

    scratch = [
        pltpu.VMEM((H0 + 2, W0 + 16, 3), jnp.float32),   # pad1
        pltpu.VMEM((H0 + 2, W0 + 16, 8), jnp.float32),   # pad2
        pltpu.VMEM((10, 8 + 16, 8), jnp.float32),        # pad3
        pltpu.VMEM((10, 8 + 16, 16), jnp.float32),       # pad4
        pltpu.VMEM((16, 16, 8), jnp.float32),            # act2 (pre-pool1)
        pltpu.VMEM((8, 8, 16), jnp.float32),             # act4 (pre-pool2)
        pltpu.VMEM((4, 4, 16), jnp.float32),             # feat (pre-flatten)
    ]

    out = pl.pallas_call(
        _fused_vgg_kernel,
        out_shape=jax.ShapeDtypeStruct((N, 1, N_CLASSES), jnp.float32),
        grid=(N,),
        in_specs=[
            pl.BlockSpec((1, H0, W0, C_IN), lambda n: (n, 0, 0, 0)),
            rep(w1), rep(b1), rep(w2), rep(b2),
            rep(w3), rep(b3), rep(w4), rep(b4),
            rep(f1w), rep(f1b), rep(f2w), rep(f2b), rep(f3w), rep(f3b),
        ],
        out_specs=pl.BlockSpec((1, 1, N_CLASSES), lambda n: (n, 0, 0)),
        scratch_shapes=scratch,
        compiler_params=pltpu.CompilerParams(
            dimension_semantics=("parallel",),   # v7x: batch sharded over 2 TCs
            vmem_limit_bytes=32 * 1024 * 1024,   # explicit, v7x-safe budget
        ),
    )(x, w1, b1, w2, b2, w3, b3, w4, b4,
      f1w, f1b, f2w, f2b, f3w, f3b)
    return out.reshape(N, N_CLASSES)


def init_params(key):
    """Deterministic synthetic weights (no checkpoint); matmul operands in bf16."""
    convs = []
    for cin, cout in CONV_CH:
        key, kw, kb = jax.random.split(key, 3)
        scale = 1.0 / jnp.sqrt(jnp.float32(cin * 9))
        w = jax.random.normal(kw, (3, 3, cin, cout), jnp.float32) * scale  # HWIO
        b = jax.random.normal(kb, (1, cout), jnp.float32) * 0.01
        convs.append((w.astype(jnp.bfloat16), b))

    fcs = []
    lin_cfg = [(FEAT_C * FEAT_H * FEAT_W, 64), (64, 64), (64, N_CLASSES)]
    for i, (cin, cout) in enumerate(lin_cfg):
        key, kw, kb = jax.random.split(key, 3)
        scale = 1.0 / jnp.sqrt(jnp.float32(cin))
        # Rows of w are in torch's (C, H, W)-flatten order (== torch W^T).
        w = jax.random.normal(kw, (cin, cout), jnp.float32) * scale
        b = jax.random.normal(kb, (1, cout), jnp.float32) * 0.01
        if i == 0:
            # Fold torch.flatten's CHW ordering into the weight layout:
            # row index c*HW + hw  ->  block [hw][c], so the kernel contracts
            # the pooled NHWC feature without any runtime permutation.
            hw = FEAT_H * FEAT_W
            w = w.reshape(FEAT_C, hw, cout).transpose(1, 0, 2)   # (HW, C, out)
        fcs.append((w.astype(jnp.bfloat16), b))

    return {"convs": convs, "fcs": fcs}


if __name__ == "__main__":
    key = jax.random.PRNGKey(0)
    k_param, k_x = jax.random.split(key)
    params = init_params(k_param)

    # Small NCHW input consistent with the module's conv stack.
    x = jax.random.normal(k_x, (2, C_IN, H0, W0), jnp.float32)

    y = vgg16_finetune_forward(params, x)
    y = jax.block_until_ready(y)

    assert y.shape == (2, N_CLASSES), y.shape
    assert bool(jnp.all(jnp.isfinite(y)))
    print("KERNEL_OK")
</pallas_src>

<mosaic_0001>
module attributes {stable_mosaic.version = 11 : i64} {
  func.func @_fused_vgg_kernel(%arg0: i32, %arg1: memref<1x16x16x3xf32, #tpu.memory_space<vmem>>, %arg2: memref<3x3x3x8xbf16, #tpu.memory_space<vmem>>, %arg3: memref<1x8xf32, #tpu.memory_space<vmem>>, %arg4: memref<3x3x8x8xbf16, #tpu.memory_space<vmem>>, %arg5: memref<1x8xf32, #tpu.memory_space<vmem>>, %arg6: memref<3x3x8x16xbf16, #tpu.memory_space<vmem>>, %arg7: memref<1x16xf32, #tpu.memory_space<vmem>>, %arg8: memref<3x3x16x16xbf16, #tpu.memory_space<vmem>>, %arg9: memref<1x16xf32, #tpu.memory_space<vmem>>, %arg10: memref<16x16x64xbf16, #tpu.memory_space<vmem>>, %arg11: memref<1x64xf32, #tpu.memory_space<vmem>>, %arg12: memref<64x64xbf16, #tpu.memory_space<vmem>>, %arg13: memref<1x64xf32, #tpu.memory_space<vmem>>, %arg14: memref<64x10xbf16, #tpu.memory_space<vmem>>, %arg15: memref<1x10xf32, #tpu.memory_space<vmem>>, %arg16: memref<1x1x10xf32, #tpu.memory_space<vmem>>, %arg17: memref<18x32x3xf32, #tpu.memory_space<vmem>>, %arg18: memref<18x32x8xf32, #tpu.memory_space<vmem>>, %arg19: memref<10x24x8xf32, #tpu.memory_space<vmem>>, %arg20: memref<10x24x16xf32, #tpu.memory_space<vmem>>, %arg21: memref<16x16x8xf32, #tpu.memory_space<vmem>>, %arg22: memref<8x8x16xf32, #tpu.memory_space<vmem>>, %arg23: memref<4x4x16xf32, #tpu.memory_space<vmem>>) attributes {dimension_semantics = [#tpu.dimension_semantics<parallel>], iteration_bounds = array<i64: 2>, scalar_prefetch = 0 : i64, scratch_operands = 7 : i64, tpu.core_type = #tpu.core_type<tc>, window_params = [{transform_indices = @transform_0, window_bounds = array<i64: 1, 16, 16, 3>}, {pipeline_mode = #tpu.pipeline_mode<synchronous>, transform_indices = @transform_1, window_bounds = array<i64: 3, 3, 3, 8>}, {pipeline_mode = #tpu.pipeline_mode<synchronous>, transform_indices = @transform_2, window_bounds = array<i64: 1, 8>}, {pipeline_mode = #tpu.pipeline_mode<synchronous>, transform_indices = @transform_3, window_bounds = array<i64: 3, 3, 8, 8>}, {pipeline_mode = #tpu.pipeline_mode<synchronous>, transform_indices = @transform_4, window_bounds = array<i64: 1, 8>}, {pipeline_mode = #tpu.pipeline_mode<synchronous>, transform_indices = @transform_5, window_bounds = array<i64: 3, 3, 8, 16>}, {pipeline_mode = #tpu.pipeline_mode<synchronous>, transform_indices = @transform_6, window_bounds = array<i64: 1, 16>}, {pipeline_mode = #tpu.pipeline_mode<synchronous>, transform_indices = @transform_7, window_bounds = array<i64: 3, 3, 16, 16>}, {pipeline_mode = #tpu.pipeline_mode<synchronous>, transform_indices = @transform_8, window_bounds = array<i64: 1, 16>}, {pipeline_mode = #tpu.pipeline_mode<synchronous>, transform_indices = @transform_9, window_bounds = array<i64: 16, 16, 64>}, {pipeline_mode = #tpu.pipeline_mode<synchronous>, transform_indices = @transform_10, window_bounds = array<i64: 1, 64>}, {pipeline_mode = #tpu.pipeline_mode<synchronous>, transform_indices = @transform_11, window_bounds = array<i64: 64, 64>}, {pipeline_mode = #tpu.pipeline_mode<synchronous>, transform_indices = @transform_12, window_bounds = array<i64: 1, 64>}, {pipeline_mode = #tpu.pipeline_mode<synchronous>, transform_indices = @transform_13, window_bounds = array<i64: 64, 10>}, {pipeline_mode = #tpu.pipeline_mode<synchronous>, transform_indices = @transform_14, window_bounds = array<i64: 1, 10>}, {transform_indices = @transform_15, window_bounds = array<i64: 1, 1, 10>}]} {
    %c0 = arith.constant 0 : index
    %c0_0 = arith.constant 0 : index
    %c0_1 = arith.constant 0 : index
    %c0_2 = arith.constant 0 : index
    %0 = vector.load %arg1[%c0, %c0_0, %c0_1, %c0_2] : memref<1x16x16x3xf32, #tpu.memory_space<vmem>>, vector<1x16x16x3xf32>
    %1 = vector.shape_cast %0 : vector<1x16x16x3xf32> to vector<16x16x3xf32>
    %cst = arith.constant 0.000000e+00 : f32
    %2 = vector.broadcast %cst : f32 to vector<18x32x3xf32>
    %c0_3 = arith.constant 0 : index
    %c0_4 = arith.constant 0 : index
    %c0_5 = arith.constant 0 : index
    %3 = vector.load %arg17[%c0_3, %c0_4, %c0_5] : memref<18x32x3xf32, #tpu.memory_space<vmem>>, vector<18x32x3xf32>
    tpu.vector_store %arg17[%c0_3, %c0_4, %c0_5], %2 {strides = array<i32>} : memref<18x32x3xf32, #tpu.memory_space<vmem>>, vector<18x32x3xf32>,
    %c1 = arith.constant 1 : index
    %c8 = arith.constant 8 : index
    %c0_6 = arith.constant 0 : index
    %4 = vector.load %arg17[%c1, %c8, %c0_6] : memref<18x32x3xf32, #tpu.memory_space<vmem>>, vector<16x16x3xf32>
    tpu.vector_store %arg17[%c1, %c8, %c0_6], %1 {strides = array<i32>} : memref<18x32x3xf32, #tpu.memory_space<vmem>>, vector<16x16x3xf32>,
    %cst_7 = arith.constant 0.000000e+00 : f32
    %5 = vector.broadcast %cst_7 : f32 to vector<256x8xf32>
    %c0_8 = arith.constant 0 : index
    %c7 = arith.constant 7 : index
    %c0_9 = arith.constant 0 : index
    %6 = vector.load %arg17[%c0_8, %c7, %c0_9] : memref<18x32x3xf32, #tpu.memory_space<vmem>>, vector<16x16x3xf32>
    %7 = vector.shape_cast %6 : vector<16x16x3xf32> to vector<256x3xf32>
    %8 = arith.truncf %7 : vector<256x3xf32> to vector<256x3xbf16>
    %c0_10 = arith.constant 0 : index
    %c0_11 = arith.constant 0 : index
    %c0_12 = arith.constant 0 : index
    %c0_13 = arith.constant 0 : index
    %9 = vector.load %arg2[%c0_10, %c0_11, %c0_12, %c0_13] : memref<3x3x3x8xbf16, #tpu.memory_space<vmem>>, vector<1x1x3x8xbf16>
    %10 = vector.shape_cast %9 : vector<1x1x3x8xbf16> to vector<3x8xbf16>
    %cst_14 = arith.constant dense<0.000000e+00> : vector<256x8xf32>
    %11 = tpu.matmul %8, %10, %cst_14 {dimension_numbers = #tpu.dot_dimension_numbers<[1], [0], [0], [1], [0, 0, 1, 1], [], []>} : vector<256x3xbf16>, vector<3x8xbf16>, vector<256x8xf32> -> vector<256x8xf32>
    %12 = arith.addf %5, %11 : vector<256x8xf32>
    %c0_15 = arith.constant 0 : index
    %c8_16 = arith.constant 8 : index
    %c0_17 = arith.constant 0 : index
    %13 = vector.load %arg17[%c0_15, %c8_16, %c0_17] : memref<18x32x3xf32, #tpu.memory_space<vmem>>, vector<16x16x3xf32>
    %14 = vector.shape_cast %13 : vector<16x16x3xf32> to vector<256x3xf32>
    %15 = arith.truncf %14 : vector<256x3xf32> to vector<256x3xbf16>
    %c0_18 = arith.constant 0 : index
    %c1_19 = arith.constant 1 : index
    %c0_20 = arith.constant 0 : index
    %c0_21 = arith.constant 0 : index
    %16 = vector.load %arg2[%c0_18, %c1_19, %c0_20, %c0_21] : memref<3x3x3x8xbf16, #tpu.memory_space<vmem>>, vector<1x1x3x8xbf16>
    %17 = vector.shape_cast %16 : vector<1x1x3x8xbf16> to vector<3x8xbf16>
    %cst_22 = arith.constant dense<0.000000e+00> : vector<256x8xf32>
    %18 = tpu.matmul %15, %17, %cst_22 {dimension_numbers = #tpu.dot_dimension_numbers<[1], [0], [0], [1], [0, 0, 1, 1], [], []>} : vector<256x3xbf16>, vector<3x8xbf16>, vector<256x8xf32> -> vector<256x8xf32>
    %19 = arith.addf %12, %18 : vector<256x8xf32>
    %c0_23 = arith.constant 0 : index
    %c9 = arith.constant 9 : index
    %c0_24 = arith.constant 0 : index
    %20 = vector.load %arg17[%c0_23, %c9, %c0_24] : memref<18x32x3xf32, #tpu.memory_space<vmem>>, vector<16x16x3xf32>
    %21 = vector.shape_cast %20 : vector<16x16x3xf32> to vector<256x3xf32>
    %22 = arith.truncf %21 : vector<256x3xf32> to vector<256x3xbf16>
    %c0_25 = arith.constant 0 : index
    %c2 = arith.constant 2 : index
    %c0_26 = arith.constant 0 : index
    %c0_27 = arith.constant 0 : index
    %23 = vector.load %arg2[%c0_25, %c2, %c0_26, %c0_27] : memref<3x3x3x8xbf16, #tpu.memory_space<vmem>>, vector<1x1x3x8xbf16>
    %24 = vector.shape_cast %23 : vector<1x1x3x8xbf16> to vector<3x8xbf16>
    %cst_28 = arith.constant dense<0.000000e+00> : vector<256x8xf32>
    %25 = tpu.matmul %22, %24, %cst_28 {dimension_numbers = #tpu.dot_dimension_numbers<[1], [0], [0], [1], [0, 0, 1, 1], [], []>} : vector<256x3xbf16>, vector<3x8xbf16>, vector<256x8xf32> -> vector<256x8xf32>
    %26 = arith.addf %19, %25 : vector<256x8xf32>
    %c1_29 = arith.constant 1 : index
    %c7_30 = arith.constant 7 : index
    %c0_31 = arith.constant 0 : index
    %27 = vector.load %arg17[%c1_29, %c7_30, %c0_31] : memref<18x32x3xf32, #tpu.memory_space<vmem>>, vector<16x16x3xf32>
    %28 = vector.shape_cast %27 : vector<16x16x3xf32> to vector<256x3xf32>
    %29 = arith.truncf %28 : vector<256x3xf32> to vector<256x3xbf16>
    %c1_32 = arith.constant 1 : index
    %c0_33 = arith.constant 0 : index
    %c0_34 = arith.constant 0 : index
    %c0_35 = arith.constant 0 : index
    %30 = vector.load %arg2[%c1_32, %c0_33, %c0_34, %c0_35] : memref<3x3x3x8xbf16, #tpu.memory_space<vmem>>, vector<1x1x3x8xbf16>
    %31 = vector.shape_cast %30 : vector<1x1x3x8xbf16> to vector<3x8xbf16>
    %cst_36 = arith.constant dense<0.000000e+00> : vector<256x8xf32>
    %32 = tpu.matmul %29, %31, %cst_36 {dimension_numbers = #tpu.dot_dimension_numbers<[1], [0], [0], [1], [0, 0, 1, 1], [], []>} : vector<256x3xbf16>, vector<3x8xbf16>, vector<256x8xf32> -> vector<256x8xf32>
    %33 = arith.addf %26, %32 : vector<256x8xf32>
    %c1_37 = arith.constant 1 : index
    %c8_38 = arith.constant 8 : index
    %c0_39 = arith.constant 0 : index
    %34 = vector.load %arg17[%c1_37, %c8_38, %c0_39] : memref<18x32x3xf32, #tpu.memory_space<vmem>>, vector<16x16x3xf32>
    %35 = vector.shape_cast %34 : vector<16x16x3xf32> to vector<256x3xf32>
    %36 = arith.truncf %35 : vector<256x3xf32> to vector<256x3xbf16>
    %c1_40 = arith.constant 1 : index
    %c1_41 = arith.constant 1 : index
    %c0_42 = arith.constant 0 : index
    %c0_43 = arith.constant 0 : index
    %37 = vector.load %arg2[%c1_40, %c1_41, %c0_42, %c0_43] : memref<3x3x3x8xbf16, #tpu.memory_space<vmem>>, vector<1x1x3x8xbf16>
    %38 = vector.shape_cast %37 : vector<1x1x3x8xbf16> to vector<3x8xbf16>
    %cst_44 = arith.constant dense<0.000000e+00> : vector<256x8xf32>
    %39 = tpu.matmul %36, %38, %cst_44 {dimension_numbers = #tpu.dot_dimension_numbers<[1], [0], [0], [1], [0, 0, 1, 1], [], []>} : vector<256x3xbf16>, vector<3x8xbf16>, vector<256x8xf32> -> vector<256x8xf32>
    %40 = arith.addf %33, %39 : vector<256x8xf32>
    %c1_45 = arith.constant 1 : index
    %c9_46 = arith.constant 9 : index
    %c0_47 = arith.constant 0 : index
    %41 = vector.load %arg17[%c1_45, %c9_46, %c0_47] : memref<18x32x3xf32, #tpu.memory_space<vmem>>, vector<16x16x3xf32>
    %42 = vector.shape_cast %41 : vector<16x16x3xf32> to vector<256x3xf32>
    %43 = arith.truncf %42 : vector<256x3xf32> to vector<256x3xbf16>
    %c1_48 = arith.constant 1 : index
    %c2_49 = arith.constant 2 : index
    %c0_50 = arith.constant 0 : index
    %c0_51 = arith.constant 0 : index
    %44 = vector.load %arg2[%c1_48, %c2_49, %c0_50, %c0_51] : memref<3x3x3x8xbf16, #tpu.memory_space<vmem>>, vector<1x1x3x8xbf16>
    %45 = vector.shape_cast %44 : vector<1x1x3x8xbf16> to vector<3x8xbf16>
    %cst_52 = arith.constant dense<0.000000e+00> : vector<256x8xf32>
    %46 = tpu.matmul %43, %45, %cst_52 {dimension_numbers = #tpu.dot_dimension_numbers<[1], [0], [0], [1], [0, 0, 1, 1], [], []>} : vector<256x3xbf16>, vector<3x8xbf16>, vector<256x8xf32> -> vector<256x8xf32>
    %47 = arith.addf %40, %46 : vector<256x8xf32>
    %c2_53 = arith.constant 2 : index
    %c7_54 = arith.constant 7 : index
    %c0_55 = arith.constant 0 : index
    %48 = vector.load %arg17[%c2_53, %c7_54, %c0_55] : memref<18x32x3xf32, #tpu.memory_space<vmem>>, vector<16x16x3xf32>
    %49 = vector.shape_cast %48 : vector<16x16x3xf32> to vector<256x3xf32>
    %50 = arith.truncf %49 : vector<256x3xf32> to vector<256x3xbf16>
    %c2_56 = arith.constant 2 : index
    %c0_57 = arith.constant 0 : index
    %c0_58 = arith.constant 0 : index
    %c0_59 = arith.constant 0 : index
    %51 = vector.load %arg2[%c2_56, %c0_57, %c0_58, %c0_59] : memref<3x3x3x8xbf16, #tpu.memory_space<vmem>>, vector<1x1x3x8xbf16>
    %52 = vector.shape_cast %51 : vector<1x1x3x8xbf16> to vector<3x8xbf16>
    %cst_60 = arith.constant dense<0.000000e+00> : vector<256x8xf32>
    %53 = tpu.matmul %50, %52, %cst_60 {dimension_numbers = #tpu.dot_dimension_numbers<[1], [0], [0], [1], [0, 0, 1, 1], [], []>} : vector<256x3xbf16>, vector<3x8xbf16>, vector<256x8xf32> -> vector<256x8xf32>
    %54 = arith.addf %47, %53 : vector<256x8xf32>
    %c2_61 = arith.constant 2 : index
    %c8_62 = arith.constant 8 : index
    %c0_63 = arith.constant 0 : index
    %55 = vector.load %arg17[%c2_61, %c8_62, %c0_63] : memref<18x32x3xf32, #tpu.memory_space<vmem>>, vector<16x16x3xf32>
    %56 = vector.shape_cast %55 : vector<16x16x3xf32> to vector<256x3xf32>
    %57 = arith.truncf %56 : vector<256x3xf32> to vector<256x3xbf16>
    %c2_64 = arith.constant 2 : index
    %c1_65 = arith.constant 1 : index
    %c0_66 = arith.constant 0 : index
    %c0_67 = arith.constant 0 : index
    %58 = vector.load %arg2[%c2_64, %c1_65, %c0_66, %c0_67] : memref<3x3x3x8xbf16, #tpu.memory_space<vmem>>, vector<1x1x3x8xbf16>
    %59 = vector.shape_cast %58 : vector<1x1x3x8xbf16> to vector<3x8xbf16>
    %cst_68 = arith.constant dense<0.000000e+00> : vector<256x8xf32>
    %60 = tpu.matmul %57, %59, %cst_68 {dimension_numbers = #tpu.dot_dimension_numbers<[1], [0], [0], [1], [0, 0, 1, 1], [], []>} : vector<256x3xbf16>, vector<3x8xbf16>, vector<256x8xf32> -> vector<256x8xf32>
    %61 = arith.addf %54, %60 : vector<256x8xf32>
    %c2_69 = arith.constant 2 : index
    %c9_70 = arith.constant 9 : index
    %c0_71 = arith.constant 0 : index
    %62 = vector.load %arg17[%c2_69, %c9_70, %c0_71] : memref<18x32x3xf32, #tpu.memory_space<vmem>>, vector<16x16x3xf32>
    %63 = vector.shape_cast %62 : vector<16x16x3xf32> to vector<256x3xf32>
    %64 = arith.truncf %63 : vector<256x3xf32> to vector<256x3xbf16>
    %c2_72 = arith.constant 2 : index
    %c2_73 = arith.constant 2 : index
    %c0_74 = arith.constant 0 : index
    %c0_75 = arith.constant 0 : index
    %65 = vector.load %arg2[%c2_72, %c2_73, %c0_74, %c0_75] : memref<3x3x3x8xbf16, #tpu.memory_space<vmem>>, vector<1x1x3x8xbf16>
    %66 = vector.shape_cast %65 : vector<1x1x3x8xbf16> to vector<3x8xbf16>
    %cst_76 = arith.constant dense<0.000000e+00> : vector<256x8xf32>
    %67 = tpu.matmul %64, %66, %cst_76 {dimension_numbers = #tpu.dot_dimension_numbers<[1], [0], [0], [1], [0, 0, 1, 1], [], []>} : vector<256x3xbf16>, vector<3x8xbf16>, vector<256x8xf32> -> vector<256x8xf32>
    %68 = arith.addf %61, %67 : vector<256x8xf32>
    %c0_77 = arith.constant 0 : index
    %c0_78 = arith.constant 0 : index
    %69 = vector.load %arg3[%c0_77, %c0_78] : memref<1x8xf32, #tpu.memory_space<vmem>>, vector<1x8xf32>
    %70 = vector.broadcast %69 : vector<1x8xf32> to vector<256x8xf32>
    %71 = arith.addf %68, %70 : vector<256x8xf32>
    %cst_79 = arith.constant 0.000000e+00 : f32
    %72 = vector.broadcast %cst_79 : f32 to vector<256x8xf32>
    %73 = arith.maximumf %71, %72 : vector<256x8xf32>
    %74 = vector.shape_cast %73 : vector<256x8xf32> to vector<16x16x8xf32>
    %cst_80 = arith.constant 0.000000e+00 : f32
    %75 = vector.broadcast %cst_80 : f32 to vector<18x32x8xf32>
    %c0_81 = arith.constant 0 : index
    %c0_82 = arith.constant 0 : index
    %c0_83 = arith.constant 0 : index
    %76 = vector.load %arg18[%c0_81, %c0_82, %c0_83] : memref<18x32x8xf32, #tpu.memory_space<vmem>>, vector<18x32x8xf32>
    tpu.vector_store %arg18[%c0_81, %c0_82, %c0_83], %75 {strides = array<i32>} : memref<18x32x8xf32, #tpu.memory_space<vmem>>, vector<18x32x8xf32>,
    %c1_84 = arith.constant 1 : index
    %c8_85 = arith.constant 8 : index
    %c0_86 = arith.constant 0 : index
    %77 = vector.load %arg18[%c1_84, %c8_85, %c0_86] : memref<18x32x8xf32, #tpu.memory_space<vmem>>, vector<16x16x8xf32>
    tpu.vector_store %arg18[%c1_84, %c8_85, %c0_86], %74 {strides = array<i32>} : memref<18x32x8xf32, #tpu.memory_space<vmem>>, vector<16x16x8xf32>,
    %cst_87 = arith.constant 0.000000e+00 : f32
    %78 = vector.broadcast %cst_87 : f32 to vector<256x8xf32>
    %c0_88 = arith.constant 0 : index
    %c7_89 = arith.constant 7 : index
    %c0_90 = arith.constant 0 : index
    %79 = vector.load %arg18[%c0_88, %c7_89, %c0_90] : memref<18x32x8xf32, #tpu.memory_space<vmem>>, vector<16x16x8xf32>
    %80 = vector.shape_cast %79 : vector<16x16x8xf32> to vector<256x8xf32>
    %81 = arith.truncf %80 : vector<256x8xf32> to vector<256x8xbf16>
    %c0_91 = arith.constant 0 : index
    %c0_92 = arith.constant 0 : index
    %c0_93 = arith.constant 0 : index
    %c0_94 = arith.constant 0 : index
    %82 = vector.load %arg4[%c0_91, %c0_92, %c0_93, %c0_94] : memref<3x3x8x8xbf16, #tpu.memory_space<vmem>>, vector<1x1x8x8xbf16>
    %83 = vector.shape_cast %82 : vector<1x1x8x8xbf16> to vector<8x8xbf16>
    %cst_95 = arith.constant dense<0.000000e+00> : vector<256x8xf32>
    %84 = tpu.matmul %81, %83, %cst_95 {dimension_numbers = #tpu.dot_dimension_numbers<[1], [0], [0], [1], [0, 0, 1, 1], [], []>} : vector<256x8xbf16>, vector<8x8xbf16>, vector<256x8xf32> -> vector<256x8xf32>
    %85 = arith.addf %78, %84 : vector<256x8xf32>
    %c0_96 = arith.constant 0 : index
    %c8_97 = arith.constant 8 : index
    %c0_98 = arith.constant 0 : index
    %86 = vector.load %arg18[%c0_96, %c8_97, %c0_98] : memref<18x32x8xf32, #tpu.memory_space<vmem>>, vector<16x16x8xf32>
    %87 = vector.shape_cast %86 : vector<16x16x8xf32> to vector<256x8xf32>
    %88 = arith.truncf %87 : vector<256x8xf32> to vector<256x8xbf16>
    %c0_99 = arith.constant 0 : index
    %c1_100 = arith.constant 1 : index
    %c0_101 = arith.constant 0 : index
    %c0_102 = arith.constant 0 : index
    %89 = vector.load %arg4[%c0_99, %c1_100, %c0_101, %c0_102] : memref<3x3x8x8xbf16, #tpu.memory_space<vmem>>, vector<1x1x8x8xbf16>
    %90 = vector.shape_cast %89 : vector<1x1x8x8xbf16> to vector<8x8xbf16>
    %cst_103 = arith.constant dense<0.000000e+00> : vector<256x8xf32>
    %91 = tpu.matmul %88, %90, %cst_103 {dimension_numbers = #tpu.dot_dimension_numbers<[1], [0], [0], [1], [0, 0, 1, 1], [], []>} : vector<256x8xbf16>, vector<8x8xbf16>, vector<256x8xf32> -> vector<256x8xf32>
    %92 = arith.addf %85, %91 : vector<256x8xf32>
    %c0_104 = arith.constant 0 : index
    %c9_105 = arith.constant 9 : index
    %c0_106 = arith.constant 0 : index
    %93 = vector.load %arg18[%c0_104, %c9_105, %c0_106] : memref<18x32x8xf32, #tpu.memory_space<vmem>>, vector<16x16x8xf32>
    %94 = vector.shape_cast %93 : vector<16x16x8xf32> to vector<256x8xf32>
    %95 = arith.truncf %94 : vector<256x8xf32> to vector<256x8xbf16>
    %c0_107 = arith.constant 0 : index
    %c2_108 = arith.constant 2 : index
    %c0_109 = arith.constant 0 : index
    %c0_110 = arith.constant 0 : index
    %96 = vector.load %arg4[%c0_107, %c2_108, %c0_109, %c0_110] : memref<3x3x8x8xbf16, #tpu.memory_space<vmem>>, vector<1x1x8x8xbf16>
    %97 = vector.shape_cast %96 : vector<1x1x8x8xbf16> to vector<8x8xbf16>
    %cst_111 = arith.constant dense<0.000000e+00> : vector<256x8xf32>
    %98 = tpu.matmul %95, %97, %cst_111 {dimension_numbers = #tpu.dot_dimension_numbers<[1], [0], [0], [1], [0, 0, 1, 1], [], []>} : vector<256x8xbf16>, vector<8x8xbf16>, vector<256x8xf32> -> vector<256x8xf32>
    %99 = arith.addf %92, %98 : vector<256x8xf32>
    %c1_112 = arith.constant 1 : index
    %c7_113 = arith.constant 7 : index
    %c0_114 = arith.constant 0 : index
    %100 = vector.load %arg18[%c1_112, %c7_113, %c0_114] : memref<18x32x8xf32, #tpu.memory_space<vmem>>, vector<16x16x8xf32>
    %101 = vector.shape_cast %100 : vector<16x16x8xf32> to vector<256x8xf32>
    %102 = arith.truncf %101 : vector<256x8xf32> to vector<256x8xbf16>
    %c1_115 = arith.constant 1 : index
    %c0_116 = arith.constant 0 : index
    %c0_117 = arith.constant 0 : index
    %c0_118 = arith.constant 0 : index
    %103 = vector.load %arg4[%c1_115, %c0_116, %c0_117, %c0_118] : memref<3x3x8x8xbf16, #tpu.memory_space<vmem>>, vector<1x1x8x8xbf16>
    %104 = vector.shape_cast %103 : vector<1x1x8x8xbf16> to vector<8x8xbf16>
    %cst_119 = arith.constant dense<0.000000e+00> : vector<256x8xf32>
    %105 = tpu.matmul %102, %104, %cst_119 {dimension_numbers = #tpu.dot_dimension_numbers<[1], [0], [0], [1], [0, 0, 1, 1], [], []>} : vector<256x8xbf16>, vector<8x8xbf16>, vector<256x8xf32> -> vector<256x8xf32>
    %106 = arith.addf %99, %105 : vector<256x8xf32>
    %c1_120 = arith.constant 1 : index
    %c8_121 = arith.constant 8 : index
    %c0_122 = arith.constant 0 : index
    %107 = vector.load %arg18[%c1_120, %c8_121, %c0_122] : memref<18x32x8xf32, #tpu.memory_space<vmem>>, vector<16x16x8xf32>
    %108 = vector.shape_cast %107 : vector<16x16x8xf32> to vector<256x8xf32>
    %109 = arith.truncf %108 : vector<256x8xf32> to vector<256x8xbf16>
    %c1_123 = arith.constant 1 : index
    %c1_124 = arith.constant 1 : index
    %c0_125 = arith.constant 0 : index
    %c0_126 = arith.constant 0 : index
    %110 = vector.load %arg4[%c1_123, %c1_124, %c0_125, %c0_126] : memref<3x3x8x8xbf16, #tpu.memory_space<vmem>>, vector<1x1x8x8xbf16>
    %111 = vector.shape_cast %110 : vector<1x1x8x8xbf16> to vector<8x8xbf16>
    %cst_127 = arith.constant dense<0.000000e+00> : vector<256x8xf32>
    %112 = tpu.matmul %109, %111, %cst_127 {dimension_numbers = #tpu.dot_dimension_numbers<[1], [0], [0], [1], [0, 0, 1, 1], [], []>} : vector<256x8xbf16>, vector<8x8xbf16>, vector<256x8xf32> -> vector<256x8xf32>
    %113 = arith.addf %106, %112 : vector<256x8xf32>
    %c1_128 = arith.constant 1 : index
    %c9_129 = arith.constant 9 : index
    %c0_130 = arith.constant 0 : index
    %114 = vector.load %arg18[%c1_128, %c9_129, %c0_130] : memref<18x32x8xf32, #tpu.memory_space<vmem>>, vector<16x16x8xf32>
    %115 = vector.shape_cast %114 : vector<16x16x8xf32> to vector<256x8xf32>
    %116 = arith.truncf %115 : vector<256x8xf32> to vector<256x8xbf16>
    %c1_131 = arith.constant 1 : index
    %c2_132 = arith.constant 2 : index
    %c0_133 = arith.constant 0 : index
    %c0_134 = arith.constant 0 : index
    %117 = vector.load %arg4[%c1_131, %c2_132, %c0_133, %c0_134] : memref<3x3x8x8xbf16, #tpu.memory_space<vmem>>, vector<1x1x8x8xbf16>
    %118 = vector.shape_cast %117 : vector<1x1x8x8xbf16> to vector<8x8xbf16>
    %cst_135 = arith.constant dense<0.000000e+00> : vector<256x8xf32>
    %119 = tpu.matmul %116, %118, %cst_135 {dimension_numbers = #tpu.dot_dimension_numbers<[1], [0], [0], [1], [0, 0, 1, 1], [], []>} : vector<256x8xbf16>, vector<8x8xbf16>, vector<256x8xf32> -> vector<256x8xf32>
    %120 = arith.addf %113, %119 : vector<256x8xf32>
    %c2_136 = arith.constant 2 : index
    %c7_137 = arith.constant 7 : index
    %c0_138 = arith.constant 0 : index
    %121 = vector.load %arg18[%c2_136, %c7_137, %c0_138] : memref<18x32x8xf32, #tpu.memory_space<vmem>>, vector<16x16x8xf32>
    %122 = vector.shape_cast %121 : vector<16x16x8xf32> to vector<256x8xf32>
    %123 = arith.truncf %122 : vector<256x8xf32> to vector<256x8xbf16>
    %c2_139 = arith.constant 2 : index
    %c0_140 = arith.constant 0 : index
    %c0_141 = arith.constant 0 : index
    %c0_142 = arith.constant 0 : index
    %124 = vector.load %arg4[%c2_139, %c0_140, %c0_141, %c0_142] : memref<3x3x8x8xbf16, #tpu.memory_space<vmem>>, vector<1x1x8x8xbf16>
    %125 = vector.shape_cast %124 : vector<1x1x8x8xbf16> to vector<8x8xbf16>
    %cst_143 = arith.constant dense<0.000000e+00> : vector<256x8xf32>
    %126 = tpu.matmul %123, %125, %cst_143 {dimension_numbers = #tpu.dot_dimension_numbers<[1], [0], [0], [1], [0, 0, 1, 1], [], []>} : vector<256x8xbf16>, vector<8x8xbf16>, vector<256x8xf32> -> vector<256x8xf32>
    %127 = arith.addf %120, %126 : vector<256x8xf32>
    %c2_144 = arith.constant 2 : index
    %c8_145 = arith.constant 8 : index
    %c0_146 = arith.constant 0 : index
    %128 = vector.load %arg18[%c2_144, %c8_145, %c0_146] : memref<18x32x8xf32, #tpu.memory_space<vmem>>, vector<16x16x8xf32>
    %129 = vector.shape_cast %128 : vector<16x16x8xf32> to vector<256x8xf32>
    %130 = arith.truncf %129 : vector<256x8xf32> to vector<256x8xbf16>
    %c2_147 = arith.constant 2 : index
    %c1_148 = arith.constant 1 : index
    %c0_149 = arith.constant 0 : index
    %c0_150 = arith.constant 0 : index
    %131 = vector.load %arg4[%c2_147, %c1_148, %c0_149, %c0_150] : memref<3x3x8x8xbf16, #tpu.memory_space<vmem>>, vector<1x1x8x8xbf16>
    %132 = vector.shape_cast %131 : vector<1x1x8x8xbf16> to vector<8x8xbf16>
    %cst_151 = arith.constant dense<0.000000e+00> : vector<256x8xf32>
    %133 = tpu.matmul %130, %132, %cst_151 {dimension_numbers = #tpu.dot_dimension_numbers<[1], [0], [0], [1], [0, 0, 1, 1], [], []>} : vector<256x8xbf16>, vector<8x8xbf16>, vector<256x8xf32> -> vector<256x8xf32>
    %134 = arith.addf %127, %133 : vector<256x8xf32>
    %c2_152 = arith.constant 2 : index
    %c9_153 = arith.constant 9 : index
    %c0_154 = arith.constant 0 : index
    %135 = vector.load %arg18[%c2_152, %c9_153, %c0_154] : memref<18x32x8xf32, #tpu.memory_space<vmem>>, vector<16x16x8xf32>
    %136 = vector.shape_cast %135 : vector<16x16x8xf32> to vector<256x8xf32>
    %137 = arith.truncf %136 : vector<256x8xf32> to vector<256x8xbf16>
    %c2_155 = arith.constant 2 : index
    %c2_156 = arith.constant 2 : index
    %c0_157 = arith.constant 0 : index
    %c0_158 = arith.constant 0 : index
    %138 = vector.load %arg4[%c2_155, %c2_156, %c0_157, %c0_158] : memref<3x3x8x8xbf16, #tpu.memory_space<vmem>>, vector<1x1x8x8xbf16>
    %139 = vector.shape_cast %138 : vector<1x1x8x8xbf16> to vector<8x8xbf16>
    %cst_159 = arith.constant dense<0.000000e+00> : vector<256x8xf32>
    %140 = tpu.matmul %137, %139, %cst_159 {dimension_numbers = #tpu.dot_dimension_numbers<[1], [0], [0], [1], [0, 0, 1, 1], [], []>} : vector<256x8xbf16>, vector<8x8xbf16>, vector<256x8xf32> -> vector<256x8xf32>
    %141 = arith.addf %134, %140 : vector<256x8xf32>
    %c0_160 = arith.constant 0 : index
    %c0_161 = arith.constant 0 : index
    %142 = vector.load %arg5[%c0_160, %c0_161] : memref<1x8xf32, #tpu.memory_space<vmem>>, vector<1x8xf32>
    %143 = vector.broadcast %142 : vector<1x8xf32> to vector<256x8xf32>
    %144 = arith.addf %141, %143 : vector<256x8xf32>
    %cst_162 = arith.constant 0.000000e+00 : f32
    %145 = vector.broadcast %cst_162 : f32 to vector<256x8xf32>
    %146 = arith.maximumf %144, %145 : vector<256x8xf32>
    %147 = vector.shape_cast %146 : vector<256x8xf32> to vector<16x16x8xf32>
    %c0_163 = arith.constant 0 : index
    %c0_164 = arith.constant 0 : index
    %c0_165 = arith.constant 0 : index
    %148 = vector.load %arg21[%c0_163, %c0_164, %c0_165] : memref<16x16x8xf32, #tpu.memory_space<vmem>>, vector<16x16x8xf32>
    tpu.vector_store %arg21[%c0_163, %c0_164, %c0_165], %147 {strides = array<i32>} : memref<16x16x8xf32, #tpu.memory_space<vmem>>, vector<16x16x8xf32>,
    %c0_166 = arith.constant 0 : index
    %c0_167 = arith.constant 0 : index
    %c0_168 = arith.constant 0 : index
    %149 = tpu.strided_load %arg21[%c0_166, %c0_167, %c0_168] {strides = array<i32: 1, 2, 1>} : memref<16x16x8xf32, #tpu.memory_space<vmem>>, vector<16x8x8xf32>
    %c0_169 = arith.constant 0 : index
    %c1_170 = arith.constant 1 : index
    %c0_171 = arith.constant 0 : index
    %150 = tpu.strided_load %arg21[%c0_169, %c1_170, %c0_171] {strides = array<i32: 1, 2, 1>} : memref<16x16x8xf32, #tpu.memory_space<vmem>>, vector<16x8x8xf32>
    %151 = arith.maximumf %149, %150 : vector<16x8x8xf32>
    %152 = vector.shape_cast %151 : vector<16x8x8xf32> to vector<8x2x8x8xf32>
    %153 = vector.extract_strided_slice %152 {offsets = [0, 0, 0, 0], sizes = [8, 1, 8, 8], strides = [1, 1, 1, 1]} : vector<8x2x8x8xf32> to vector<8x1x8x8xf32>
    %154 = vector.shape_cast %153 : vector<8x1x8x8xf32> to vector<8x8x8xf32>
    %155 = vector.extract_strided_slice %152 {offsets = [0, 1, 0, 0], sizes = [8, 1, 8, 8], strides = [1, 1, 1, 1]} : vector<8x2x8x8xf32> to vector<8x1x8x8xf32>
    %156 = vector.shape_cast %155 : vector<8x1x8x8xf32> to vector<8x8x8xf32>
    %157 = arith.maximumf %154, %156 : vector<8x8x8xf32>
    %cst_172 = arith.constant 0.000000e+00 : f32
    %158 = vector.broadcast %cst_172 : f32 to vector<10x24x8xf32>
    %c0_173 = arith.constant 0 : index
    %c0_174 = arith.constant 0 : index
    %c0_175 = arith.constant 0 : index
    %159 = vector.load %arg19[%c0_173, %c0_174, %c0_175] : memref<10x24x8xf32, #tpu.memory_space<vmem>>, vector<10x24x8xf32>
    tpu.vector_store %arg19[%c0_173, %c0_174, %c0_175], %158 {strides = array<i32>} : memref<10x24x8xf32, #tpu.memory_space<vmem>>, vector<10x24x8xf32>,
    %c1_176 = arith.constant 1 : index
    %c8_177 = arith.constant 8 : index
    %c0_178 = arith.constant 0 : index
    %160 = vector.load %arg19[%c1_176, %c8_177, %c0_178] : memref<10x24x8xf32, #tpu.memory_space<vmem>>, vector<8x8x8xf32>
    tpu.vector_store %arg19[%c1_176, %c8_177, %c0_178], %157 {strides = array<i32>} : memref<10x24x8xf32, #tpu.memory_space<vmem>>, vector<8x8x8xf32>,
    %cst_179 = arith.constant 0.000000e+00 : f32
    %161 = vector.broadcast %cst_179 : f32 to vector<64x16xf32>
    %c0_180 = arith.constant 0 : index
    %c7_181 = arith.constant 7 : index
    %c0_182 = arith.constant 0 : index
    %162 = vector.load %arg19[%c0_180, %c7_181, %c0_182] : memref<10x24x8xf32, #tpu.memory_space<vmem>>, vector<8x8x8xf32>
    %163 = vector.shape_cast %162 : vector<8x8x8xf32> to vector<64x8xf32>
    %164 = arith.truncf %163 : vector<64x8xf32> to vector<64x8xbf16>
    %c0_183 = arith.constant 0 : index
    %c0_184 = arith.constant 0 : index
    %c0_185 = arith.constant 0 : index
    %c0_186 = arith.constant 0 : index
    %165 = vector.load %arg6[%c0_183, %c0_184, %c0_185, %c0_186] : memref<3x3x8x16xbf16, #tpu.memory_space<vmem>>, vector<1x1x8x16xbf16>
    %166 = vector.shape_cast %165 : vector<1x1x8x16xbf16> to vector<8x16xbf16>
    %cst_187 = arith.constant dense<0.000000e+00> : vector<64x16xf32>
    %167 = tpu.matmul %164, %166, %cst_187 {dimension_numbers = #tpu.dot_dimension_numbers<[1], [0], [0], [1], [0, 0, 1, 1], [], []>} : vector<64x8xbf16>, vector<8x16xbf16>, vector<64x16xf32> -> vector<64x16xf32>
    %168 = arith.addf %161, %167 : vector<64x16xf32>
    %c0_188 = arith.constant 0 : index
    %c8_189 = arith.constant 8 : index
    %c0_190 = arith.constant 0 : index
    %169 = vector.load %arg19[%c0_188, %c8_189, %c0_190] : memref<10x24x8xf32, #tpu.memory_space<vmem>>, vector<8x8x8xf32>
    %170 = vector.shape_cast %169 : vector<8x8x8xf32> to vector<64x8xf32>
    %171 = arith.truncf %170 : vector<64x8xf32> to vector<64x8xbf16>
    %c0_191 = arith.constant 0 : index
    %c1_192 = arith.constant 1 : index
    %c0_193 = arith.constant 0 : index
    %c0_194 = arith.constant 0 : index
    %172 = vector.load %arg6[%c0_191, %c1_192, %c0_193, %c0_194] : memref<3x3x8x16xbf16, #tpu.memory_space<vmem>>, vector<1x1x8x16xbf16>
    %173 = vector.shape_cast %172 : vector<1x1x8x16xbf16> to vector<8x16xbf16>
    %cst_195 = arith.constant dense<0.000000e+00> : vector<64x16xf32>
    %174 = tpu.matmul %171, %173, %cst_195 {dimension_numbers = #tpu.dot_dimension_numbers<[1], [0], [0], [1], [0, 0, 1, 1], [], []>} : vector<64x8xbf16>, vector<8x16xbf16>, vector<64x16xf32> -> vector<64x16xf32>
    %175 = arith.addf %168, %174 : vector<64x16xf32>
    %c0_196 = arith.constant 0 : index
    %c9_197 = arith.constant 9 : index
    %c0_198 = arith.constant 0 : index
    %176 = vector.load %arg19[%c0_196, %c9_197, %c0_198] : memref<10x24x8xf32, #tpu.memory_space<vmem>>, vector<8x8x8xf32>
    %177 = vector.shape_cast %176 : vector<8x8x8xf32> to vector<64x8xf32>
    %178 = arith.truncf %177 : vector<64x8xf32> to vector<64x8xbf16>
    %c0_199 = arith.constant 0 : index
    %c2_200 = arith.constant 2 : index
    %c0_201 = arith.constant 0 : index
    %c0_202 = arith.constant 0 : index
    %179 = vector.load %arg6[%c0_199, %c2_200, %c0_201, %c0_202] : memref<3x3x8x16xbf16, #tpu.memory_space<vmem>>, vector<1x1x8x16xbf16>
    %180 = vector.shape_cast %179 : vector<1x1x8x16xbf16> to vector<8x16xbf16>
    %cst_203 = arith.constant dense<0.000000e+00> : vector<64x16xf32>
    %181 = tpu.matmul %178, %180, %cst_203 {dimension_numbers = #tpu.dot_dimension_numbers<[1], [0], [0], [1], [0, 0, 1, 1], [], []>} : vector<64x8xbf16>, vector<8x16xbf16>, vector<64x16xf32> -> vector<64x16xf32>
    %182 = arith.addf %175, %181 : vector<64x16xf32>
    %c1_204 = arith.constant 1 : index
    %c7_205 = arith.constant 7 : index
    %c0_206 = arith.constant 0 : index
    %183 = vector.load %arg19[%c1_204, %c7_205, %c0_206] : memref<10x24x8xf32, #tpu.memory_space<vmem>>, vector<8x8x8xf32>
    %184 = vector.shape_cast %183 : vector<8x8x8xf32> to vector<64x8xf32>
    %185 = arith.truncf %184 : vector<64x8xf32> to vector<64x8xbf16>
    %c1_207 = arith.constant 1 : index
    %c0_208 = arith.constant 0 : index
    %c0_209 = arith.constant 0 : index
    %c0_210 = arith.constant 0 : index
    %186 = vector.load %arg6[%c1_207, %c0_208, %c0_209, %c0_210] : memref<3x3x8x16xbf16, #tpu.memory_space<vmem>>, vector<1x1x8x16xbf16>
    %187 = vector.shape_cast %186 : vector<1x1x8x16xbf16> to vector<8x16xbf16>
    %cst_211 = arith.constant dense<0.000000e+00> : vector<64x16xf32>
    %188 = tpu.matmul %185, %187, %cst_211 {dimension_numbers = #tpu.dot_dimension_numbers<[1], [0], [0], [1], [0, 0, 1, 1], [], []>} : vector<64x8xbf16>, vector<8x16xbf16>, vector<64x16xf32> -> vector<64x16xf32>
    %189 = arith.addf %182, %188 : vector<64x16xf32>
    %c1_212 = arith.constant 1 : index
    %c8_213 = arith.constant 8 : index
    %c0_214 = arith.constant 0 : index
    %190 = vector.load %arg19[%c1_212, %c8_213, %c0_214] : memref<10x24x8xf32, #tpu.memory_space<vmem>>, vector<8x8x8xf32>
    %191 = vector.shape_cast %190 : vector<8x8x8xf32> to vector<64x8xf32>
    %192 = arith.truncf %191 : vector<64x8xf32> to vector<64x8xbf16>
    %c1_215 = arith.constant 1 : index
    %c1_216 = arith.constant 1 : index
    %c0_217 = arith.constant 0 : index
    %c0_218 = arith.constant 0 : index
    %193 = vector.load %arg6[%c1_215, %c1_216, %c0_217, %c0_218] : memref<3x3x8x16xbf16, #tpu.memory_space<vmem>>, vector<1x1x8x16xbf16>
    %194 = vector.shape_cast %193 : vector<1x1x8x16xbf16> to vector<8x16xbf16>
    %cst_219 = arith.constant dense<0.000000e+00> : vector<64x16xf32>
    %195 = tpu.matmul %192, %194, %cst_219 {dimension_numbers = #tpu.dot_dimension_numbers<[1], [0], [0], [1], [0, 0, 1, 1], [], []>} : vector<64x8xbf16>, vector<8x16xbf16>, vector<64x16xf32> -> vector<64x16xf32>
    %196 = arith.addf %189, %195 : vector<64x16xf32>
    %c1_220 = arith.constant 1 : index
    %c9_221 = arith.constant 9 : index
    %c0_222 = arith.constant 0 : index
    %197 = vector.load %arg19[%c1_220, %c9_221, %c0_222] : memref<10x24x8xf32, #tpu.memory_space<vmem>>, vector<8x8x8xf32>
    %198 = vector.shape_cast %197 : vector<8x8x8xf32> to vector<64x8xf32>
    %199 = arith.truncf %198 : vector<64x8xf32> to vector<64x8xbf16>
    %c1_223 = arith.constant 1 : index
    %c2_224 = arith.constant 2 : index
    %c0_225 = arith.constant 0 : index
    %c0_226 = arith.constant 0 : index
    %200 = vector.load %arg6[%c1_223, %c2_224, %c0_225, %c0_226] : memref<3x3x8x16xbf16, #tpu.memory_space<vmem>>, vector<1x1x8x16xbf16>
    %201 = vector.shape_cast %200 : vector<1x1x8x16xbf16> to vector<8x16xbf16>
    %cst_227 = arith.constant dense<0.000000e+00> : vector<64x16xf32>
    %202 = tpu.matmul %199, %201, %cst_227 {dimension_numbers = #tpu.dot_dimension_numbers<[1], [0], [0], [1], [0, 0, 1, 1], [], []>} : vector<64x8xbf16>, vector<8x16xbf16>, vector<64x16xf32> -> vector<64x16xf32>
    %203 = arith.addf %196, %202 : vector<64x16xf32>
    %c2_228 = arith.constant 2 : index
    %c7_229 = arith.constant 7 : index
    %c0_230 = arith.constant 0 : index
    %204 = vector.load %arg19[%c2_228, %c7_229, %c0_230] : memref<10x24x8xf32, #tpu.memory_space<vmem>>, vector<8x8x8xf32>
    %205 = vector.shape_cast %204 : vector<8x8x8xf32> to vector<64x8xf32>
    %206 = arith.truncf %205 : vector<64x8xf32> to vector<64x8xbf16>
    %c2_231 = arith.constant 2 : index
    %c0_232 = arith.constant 0 : index
    %c0_233 = arith.constant 0 : index
    %c0_234 = arith.constant 0 : index
    %207 = vector.load %arg6[%c2_231, %c0_232, %c0_233, %c0_234] : memref<3x3x8x16xbf16, #tpu.memory_space<vmem>>, vector<1x1x8x16xbf16>
    %208 = vector.shape_cast %207 : vector<1x1x8x16xbf16> to vector<8x16xbf16>
    %cst_235 = arith.constant dense<0.000000e+00> : vector<64x16xf32>
    %209 = tpu.matmul %206, %208, %cst_235 {dimension_numbers = #tpu.dot_dimension_numbers<[1], [0], [0], [1], [0, 0, 1, 1], [], []>} : vector<64x8xbf16>, vector<8x16xbf16>, vector<64x16xf32> -> vector<64x16xf32>
    %210 = arith.addf %203, %209 : vector<64x16xf32>
    %c2_236 = arith.constant 2 : index
    %c8_237 = arith.constant 8 : index
    %c0_238 = arith.constant 0 : index
    %211 = vector.load %arg19[%c2_236, %c8_237, %c0_238] : memref<10x24x8xf32, #tpu.memory_space<vmem>>, vector<8x8x8xf32>
    %212 = vector.shape_cast %211 : vector<8x8x8xf32> to vector<64x8xf32>
    %213 = arith.truncf %212 : vector<64x8xf32> to vector<64x8xbf16>
    %c2_239 = arith.constant 2 : index
    %c1_240 = arith.constant 1 : index
    %c0_241 = arith.constant 0 : index
    %c0_242 = arith.constant 0 : index
    %214 = vector.load %arg6[%c2_239, %c1_240, %c0_241, %c0_242] : memref<3x3x8x16xbf16, #tpu.memory_space<vmem>>, vector<1x1x8x16xbf16>
    %215 = vector.shape_cast %214 : vector<1x1x8x16xbf16> to vector<8x16xbf16>
    %cst_243 = arith.constant dense<0.000000e+00> : vector<64x16xf32>
    %216 = tpu.matmul %213, %215, %cst_243 {dimension_numbers = #tpu.dot_dimension_numbers<[1], [0], [0], [1], [0, 0, 1, 1], [], []>} : vector<64x8xbf16>, vector<8x16xbf16>, vector<64x16xf32> -> vector<64x16xf32>
    %217 = arith.addf %210, %216 : vector<64x16xf32>
    %c2_244 = arith.constant 2 : index
    %c9_245 = arith.constant 9 : index
    %c0_246 = arith.constant 0 : index
    %218 = vector.load %arg19[%c2_244, %c9_245, %c0_246] : memref<10x24x8xf32, #tpu.memory_space<vmem>>, vector<8x8x8xf32>
    %219 = vector.shape_cast %218 : vector<8x8x8xf32> to vector<64x8xf32>
    %220 = arith.truncf %219 : vector<64x8xf32> to vector<64x8xbf16>
    %c2_247 = arith.constant 2 : index
    %c2_248 = arith.constant 2 : index
    %c0_249 = arith.constant 0 : index
    %c0_250 = arith.constant 0 : index
    %221 = vector.load %arg6[%c2_247, %c2_248, %c0_249, %c0_250] : memref<3x3x8x16xbf16, #tpu.memory_space<vmem>>, vector<1x1x8x16xbf16>
    %222 = vector.shape_cast %221 : vector<1x1x8x16xbf16> to vector<8x16xbf16>
    %cst_251 = arith.constant dense<0.000000e+00> : vector<64x16xf32>
    %223 = tpu.matmul %220, %222, %cst_251 {dimension_numbers = #tpu.dot_dimension_numbers<[1], [0], [0], [1], [0, 0, 1, 1], [], []>} : vector<64x8xbf16>, vector<8x16xbf16>, vector<64x16xf32> -> vector<64x16xf32>
    %224 = arith.addf %217, %223 : vector<64x16xf32>
    %c0_252 = arith.constant 0 : index
    %c0_253 = arith.constant 0 : index
    %225 = vector.load %arg7[%c0_252, %c0_253] : memref<1x16xf32, #tpu.memory_space<vmem>>, vector<1x16xf32>
    %226 = vector.broadcast %225 : vector<1x16xf32> to vector<64x16xf32>
    %227 = arith.addf %224, %226 : vector<64x16xf32>
    %cst_254 = arith.constant 0.000000e+00 : f32
    %228 = vector.broadcast %cst_254 : f32 to vector<64x16xf32>
    %229 = arith.maximumf %227, %228 : vector<64x16xf32>
    %230 = vector.shape_cast %229 : vector<64x16xf32> to vector<8x8x16xf32>
    %cst_255 = arith.constant 0.000000e+00 : f32
    %231 = vector.broadcast %cst_255 : f32 to vector<10x24x16xf32>
    %c0_256 = arith.constant 0 : index
    %c0_257 = arith.constant 0 : index
    %c0_258 = arith.constant 0 : index
    %232 = vector.load %arg20[%c0_256, %c0_257, %c0_258] : memref<10x24x16xf32, #tpu.memory_space<vmem>>, vector<10x24x16xf32>
    tpu.vector_store %arg20[%c0_256, %c0_257, %c0_258], %231 {strides = array<i32>} : memref<10x24x16xf32, #tpu.memory_space<vmem>>, vector<10x24x16xf32>,
    %c1_259 = arith.constant 1 : index
    %c8_260 = arith.constant 8 : index
    %c0_261 = arith.constant 0 : index
    %233 = vector.load %arg20[%c1_259, %c8_260, %c0_261] : memref<10x24x16xf32, #tpu.memory_space<vmem>>, vector<8x8x16xf32>
    tpu.vector_store %arg20[%c1_259, %c8_260, %c0_261], %230 {strides = array<i32>} : memref<10x24x16xf32, #tpu.memory_space<vmem>>, vector<8x8x16xf32>,
    %cst_262 = arith.constant 0.000000e+00 : f32
    %234 = vector.broadcast %cst_262 : f32 to vector<64x16xf32>
    %c0_263 = arith.constant 0 : index
    %c7_264 = arith.constant 7 : index
    %c0_265 = arith.constant 0 : index
    %235 = vector.load %arg20[%c0_263, %c7_264, %c0_265] : memref<10x24x16xf32, #tpu.memory_space<vmem>>, vector<8x8x16xf32>
    %236 = vector.shape_cast %235 : vector<8x8x16xf32> to vector<64x16xf32>
    %237 = arith.truncf %236 : vector<64x16xf32> to vector<64x16xbf16>
    %c0_266 = arith.constant 0 : index
    %c0_267 = arith.constant 0 : index
    %c0_268 = arith.constant 0 : index
    %c0_269 = arith.constant 0 : index
    %238 = vector.load %arg8[%c0_266, %c0_267, %c0_268, %c0_269] : memref<3x3x16x16xbf16, #tpu.memory_space<vmem>>, vector<1x1x16x16xbf16>
    %239 = vector.shape_cast %238 : vector<1x1x16x16xbf16> to vector<16x16xbf16>
    %cst_270 = arith.constant dense<0.000000e+00> : vector<64x16xf32>
    %240 = tpu.matmul %237, %239, %cst_270 {dimension_numbers = #tpu.dot_dimension_numbers<[1], [0], [0], [1], [0, 0, 1, 1], [], []>} : vector<64x16xbf16>, vector<16x16xbf16>, vector<64x16xf32> -> vector<64x16xf32>
    %241 = arith.addf %234, %240 : vector<64x16xf32>
    %c0_271 = arith.constant 0 : index
    %c8_272 = arith.constant 8 : index
    %c0_273 = arith.constant 0 : index
    %242 = vector.load %arg20[%c0_271, %c8_272, %c0_273] : memref<10x24x16xf32, #tpu.memory_space<vmem>>, vector<8x8x16xf32>
    %243 = vector.shape_cast %242 : vector<8x8x16xf32> to vector<64x16xf32>
    %244 = arith.truncf %243 : vector<64x16xf32> to vector<64x16xbf16>
    %c0_274 = arith.constant 0 : index
    %c1_275 = arith.constant 1 : index
    %c0_276 = arith.constant 0 : index
    %c0_277 = arith.constant 0 : index
    %245 = vector.load %arg8[%c0_274, %c1_275, %c0_276, %c0_277] : memref<3x3x16x16xbf16, #tpu.memory_space<vmem>>, vector<1x1x16x16xbf16>
    %246 = vector.shape_cast %245 : vector<1x1x16x16xbf16> to vector<16x16xbf16>
    %cst_278 = arith.constant dense<0.000000e+00> : vector<64x16xf32>
    %247 = tpu.matmul %244, %246, %cst_278 {dimension_numbers = #tpu.dot_dimension_numbers<[1], [0], [0], [1], [0, 0, 1, 1], [], []>} : vector<64x16xbf16>, vector<16x16xbf16>, vector<64x16xf32> -> vector<64x16xf32>
    %248 = arith.addf %241, %247 : vector<64x16xf32>
    %c0_279 = arith.constant 0 : index
    %c9_280 = arith.constant 9 : index
    %c0_281 = arith.constant 0 : index
    %249 = vector.load %arg20[%c0_279, %c9_280, %c0_281] : memref<10x24x16xf32, #tpu.memory_space<vmem>>, vector<8x8x16xf32>
    %250 = vector.shape_cast %249 : vector<8x8x16xf32> to vector<64x16xf32>
    %251 = arith.truncf %250 : vector<64x16xf32> to vector<64x16xbf16>
    %c0_282 = arith.constant 0 : index
    %c2_283 = arith.constant 2 : index
    %c0_284 = arith.constant 0 : index
    %c0_285 = arith.constant 0 : index
    %252 = vector.load %arg8[%c0_282, %c2_283, %c0_284, %c0_285] : memref<3x3x16x16xbf16, #tpu.memory_space<vmem>>, vector<1x1x16x16xbf16>
    %253 = vector.shape_cast %252 : vector<1x1x16x16xbf16> to vector<16x16xbf16>
    %cst_286 = arith.constant dense<0.000000e+00> : vector<64x16xf32>
    %254 = tpu.matmul %251, %253, %cst_286 {dimension_numbers = #tpu.dot_dimension_numbers<[1], [0], [0], [1], [0, 0, 1, 1], [], []>} : vector<64x16xbf16>, vector<16x16xbf16>, vector<64x16xf32> -> vector<64x16xf32>
    %255 = arith.addf %248, %254 : vector<64x16xf32>
    %c1_287 = arith.constant 1 : index
    %c7_288 = arith.constant 7 : index
    %c0_289 = arith.constant 0 : index
    %256 = vector.load %arg20[%c1_287, %c7_288, %c0_289] : memref<10x24x16xf32, #tpu.memory_space<vmem>>, vector<8x8x16xf32>
    %257 = vector.shape_cast %256 : vector<8x8x16xf32> to vector<64x16xf32>
    %258 = arith.truncf %257 : vector<64x16xf32> to vector<64x16xbf16>
    %c1_290 = arith.constant 1 : index
    %c0_291 = arith.constant 0 : index
    %c0_292 = arith.constant 0 : index
    %c0_293 = arith.constant 0 : index
    %259 = vector.load %arg8[%c1_290, %c0_291, %c0_292, %c0_293] : memref<3x3x16x16xbf16, #tpu.memory_space<vmem>>, vector<1x1x16x16xbf16>
    %260 = vector.shape_cast %259 : vector<1x1x16x16xbf16> to vector<16x16xbf16>
    %cst_294 = arith.constant dense<0.000000e+00> : vector<64x16xf32>
    %261 = tpu.matmul %258, %260, %cst_294 {dimension_numbers = #tpu.dot_dimension_numbers<[1], [0], [0], [1], [0, 0, 1, 1], [], []>} : vector<64x16xbf16>, vector<16x16xbf16>, vector<64x16xf32> -> vector<64x16xf32>
    %262 = arith.addf %255, %261 : vector<64x16xf32>
    %c1_295 = arith.constant 1 : index
    %c8_296 = arith.constant 8 : index
    %c0_297 = arith.constant 0 : index
    %263 = vector.load %arg20[%c1_295, %c8_296, %c0_297] : memref<10x24x16xf32, #tpu.memory_space<vmem>>, vector<8x8x16xf32>
    %264 = vector.shape_cast %263 : vector<8x8x16xf32> to vector<64x16xf32>
    %265 = arith.truncf %264 : vector<64x16xf32> to vector<64x16xbf16>
    %c1_298 = arith.constant 1 : index
    %c1_299 = arith.constant 1 : index
    %c0_300 = arith.constant 0 : index
    %c0_301 = arith.constant 0 : index
    %266 = vector.load %arg8[%c1_298, %c1_299, %c0_300, %c0_301] : memref<3x3x16x16xbf16, #tpu.memory_space<vmem>>, vector<1x1x16x16xbf16>
    %267 = vector.shape_cast %266 : vector<1x1x16x16xbf16> to vector<16x16xbf16>
    %cst_302 = arith.constant dense<0.000000e+00> : vector<64x16xf32>
    %268 = tpu.matmul %265, %267, %cst_302 {dimension_numbers = #tpu.dot_dimension_numbers<[1], [0], [0], [1], [0, 0, 1, 1], [], []>} : vector<64x16xbf16>, vector<16x16xbf16>, vector<64x16xf32> -> vector<64x16xf32>
    %269 = arith.addf %262, %268 : vector<64x16xf32>
    %c1_303 = arith.constant 1 : index
    %c9_304 = arith.constant 9 : index
    %c0_305 = arith.constant 0 : index
    %270 = vector.load %arg20[%c1_303, %c9_304, %c0_305] : memref<10x24x16xf32, #tpu.memory_space<vmem>>, vector<8x8x16xf32>
    %271 = vector.shape_cast %270 : vector<8x8x16xf32> to vector<64x16xf32>
    %272 = arith.truncf %271 : vector<64x16xf32> to vector<64x16xbf16>
    %c1_306 = arith.constant 1 : index
    %c2_307 = arith.constant 2 : index
    %c0_308 = arith.constant 0 : index
    %c0_309 = arith.constant 0 : index
    %273 = vector.load %arg8[%c1_306, %c2_307, %c0_308, %c0_309] : memref<3x3x16x16xbf16, #tpu.memory_space<vmem>>, vector<1x1x16x16xbf16>
    %274 = vector.shape_cast %273 : vector<1x1x16x16xbf16> to vector<16x16xbf16>
    %cst_310 = arith.constant dense<0.000000e+00> : vector<64x16xf32>
    %275 = tpu.matmul %272, %274, %cst_310 {dimension_numbers = #tpu.dot_dimension_numbers<[1], [0], [0], [1], [0, 0, 1, 1], [], []>} : vector<64x16xbf16>, vector<16x16xbf16>, vector<64x16xf32> -> vector<64x16xf32>
    %276 = arith.addf %269, %275 : vector<64x16xf32>
    %c2_311 = arith.constant 2 : index
    %c7_312 = arith.constant 7 : index
    %c0_313 = arith.constant 0 : index
    %277 = vector.load %arg20[%c2_311, %c7_312, %c0_313] : memref<10x24x16xf32, #tpu.memory_space<vmem>>, vector<8x8x16xf32>
    %278 = vector.shape_cast %277 : vector<8x8x16xf32> to vector<64x16xf32>
    %279 = arith.truncf %278 : vector<64x16xf32> to vector<64x16xbf16>
    %c2_314 = arith.constant 2 : index
    %c0_315 = arith.constant 0 : index
    %c0_316 = arith.constant 0 : index
    %c0_317 = arith.constant 0 : index
    %280 = vector.load %arg8[%c2_314, %c0_315, %c0_316, %c0_317] : memref<3x3x16x16xbf16, #tpu.memory_space<vmem>>, vector<1x1x16x16xbf16>
    %281 = vector.shape_cast %280 : vector<1x1x16x16xbf16> to vector<16x16xbf16>
    %cst_318 = arith.constant dense<0.000000e+00> : vector<64x16xf32>
    %282 = tpu.matmul %279, %281, %cst_318 {dimension_numbers = #tpu.dot_dimension_numbers<[1], [0], [0], [1], [0, 0, 1, 1], [], []>} : vector<64x16xbf16>, vector<16x16xbf16>, vector<64x16xf32> -> vector<64x16xf32>
    %283 = arith.addf %276, %282 : vector<64x16xf32>
    %c2_319 = arith.constant 2 : index
    %c8_320 = arith.constant 8 : index
    %c0_321 = arith.constant 0 : index
    %284 = vector.load %arg20[%c2_319, %c8_320, %c0_321] : memref<10x24x16xf32, #tpu.memory_space<vmem>>, vector<8x8x16xf32>
    %285 = vector.shape_cast %284 : vector<8x8x16xf32> to vector<64x16xf32>
    %286 = arith.truncf %285 : vector<64x16xf32> to vector<64x16xbf16>
    %c2_322 = arith.constant 2 : index
    %c1_323 = arith.constant 1 : index
    %c0_324 = arith.constant 0 : index
    %c0_325 = arith.constant 0 : index
    %287 = vector.load %arg8[%c2_322, %c1_323, %c0_324, %c0_325] : memref<3x3x16x16xbf16, #tpu.memory_space<vmem>>, vector<1x1x16x16xbf16>
    %288 = vector.shape_cast %287 : vector<1x1x16x16xbf16> to vector<16x16xbf16>
    %cst_326 = arith.constant dense<0.000000e+00> : vector<64x16xf32>
    %289 = tpu.matmul %286, %288, %cst_326 {dimension_numbers = #tpu.dot_dimension_numbers<[1], [0], [0], [1], [0, 0, 1, 1], [], []>} : vector<64x16xbf16>, vector<16x16xbf16>, vector<64x16xf32> -> vector<64x16xf32>
    %290 = arith.addf %283, %289 : vector<64x16xf32>
    %c2_327 = arith.constant 2 : index
    %c9_328 = arith.constant 9 : index
    %c0_329 = arith.constant 0 : index
    %291 = vector.load %arg20[%c2_327, %c9_328, %c0_329] : memref<10x24x16xf32, #tpu.memory_space<vmem>>, vector<8x8x16xf32>
    %292 = vector.shape_cast %291 : vector<8x8x16xf32> to vector<64x16xf32>
    %293 = arith.truncf %292 : vector<64x16xf32> to vector<64x16xbf16>
    %c2_330 = arith.constant 2 : index
    %c2_331 = arith.constant 2 : index
    %c0_332 = arith.constant 0 : index
    %c0_333 = arith.constant 0 : index
    %294 = vector.load %arg8[%c2_330, %c2_331, %c0_332, %c0_333] : memref<3x3x16x16xbf16, #tpu.memory_space<vmem>>, vector<1x1x16x16xbf16>
    %295 = vector.shape_cast %294 : vector<1x1x16x16xbf16> to vector<16x16xbf16>
    %cst_334 = arith.constant dense<0.000000e+00> : vector<64x16xf32>
    %296 = tpu.matmul %293, %295, %cst_334 {dimension_numbers = #tpu.dot_dimension_numbers<[1], [0], [0], [1], [0, 0, 1, 1], [], []>} : vector<64x16xbf16>, vector<16x16xbf16>, vector<64x16xf32> -> vector<64x16xf32>
    %297 = arith.addf %290, %296 : vector<64x16xf32>
    %c0_335 = arith.constant 0 : index
    %c0_336 = arith.constant 0 : index
    %298 = vector.load %arg9[%c0_335, %c0_336] : memref<1x16xf32, #tpu.memory_space<vmem>>, vector<1x16xf32>
    %299 = vector.broadcast %298 : vector<1x16xf32> to vector<64x16xf32>
    %300 = arith.addf %297, %299 : vector<64x16xf32>
    %cst_337 = arith.constant 0.000000e+00 : f32
    %301 = vector.broadcast %cst_337 : f32 to vector<64x16xf32>
    %302 = arith.maximumf %300, %301 : vector<64x16xf32>
    %303 = vector.shape_cast %302 : vector<64x16xf32> to vector<8x8x16xf32>
    %c0_338 = arith.constant 0 : index
    %c0_339 = arith.constant 0 : index
    %c0_340 = arith.constant 0 : index
    %304 = vector.load %arg22[%c0_338, %c0_339, %c0_340] : memref<8x8x16xf32, #tpu.memory_space<vmem>>, vector<8x8x16xf32>
    tpu.vector_store %arg22[%c0_338, %c0_339, %c0_340], %303 {strides = array<i32>} : memref<8x8x16xf32, #tpu.memory_space<vmem>>, vector<8x8x16xf32>,
    %c0_341 = arith.constant 0 : index
    %c0_342 = arith.constant 0 : index
    %c0_343 = arith.constant 0 : index
    %305 = tpu.strided_load %arg22[%c0_341, %c0_342, %c0_343] {strides = array<i32: 1, 2, 1>} : memref<8x8x16xf32, #tpu.memory_space<vmem>>, vector<8x4x16xf32>
    %c0_344 = arith.constant 0 : index
    %c1_345 = arith.constant 1 : index
    %c0_346 = arith.constant 0 : index
    %306 = tpu.strided_load %arg22[%c0_344, %c1_345, %c0_346] {strides = array<i32: 1, 2, 1>} : memref<8x8x16xf32, #tpu.memory_space<vmem>>, vector<8x4x16xf32>
    %307 = arith.maximumf %305, %306 : vector<8x4x16xf32>
    %308 = vector.shape_cast %307 : vector<8x4x16xf32> to vector<4x2x4x16xf32>
    %309 = vector.extract_strided_slice %308 {offsets = [0, 0, 0, 0], sizes = [4, 1, 4, 16], strides = [1, 1, 1, 1]} : vector<4x2x4x16xf32> to vector<4x1x4x16xf32>
    %310 = vector.shape_cast %309 : vector<4x1x4x16xf32> to vector<4x4x16xf32>
    %311 = vector.extract_strided_slice %308 {offsets = [0, 1, 0, 0], sizes = [4, 1, 4, 16], strides = [1, 1, 1, 1]} : vector<4x2x4x16xf32> to vector<4x1x4x16xf32>
    %312 = vector.shape_cast %311 : vector<4x1x4x16xf32> to vector<4x4x16xf32>
    %313 = arith.maximumf %310, %312 : vector<4x4x16xf32>
    %c0_347 = arith.constant 0 : index
    %c0_348 = arith.constant 0 : index
    %c0_349 = arith.constant 0 : index
    %314 = vector.load %arg23[%c0_347, %c0_348, %c0_349] : memref<4x4x16xf32, #tpu.memory_space<vmem>>, vector<4x4x16xf32>
    tpu.vector_store %arg23[%c0_347, %c0_348, %c0_349], %313 {strides = array<i32>} : memref<4x4x16xf32, #tpu.memory_space<vmem>>, vector<4x4x16xf32>,
    %cst_350 = arith.constant 0.000000e+00 : f32
    %315 = vector.broadcast %cst_350 : f32 to vector<1x64xf32>
    %c0_351 = arith.constant 0 : index
    %c0_352 = arith.constant 0 : index
    %c0_353 = arith.constant 0 : index
    %316 = vector.load %arg23[%c0_351, %c0_352, %c0_353] : memref<4x4x16xf32, #tpu.memory_space<vmem>>, vector<1x1x16xf32>
    %317 = vector.shape_cast %316 : vector<1x1x16xf32> to vector<1x16xf32>
    %318 = arith.truncf %317 : vector<1x16xf32> to vector<1x16xbf16>
    %c0_354 = arith.constant 0 : index
    %c0_355 = arith.constant 0 : index
    %c0_356 = arith.constant 0 : index
    %319 = vector.load %arg10[%c0_354, %c0_355, %c0_356] : memref<16x16x64xbf16, #tpu.memory_space<vmem>>, vector<1x16x64xbf16>
    %320 = vector.shape_cast %319 : vector<1x16x64xbf16> to vector<16x64xbf16>
    %cst_357 = arith.constant dense<0.000000e+00> : vector<1x64xf32>
    %321 = tpu.matmul %318, %320, %cst_357 {dimension_numbers = #tpu.dot_dimension_numbers<[1], [0], [0], [1], [0, 0, 1, 1], [], []>} : vector<1x16xbf16>, vector<16x64xbf16>, vector<1x64xf32> -> vector<1x64xf32>
    %322 = arith.addf %315, %321 : vector<1x64xf32>
    %c0_358 = arith.constant 0 : index
    %c1_359 = arith.constant 1 : index
    %c0_360 = arith.constant 0 : index
    %323 = vector.load %arg23[%c0_358, %c1_359, %c0_360] : memref<4x4x16xf32, #tpu.memory_space<vmem>>, vector<1x1x16xf32>
    %324 = vector.shape_cast %323 : vector<1x1x16xf32> to vector<1x16xf32>
    %325 = arith.truncf %324 : vector<1x16xf32> to vector<1x16xbf16>
    %c1_361 = arith.constant 1 : index
    %c0_362 = arith.constant 0 : index
    %c0_363 = arith.constant 0 : index
    %326 = vector.load %arg10[%c1_361, %c0_362, %c0_363] : memref<16x16x64xbf16, #tpu.memory_space<vmem>>, vector<1x16x64xbf16>
    %327 = vector.shape_cast %326 : vector<1x16x64xbf16> to vector<16x64xbf16>
    %cst_364 = arith.constant dense<0.000000e+00> : vector<1x64xf32>
    %328 = tpu.matmul %325, %327, %cst_364 {dimension_numbers = #tpu.dot_dimension_numbers<[1], [0], [0], [1], [0, 0, 1, 1], [], []>} : vector<1x16xbf16>, vector<16x64xbf16>, vector<1x64xf32> -> vector<1x64xf32>
    %329 = arith.addf %322, %328 : vector<1x64xf32>
    %c0_365 = arith.constant 0 : index
    %c2_366 = arith.constant 2 : index
    %c0_367 = arith.constant 0 : index
    %330 = vector.load %arg23[%c0_365, %c2_366, %c0_367] : memref<4x4x16xf32, #tpu.memory_space<vmem>>, vector<1x1x16xf32>
    %331 = vector.shape_cast %330 : vector<1x1x16xf32> to vector<1x16xf32>
    %332 = arith.truncf %331 : vector<1x16xf32> to vector<1x16xbf16>
    %c2_368 = arith.constant 2 : index
    %c0_369 = arith.constant 0 : index
    %c0_370 = arith.constant 0 : index
    %333 = vector.load %arg10[%c2_368, %c0_369, %c0_370] : memref<16x16x64xbf16, #tpu.memory_space<vmem>>, vector<1x16x64xbf16>
    %334 = vector.shape_cast %333 : vector<1x16x64xbf16> to vector<16x64xbf16>
    %cst_371 = arith.constant dense<0.000000e+00> : vector<1x64xf32>
    %335 = tpu.matmul %332, %334, %cst_371 {dimension_numbers = #tpu.dot_dimension_numbers<[1], [0], [0], [1], [0, 0, 1, 1], [], []>} : vector<1x16xbf16>, vector<16x64xbf16>, vector<1x64xf32> -> vector<1x64xf32>
    %336 = arith.addf %329, %335 : vector<1x64xf32>
    %c0_372 = arith.constant 0 : index
    %c3 = arith.constant 3 : index
    %c0_373 = arith.constant 0 : index
    %337 = vector.load %arg23[%c0_372, %c3, %c0_373] : memref<4x4x16xf32, #tpu.memory_space<vmem>>, vector<1x1x16xf32>
    %338 = vector.shape_cast %337 : vector<1x1x16xf32> to vector<1x16xf32>
    %339 = arith.truncf %338 : vector<1x16xf32> to vector<1x16xbf16>
    %c3_374 = arith.constant 3 : index
    %c0_375 = arith.constant 0 : index
    %c0_376 = arith.constant 0 : index
    %340 = vector.load %arg10[%c3_374, %c0_375, %c0_376] : memref<16x16x64xbf16, #tpu.memory_space<vmem>>, vector<1x16x64xbf16>
    %341 = vector.shape_cast %340 : vector<1x16x64xbf16> to vector<16x64xbf16>
    %cst_377 = arith.constant dense<0.000000e+00> : vector<1x64xf32>
    %342 = tpu.matmul %339, %341, %cst_377 {dimension_numbers = #tpu.dot_dimension_numbers<[1], [0], [0], [1], [0, 0, 1, 1], [], []>} : vector<1x16xbf16>, vector<16x64xbf16>, vector<1x64xf32> -> vector<1x64xf32>
    %343 = arith.addf %336, %342 : vector<1x64xf32>
    %c1_378 = arith.constant 1 : index
    %c0_379 = arith.constant 0 : index
    %c0_380 = arith.constant 0 : index
    %344 = vector.load %arg23[%c1_378, %c0_379, %c0_380] : memref<4x4x16xf32, #tpu.memory_space<vmem>>, vector<1x1x16xf32>
    %345 = vector.shape_cast %344 : vector<1x1x16xf32> to vector<1x16xf32>
    %346 = arith.truncf %345 : vector<1x16xf32> to vector<1x16xbf16>
    %c4 = arith.constant 4 : index
    %c0_381 = arith.constant 0 : index
    %c0_382 = arith.constant 0 : index
    %347 = vector.load %arg10[%c4, %c0_381, %c0_382] : memref<16x16x64xbf16, #tpu.memory_space<vmem>>, vector<1x16x64xbf16>
    %348 = vector.shape_cast %347 : vector<1x16x64xbf16> to vector<16x64xbf16>
    %cst_383 = arith.constant dense<0.000000e+00> : vector<1x64xf32>
    %349 = tpu.matmul %346, %348, %cst_383 {dimension_numbers = #tpu.dot_dimension_numbers<[1], [0], [0], [1], [0, 0, 1, 1], [], []>} : vector<1x16xbf16>, vector<16x64xbf16>, vector<1x64xf32> -> vector<1x64xf32>
    %350 = arith.addf %343, %349 : vector<1x64xf32>
    %c1_384 = arith.constant 1 : index
    %c1_385 = arith.constant 1 : index
    %c0_386 = arith.constant 0 : index
    %351 = vector.load %arg23[%c1_384, %c1_385, %c0_386] : memref<4x4x16xf32, #tpu.memory_space<vmem>>, vector<1x1x16xf32>
    %352 = vector.shape_cast %351 : vector<1x1x16xf32> to vector<1x16xf32>
    %353 = arith.truncf %352 : vector<1x16xf32> to vector<1x16xbf16>
    %c5 = arith.constant 5 : index
    %c0_387 = arith.constant 0 : index
    %c0_388 = arith.constant 0 : index
    %354 = vector.load %arg10[%c5, %c0_387, %c0_388] : memref<16x16x64xbf16, #tpu.memory_space<vmem>>, vector<1x16x64xbf16>
    %355 = vector.shape_cast %354 : vector<1x16x64xbf16> to vector<16x64xbf16>
    %cst_389 = arith.constant dense<0.000000e+00> : vector<1x64xf32>
    %356 = tpu.matmul %353, %355, %cst_389 {dimension_numbers = #tpu.dot_dimension_numbers<[1], [0], [0], [1], [0, 0, 1, 1], [], []>} : vector<1x16xbf16>, vector<16x64xbf16>, vector<1x64xf32> -> vector<1x64xf32>
    %357 = arith.addf %350, %356 : vector<1x64xf32>
    %c1_390 = arith.constant 1 : index
    %c2_391 = arith.constant 2 : index
    %c0_392 = arith.constant 0 : index
    %358 = vector.load %arg23[%c1_390, %c2_391, %c0_392] : memref<4x4x16xf32, #tpu.memory_space<vmem>>, vector<1x1x16xf32>
    %359 = vector.shape_cast %358 : vector<1x1x16xf32> to vector<1x16xf32>
    %360 = arith.truncf %359 : vector<1x16xf32> to vector<1x16xbf16>
    %c6 = arith.constant 6 : index
    %c0_393 = arith.constant 0 : index
    %c0_394 = arith.constant 0 : index
    %361 = vector.load %arg10[%c6, %c0_393, %c0_394] : memref<16x16x64xbf16, #tpu.memory_space<vmem>>, vector<1x16x64xbf16>
    %362 = vector.shape_cast %361 : vector<1x16x64xbf16> to vector<16x64xbf16>
    %cst_395 = arith.constant dense<0.000000e+00> : vector<1x64xf32>
    %363 = tpu.matmul %360, %362, %cst_395 {dimension_numbers = #tpu.dot_dimension_numbers<[1], [0], [0], [1], [0, 0, 1, 1], [], []>} : vector<1x16xbf16>, vector<16x64xbf16>, vector<1x64xf32> -> vector<1x64xf32>
    %364 = arith.addf %357, %363 : vector<1x64xf32>
    %c1_396 = arith.constant 1 : index
    %c3_397 = arith.constant 3 : index
    %c0_398 = arith.constant 0 : index
    %365 = vector.load %arg23[%c1_396, %c3_397, %c0_398] : memref<4x4x16xf32, #tpu.memory_space<vmem>>, vector<1x1x16xf32>
    %366 = vector.shape_cast %365 : vector<1x1x16xf32> to vector<1x16xf32>
    %367 = arith.truncf %366 : vector<1x16xf32> to vector<1x16xbf16>
    %c7_399 = arith.constant 7 : index
    %c0_400 = arith.constant 0 : index
    %c0_401 = arith.constant 0 : index
    %368 = vector.load %arg10[%c7_399, %c0_400, %c0_401] : memref<16x16x64xbf16, #tpu.memory_space<vmem>>, vector<1x16x64xbf16>
    %369 = vector.shape_cast %368 : vector<1x16x64xbf16> to vector<16x64xbf16>
    %cst_402 = arith.constant dense<0.000000e+00> : vector<1x64xf32>
    %370 = tpu.matmul %367, %369, %cst_402 {dimension_numbers = #tpu.dot_dimension_numbers<[1], [0], [0], [1], [0, 0, 1, 1], [], []>} : vector<1x16xbf16>, vector<16x64xbf16>, vector<1x64xf32> -> vector<1x64xf32>
    %371 = arith.addf %364, %370 : vector<1x64xf32>
    %c2_403 = arith.constant 2 : index
    %c0_404 = arith.constant 0 : index
    %c0_405 = arith.constant 0 : index
    %372 = vector.load %arg23[%c2_403, %c0_404, %c0_405] : memref<4x4x16xf32, #tpu.memory_space<vmem>>, vector<1x1x16xf32>
    %373 = vector.shape_cast %372 : vector<1x1x16xf32> to vector<1x16xf32>
    %374 = arith.truncf %373 : vector<1x16xf32> to vector<1x16xbf16>
    %c8_406 = arith.constant 8 : index
    %c0_407 = arith.constant 0 : index
    %c0_408 = arith.constant 0 : index
    %375 = vector.load %arg10[%c8_406, %c0_407, %c0_408] : memref<16x16x64xbf16, #tpu.memory_space<vmem>>, vector<1x16x64xbf16>
    %376 = vector.shape_cast %375 : vector<1x16x64xbf16> to vector<16x64xbf16>
    %cst_409 = arith.constant dense<0.000000e+00> : vector<1x64xf32>
    %377 = tpu.matmul %374, %376, %cst_409 {dimension_numbers = #tpu.dot_dimension_numbers<[1], [0], [0], [1], [0, 0, 1, 1], [], []>} : vector<1x16xbf16>, vector<16x64xbf16>, vector<1x64xf32> -> vector<1x64xf32>
    %378 = arith.addf %371, %377 : vector<1x64xf32>
    %c2_410 = arith.constant 2 : index
    %c1_411 = arith.constant 1 : index
    %c0_412 = arith.constant 0 : index
    %379 = vector.load %arg23[%c2_410, %c1_411, %c0_412] : memref<4x4x16xf32, #tpu.memory_space<vmem>>, vector<1x1x16xf32>
    %380 = vector.shape_cast %379 : vector<1x1x16xf32> to vector<1x16xf32>
    %381 = arith.truncf %380 : vector<1x16xf32> to vector<1x16xbf16>
    %c9_413 = arith.constant 9 : index
    %c0_414 = arith.constant 0 : index
    %c0_415 = arith.constant 0 : index
    %382 = vector.load %arg10[%c9_413, %c0_414, %c0_415] : memref<16x16x64xbf16, #tpu.memory_space<vmem>>, vector<1x16x64xbf16>
    %383 = vector.shape_cast %382 : vector<1x16x64xbf16> to vector<16x64xbf16>
    %cst_416 = arith.constant dense<0.000000e+00> : vector<1x64xf32>
    %384 = tpu.matmul %381, %383, %cst_416 {dimension_numbers = #tpu.dot_dimension_numbers<[1], [0], [0], [1], [0, 0, 1, 1], [], []>} : vector<1x16xbf16>, vector<16x64xbf16>, vector<1x64xf32> -> vector<1x64xf32>
    %385 = arith.addf %378, %384 : vector<1x64xf32>
    %c2_417 = arith.constant 2 : index
    %c2_418 = arith.constant 2 : index
    %c0_419 = arith.constant 0 : index
    %386 = vector.load %arg23[%c2_417, %c2_418, %c0_419] : memref<4x4x16xf32, #tpu.memory_space<vmem>>, vector<1x1x16xf32>
    %387 = vector.shape_cast %386 : vector<1x1x16xf32> to vector<1x16xf32>
    %388 = arith.truncf %387 : vector<1x16xf32> to vector<1x16xbf16>
    %c10 = arith.constant 10 : index
    %c0_420 = arith.constant 0 : index
    %c0_421 = arith.constant 0 : index
    %389 = vector.load %arg10[%c10, %c0_420, %c0_421] : memref<16x16x64xbf16, #tpu.memory_space<vmem>>, vector<1x16x64xbf16>
    %390 = vector.shape_cast %389 : vector<1x16x64xbf16> to vector<16x64xbf16>
    %cst_422 = arith.constant dense<0.000000e+00> : vector<1x64xf32>
    %391 = tpu.matmul %388, %390, %cst_422 {dimension_numbers = #tpu.dot_dimension_numbers<[1], [0], [0], [1], [0, 0, 1, 1], [], []>} : vector<1x16xbf16>, vector<16x64xbf16>, vector<1x64xf32> -> vector<1x64xf32>
    %392 = arith.addf %385, %391 : vector<1x64xf32>
    %c2_423 = arith.constant 2 : index
    %c3_424 = arith.constant 3 : index
    %c0_425 = arith.constant 0 : index
    %393 = vector.load %arg23[%c2_423, %c3_424, %c0_425] : memref<4x4x16xf32, #tpu.memory_space<vmem>>, vector<1x1x16xf32>
    %394 = vector.shape_cast %393 : vector<1x1x16xf32> to vector<1x16xf32>
    %395 = arith.truncf %394 : vector<1x16xf32> to vector<1x16xbf16>
    %c11 = arith.constant 11 : index
    %c0_426 = arith.constant 0 : index
    %c0_427 = arith.constant 0 : index
    %396 = vector.load %arg10[%c11, %c0_426, %c0_427] : memref<16x16x64xbf16, #tpu.memory_space<vmem>>, vector<1x16x64xbf16>
    %397 = vector.shape_cast %396 : vector<1x16x64xbf16> to vector<16x64xbf16>
    %cst_428 = arith.constant dense<0.000000e+00> : vector<1x64xf32>
    %398 = tpu.matmul %395, %397, %cst_428 {dimension_numbers = #tpu.dot_dimension_numbers<[1], [0], [0], [1], [0, 0, 1, 1], [], []>} : vector<1x16xbf16>, vector<16x64xbf16>, vector<1x64xf32> -> vector<1x64xf32>
    %399 = arith.addf %392, %398 : vector<1x64xf32>
    %c3_429 = arith.constant 3 : index
    %c0_430 = arith.constant 0 : index
    %c0_431 = arith.constant 0 : index
    %400 = vector.load %arg23[%c3_429, %c0_430, %c0_431] : memref<4x4x16xf32, #tpu.memory_space<vmem>>, vector<1x1x16xf32>
    %401 = vector.shape_cast %400 : vector<1x1x16xf32> to vector<1x16xf32>
    %402 = arith.truncf %401 : vector<1x16xf32> to vector<1x16xbf16>
    %c12 = arith.constant 12 : index
    %c0_432 = arith.constant 0 : index
    %c0_433 = arith.constant 0 : index
    %403 = vector.load %arg10[%c12, %c0_432, %c0_433] : memref<16x16x64xbf16, #tpu.memory_space<vmem>>, vector<1x16x64xbf16>
    %404 = vector.shape_cast %403 : vector<1x16x64xbf16> to vector<16x64xbf16>
    %cst_434 = arith.constant dense<0.000000e+00> : vector<1x64xf32>
    %405 = tpu.matmul %402, %404, %cst_434 {dimension_numbers = #tpu.dot_dimension_numbers<[1], [0], [0], [1], [0, 0, 1, 1], [], []>} : vector<1x16xbf16>, vector<16x64xbf16>, vector<1x64xf32> -> vector<1x64xf32>
    %406 = arith.addf %399, %405 : vector<1x64xf32>
    %c3_435 = arith.constant 3 : index
    %c1_436 = arith.constant 1 : index
    %c0_437 = arith.constant 0 : index
    %407 = vector.load %arg23[%c3_435, %c1_436, %c0_437] : memref<4x4x16xf32, #tpu.memory_space<vmem>>, vector<1x1x16xf32>
    %408 = vector.shape_cast %407 : vector<1x1x16xf32> to vector<1x16xf32>
    %409 = arith.truncf %408 : vector<1x16xf32> to vector<1x16xbf16>
    %c13 = arith.constant 13 : index
    %c0_438 = arith.constant 0 : index
    %c0_439 = arith.constant 0 : index
    %410 = vector.load %arg10[%c13, %c0_438, %c0_439] : memref<16x16x64xbf16, #tpu.memory_space<vmem>>, vector<1x16x64xbf16>
    %411 = vector.shape_cast %410 : vector<1x16x64xbf16> to vector<16x64xbf16>
    %cst_440 = arith.constant dense<0.000000e+00> : vector<1x64xf32>
    %412 = tpu.matmul %409, %411, %cst_440 {dimension_numbers = #tpu.dot_dimension_numbers<[1], [0], [0], [1], [0, 0, 1, 1], [], []>} : vector<1x16xbf16>, vector<16x64xbf16>, vector<1x64xf32> -> vector<1x64xf32>
    %413 = arith.addf %406, %412 : vector<1x64xf32>
    %c3_441 = arith.constant 3 : index
    %c2_442 = arith.constant 2 : index
    %c0_443 = arith.constant 0 : index
    %414 = vector.load %arg23[%c3_441, %c2_442, %c0_443] : memref<4x4x16xf32, #tpu.memory_space<vmem>>, vector<1x1x16xf32>
    %415 = vector.shape_cast %414 : vector<1x1x16xf32> to vector<1x16xf32>
    %416 = arith.truncf %415 : vector<1x16xf32> to vector<1x16xbf16>
    %c14 = arith.constant 14 : index
    %c0_444 = arith.constant 0 : index
    %c0_445 = arith.constant 0 : index
    %417 = vector.load %arg10[%c14, %c0_444, %c0_445] : memref<16x16x64xbf16, #tpu.memory_space<vmem>>, vector<1x16x64xbf16>
    %418 = vector.shape_cast %417 : vector<1x16x64xbf16> to vector<16x64xbf16>
    %cst_446 = arith.constant dense<0.000000e+00> : vector<1x64xf32>
    %419 = tpu.matmul %416, %418, %cst_446 {dimension_numbers = #tpu.dot_dimension_numbers<[1], [0], [0], [1], [0, 0, 1, 1], [], []>} : vector<1x16xbf16>, vector<16x64xbf16>, vector<1x64xf32> -> vector<1x64xf32>
    %420 = arith.addf %413, %419 : vector<1x64xf32>
    %c3_447 = arith.constant 3 : index
    %c3_448 = arith.constant 3 : index
    %c0_449 = arith.constant 0 : index
    %421 = vector.load %arg23[%c3_447, %c3_448, %c0_449] : memref<4x4x16xf32, #tpu.memory_space<vmem>>, vector<1x1x16xf32>
    %422 = vector.shape_cast %421 : vector<1x1x16xf32> to vector<1x16xf32>
    %423 = arith.truncf %422 : vector<1x16xf32> to vector<1x16xbf16>
    %c15 = arith.constant 15 : index
    %c0_450 = arith.constant 0 : index
    %c0_451 = arith.constant 0 : index
    %424 = vector.load %arg10[%c15, %c0_450, %c0_451] : memref<16x16x64xbf16, #tpu.memory_space<vmem>>, vector<1x16x64xbf16>
    %425 = vector.shape_cast %424 : vector<1x16x64xbf16> to vector<16x64xbf16>
    %cst_452 = arith.constant dense<0.000000e+00> : vector<1x64xf32>
    %426 = tpu.matmul %423, %425, %cst_452 {dimension_numbers = #tpu.dot_dimension_numbers<[1], [0], [0], [1], [0, 0, 1, 1], [], []>} : vector<1x16xbf16>, vector<16x64xbf16>, vector<1x64xf32> -> vector<1x64xf32>
    %427 = arith.addf %420, %426 : vector<1x64xf32>
    %c0_453 = arith.constant 0 : index
    %c0_454 = arith.constant 0 : index
    %428 = vector.load %arg11[%c0_453, %c0_454] : memref<1x64xf32, #tpu.memory_space<vmem>>, vector<1x64xf32>
    %429 = arith.addf %427, %428 : vector<1x64xf32>
    %cst_455 = arith.constant 0.000000e+00 : f32
    %430 = vector.broadcast %cst_455 : f32 to vector<1x64xf32>
    %431 = arith.maximumf %429, %430 : vector<1x64xf32>
    %432 = arith.truncf %431 : vector<1x64xf32> to vector<1x64xbf16>
    %c0_456 = arith.constant 0 : index
    %c0_457 = arith.constant 0 : index
    %433 = vector.load %arg12[%c0_456, %c0_457] : memref<64x64xbf16, #tpu.memory_space<vmem>>, vector<64x64xbf16>
    %cst_458 = arith.constant dense<0.000000e+00> : vector<1x64xf32>
    %434 = tpu.matmul %432, %433, %cst_458 {dimension_numbers = #tpu.dot_dimension_numbers<[1], [0], [0], [1], [0, 0, 1, 1], [], []>} : vector<1x64xbf16>, vector<64x64xbf16>, vector<1x64xf32> -> vector<1x64xf32>
    %c0_459 = arith.constant 0 : index
    %c0_460 = arith.constant 0 : index
    %435 = vector.load %arg13[%c0_459, %c0_460] : memref<1x64xf32, #tpu.memory_space<vmem>>, vector<1x64xf32>
    %436 = arith.addf %434, %435 : vector<1x64xf32>
    %cst_461 = arith.constant 0.000000e+00 : f32
    %437 = vector.broadcast %cst_461 : f32 to vector<1x64xf32>
    %438 = arith.maximumf %436, %437 : vector<1x64xf32>
    %439 = arith.truncf %438 : vector<1x64xf32> to vector<1x64xbf16>
    %c0_462 = arith.constant 0 : index
    %c0_463 = arith.constant 0 : index
    %440 = vector.load %arg14[%c0_462, %c0_463] : memref<64x10xbf16, #tpu.memory_space<vmem>>, vector<64x10xbf16>
    %cst_464 = arith.constant dense<0.000000e+00> : vector<1x10xf32>
    %441 = tpu.matmul %439, %440, %cst_464 {dimension_numbers = #tpu.dot_dimension_numbers<[1], [0], [0], [1], [0, 0, 1, 1], [], []>} : vector<1x64xbf16>, vector<64x10xbf16>, vector<1x10xf32> -> vector<1x10xf32>
    %c0_465 = arith.constant 0 : index
    %c0_466 = arith.constant 0 : index
    %442 = vector.load %arg15[%c0_465, %c0_466] : memref<1x10xf32, #tpu.memory_space<vmem>>, vector<1x10xf32>
    %443 = arith.addf %441, %442 : vector<1x10xf32>
    %c0_467 = arith.constant 0 : index
    %c0_468 = arith.constant 0 : index
    %c0_469 = arith.constant 0 : index
    %444 = vector.load %arg16[%c0_467, %c0_468, %c0_469] : memref<1x1x10xf32, #tpu.memory_space<vmem>>, vector<1x1x10xf32>
    %445 = vector.shape_cast %444 : vector<1x1x10xf32> to vector<1x10xf32>
    %446 = vector.shape_cast %443 : vector<1x10xf32> to vector<1x1x10xf32>
    tpu.vector_store %arg16[%c0_467, %c0_468, %c0_469], %446 {strides = array<i32>} : memref<1x1x10xf32, #tpu.memory_space<vmem>>, vector<1x1x10xf32>,
    return
  }
  func.func @transform_0(%arg0: i32) -> (i32, i32, i32, i32) {
    %c0_i32 = arith.constant 0 : i32
    %c0_i32_0 = arith.constant 0 : i32
    %c0_i32_1 = arith.constant 0 : i32
    %c0_i32_2 = arith.constant 0 : i32
    return %arg0, %c0_i32, %c0_i32_0, %c0_i32_1 : i32, i32, i32, i32
  }
  func.func @transform_1(%arg0: i32) -> (i32, i32, i32, i32) {
    %c0_i32 = arith.constant 0 : i32
    %c0_i32_0 = arith.constant 0 : i32
    %c0_i32_1 = arith.constant 0 : i32
    %c0_i32_2 = arith.constant 0 : i32
    %c0_i32_3 = arith.constant 0 : i32
    return %c0_i32, %c0_i32_0, %c0_i32_1, %c0_i32_2 : i32, i32, i32, i32
  }
  func.func @transform_2(%arg0: i32) -> (i32, i32) {
    %c0_i32 = arith.constant 0 : i32
    %c0_i32_0 = arith.constant 0 : i32
    %c0_i32_1 = arith.constant 0 : i32
    return %c0_i32, %c0_i32_0 : i32, i32
  }
  func.func @transform_3(%arg0: i32) -> (i32, i32, i32, i32) {
    %c0_i32 = arith.constant 0 : i32
    %c0_i32_0 = arith.constant 0 : i32
    %c0_i32_1 = arith.constant 0 : i32
    %c0_i32_2 = arith.constant 0 : i32
    %c0_i32_3 = arith.constant 0 : i32
    return %c0_i32, %c0_i32_0, %c0_i32_1, %c0_i32_2 : i32, i32, i32, i32
  }
  func.func @transform_4(%arg0: i32) -> (i32, i32) {
    %c0_i32 = arith.constant 0 : i32
    %c0_i32_0 = arith.constant 0 : i32
    %c0_i32_1 = arith.constant 0 : i32
    return %c0_i32, %c0_i32_0 : i32, i32
  }
  func.func @transform_5(%arg0: i32) -> (i32, i32, i32, i32) {
    %c0_i32 = arith.constant 0 : i32
    %c0_i32_0 = arith.constant 0 : i32
    %c0_i32_1 = arith.constant 0 : i32
    %c0_i32_2 = arith.constant 0 : i32
    %c0_i32_3 = arith.constant 0 : i32
    return %c0_i32, %c0_i32_0, %c0_i32_1, %c0_i32_2 : i32, i32, i32, i32
  }
  func.func @transform_6(%arg0: i32) -> (i32, i32) {
    %c0_i32 = arith.constant 0 : i32
    %c0_i32_0 = arith.constant 0 : i32
    %c0_i32_1 = arith.constant 0 : i32
    return %c0_i32, %c0_i32_0 : i32, i32
  }
  func.func @transform_7(%arg0: i32) -> (i32, i32, i32, i32) {
    %c0_i32 = arith.constant 0 : i32
    %c0_i32_0 = arith.constant 0 : i32
    %c0_i32_1 = arith.constant 0 : i32
    %c0_i32_2 = arith.constant 0 : i32
    %c0_i32_3 = arith.constant 0 : i32
    return %c0_i32, %c0_i32_0, %c0_i32_1, %c0_i32_2 : i32, i32, i32, i32
  }
  func.func @transform_8(%arg0: i32) -> (i32, i32) {
    %c0_i32 = arith.constant 0 : i32
    %c0_i32_0 = arith.constant 0 : i32
    %c0_i32_1 = arith.constant 0 : i32
    return %c0_i32, %c0_i32_0 : i32, i32
  }
  func.func @transform_9(%arg0: i32) -> (i32, i32, i32) {
    %c0_i32 = arith.constant 0 : i32
    %c0_i32_0 = arith.constant 0 : i32
    %c0_i32_1 = arith.constant 0 : i32
    %c0_i32_2 = arith.constant 0 : i32
    return %c0_i32, %c0_i32_0, %c0_i32_1 : i32, i32, i32
  }
  func.func @transform_10(%arg0: i32) -> (i32, i32) {
    %c0_i32 = arith.constant 0 : i32
    %c0_i32_0 = arith.constant 0 : i32
    %c0_i32_1 = arith.constant 0 : i32
    return %c0_i32, %c0_i32_0 : i32, i32
  }
  func.func @transform_11(%arg0: i32) -> (i32, i32) {
    %c0_i32 = arith.constant 0 : i32
    %c0_i32_0 = arith.constant 0 : i32
    %c0_i32_1 = arith.constant 0 : i32
    return %c0_i32, %c0_i32_0 : i32, i32
  }
  func.func @transform_12(%arg0: i32) -> (i32, i32) {
    %c0_i32 = arith.constant 0 : i32
    %c0_i32_0 = arith.constant 0 : i32
    %c0_i32_1 = arith.constant 0 : i32
    return %c0_i32, %c0_i32_0 : i32, i32
  }
  func.func @transform_13(%arg0: i32) -> (i32, i32) {
    %c0_i32 = arith.constant 0 : i32
    %c0_i32_0 = arith.constant 0 : i32
    %c0_i32_1 = arith.constant 0 : i32
    return %c0_i32, %c0_i32_0 : i32, i32
  }
  func.func @transform_14(%arg0: i32) -> (i32, i32) {
    %c0_i32 = arith.constant 0 : i32
    %c0_i32_0 = arith.constant 0 : i32
    %c0_i32_1 = arith.constant 0 : i32
    return %c0_i32, %c0_i32_0 : i32, i32
  }
  func.func @transform_15(%arg0: i32) -> (i32, i32, i32) {
    %c0_i32 = arith.constant 0 : i32
    %c0_i32_0 = arith.constant 0 : i32
    %c0_i32_1 = arith.constant 0 : i32
    return %arg0, %c0_i32, %c0_i32_0 : i32, i32, i32
  }
}

</mosaic_0001>

<llo_original>
// kernel: tpu_custom_call.1
$region0: #{tpu_custom_call.1}
  #allocation0 [shape = 'u32[]', space=smem, size = 0x4, offset = 0x4, fixed_abs, tag = 'smem constant byte address 0x4 - core index']
  #allocation1 [shape = 'u32[144,128]{1,0:T(1,128)}', space=vmem, size = 0x12000, scoped, tag = 'internal scratch']
  #allocation2 [shape = 'f32[18,32,3]{2,1,0:T(8,128)}', space=vmem, size = 0x48000, scoped, tag = 'scratch operand']
  #allocation3 [shape = 'f32[18,32,8]{2,1,0:T(8,128)}', space=vmem, size = 0x48000, scoped, tag = 'scratch operand']
  #allocation4 [shape = 'f32[10,24,8]{2,1,0:T(8,128)}', space=vmem, size = 0x1e000, scoped, tag = 'scratch operand']
  #allocation5 [shape = 'f32[10,24,16]{2,1,0:T(8,128)}', space=vmem, size = 0x1e000, scoped, tag = 'scratch operand']
  #allocation6 [shape = 'f32[16,16,8]{2,1,0:T(8,128)}', space=vmem, size = 0x20000, scoped, tag = 'scratch operand']
  #allocation7 [shape = 'f32[8,8,16]{2,1,0:T(8,128)}', space=vmem, size = 0x8000, scoped, tag = 'scratch operand']
  #allocation8 [shape = 'f32[4,4,16]{2,1,0:T(4,128)}', space=vmem, size = 0x2000, scoped, tag = 'scratch operand']
  %s0 = inlined_call_operand.vmem [shape: f32[2,16,16,3], index: 0, kind: input, shape index: {}]
  %s1 = inlined_call_operand.vmem [shape: bf16[3,3,3,8], index: 1, kind: input, shape index: {}]
  %s2 = inlined_call_operand.vmem [shape: f32[1,8], index: 2, kind: input, shape index: {}]
  %s3 = inlined_call_operand.vmem [shape: bf16[3,3,8,8], index: 3, kind: input, shape index: {}]
  %s4 = inlined_call_operand.vmem [shape: f32[1,8], index: 4, kind: input, shape index: {}]
  %s5 = inlined_call_operand.vmem [shape: bf16[3,3,8,16], index: 5, kind: input, shape index: {}]
  %s6 = inlined_call_operand.vmem [shape: f32[1,16], index: 6, kind: input, shape index: {}]
  %s7 = inlined_call_operand.vmem [shape: bf16[3,3,16,16], index: 7, kind: input, shape index: {}]
  %s8 = inlined_call_operand.vmem [shape: f32[1,16], index: 8, kind: input, shape index: {}]
  %s9 = inlined_call_operand.vmem [shape: bf16[16,16,64], index: 9, kind: input, shape index: {}]
  %s10 = inlined_call_operand.vmem [shape: f32[1,64], index: 10, kind: input, shape index: {}]
  %s11 = inlined_call_operand.vmem [shape: bf16[64,64], index: 11, kind: input, shape index: {}]
  %s12 = inlined_call_operand.vmem [shape: f32[1,64], index: 12, kind: input, shape index: {}]
  %s13 = inlined_call_operand.vmem [shape: bf16[64,10], index: 13, kind: input, shape index: {}]
  %s14 = inlined_call_operand.vmem [shape: f32[1,10], index: 14, kind: input, shape index: {}]
  %s15 = inlined_call_operand.hbm [shape: f32[2,1,10], index: 15, kind: output, shape index: {}]
  %s16 = sld [smem:[#allocation0]]
  $region93: #{tpu_custom_call.1} parent=0
    _
  %s18 = ssub.s32 1, %s16
  %s19 = scalar_select 0, %s18, %s16
  $region1: #{tpu_custom_call.1} parent=0
    #allocation9 [shape = 'u8[1024]{0}', space=vmem, size = 0x400, scoped, tag = 'output window, operand 0']
    #allocation10 [shape = 's32[2]{0}', space=sflag, size = 0x8, scoped, tag = 'scoped memory for tpu_custom_call.1']
    %20 = vsyncpa [#allocation10], 0
    %s21 = scalar_lea.sflag [#allocation10], 1
    %22 = vsyncpa %s21, 0
    loop: start=0, step=1, limit=4
    $region2: #{tpu_custom_call.1} parent=1 // loop_pre_header
      _
    $region3: #{tpu_custom_call.1} parent=1 // loop_header
      %s24 = sphi 0, %s28
      %p25 = scmp.ge.s32.totalorder %s24, 4
      %s34 = sphi 0, %s36
      %s37 = sphi 0, %s34
      %s38 = sphi 0, %s37
      %s54 = sphi 0, %s38
      %s58 = sphi 0, %s58
      %s60 = sphi 0, %s58
      %s61 = sphi 0, %s60
      %s75 = sphi 0, %s61
      %s79 = sphi 0, %s79
      %s81 = sphi 0, %s79
      %s82 = sphi 0, %s81
      %s96 = sphi 0, %s82
      %s100 = sphi 0, %s100
      %s102 = sphi 0, %s100
      %s103 = sphi 0, %s102
      %s117 = sphi 0, %s103
      %s121 = sphi 0, %s121
      %s123 = sphi 0, %s121
      %s124 = sphi 0, %s123
      %s138 = sphi 0, %s124
      %s142 = sphi 0, %s142
      %s144 = sphi 0, %s142
      %s145 = sphi 0, %s144
      %s159 = sphi 0, %s145
      %s163 = sphi 0, %s163
      %s165 = sphi 0, %s163
      %s166 = sphi 0, %s165
      %s180 = sphi 0, %s166
      %s184 = sphi 0, %s184
      %s186 = sphi 0, %s184
      %s187 = sphi 0, %s186
      %s201 = sphi 0, %s187
      %s205 = sphi 0, %s205
      %s207 = sphi 0, %s205
      %s208 = sphi 0, %s207
      %s222 = sphi 0, %s208
      %s226 = sphi 0, %s226
      %s228 = sphi 0, %s226
      %s229 = sphi 0, %s228
      %s243 = sphi 0, %s229
      %s247 = sphi 0, %s247
      %s249 = sphi 0, %s247
      %s250 = sphi 0, %s249
      %s264 = sphi 0, %s250
      %s268 = sphi 0, %s268
      %s270 = sphi 0, %s268
      %s271 = sphi 0, %s270
      %s285 = sphi 0, %s271
      %s289 = sphi 0, %s289
      %s291 = sphi 0, %s289
      %s292 = sphi 0, %s291
      %s306 = sphi 0, %s292
      %s310 = sphi 0, %s310
      %s312 = sphi 0, %s310
      %s313 = sphi 0, %s312
      %s327 = sphi 0, %s313
      %s331 = sphi 0, %s331
      %s333 = sphi 0, %s331
      %s334 = sphi 0, %s333
      %s348 = sphi 0, %s334
      %s354 = sphi 0, %s356
      %s357 = sphi 0, %s354
      %s358 = sphi 0, %s357
      %s374 = sphi 0, %s358
    $region4: #{tpu_custom_call.1} parent=1 // loop_header_branch
      %27 = sbr.rel (%p25) target = $region8
    $region5: #{tpu_custom_call.1} parent=1 // loop_body
      %s29 = ssub.s32 %s24, 1
      %s30 = ssub.s32 %s24, 2
      %s31 = sadd.s32 %s24, 1
      %s32 = ssub.s32 %s24, %s31
      %p33 = scmp.eq.s32.totalorder %s32, 0
      %s35 = sadd.s32 %s34, 1
      %s36 = scalar_select %p33, %s34, %s35
      %p39 = pneg %p33
      %p40 = scmp.eq.s32.totalorder %s24, 1
      %p41 = por %p39, %p40
      %p42 = scmp.ne.s32.totalorder %s34, %s37
      %p43 = scmp.eq.s32.totalorder %s24, 0
      %p44 = por %p42, %p43
      %p45 = scmp.ne.s32.totalorder %s34, %s37
      %p46 = scmp.eq.s32.totalorder %s29, 1
      %p47 = por %p45, %p46
      %p48 = scmp.ne.s32.totalorder %s37, %s38
      %p49 = scmp.eq.s32.totalorder %s29, 0
      %p50 = por %p48, %p49
      %p51 = scmp.ne.s32.totalorder %s37, %s38
      %p52 = scmp.eq.s32.totalorder %s30, 1
      %p53 = por %p51, %p52
      %p55 = scmp.ne.s32.totalorder %s38, %s54
      %p56 = scmp.eq.s32.totalorder %s30, 0
      %p57 = por %p55, %p56
      %s59 = sadd.s32 %s58, 1
      %p62 = scmp.eq.s32.totalorder %s24, 1
      %p63 = scmp.ne.s32.totalorder %s58, %s60
      %p64 = scmp.eq.s32.totalorder %s24, 0
      %p65 = por %p63, %p64
      %p66 = scmp.ne.s32.totalorder %s58, %s60
      %p67 = scmp.eq.s32.totalorder %s29, 1
      %p68 = por %p66, %p67
      %p69 = scmp.ne.s32.totalorder %s60, %s61
      %p70 = scmp.eq.s32.totalorder %s29, 0
      %p71 = por %p69, %p70
      %p72 = scmp.ne.s32.totalorder %s60, %s61
      %p73 = scmp.eq.s32.totalorder %s30, 1
      %p74 = por %p72, %p73
      %p76 = scmp.ne.s32.totalorder %s61, %s75
      %p77 = scmp.eq.s32.totalorder %s30, 0
      %p78 = por %p76, %p77
      %s80 = sadd.s32 %s79, 1
      %p83 = scmp.eq.s32.totalorder %s24, 1
      %p84 = scmp.ne.s32.totalorder %s79, %s81
      %p85 = scmp.eq.s32.totalorder %s24, 0
      %p86 = por %p84, %p85
      %p87 = scmp.ne.s32.totalorder %s79, %s81
      %p88 = scmp.eq.s32.totalorder %s29, 1
      %p89 = por %p87, %p88
      %p90 = scmp.ne.s32.totalorder %s81, %s82
      %p91 = scmp.eq.s32.totalorder %s29, 0
      %p92 = por %p90, %p91
      %p93 = scmp.ne.s32.totalorder %s81, %s82
      %p94 = scmp.eq.s32.totalorder %s30, 1
      %p95 = por %p93, %p94
      %p97 = scmp.ne.s32.totalorder %s82, %s96
      %p98 = scmp.eq.s32.totalorder %s30, 0
      %p99 = por %p97, %p98
      %s101 = sadd.s32 %s100, 1
      %p104 = scmp.eq.s32.totalorder %s24, 1
      %p105 = scmp.ne.s32.totalorder %s100, %s102
      %p106 = scmp.eq.s32.totalorder %s24, 0
      %p107 = por %p105, %p106
      %p108 = scmp.ne.s32.totalorder %s100, %s102
      %p109 = scmp.eq.s32.totalorder %s29, 1
      %p110 = por %p108, %p109
      %p111 = scmp.ne.s32.totalorder %s102, %s103
      %p112 = scmp.eq.s32.totalorder %s29, 0
      %p113 = por %p111, %p112
      %p114 = scmp.ne.s32.totalorder %s102, %s103
      %p115 = scmp.eq.s32.totalorder %s30, 1
      %p116 = por %p114, %p115
      %p118 = scmp.ne.s32.totalorder %s103, %s117
      %p119 = scmp.eq.s32.totalorder %s30, 0
      %p120 = por %p118, %p119
      %s122 = sadd.s32 %s121, 1
      %p125 = scmp.eq.s32.totalorder %s24, 1
      %p126 = scmp.ne.s32.totalorder %s121, %s123
      %p127 = scmp.eq.s32.totalorder %s24, 0
      %p128 = por %p126, %p127
      %p129 = scmp.ne.s32.totalorder %s121, %s123
      %p130 = scmp.eq.s32.totalorder %s29, 1
      %p131 = por %p129, %p130
      %p132 = scmp.ne.s32.totalorder %s123, %s124
      %p133 = scmp.eq.s32.totalorder %s29, 0
      %p134 = por %p132, %p133
      %p135 = scmp.ne.s32.totalorder %s123, %s124
      %p136 = scmp.eq.s32.totalorder %s30, 1
      %p137 = por %p135, %p136
      %p139 = scmp.ne.s32.totalorder %s124, %s138
      %p140 = scmp.eq.s32.totalorder %s30, 0
      %p141 = por %p139, %p140
      %s143 = sadd.s32 %s142, 1
      %p146 = scmp.eq.s32.totalorder %s24, 1
      %p147 = scmp.ne.s32.totalorder %s142, %s144
      %p148 = scmp.eq.s32.totalorder %s24, 0
      %p149 = por %p147, %p148
      %p150 = scmp.ne.s32.totalorder %s142, %s144
      %p151 = scmp.eq.s32.totalorder %s29, 1
      %p152 = por %p150, %p151
      %p153 = scmp.ne.s32.totalorder %s144, %s145
      %p154 = scmp.eq.s32.totalorder %s29, 0
      %p155 = por %p153, %p154
      %p156 = scmp.ne.s32.totalorder %s144, %s145
      %p157 = scmp.eq.s32.totalorder %s30, 1
      %p158 = por %p156, %p157
      %p160 = scmp.ne.s32.totalorder %s145, %s159
      %p161 = scmp.eq.s32.totalorder %s30, 0
      %p162 = por %p160, %p161
      %s164 = sadd.s32 %s163, 1
      %p167 = scmp.eq.s32.totalorder %s24, 1
      %p168 = scmp.ne.s32.totalorder %s163, %s165
      %p169 = scmp.eq.s32.totalorder %s24, 0
      %p170 = por %p168, %p169
      %p171 = scmp.ne.s32.totalorder %s163, %s165
      %p172 = scmp.eq.s32.totalorder %s29, 1
      %p173 = por %p171, %p172
      %p174 = scmp.ne.s32.totalorder %s165, %s166
      %p175 = scmp.eq.s32.totalorder %s29, 0
      %p176 = por %p174, %p175
      %p177 = scmp.ne.s32.totalorder %s165, %s166
      %p178 = scmp.eq.s32.totalorder %s30, 1
      %p179 = por %p177, %p178
      %p181 = scmp.ne.s32.totalorder %s166, %s180
      %p182 = scmp.eq.s32.totalorder %s30, 0
      %p183 = por %p181, %p182
      %s185 = sadd.s32 %s184, 1
      %p188 = scmp.eq.s32.totalorder %s24, 1
      %p189 = scmp.ne.s32.totalorder %s184, %s186
      %p190 = scmp.eq.s32.totalorder %s24, 0
      %p191 = por %p189, %p190
      %p192 = scmp.ne.s32.totalorder %s184, %s186
      %p193 = scmp.eq.s32.totalorder %s29, 1
      %p194 = por %p192, %p193
      %p195 = scmp.ne.s32.totalorder %s186, %s187
      %p196 = scmp.eq.s32.totalorder %s29, 0
      %p197 = por %p195, %p196
      %p198 = scmp.ne.s32.totalorder %s186, %s187
      %p199 = scmp.eq.s32.totalorder %s30, 1
      %p200 = por %p198, %p199
      %p202 = scmp.ne.s32.totalorder %s187, %s201
      %p203 = scmp.eq.s32.totalorder %s30, 0
      %p204 = por %p202, %p203
      %s206 = sadd.s32 %s205, 1
      %p209 = scmp.eq.s32.totalorder %s24, 1
      %p210 = scmp.ne.s32.totalorder %s205, %s207
      %p211 = scmp.eq.s32.totalorder %s24, 0
      %p212 = por %p210, %p211
      %p213 = scmp.ne.s32.totalorder %s205, %s207
      %p214 = scmp.eq.s32.totalorder %s29, 1
      %p215 = por %p213, %p214
      %p216 = scmp.ne.s32.totalorder %s207, %s208
      %p217 = scmp.eq.s32.totalorder %s29, 0
      %p218 = por %p216, %p217
      %p219 = scmp.ne.s32.totalorder %s207, %s208
      %p220 = scmp.eq.s32.totalorder %s30, 1
      %p221 = por %p219, %p220
      %p223 = scmp.ne.s32.totalorder %s208, %s222
      %p224 = scmp.eq.s32.totalorder %s30, 0
      %p225 = por %p223, %p224
      %s227 = sadd.s32 %s226, 1
      %p230 = scmp.eq.s32.totalorder %s24, 1
      %p231 = scmp.ne.s32.totalorder %s226, %s228
      %p232 = scmp.eq.s32.totalorder %s24, 0
      %p233 = por %p231, %p232
      %p234 = scmp.ne.s32.totalorder %s226, %s228
      %p235 = scmp.eq.s32.totalorder %s29, 1
      %p236 = por %p234, %p235
      %p237 = scmp.ne.s32.totalorder %s228, %s229
      %p238 = scmp.eq.s32.totalorder %s29, 0
      %p239 = por %p237, %p238
      %p240 = scmp.ne.s32.totalorder %s228, %s229
      %p241 = scmp.eq.s32.totalorder %s30, 1
      %p242 = por %p240, %p241
      %p244 = scmp.ne.s32.totalorder %s229, %s243
      %p245 = scmp.eq.s32.totalorder %s30, 0
      %p246 = por %p244, %p245
      %s248 = sadd.s32 %s247, 1
      %p251 = scmp.eq.s32.totalorder %s24, 1
      %p252 = scmp.ne.s32.totalorder %s247, %s249
      %p253 = scmp.eq.s32.totalorder %s24, 0
      %p254 = por %p252, %p253
      %p255 = scmp.ne.s32.totalorder %s247, %s249
      %p256 = scmp.eq.s32.totalorder %s29, 1
      %p257 = por %p255, %p256
      %p258 = scmp.ne.s32.totalorder %s249, %s250
      %p259 = scmp.eq.s32.totalorder %s29, 0
      %p260 = por %p258, %p259
      %p261 = scmp.ne.s32.totalorder %s249, %s250
      %p262 = scmp.eq.s32.totalorder %s30, 1
      %p263 = por %p261, %p262
      %p265 = scmp.ne.s32.totalorder %s250, %s264
      %p266 = scmp.eq.s32.totalorder %s30, 0
      %p267 = por %p265, %p266
      %s269 = sadd.s32 %s268, 1
      %p272 = scmp.eq.s32.totalorder %s24, 1
      %p273 = scmp.ne.s32.totalorder %s268, %s270
      %p274 = scmp.eq.s32.totalorder %s24, 0
      %p275 = por %p273, %p274
      %p276 = scmp.ne.s32.totalorder %s268, %s270
      %p277 = scmp.eq.s32.totalorder %s29, 1
      %p278 = por %p276, %p277
      %p279 = scmp.ne.s32.totalorder %s270, %s271
      %p280 = scmp.eq.s32.totalorder %s29, 0
      %p281 = por %p279, %p280
      %p282 = scmp.ne.s32.totalorder %s270, %s271
      %p283 = scmp.eq.s32.totalorder %s30, 1
      %p284 = por %p282, %p283
      %p286 = scmp.ne.s32.totalorder %s271, %s285
      %p287 = scmp.eq.s32.totalorder %s30, 0
      %p288 = por %p286, %p287
      %s290 = sadd.s32 %s289, 1
      %p293 = scmp.eq.s32.totalorder %s24, 1
      %p294 = scmp.ne.s32.totalorder %s289, %s291
      %p295 = scmp.eq.s32.totalorder %s24, 0
      %p296 = por %p294, %p295
      %p297 = scmp.ne.s32.totalorder %s289, %s291
      %p298 = scmp.eq.s32.totalorder %s29, 1
      %p299 = por %p297, %p298
      %p300 = scmp.ne.s32.totalorder %s291, %s292
      %p301 = scmp.eq.s32.totalorder %s29, 0
      %p302 = por %p300, %p301
      %p303 = scmp.ne.s32.totalorder %s291, %s292
      %p304 = scmp.eq.s32.totalorder %s30, 1
      %p305 = por %p303, %p304
      %p307 = scmp.ne.s32.totalorder %s292, %s306
      %p308 = scmp.eq.s32.totalorder %s30, 0
      %p309 = por %p307, %p308
      %s311 = sadd.s32 %s310, 1
      %p314 = scmp.eq.s32.totalorder %s24, 1
      %p315 = scmp.ne.s32.totalorder %s310, %s312
      %p316 = scmp.eq.s32.totalorder %s24, 0
      %p317 = por %p315, %p316
      %p318 = scmp.ne.s32.totalorder %s310, %s312
      %p319 = scmp.eq.s32.totalorder %s29, 1
      %p320 = por %p318, %p319
      %p321 = scmp.ne.s32.totalorder %s312, %s313
      %p322 = scmp.eq.s32.totalorder %s29, 0
      %p323 = por %p321, %p322
      %p324 = scmp.ne.s32.totalorder %s312, %s313
      %p325 = scmp.eq.s32.totalorder %s30, 1
      %p326 = por %p324, %p325
      %p328 = scmp.ne.s32.totalorder %s313, %s327
      %p329 = scmp.eq.s32.totalorder %s30, 0
      %p330 = por %p328, %p329
      %s332 = sadd.s32 %s331, 1
      %p335 = scmp.eq.s32.totalorder %s24, 1
      %p336 = scmp.ne.s32.totalorder %s331, %s333
      %p337 = scmp.eq.s32.totalorder %s24, 0
      %p338 = por %p336, %p337
      %p339 = scmp.ne.s32.totalorder %s331, %s333
      %p340 = scmp.eq.s32.totalorder %s29, 1
      %p341 = por %p339, %p340
      %p342 = scmp.ne.s32.totalorder %s333, %s334
      %p343 = scmp.eq.s32.totalorder %s29, 0
      %p344 = por %p342, %p343
      %p345 = scmp.ne.s32.totalorder %s333, %s334
      %p346 = scmp.eq.s32.totalorder %s30, 1
      %p347 = por %p345, %p346
      %p349 = scmp.ne.s32.totalorder %s334, %s348
      %p350 = scmp.eq.s32.totalorder %s30, 0
      %p351 = por %p349, %p350
      %s352 = ssub.s32 %s24, %s31
      %p353 = scmp.eq.s32.totalorder %s352, 0
      %s355 = sadd.s32 %s354, 1
      %s356 = scalar_select %p353, %s354, %s355
      %p359 = pneg %p353
      %p360 = scmp.eq.s32.totalorder %s24, 1
      %p361 = por %p359, %p360
      %p362 = scmp.ne.s32.totalorder %s354, %s357
      %p363 = scmp.eq.s32.totalorder %s24, 0
      %p364 = por %p362, %p363
      %p365 = scmp.ne.s32.totalorder %s354, %s357
      %p366 = scmp.eq.s32.totalorder %s29, 1
      %p367 = por %p365, %p366
      %p368 = scmp.ne.s32.totalorder %s357, %s358
      %p369 = scmp.eq.s32.totalorder %s29, 0
      %p370 = por %p368, %p369
      %p371 = scmp.ne.s32.totalorder %s357, %s358
      %p372 = scmp.eq.s32.totalorder %s30, 1
      %p373 = por %p371, %p372
      %p375 = scmp.ne.s32.totalorder %s358, %s374
      %p376 = scmp.eq.s32.totalorder %s30, 0
      %p377 = por %p375, %p376
      %p378 = scmp.le.s32.totalorder 1, %s24
      %p379 = scmp.lt.s32.totalorder %s24, 3
      %p380 = pnand %p378, %p379
      %p381 = pneg %p380
      // Predicated region
      $region9: #{tpu_custom_call.1} parent=5 // pred_check
        _
      $region10: #{tpu_custom_call.1} parent=5 // pred_check_branch
        %383 = sbr.rel (%p380) target = $region12
      $region11: #{tpu_custom_call.1} parent=5 // pred_region
        %s384 = ssub.s32 %s24, 1
        // Predicated region
        $region13: #{tpu_custom_call.1} parent=11 // pred_check
          %p385 = pneg %p71
        $region14: #{tpu_custom_call.1} parent=11 // pred_check_branch
          %387 = sbr.rel (%p385) target = $region16
        $region15: #{tpu_custom_call.1} parent=11 // pred_region
          _
        $region16: #{tpu_custom_call.1} parent=11 // pred_fallthru
          _
        // Predicated region
        $region17: #{tpu_custom_call.1} parent=11 // pred_check
          %p388 = pneg %p92
        $region18: #{tpu_custom_call.1} parent=11 // pred_check_branch
          %390 = sbr.rel (%p388) target = $region20
        $region19: #{tpu_custom_call.1} parent=11 // pred_region
          _
        $region20: #{tpu_custom_call.1} parent=11 // pred_fallthru
          _
        // Predicated region
        $region21: #{tpu_custom_call.1} parent=11 // pred_check
          %p391 = pneg %p113
        $region22: #{tpu_custom_call.1} parent=11 // pred_check_branch
          %393 = sbr.rel (%p391) target = $region24
        $region23: #{tpu_custom_call.1} parent=11 // pred_region
          _
        $region24: #{tpu_custom_call.1} parent=11 // pred_fallthru
          _
        // Predicated region
        $region25: #{tpu_custom_call.1} parent=11 // pred_check
          %p394 = pneg %p134
        $region26: #{tpu_custom_call.1} parent=11 // pred_check_branch
          %396 = sbr.rel (%p394) target = $region28
        $region27: #{tpu_custom_call.1} parent=11 // pred_region
          _
        $region28: #{tpu_custom_call.1} parent=11 // pred_fallthru
          _
        // Predicated region
        $region29: #{tpu_custom_call.1} parent=11 // pred_check
          %p397 = pneg %p155
        $region30: #{tpu_custom_call.1} parent=11 // pred_check_branch
          %399 = sbr.rel (%p397) target = $region32
        $region31: #{tpu_custom_call.1} parent=11 // pred_region
          _
        $region32: #{tpu_custom_call.1} parent=11 // pred_fallthru
          _
        // Predicated region
        $region33: #{tpu_custom_call.1} parent=11 // pred_check
          %p400 = pneg %p176
        $region34: #{tpu_custom_call.1} parent=11 // pred_check_branch
          %402 = sbr.rel (%p400) target = $region36
        $region35: #{tpu_custom_call.1} parent=11 // pred_region
          _
        $region36: #{tpu_custom_call.1} parent=11 // pred_fallthru
          _
        // Predicated region
        $region37: #{tpu_custom_call.1} parent=11 // pred_check
          %p403 = pneg %p197
        $region38: #{tpu_custom_call.1} parent=11 // pred_check_branch
          %405 = sbr.rel (%p403) target = $region40
        $region39: #{tpu_custom_call.1} parent=11 // pred_region
          _
        $region40: #{tpu_custom_call.1} parent=11 // pred_fallthru
          _
        // Predicated region
        $region41: #{tpu_custom_call.1} parent=11 // pred_check
          %p406 = pneg %p218
        $region42: #{tpu_custom_call.1} parent=11 // pred_check_branch
          %408 = sbr.rel (%p406) target = $region44
        $region43: #{tpu_custom_call.1} parent=11 // pred_region
          _
        $region44: #{tpu_custom_call.1} parent=11 // pred_fallthru
          _
        // Predicated region
        $region45: #{tpu_custom_call.1} parent=11 // pred_check
          %p409 = pneg %p239
        $region46: #{tpu_custom_call.1} parent=11 // pred_check_branch
          %411 = sbr.rel (%p409) target = $region48
        $region47: #{tpu_custom_call.1} parent=11 // pred_region
          _
        $region48: #{tpu_custom_call.1} parent=11 // pred_fallthru
          _
        // Predicated region
        $region49: #{tpu_custom_call.1} parent=11 // pred_check
          %p412 = pneg %p260
        $region50: #{tpu_custom_call.1} parent=11 // pred_check_branch
          %414 = sbr.rel (%p412) target = $region52
        $region51: #{tpu_custom_call.1} parent=11 // pred_region
          _
        $region52: #{tpu_custom_call.1} parent=11 // pred_fallthru
          _
        // Predicated region
        $region53: #{tpu_custom_call.1} parent=11 // pred_check
          %p415 = pneg %p281
        $region54: #{tpu_custom_call.1} parent=11 // pred_check_branch
          %417 = sbr.rel (%p415) target = $region56
        $region55: #{tpu_custom_call.1} parent=11 // pred_region
          _
        $region56: #{tpu_custom_call.1} parent=11 // pred_fallthru
          _
        // Predicated region
        $region57: #{tpu_custom_call.1} parent=11 // pred_check
          %p418 = pneg %p302
        $region58: #{tpu_custom_call.1} parent=11 // pred_check_branch
          %420 = sbr.rel (%p418) target = $region60
        $region59: #{tpu_custom_call.1} parent=11 // pred_region
          _
        $region60: #{tpu_custom_call.1} parent=11 // pred_fallthru
          _
        // Predicated region
        $region61: #{tpu_custom_call.1} parent=11 // pred_check
          %p421 = pneg %p323
        $region62: #{tpu_custom_call.1} parent=11 // pred_check_branch
          %423 = sbr.rel (%p421) target = $region64
        $region63: #{tpu_custom_call.1} parent=11 // pred_region
          _
        $region64: #{tpu_custom_call.1} parent=11 // pred_fallthru
          _
        // Predicated region
        $region65: #{tpu_custom_call.1} parent=11 // pred_check
          %p424 = pneg %p344
        $region66: #{tpu_custom_call.1} parent=11 // pred_check_branch
          %426 = sbr.rel (%p424) target = $region68
        $region67: #{tpu_custom_call.1} parent=11 // pred_region
          _
        $region68: #{tpu_custom_call.1} parent=11 // pred_fallthru
          _
      $region12: #{tpu_custom_call.1} parent=5 // pred_fallthru
        _
      %p427 = scmp.lt.s32.totalorder %s24, 2
      // Predicated region
      $region69: #{tpu_custom_call.1} parent=5 // pred_check
        %p428 = pneg %p427
      $region70: #{tpu_custom_call.1} parent=5 // pred_check_branch
        %430 = sbr.rel (%p428) target = $region72
      $region71: #{tpu_custom_call.1} parent=5 // pred_region
        // Predicated region
        $region73: #{tpu_custom_call.1} parent=71 // pred_check
          %p431 = pneg %p44
        $region74: #{tpu_custom_call.1} parent=71 // pred_check_branch
          %433 = sbr.rel (%p431) target = $region76
        $region75: #{tpu_custom_call.1} parent=71 // pred_region
          %p434 = scmp.lt.s32.totalorder %s24, 1
          %s435 = scalar_select %p434, %s24, 1
          %s436 = smul.addr %s435, 32
          %s437 = smul.addr %s436, 8
          %s438 = scalar_lea.vmem %s0, %s437
        $region76: #{tpu_custom_call.1} parent=71 // pred_fallthru
          _
      $region72: #{tpu_custom_call.1} parent=5 // pred_fallthru
        _
      %p439 = scmp.le.s32.totalorder 1, %s24
      %p440 = scmp.lt.s32.totalorder %s24, 3
      %p441 = pnand %p439, %p440
      %p442 = pneg %p441
      // Predicated region
      $region77: #{tpu_custom_call.1} parent=5 // pred_check
        _
      $region78: #{tpu_custom_call.1} parent=5 // pred_check_branch
        %444 = sbr.rel (%p441) target = $region80
      $region79: #{tpu_custom_call.1} parent=5 // pred_region
        %s445 = ssub.s32 %s24, 1
        %p446 = scmp.lt.s32.totalorder %s29, 1
        %s447 = scalar_select %p446, %s29, 1
        %s448 = smul.addr %s447, 32
        %s449 = smul.addr %s448, 8
        %s450 = scalar_lea.vmem %s0, %s449
        %p451 = pneg %p50
        %p452 = pneg %p47
        %p453 = pneg %p71
        %p454 = pneg %p68
        %p455 = pneg %p92
        %p456 = pneg %p89
        %p457 = pneg %p113
        %p458 = pneg %p110
        %p459 = pneg %p134
        %p460 = pneg %p131
        %p461 = pneg %p155
        %p462 = pneg %p152
        %p463 = pneg %p176
        %p464 = pneg %p173
        %p465 = pneg %p197
        %p466 = pneg %p194
        %p467 = pneg %p218
        %p468 = pneg %p215
        %p469 = pneg %p239
        %p470 = pneg %p236
        %p471 = pneg %p260
        %p472 = pneg %p257
        %p473 = pneg %p281
        %p474 = pneg %p278
        %p475 = pneg %p302
        %p476 = pneg %p299
        %p477 = pneg %p323
        %p478 = pneg %p320
        %p479 = pneg %p344
        %p480 = pneg %p341
        %p481 = pneg %p370
        %p482 = pneg %p367
        %s483 = sand.u32 %s357, 1
        %s484 = scalar_lea.sflag [#allocation10], %s483
        %s485 = sand.u32 %s357, 1
        %s486 = scalar_lea.vmem [#allocation9], %s485
        %p487 = scmp.lt.s32.totalorder %s29, 1
        %s488 = scalar_select %p487, %s29, 1
        %s489 = smul.addr %s488, 32
        %s490 = smul.addr %s489, 8
        %s491 = scalar_lea.vmem %s0, %s490
        %v493 = vld [vmem:[%s491] sm:$0xff]
        %v494 = vld [vmem:[%s491 + $0x8] sm:$0xff]
        %v495 = vld [vmem:[%s491 + $0x10] sm:$0xff]
        %v496 = vld [vmem:[%s491 + $0x18] sm:$0xff]
        %v497 = vld [vmem:[%s491 + $0x20] sm:$0xff]
        %v498 = vld [vmem:[%s491 + $0x28] sm:$0xff]
        %v499 = vld [vmem:[%s491 + $0x30] sm:$0xff]
        %v500 = vld [vmem:[%s491 + $0x38] sm:$0xff]
        %v501 = vld [vmem:[%s491 + $0x40] sm:$0xff]
        %v502 = vld [vmem:[%s491 + $0x48] sm:$0xff]
        %v503 = vld [vmem:[%s491 + $0x50] sm:$0xff]
        %v504 = vld [vmem:[%s491 + $0x58] sm:$0xff]
        %v505 = vld [vmem:[%s491 + $0x60] sm:$0xff]
        %v506 = vld [vmem:[%s491 + $0x68] sm:$0xff]
        %v507 = vld [vmem:[%s491 + $0x70] sm:$0xff]
        %v508 = vld [vmem:[%s491 + $0x78] sm:$0xff]
        %v509 = vld [vmem:[%s491 + $0x80] sm:$0xff]
        %v510 = vld [vmem:[%s491 + $0x88] sm:$0xff]
        %v511 = vld [vmem:[%s491 + $0x90] sm:$0xff]
        %v512 = vld [vmem:[%s491 + $0x98] sm:$0xff]
        %v513 = vld [vmem:[%s491 + $0xa0] sm:$0xff]
        %v514 = vld [vmem:[%s491 + $0xa8] sm:$0xff]
        %v515 = vld [vmem:[%s491 + $0xb0] sm:$0xff]
        %v516 = vld [vmem:[%s491 + $0xb8] sm:$0xff]
        %v517 = vld [vmem:[%s491 + $0xc0] sm:$0xff]
        %v518 = vld [vmem:[%s491 + $0xc8] sm:$0xff]
        %v519 = vld [vmem:[%s491 + $0xd0] sm:$0xff]
        %v520 = vld [vmem:[%s491 + $0xd8] sm:$0xff]
        %v521 = vld [vmem:[%s491 + $0xe0] sm:$0xff]
        %v522 = vld [vmem:[%s491 + $0xe8] sm:$0xff]
        %v523 = vld [vmem:[%s491 + $0xf0] sm:$0xff]
        %v524 = vld [vmem:[%s491 + $0xf8] sm:$0xff]
        %vm525 = vcmask 23552
        %526 = vst.msk [vmem:[#allocation2] sm:$0xff] %vm525, 0.0
        %527 = vst.msk [vmem:[#allocation2 + $0x8] sm:$0xff] %vm525, 0.0
        %528 = vst.msk [vmem:[#allocation2 + $0x10] sm:$0xff] %vm525, 0.0
        %529 = vst.msk [vmem:[#allocation2 + $0x18] sm:$0xff] %vm525, 0.0
        %530 = vst.msk [vmem:[#allocation2 + $0x20] sm:$0xff] %vm525, 0.0
        %531 = vst.msk [vmem:[#allocation2 + $0x28] sm:$0xff] %vm525, 0.0
        %532 = vst.msk [vmem:[#allocation2 + $0x30] sm:$0xff] %vm525, 0.0
        %533 = vst.msk [vmem:[#allocation2 + $0x38] sm:$0xff] %vm525, 0.0
        %534 = vst.msk [vmem:[#allocation2 + $0x40] sm:$0xff] %vm525, 0.0
        %535 = vst.msk [vmem:[#allocation2 + $0x48] sm:$0xff] %vm525, 0.0
        %536 = vst.msk [vmem:[#allocation2 + $0x50] sm:$0xff] %vm525, 0.0
        %537 = vst.msk [vmem:[#allocation2 + $0x58] sm:$0xff] %vm525, 0.0
        %538 = vst.msk [vmem:[#allocation2 + $0x60] sm:$0xff] %vm525, 0.0
        %539 = vst.msk [vmem:[#allocation2 + $0x68] sm:$0xff] %vm525, 0.0
        %540 = vst.msk [vmem:[#allocation2 + $0x70] sm:$0xff] %vm525, 0.0
        %541 = vst.msk [vmem:[#allocation2 + $0x78] sm:$0xff] %vm525, 0.0
        %542 = vst.msk [vmem:[#allocation2 + $0x80] sm:$0xff] %vm525, 0.0
        %543 = vst.msk [vmem:[#allocation2 + $0x88] sm:$0xff] %vm525, 0.0
        %544 = vst.msk [vmem:[#allocation2 + $0x90] sm:$0xff] %vm525, 0.0
        %545 = vst.msk [vmem:[#allocation2 + $0x98] sm:$0xff] %vm525, 0.0
        %546 = vst.msk [vmem:[#allocation2 + $0xa0] sm:$0xff] %vm525, 0.0
        %547 = vst.msk [vmem:[#allocation2 + $0xa8] sm:$0xff] %vm525, 0.0
        %548 = vst.msk [vmem:[#allocation2 + $0xb0] sm:$0xff] %vm525, 0.0
        %549 = vst.msk [vmem:[#allocation2 + $0xb8] sm:$0xff] %vm525, 0.0
        %550 = vst.msk [vmem:[#allocation2 + $0xc0] sm:$0xff] %vm525, 0.0
        %551 = vst.msk [vmem:[#allocation2 + $0xc8] sm:$0xff] %vm525, 0.0
        %552 = vst.msk [vmem:[#allocation2 + $0xd0] sm:$0xff] %vm525, 0.0
        %553 = vst.msk [vmem:[#allocation2 + $0xd8] sm:$0xff] %vm525, 0.0
        %554 = vst.msk [vmem:[#allocation2 + $0xe0] sm:$0xff] %vm525, 0.0
        %555 = vst.msk [vmem:[#allocation2 + $0xe8] sm:$0xff] %vm525, 0.0
        %556 = vst.msk [vmem:[#allocation2 + $0xf0] sm:$0xff] %vm525, 0.0
        %557 = vst.msk [vmem:[#allocation2 + $0xf8] sm:$0xff] %vm525, 0.0
        %558 = vst.msk [vmem:[#allocation2 + $0x100] sm:$0xff] %vm525, 0.0
        %559 = vst.msk [vmem:[#allocation2 + $0x108] sm:$0xff] %vm525, 0.0
        %560 = vst.msk [vmem:[#allocation2 + $0x110] sm:$0xff] %vm525, 0.0
        %561 = vst.msk [vmem:[#allocation2 + $0x118] sm:$0xff] %vm525, 0.0
        %562 = vst.msk [vmem:[#allocation2 + $0x120] sm:$0xff] %vm525, 0.0
        %563 = vst.msk [vmem:[#allocation2 + $0x128] sm:$0xff] %vm525, 0.0
        %564 = vst.msk [vmem:[#allocation2 + $0x130] sm:$0xff] %vm525, 0.0
        %565 = vst.msk [vmem:[#allocation2 + $0x138] sm:$0xff] %vm525, 0.0
        %566 = vst.msk [vmem:[#allocation2 + $0x140] sm:$0xff] %vm525, 0.0
        %567 = vst.msk [vmem:[#allocation2 + $0x148] sm:$0xff] %vm525, 0.0
        %568 = vst.msk [vmem:[#allocation2 + $0x150] sm:$0xff] %vm525, 0.0
        %569 = vst.msk [vmem:[#allocation2 + $0x158] sm:$0xff] %vm525, 0.0
        %570 = vst.msk [vmem:[#allocation2 + $0x160] sm:$0xff] %vm525, 0.0
        %571 = vst.msk [vmem:[#allocation2 + $0x168] sm:$0xff] %vm525, 0.0
        %572 = vst.msk [vmem:[#allocation2 + $0x170] sm:$0xff] %vm525, 0.0
        %573 = vst.msk [vmem:[#allocation2 + $0x178] sm:$0xff] %vm525, 0.0
        %574 = vst.msk [vmem:[#allocation2 + $0x180] sm:$0xff] %vm525, 0.0
        %575 = vst.msk [vmem:[#allocation2 + $0x188] sm:$0xff] %vm525, 0.0
        %576 = vst.msk [vmem:[#allocation2 + $0x190] sm:$0xff] %vm525, 0.0
        %577 = vst.msk [vmem:[#allocation2 + $0x198] sm:$0xff] %vm525, 0.0
        %578 = vst.msk [vmem:[#allocation2 + $0x1a0] sm:$0xff] %vm525, 0.0
        %579 = vst.msk [vmem:[#allocation2 + $0x1a8] sm:$0xff] %vm525, 0.0
        %580 = vst.msk [vmem:[#allocation2 + $0x1b0] sm:$0xff] %vm525, 0.0
        %581 = vst.msk [vmem:[#allocation2 + $0x1b8] sm:$0xff] %vm525, 0.0
        %582 = vst.msk [vmem:[#allocation2 + $0x1c0] sm:$0xff] %vm525, 0.0
        %583 = vst.msk [vmem:[#allocation2 + $0x1c8] sm:$0xff] %vm525, 0.0
        %584 = vst.msk [vmem:[#allocation2 + $0x1d0] sm:$0xff] %vm525, 0.0
        %585 = vst.msk [vmem:[#allocation2 + $0x1d8] sm:$0xff] %vm525, 0.0
        %586 = vst.msk [vmem:[#allocation2 + $0x1e0] sm:$0xff] %vm525, 0.0
        %587 = vst.msk [vmem:[#allocation2 + $0x1e8] sm:$0xff] %vm525, 0.0
        %588 = vst.msk [vmem:[#allocation2 + $0x1f0] sm:$0xff] %vm525, 0.0
        %589 = vst.msk [vmem:[#allocation2 + $0x1f8] sm:$0xff] %vm525, 0.0
        %590 = vst.msk [vmem:[#allocation2 + $0x200] sm:$0xff] %vm525, 0.0
        %591 = vst.msk [vmem:[#allocation2 + $0x208] sm:$0xff] %vm525, 0.0
        %592 = vst.msk [vmem:[#allocation2 + $0x210] sm:$0xff] %vm525, 0.0
        %593 = vst.msk [vmem:[#allocation2 + $0x218] sm:$0xff] %vm525, 0.0
        %594 = vst.msk [vmem:[#allocation2 + $0x220] sm:$0xff] %vm525, 0.0
        %595 = vst.msk [vmem:[#allocation2 + $0x228] sm:$0xff] %vm525, 0.0
        %596 = vst.msk [vmem:[#allocation2 + $0x230] sm:$0xff] %vm525, 0.0
        %597 = vst.msk [vmem:[#allocation2 + $0x238] sm:$0xff] %vm525, 0.0
        %s598 = scalar_lea.vmem [#allocation2], 32
        %599 = vst.msk [vmem:[%s598 + $0x8] sm:$0xff] %vm525, %v493
        %600 = vst.msk [vmem:[%s598 + $0x10] sm:$0xff] %vm525, %v494
        %601 = vst.msk [vmem:[%s598 + $0x28] sm:$0xff] %vm525, %v495
        %602 = vst.msk [vmem:[%s598 + $0x30] sm:$0xff] %vm525, %v496
        %603 = vst.msk [vmem:[%s598 + $0x48] sm:$0xff] %vm525, %v497
        %604 = vst.msk [vmem:[%s598 + $0x50] sm:$0xff] %vm525, %v498
        %605 = vst.msk [vmem:[%s598 + $0x68] sm:$0xff] %vm525, %v499
        %606 = vst.msk [vmem:[%s598 + $0x70] sm:$0xff] %vm525, %v500
        %607 = vst.msk [vmem:[%s598 + $0x88] sm:$0xff] %vm525, %v501
        %608 = vst.msk [vmem:[%s598 + $0x90] sm:$0xff] %vm525, %v502
        %609 = vst.msk [vmem:[%s598 + $0xa8] sm:$0xff] %vm525, %v503
        %610 = vst.msk [vmem:[%s598 + $0xb0] sm:$0xff] %vm525, %v504
        %611 = vst.msk [vmem:[%s598 + $0xc8] sm:$0xff] %vm525, %v505
        %612 = vst.msk [vmem:[%s598 + $0xd0] sm:$0xff] %vm525, %v506
        %613 = vst.msk [vmem:[%s598 + $0xe8] sm:$0xff] %vm525, %v507
        %614 = vst.msk [vmem:[%s598 + $0xf0] sm:$0xff] %vm525, %v508
        %615 = vst.msk [vmem:[%s598 + $0x108] sm:$0xff] %vm525, %v509
        %616 = vst.msk [vmem:[%s598 + $0x110] sm:$0xff] %vm525, %v510
        %617 = vst.msk [vmem:[%s598 + $0x128] sm:$0xff] %vm525, %v511
        %618 = vst.msk [vmem:[%s598 + $0x130] sm:$0xff] %vm525, %v512
        %619 = vst.msk [vmem:[%s598 + $0x148] sm:$0xff] %vm525, %v513
        %620 = vst.msk [vmem:[%s598 + $0x150] sm:$0xff] %vm525, %v514
        %621 = vst.msk [vmem:[%s598 + $0x168] sm:$0xff] %vm525, %v515
        %622 = vst.msk [vmem:[%s598 + $0x170] sm:$0xff] %vm525, %v516
        %623 = vst.msk [vmem:[%s598 + $0x188] sm:$0xff] %vm525, %v517
        %624 = vst.msk [vmem:[%s598 + $0x190] sm:$0xff] %vm525, %v518
        %625 = vst.msk [vmem:[%s598 + $0x1a8] sm:$0xff] %vm525, %v519
        %626 = vst.msk [vmem:[%s598 + $0x1b0] sm:$0xff] %vm525, %v520
        %627 = vst.msk [vmem:[%s598 + $0x1c8] sm:$0xff] %vm525, %v521
        %628 = vst.msk [vmem:[%s598 + $0x1d0] sm:$0xff] %vm525, %v522
        %629 = vst.msk [vmem:[%s598 + $0x1e8] sm:$0xff] %vm525, %v523
        %630 = vst.msk [vmem:[%s598 + $0x1f0] sm:$0xff] %vm525, %v524
        %v631 = vld [vmem:[#allocation2 + $0x7] sm:$0xff]
        %v632 = vld [vmem:[#allocation2 + $0xf] sm:$0xff]
        %v633 = vld [vmem:[#allocation2 + $0x27] sm:$0xff]
        %v634 = vld [vmem:[#allocation2 + $0x2f] sm:$0xff]
        %v635 = vld [vmem:[#allocation2 + $0x47] sm:$0xff]
        %v636 = vld [vmem:[#allocation2 + $0x4f] sm:$0xff]
        %v637 = vld [vmem:[#allocation2 + $0x67] sm:$0xff]
        %v638 = vld [vmem:[#allocation2 + $0x6f] sm:$0xff]
        %v639 = vld [vmem:[#allocation2 + $0x87] sm:$0xff]
        %v640 = vld [vmem:[#allocation2 + $0x8f] sm:$0xff]
        %v641 = vld [vmem:[#allocation2 + $0xa7] sm:$0xff]
        %v642 = vld [vmem:[#allocation2 + $0xaf] sm:$0xff]
        %v643 = vld [vmem:[#allocation2 + $0xc7] sm:$0xff]
        %v644 = vld [vmem:[#allocation2 + $0xcf] sm:$0xff]
        %v645 = vld [vmem:[#allocation2 + $0xe7] sm:$0xff]
        %v646 = vld [vmem:[#allocation2 + $0xef] sm:$0xff]
        %v647 = vld [vmem:[#allocation2 + $0x107] sm:$0xff]
        %v648 = vld [vmem:[#allocation2 + $0x10f] sm:$0xff]
        %v649 = vld [vmem:[#allocation2 + $0x127] sm:$0xff]
        %v650 = vld [vmem:[#allocation2 + $0x12f] sm:$0xff]
        %v651 = vld [vmem:[#allocation2 + $0x147] sm:$0xff]
        %v652 = vld [vmem:[#allocation2 + $0x14f] sm:$0xff]
        %v653 = vld [vmem:[#allocation2 + $0x167] sm:$0xff]
        %v654 = vld [vmem:[#allocation2 + $0x16f] sm:$0xff]
        %v655 = vld [vmem:[#allocation2 + $0x187] sm:$0xff]
        %v656 = vld [vmem:[#allocation2 + $0x18f] sm:$0xff]
        %v657 = vld [vmem:[#allocation2 + $0x1a7] sm:$0xff]
        %v658 = vld [vmem:[#allocation2 + $0x1af] sm:$0xff]
        %v659 = vld [vmem:[#allocation2 + $0x1c7] sm:$0xff]
        %v660 = vld [vmem:[#allocation2 + $0x1cf] sm:$0xff]
        %v661 = vld [vmem:[#allocation2 + $0x1e7] sm:$0xff]
        %v662 = vld [vmem:[#allocation2 + $0x1ef] sm:$0xff]
        %v663 = vpack.c.bf16 %v632, %v631
        %v664 = vpack.c.bf16 %v634, %v633
        %v665 = vpack.c.bf16 %v636, %v635
        %v666 = vpack.c.bf16 %v638, %v637
        %v667 = vpack.c.bf16 %v640, %v639
        %v668 = vpack.c.bf16 %v642, %v641
        %v669 = vpack.c.bf16 %v644, %v643
        %v670 = vpack.c.bf16 %v646, %v645
        %v671 = vpack.c.bf16 %v648, %v647
        %v672 = vpack.c.bf16 %v650, %v649
        %v673 = vpack.c.bf16 %v652, %v651
        %v674 = vpack.c.bf16 %v654, %v653
        %v675 = vpack.c.bf16 %v656, %v655
        %v676 = vpack.c.bf16 %v658, %v657
        %v677 = vpack.c.bf16 %v660, %v659
        %v678 = vpack.c.bf16 %v662, %v661
        %v679 = vld [vmem:[%s1] sm:$0x3]
        %v680 = vld [vmem:[#allocation2 + $0x8] sm:$0xff]
        %v681 = vld [vmem:[#allocation2 + $0x10] sm:$0xff]
        %v682 = vld [vmem:[#allocation2 + $0x28] sm:$0xff]
        %v683 = vld [vmem:[#allocation2 + $0x30] sm:$0xff]
        %v684 = vld [vmem:[#allocation2 + $0x48] sm:$0xff]
        %v685 = vld [vmem:[#allocation2 + $0x50] sm:$0xff]
        %v686 = vld [vmem:[#allocation2 + $0x68] sm:$0xff]
        %v687 = vld [vmem:[#allocation2 + $0x70] sm:$0xff]
        %v688 = vld [vmem:[#allocation2 + $0x88] sm:$0xff]
        %v689 = vld [vmem:[#allocation2 + $0x90] sm:$0xff]
        %v690 = vld [vmem:[#allocation2 + $0xa8] sm:$0xff]
        %v691 = vld [vmem:[#allocation2 + $0xb0] sm:$0xff]
        %v692 = vld [vmem:[#allocation2 + $0xc8] sm:$0xff]
        %v693 = vld [vmem:[#allocation2 + $0xd0] sm:$0xff]
        %v694 = vld [vmem:[#allocation2 + $0xe8] sm:$0xff]
        %v695 = vld [vmem:[#allocation2 + $0xf0] sm:$0xff]
        %v696 = vld [vmem:[#allocation2 + $0x108] sm:$0xff]
        %v697 = vld [vmem:[#allocation2 + $0x110] sm:$0xff]
        %v698 = vld [vmem:[#allocation2 + $0x128] sm:$0xff]
        %v699 = vld [vmem:[#allocation2 + $0x130] sm:$0xff]
        %v700 = vld [vmem:[#allocation2 + $0x148] sm:$0xff]
        %v701 = vld [vmem:[#allocation2 + $0x150] sm:$0xff]
        %v702 = vld [vmem:[#allocation2 + $0x168] sm:$0xff]
        %v703 = vld [vmem:[#allocation2 + $0x170] sm:$0xff]
        %v704 = vld [vmem:[#allocation2 + $0x188] sm:$0xff]
        %v705 = vld [vmem:[#allocation2 + $0x190] sm:$0xff]
        %v706 = vld [vmem:[#allocation2 + $0x1a8] sm:$0xff]
        %v707 = vld [vmem:[#allocation2 + $0x1b0] sm:$0xff]
        %v708 = vld [vmem:[#allocation2 + $0x1c8] sm:$0xff]
        %v709 = vld [vmem:[#allocation2 + $0x1d0] sm:$0xff]
        %v710 = vld [vmem:[#allocation2 + $0x1e8] sm:$0xff]
        %v711 = vld [vmem:[#allocation2 + $0x1f0] sm:$0xff]
        %v712 = vpack.c.bf16 %v681, %v680
        %v713 = vpack.c.bf16 %v683, %v682
        %v714 = vpack.c.bf16 %v685, %v684
        %v715 = vpack.c.bf16 %v687, %v686
        %v716 = vpack.c.bf16 %v689, %v688
        %v717 = vpack.c.bf16 %v691, %v690
        %v718 = vpack.c.bf16 %v693, %v692
        %v719 = vpack.c.bf16 %v695, %v694
        %v720 = vpack.c.bf16 %v697, %v696
        %v721 = vpack.c.bf16 %v699, %v698
        %v722 = vpack.c.bf16 %v701, %v700
        %v723 = vpack.c.bf16 %v703, %v702
        %v724 = vpack.c.bf16 %v705, %v704
        %v725 = vpack.c.bf16 %v707, %v706
        %v726 = vpack.c.bf16 %v709, %v708
        %v727 = vpack.c.bf16 %v711, %v710
        %s728 = scalar_lea.vmem %s1, 2
        %v729 = vld [vmem:[%s728] sm:$0x3]
        %v731 = vsel %vm525, %v712, 0
        %v734 = vsel %vm525, %v713, 0
        %v737 = vsel %vm525, %v714, 0
        %v740 = vsel %vm525, %v715, 0
        %v743 = vsel %vm525, %v716, 0
        %v746 = vsel %vm525, %v717, 0
        %v749 = vsel %vm525, %v718, 0
        %v752 = vsel %vm525, %v719, 0
        %v755 = vsel %vm525, %v720, 0
        %v758 = vsel %vm525, %v721, 0
        %v761 = vsel %vm525, %v722, 0
        %v764 = vsel %vm525, %v723, 0
        %v767 = vsel %vm525, %v724, 0
        %v770 = vsel %vm525, %v725, 0
        %v773 = vsel %vm525, %v726, 0
        %v776 = vsel %vm525, %v727, 0
        %vm778 = vcmask 1040384
        %vm779 = vcmask 1041408
        %v780 = vsel %vm778, 4294967295, 65535
        %v781 = vsel %vm779, %v780, 0
        %v783 = vand.u32 %v729, %v781
        %785 = vmatprep.subr.bf16.mxu0 0
        %786 = vmatpush1.bf16.msra.mxu0 %v783
        %787 = vmatprep.subr.bf16.mxu0 0
        %788 = vmatpush1.bf16.msra.mxu0 0
        %789 = vmatprep.subr.bf16.mxu0 0
        %790 = vmatpush1.bf16.msra.mxu0 0
        %791 = vmatprep.subr.bf16.mxu0 0
        %792 = vmatpush1.bf16.msra.mxu0 0
        %793 = vmatprep.subr.bf16.mxu0 0
        %794 = vmatpush1.bf16.msra.mxu0 0
        %795 = vmatprep.subr.bf16.mxu0 0
        %796 = vmatpush1.bf16.msra.mxu0 0
        %797 = vmatprep.subr.bf16.mxu0 0
        %798 = vmatpush1.bf16.msra.mxu0 0
        %799 = vmatprep.subr.bf16.mxu0 0
        %800 = vmatpush1.bf16.msra.mxu0 0
        %801 = vmatprep.subr.bf16.mxu0 0
        %802 = vmatpush1.bf16.msra.mxu0 0
        %803 = vmatprep.subr.bf16.mxu0 0
        %804 = vmatpush1.bf16.msra.mxu0 0
        %805 = vmatprep.subr.bf16.mxu0 0
        %806 = vmatpush1.bf16.msra.mxu0 0
        %807 = vmatprep.subr.bf16.mxu0 0
        %808 = vmatpush1.bf16.msra.mxu0 0
        %809 = vmatprep.subr.bf16.mxu0 0
        %810 = vmatpush1.bf16.msra.mxu0 0
        %811 = vmatprep.subr.bf16.mxu0 0
        %812 = vmatpush1.bf16.msra.mxu0 0
        %813 = vmatprep.subr.bf16.mxu0 0
        %814 = vmatpush1.bf16.msra.mxu0 0
        %815 = vmatprep.subr.bf16.mxu0 0
        %816 = vmatpush1.bf16.msra.mxu0 0
        %817 = vmatprep.mubr.bf16.mxu0 0
        %818 = vmatmul.mubr.bf16.gmra.mrb[0].mxu0 %v731
        %v819 = vpop.f32.mrb[0].mxu0
        %v820 = vadd.f32 0.0, %v819
        %v821 = vpop.f32.mrb[0].mxu0
        %v822 = vpop.f32.mrb[0].mxu0
        %v823 = vadd.f32 0.0, %v822
        %v824 = vpop.f32.mrb[0].mxu0
        %825 = vmatprep.mubr.bf16.mxu0 0
        %826 = vmatmul.mubr.bf16.gmra.mrb[0].mxu0 %v734
        %v827 = vpop.f32.mrb[0].mxu0
        %v828 = vadd.f32 0.0, %v827
        %v829 = vpop.f32.mrb[0].mxu0
        %v830 = vpop.f32.mrb[0].mxu0
        %v831 = vadd.f32 0.0, %v830
        %v832 = vpop.f32.mrb[0].mxu0
        %833 = vmatprep.mubr.bf16.mxu0 0
        %834 = vmatmul.mubr.bf16.gmra.mrb[0].mxu0 %v737
        %v835 = vpop.f32.mrb[0].mxu0
        %v836 = vadd.f32 0.0, %v835
        %v837 = vpop.f32.mrb[0].mxu0
        %v838 = vpop.f32.mrb[0].mxu0
        %v839 = vadd.f32 0.0, %v838
        %v840 = vpop.f32.mrb[0].mxu0
        %841 = vmatprep.mubr.bf16.mxu0 0
        %842 = vmatmul.mubr.bf16.gmra.mrb[0].mxu0 %v740
        %v843 = vpop.f32.mrb[0].mxu0
        %v844 = vadd.f32 0.0, %v843
        %v845 = vpop.f32.mrb[0].mxu0
        %v846 = vpop.f32.mrb[0].mxu0
        %v847 = vadd.f32 0.0, %v846
        %v848 = vpop.f32.mrb[0].mxu0
        %849 = vmatprep.mubr.bf16.mxu0 0
        %850 = vmatmul.mubr.bf16.gmra.mrb[0].mxu0 %v743
        %v851 = vpop.f32.mrb[0].mxu0
        %v852 = vadd.f32 0.0, %v851
        %v853 = vpop.f32.mrb[0].mxu0
        %v854 = vpop.f32.mrb[0].mxu0
        %v855 = vadd.f32 0.0, %v854
        %v856 = vpop.f32.mrb[0].mxu0
        %857 = vmatprep.mubr.bf16.mxu0 0
        %858 = vmatmul.mubr.bf16.gmra.mrb[0].mxu0 %v746
        %v859 = vpop.f32.mrb[0].mxu0
        %v860 = vadd.f32 0.0, %v859
        %v861 = vpop.f32.mrb[0].mxu0
        %v862 = vpop.f32.mrb[0].mxu0
        %v863 = vadd.f32 0.0, %v862
        %v864 = vpop.f32.mrb[0].mxu0
        %865 = vmatprep.mubr.bf16.mxu0 0
        %866 = vmatmul.mubr.bf16.gmra.mrb[0].mxu0 %v749
        %v867 = vpop.f32.mrb[0].mxu0
        %v868 = vadd.f32 0.0, %v867
        %v869 = vpop.f32.mrb[0].mxu0
        %v870 = vpop.f32.mrb[0].mxu0
        %v871 = vadd.f32 0.0, %v870
        %v872 = vpop.f32.mrb[0].mxu0
        %873 = vmatprep.mubr.bf16.mxu0 0
        %874 = vmatmul.mubr.bf16.gmra.mrb[0].mxu0 %v752
        %v875 = vpop.f32.mrb[0].mxu0
        %v876 = vadd.f32 0.0, %v875
        %v877 = vpop.f32.mrb[0].mxu0
        %v878 = vpop.f32.mrb[0].mxu0
        %v879 = vadd.f32 0.0, %v878
        %v880 = vpop.f32.mrb[0].mxu0
        %881 = vmatprep.mubr.bf16.mxu0 0
        %882 = vmatmul.mubr.bf16.gmra.mrb[0].mxu0 %v755
        %v883 = vpop.f32.mrb[0].mxu0
        %v884 = vadd.f32 0.0, %v883
        %v885 = vpop.f32.mrb[0].mxu0
        %v886 = vpop.f32.mrb[0].mxu0
        %v887 = vadd.f32 0.0, %v886
        %v888 = vpop.f32.mrb[0].mxu0
        %889 = vmatprep.mubr.bf16.mxu0 0
        %890 = vmatmul.mubr.bf16.gmra.mrb[0].mxu0 %v758
        %v891 = vpop.f32.mrb[0].mxu0
        %v892 = vadd.f32 0.0, %v891
        %v893 = vpop.f32.mrb[0].mxu0
        %v894 = vpop.f32.mrb[0].mxu0
        %v895 = vadd.f32 0.0, %v894
        %v896 = vpop.f32.mrb[0].mxu0
        %897 = vmatprep.mubr.bf16.mxu0 0
        %898 = vmatmul.mubr.bf16.gmra.mrb[0].mxu0 %v761
        %v899 = vpop.f32.mrb[0].mxu0
        %v900 = vadd.f32 0.0, %v899
        %v901 = vpop.f32.mrb[0].mxu0
        %v902 = vpop.f32.mrb[0].mxu0
        %v903 = vadd.f32 0.0, %v902
        %v904 = vpop.f32.mrb[0].mxu0
        %905 = vmatprep.mubr.bf16.mxu0 0
        %906 = vmatmul.mubr.bf16.gmra.mrb[0].mxu0 %v764
        %v907 = vpop.f32.mrb[0].mxu0
        %v908 = vadd.f32 0.0, %v907
        %v909 = vpop.f32.mrb[0].mxu0
        %v910 = vpop.f32.mrb[0].mxu0
        %v911 = vadd.f32 0.0, %v910
        %v912 = vpop.f32.mrb[0].mxu0
        %913 = vmatprep.mubr.bf16.mxu0 0
        %914 = vmatmul.mubr.bf16.gmra.mrb[0].mxu0 %v767
        %v915 = vpop.f32.mrb[0].mxu0
        %v916 = vadd.f32 0.0, %v915
        %v917 = vpop.f32.mrb[0].mxu0
        %v918 = vpop.f32.mrb[0].mxu0
        %v919 = vadd.f32 0.0, %v918
        %v920 = vpop.f32.mrb[0].mxu0
        %921 = vmatprep.mubr.bf16.mxu0 0
        %922 = vmatmul.mubr.bf16.gmra.mrb[0].mxu0 %v770
        %v923 = vpop.f32.mrb[0].mxu0
        %v924 = vadd.f32 0.0, %v923
        %v925 = vpop.f32.mrb[0].mxu0
        %v926 = vpop.f32.mrb[0].mxu0
        %v927 = vadd.f32 0.0, %v926
        %v928 = vpop.f32.mrb[0].mxu0
        %929 = vmatprep.mubr.bf16.mxu0 0
        %930 = vmatmul.mubr.bf16.gmra.mrb[0].mxu0 %v773
        %v931 = vpop.f32.mrb[0].mxu0
        %v932 = vadd.f32 0.0, %v931
        %v933 = vpop.f32.mrb[0].mxu0
        %v934 = vpop.f32.mrb[0].mxu0
        %v935 = vadd.f32 0.0, %v934
        %v936 = vpop.f32.mrb[0].mxu0
        %937 = vmatprep.mubr.bf16.mxu0 0
        %938 = vmatmul.mubr.bf16.gmra.mrb[0].mxu0 %v776
        %v939 = vpop.f32.mrb[0].mxu0
        %v940 = vadd.f32 0.0, %v939
        %v941 = vpop.f32.mrb[0].mxu0
        %v942 = vpop.f32.mrb[0].mxu0
        %v943 = vadd.f32 0.0, %v942
        %v944 = vpop.f32.mrb[0].mxu0
        %945 = vdwg.mxu0
        %v947 = vsel %vm525, %v663, 0
        %v950 = vsel %vm525, %v664, 0
        %v953 = vsel %vm525, %v665, 0
        %v956 = vsel %vm525, %v666, 0
        %v959 = vsel %vm525, %v667, 0
        %v962 = vsel %vm525, %v668, 0
        %v965 = vsel %vm525, %v669, 0
        %v968 = vsel %vm525, %v670, 0
        %v971 = vsel %vm525, %v671, 0
        %v974 = vsel %vm525, %v672, 0
        %v977 = vsel %vm525, %v673, 0
        %v980 = vsel %vm525, %v674, 0
        %v983 = vsel %vm525, %v675, 0
        %v986 = vsel %vm525, %v676, 0
        %v989 = vsel %vm525, %v677, 0
        %v992 = vsel %vm525, %v678, 0
        %v995 = vand.u32 %v679, %v781
        %997 = vmatprep.subr.bf16.mxu0 0
        %998 = vmatpush1.bf16.msra.mxu0 %v995
        %999 = vmatprep.subr.bf16.mxu0 0
        %1000 = vmatpush1.bf16.msra.mxu0 0
        %1001 = vmatprep.subr.bf16.mxu0 0
        %1002 = vmatpush1.bf16.msra.mxu0 0
        %1003 = vmatprep.subr.bf16.mxu0 0
        %1004 = vmatpush1.bf16.msra.mxu0 0
        %1005 = vmatprep.subr.bf16.mxu0 0
        %1006 = vmatpush1.bf16.msra.mxu0 0
        %1007 = vmatprep.subr.bf16.mxu0 0
        %1008 = vmatpush1.bf16.msra.mxu0 0
        %1009 = vmatprep.subr.bf16.mxu0 0
        %1010 = vmatpush1.bf16.msra.mxu0 0
        %1011 = vmatprep.subr.bf16.mxu0 0
        %1012 = vmatpush1.bf16.msra.mxu0 0
        %1013 = vmatprep.subr.bf16.mxu0 0
        %1014 = vmatpush1.bf16.msra.mxu0 0
        %1015 = vmatprep.subr.bf16.mxu0 0
        %1016 = vmatpush1.bf16.msra.mxu0 0
        %1017 = vmatprep.subr.bf16.mxu0 0
        %1018 = vmatpush1.bf16.msra.mxu0 0
        %1019 = vmatprep.subr.bf16.mxu0 0
        %1020 = vmatpush1.bf16.msra.mxu0 0
        %1021 = vmatprep.subr.bf16.mxu0 0
        %1022 = vmatpush1.bf16.msra.mxu0 0
        %1023 = vmatprep.subr.bf16.mxu0 0
        %1024 = vmatpush1.bf16.msra.mxu0 0
        %1025 = vmatprep.subr.bf16.mxu0 0
        %1026 = vmatpush1.bf16.msra.mxu0 0
        %1027 = vmatprep.subr.bf16.mxu0 0
        %1028 = vmatpush1.bf16.msra.mxu0 0
        %1029 = vmatprep.mubr.bf16.mxu0 0
        %1030 = vmatmul.mubr.bf16.gmra.mrb[0].mxu0 %v947
        %v1031 = vpop.f32.mrb[0].mxu0
        %v1032 = vadd.f32 %v820, %v1031
        %v1033 = vpop.f32.mrb[0].mxu0
        %v1034 = vpop.f32.mrb[0].mxu0
        %v1035 = vadd.f32 %v823, %v1034
        %v1036 = vpop.f32.mrb[0].mxu0
        %1037 = vmatprep.mubr.bf16.mxu0 0
        %1038 = vmatmul.mubr.bf16.gmra.mrb[0].mxu0 %v950
        %v1039 = vpop.f32.mrb[0].mxu0
        %v1040 = vadd.f32 %v828, %v1039
        %v1041 = vpop.f32.mrb[0].mxu0
        %v1042 = vpop.f32.mrb[0].mxu0
        %v1043 = vadd.f32 %v831, %v1042
        %v1044 = vpop.f32.mrb[0].mxu0
        %1045 = vmatprep.mubr.bf16.mxu0 0
        %1046 = vmatmul.mubr.bf16.gmra.mrb[0].mxu0 %v953
        %v1047 = vpop.f32.mrb[0].mxu0
        %v1048 = vadd.f32 %v836, %v1047
        %v1049 = vpop.f32.mrb[0].mxu0
        %v1050 = vpop.f32.mrb[0].mxu0
        %v1051 = vadd.f32 %v839, %v1050
        %v1052 = vpop.f32.mrb[0].mxu0
        %1053 = vmatprep.mubr.bf16.mxu0 0
        %1054 = vmatmul.mubr.bf16.gmra.mrb[0].mxu0 %v956
        %v1055 = vpop.f32.mrb[0].mxu0
        %v1056 = vadd.f32 %v844, %v1055
        %v1057 = vpop.f32.mrb[0].mxu0
        %v1058 = vpop.f32.mrb[0].mxu0
        %v1059 = vadd.f32 %v847, %v1058
        %v1060 = vpop.f32.mrb[0].mxu0
        %1061 = vmatprep.mubr.bf16.mxu0 0
        %1062 = vmatmul.mubr.bf16.gmra.mrb[0].mxu0 %v959
        %v1063 = vpop.f32.mrb[0].mxu0
        %v1064 = vadd.f32 %v852, %v1063
        %v1065 = vpop.f32.mrb[0].mxu0
        %v1066 = vpop.f32.mrb[0].mxu0
        %v1067 = vadd.f32 %v855, %v1066
        %v1068 = vpop.f32.mrb[0].mxu0
        %1069 = vmatprep.mubr.bf16.mxu0 0
        %1070 = vmatmul.mubr.bf16.gmra.mrb[0].mxu0 %v962
        %v1071 = vpop.f32.mrb[0].mxu0
        %v1072 = vadd.f32 %v860, %v1071
        %v1073 = vpop.f32.mrb[0].mxu0
        %v1074 = vpop.f32.mrb[0].mxu0
        %v1075 = vadd.f32 %v863, %v1074
        %v1076 = vpop.f32.mrb[0].mxu0
        %1077 = vmatprep.mubr.bf16.mxu0 0
        %1078 = vmatmul.mubr.bf16.gmra.mrb[0].mxu0 %v965
        %v1079 = vpop.f32.mrb[0].mxu0
        %v1080 = vadd.f32 %v868, %v1079
        %v1081 = vpop.f32.mrb[0].mxu0
        %v1082 = vpop.f32.mrb[0].mxu0
        %v1083 = vadd.f32 %v871, %v1082
        %v1084 = vpop.f32.mrb[0].mxu0
        %1085 = vmatprep.mubr.bf16.mxu0 0
        %1086 = vmatmul.mubr.bf16.gmra.mrb[0].mxu0 %v968
        %v1087 = vpop.f32.mrb[0].mxu0
        %v1088 = vadd.f32 %v876, %v1087
        %v1089 = vpop.f32.mrb[0].mxu0
        %v1090 = vpop.f32.mrb[0].mxu0
        %v1091 = vadd.f32 %v879, %v1090
        %v1092 = vpop.f32.mrb[0].mxu0
        %1093 = vmatprep.mubr.bf16.mxu0 0
        %1094 = vmatmul.mubr.bf16.gmra.mrb[0].mxu0 %v971
        %v1095 = vpop.f32.mrb[0].mxu0
        %v1096 = vadd.f32 %v884, %v1095
        %v1097 = vpop.f32.mrb[0].mxu0
        %v1098 = vpop.f32.mrb[0].mxu0
        %v1099 = vadd.f32 %v887, %v1098
        %v1100 = vpop.f32.mrb[0].mxu0
        %1101 = vmatprep.mubr.bf16.mxu0 0
        %1102 = vmatmul.mubr.bf16.gmra.mrb[0].mxu0 %v974
        %v1103 = vpop.f32.mrb[0].mxu0
        %v1104 = vadd.f32 %v892, %v1103
        %v1105 = vpop.f32.mrb[0].mxu0
        %v1106 = vpop.f32.mrb[0].mxu0
        %v1107 = vadd.f32 %v895, %v1106
        %v1108 = vpop.f32.mrb[0].mxu0
        %1109 = vmatprep.mubr.bf16.mxu0 0
        %1110 = vmatmul.mubr.bf16.gmra.mrb[0].mxu0 %v977
        %v1111 = vpop.f32.mrb[0].mxu0
        %v1112 = vadd.f32 %v900, %v1111
        %v1113 = vpop.f32.mrb[0].mxu0
        %v1114 = vpop.f32.mrb[0].mxu0
        %v1115 = vadd.f32 %v903, %v1114
        %v1116 = vpop.f32.mrb[0].mxu0
        %1117 = vmatprep.mubr.bf16.mxu0 0
        %1118 = vmatmul.mubr.bf16.gmra.mrb[0].mxu0 %v980
        %v1119 = vpop.f32.mrb[0].mxu0
        %v1120 = vadd.f32 %v908, %v1119
        %v1121 = vpop.f32.mrb[0].mxu0
        %v1122 = vpop.f32.mrb[0].mxu0
        %v1123 = vadd.f32 %v911, %v1122
        %v1124 = vpop.f32.mrb[0].mxu0
        %1125 = vmatprep.mubr.bf16.mxu0 0
        %1126 = vmatmul.mubr.bf16.gmra.mrb[0].mxu0 %v983
        %v1127 = vpop.f32.mrb[0].mxu0
        %v1128 = vadd.f32 %v916, %v1127
        %v1129 = vpop.f32.mrb[0].mxu0
        %v1130 = vpop.f32.mrb[0].mxu0
        %v1131 = vadd.f32 %v919, %v1130
        %v1132 = vpop.f32.mrb[0].mxu0
        %1133 = vmatprep.mubr.bf16.mxu0 0
        %1134 = vmatmul.mubr.bf16.gmra.mrb[0].mxu0 %v986
        %v1135 = vpop.f32.mrb[0].mxu0
        %v1136 = vadd.f32 %v924, %v1135
        %v1137 = vpop.f32.mrb[0].mxu0
        %v1138 = vpop.f32.mrb[0].mxu0
        %v1139 = vadd.f32 %v927, %v1138
        %v1140 = vpop.f32.mrb[0].mxu0
        %1141 = vmatprep.mubr.bf16.mxu0 0
        %1142 = vmatmul.mubr.bf16.gmra.mrb[0].mxu0 %v989
        %v1143 = vpop.f32.mrb[0].mxu0
        %v1144 = vadd.f32 %v932, %v1143
        %v1145 = vpop.f32.mrb[0].mxu0
        %v1146 = vpop.f32.mrb[0].mxu0
        %v1147 = vadd.f32 %v935, %v1146
        %v1148 = vpop.f32.mrb[0].mxu0
        %1149 = vmatprep.mubr.bf16.mxu0 0
        %1150 = vmatmul.mubr.bf16.gmra.mrb[0].mxu0 %v992
        %v1151 = vpop.f32.mrb[0].mxu0
        %v1152 = vadd.f32 %v940, %v1151
        %v1153 = vpop.f32.mrb[0].mxu0
        %v1154 = vpop.f32.mrb[0].mxu0
        %v1155 = vadd.f32 %v943, %v1154
        %v1156 = vpop.f32.mrb[0].mxu0
        %1157 = vdwg.mxu0
        %v1158 = vld [vmem:[#allocation2 + $0x9] sm:$0xff]
        %v1159 = vld [vmem:[#allocation2 + $0x11] sm:$0xff]
        %v1160 = vld [vmem:[#allocation2 + $0x29] sm:$0xff]
        %v1161 = vld [vmem:[#allocation2 + $0x31] sm:$0xff]
        %v1162 = vld [vmem:[#allocation2 + $0x49] sm:$0xff]
        %v1163 = vld [vmem:[#allocation2 + $0x51] sm:$0xff]
        %v1164 = vld [vmem:[#allocation2 + $0x69] sm:$0xff]
        %v1165 = vld [vmem:[#allocation2 + $0x71] sm:$0xff]
        %v1166 = vld [vmem:[#allocation2 + $0x89] sm:$0xff]
        %v1167 = vld [vmem:[#allocation2 + $0x91] sm:$0xff]
        %v1168 = vld [vmem:[#allocation2 + $0xa9] sm:$0xff]
        %v1169 = vld [vmem:[#allocation2 + $0xb1] sm:$0xff]
        %v1170 = vld [vmem:[#allocation2 + $0xc9] sm:$0xff]
        %v1171 = vld [vmem:[#allocation2 + $0xd1] sm:$0xff]
        %v1172 = vld [vmem:[#allocation2 + $0xe9] sm:$0xff]
        %v1173 = vld [vmem:[#allocation2 + $0xf1] sm:$0xff]
        %v1174 = vld [vmem:[#allocation2 + $0x109] sm:$0xff]
        %v1175 = vld [vmem:[#allocation2 + $0x111] sm:$0xff]
        %v1176 = vld [vmem:[#allocation2 + $0x129] sm:$0xff]
        %v1177 = vld [vmem:[#allocation2 + $0x131] sm:$0xff]
        %v1178 = vld [vmem:[#allocation2 + $0x149] sm:$0xff]
        %v1179 = vld [vmem:[#allocation2 + $0x151] sm:$0xff]
        %v1180 = vld [vmem:[#allocation2 + $0x169] sm:$0xff]
        %v1181 = vld [vmem:[#allocation2 + $0x171] sm:$0xff]
        %v1182 = vld [vmem:[#allocation2 + $0x189] sm:$0xff]
        %v1183 = vld [vmem:[#allocation2 + $0x191] sm:$0xff]
        %v1184 = vld [vmem:[#allocation2 + $0x1a9] sm:$0xff]
        %v1185 = vld [vmem:[#allocation2 + $0x1b1] sm:$0xff]
        %v1186 = vld [vmem:[#allocation2 + $0x1c9] sm:$0xff]
        %v1187 = vld [vmem:[#allocation2 + $0x1d1] sm:$0xff]
        %v1188 = vld [vmem:[#allocation2 + $0x1e9] sm:$0xff]
        %v1189 = vld [vmem:[#allocation2 + $0x1f1] sm:$0xff]
        %v1190 = vpack.c.bf16 %v1159, %v1158
        %v1191 = vpack.c.bf16 %v1161, %v1160
        %v1192 = vpack.c.bf16 %v1163, %v1162
        %v1193 = vpack.c.bf16 %v1165, %v1164
        %v1194 = vpack.c.bf16 %v1167, %v1166
        %v1195 = vpack.c.bf16 %v1169, %v1168
        %v1196 = vpack.c.bf16 %v1171, %v1170
        %v1197 = vpack.c.bf16 %v1173, %v1172
        %v1198 = vpack.c.bf16 %v1175, %v1174
        %v1199 = vpack.c.bf16 %v1177, %v1176
        %v1200 = vpack.c.bf16 %v1179, %v1178
        %v1201 = vpack.c.bf16 %v1181, %v1180
        %v1202 = vpack.c.bf16 %v1183, %v1182
        %v1203 = vpack.c.bf16 %v1185, %v1184
        %v1204 = vpack.c.bf16 %v1187, %v1186
        %v1205 = vpack.c.bf16 %v1189, %v1188
        %s1206 = scalar_lea.vmem %s1, 4
        %v1207 = vld [vmem:[%s1206] sm:$0x3]
        %v1209 = vsel %vm525, %v1190, 0
        %v1212 = vsel %vm525, %v1191, 0
        %v1215 = vsel %vm525, %v1192, 0
        %v1218 = vsel %vm525, %v1193, 0
        %v1221 = vsel %vm525, %v1194, 0
        %v1224 = vsel %vm525, %v1195, 0
        %v1227 = vsel %vm525, %v1196, 0
        %v1230 = vsel %vm525, %v1197, 0
        %v1233 = vsel %vm525, %v1198, 0
        %v1236 = vsel %vm525, %v1199, 0
        %v1239 = vsel %vm525, %v1200, 0
        %v1242 = vsel %vm525, %v1201, 0
        %v1245 = vsel %vm525, %v1202, 0
        %v1248 = vsel %vm525, %v1203, 0
        %v1251 = vsel %vm525, %v1204, 0
        %v1254 = vsel %vm525, %v1205, 0
        %v1257 = vand.u32 %v1207, %v781
        %1259 = vmatprep.subr.bf16.mxu0 0
        %1260 = vmatpush1.bf16.msra.mxu0 %v1257
        %1261 = vmatprep.subr.bf16.mxu0 0
        %1262 = vmatpush1.bf16.msra.mxu0 0
        %1263 = vmatprep.subr.bf16.mxu0 0
        %1264 = vmatpush1.bf16.msra.mxu0 0
        %1265 = vmatprep.subr.bf16.mxu0 0
        %1266 = vmatpush1.bf16.msra.mxu0 0
        %1267 = vmatprep.subr.bf16.mxu0 0
        %1268 = vmatpush1.bf16.msra.mxu0 0
        %1269 = vmatprep.subr.bf16.mxu0 0
        %1270 = vmatpush1.bf16.msra.mxu0 0
        %1271 = vmatprep.subr.bf16.mxu0 0
        %1272 = vmatpush1.bf16.msra.mxu0 0
        %1273 = vmatprep.subr.bf16.mxu0 0
        %1274 = vmatpush1.bf16.msra.mxu0 0
        %1275 = vmatprep.subr.bf16.mxu0 0
        %1276 = vmatpush1.bf16.msra.mxu0 0
        %1277 = vmatprep.subr.bf16.mxu0 0
        %1278 = vmatpush1.bf16.msra.mxu0 0
        %1279 = vmatprep.subr.bf16.mxu0 0
        %1280 = vmatpush1.bf16.msra.mxu0 0
        %1281 = vmatprep.subr.bf16.mxu0 0
        %1282 = vmatpush1.bf16.msra.mxu0 0
        %1283 = vmatprep.subr.bf16.mxu0 0
        %1284 = vmatpush1.bf16.msra.mxu0 0
        %1285 = vmatprep.subr.bf16.mxu0 0
        %1286 = vmatpush1.bf16.msra.mxu0 0
        %1287 = vmatprep.subr.bf16.mxu0 0
        %1288 = vmatpush1.bf16.msra.mxu0 0
        %1289 = vmatprep.subr.bf16.mxu0 0
        %1290 = vmatpush1.bf16.msra.mxu0 0
        %1291 = vmatprep.mubr.bf16.mxu0 0
        %1292 = vmatmul.mubr.bf16.gmra.mrb[0].mxu0 %v1209
        %v1293 = vpop.f32.mrb[0].mxu0
        %v1294 = vadd.f32 0.0, %v1293
        %v1295 = vpop.f32.mrb[0].mxu0
        %v1296 = vpop.f32.mrb[0].mxu0
        %v1297 = vadd.f32 0.0, %v1296
        %v1298 = vpop.f32.mrb[0].mxu0
        %1299 = vmatprep.mubr.bf16.mxu0 0
        %1300 = vmatmul.mubr.bf16.gmra.mrb[0].mxu0 %v1212
        %v1301 = vpop.f32.mrb[0].mxu0
        %v1302 = vadd.f32 0.0, %v1301
        %v1303 = vpop.f32.mrb[0].mxu0
        %v1304 = vpop.f32.mrb[0].mxu0
        %v1305 = vadd.f32 0.0, %v1304
        %v1306 = vpop.f32.mrb[0].mxu0
        %1307 = vmatprep.mubr.bf16.mxu0 0
        %1308 = vmatmul.mubr.bf16.gmra.mrb[0].mxu0 %v1215
        %v1309 = vpop.f32.mrb[0].mxu0
        %v1310 = vadd.f32 0.0, %v1309
        %v1311 = vpop.f32.mrb[0].mxu0
        %v1312 = vpop.f32.mrb[0].mxu0
        %v1313 = vadd.f32 0.0, %v1312
        %v1314 = vpop.f32.mrb[0].mxu0
        %1315 = vmatprep.mubr.bf16.mxu0 0
        %1316 = vmatmul.mubr.bf16.gmra.mrb[0].mxu0 %v1218
        %v1317 = vpop.f32.mrb[0].mxu0
        %v1318 = vadd.f32 0.0, %v1317
        %v1319 = vpop.f32.mrb[0].mxu0
        %v1320 = vpop.f32.mrb[0].mxu0
        %v1321 = vadd.f32 0.0, %v1320
        %v1322 = vpop.f32.mrb[0].mxu0
        %1323 = vmatprep.mubr.bf16.mxu0 0
        %1324 = vmatmul.mubr.bf16.gmra.mrb[0].mxu0 %v1221
        %v1325 = vpop.f32.mrb[0].mxu0
        %v1326 = vadd.f32 0.0, %v1325
        %v1327 = vpop.f32.mrb[0].mxu0
        %v1328 = vpop.f32.mrb[0].mxu0
        %v1329 = vadd.f32 0.0, %v1328
        %v1330 = vpop.f32.mrb[0].mxu0
        %1331 = vmatprep.mubr.bf16.mxu0 0
        %1332 = vmatmul.mubr.bf16.gmra.mrb[0].mxu0 %v1224
        %v1333 = vpop.f32.mrb[0].mxu0
        %v1334 = vadd.f32 0.0, %v1333
        %v1335 = vpop.f32.mrb[0].mxu0
        %v1336 = vpop.f32.mrb[0].mxu0
        %v1337 = vadd.f32 0.0, %v1336
        %v1338 = vpop.f32.mrb[0].mxu0
        %1339 = vmatprep.mubr.bf16.mxu0 0
        %1340 = vmatmul.mubr.bf16.gmra.mrb[0].mxu0 %v1227
        %v1341 = vpop.f32.mrb[0].mxu0
        %v1342 = vadd.f32 0.0, %v1341
        %v1343 = vpop.f32.mrb[0].mxu0
        %v1344 = vpop.f32.mrb[0].mxu0
        %v1345 = vadd.f32 0.0, %v1344
        %v1346 = vpop.f32.mrb[0].mxu0
        %1347 = vmatprep.mubr.bf16.mxu0 0
        %1348 = vmatmul.mubr.bf16.gmra.mrb[0].mxu0 %v1230
        %v1349 = vpop.f32.mrb[0].mxu0
        %v1350 = vadd.f32 0.0, %v1349
        %v1351 = vpop.f32.mrb[0].mxu0
        %v1352 = vpop.f32.mrb[0].mxu0
        %v1353 = vadd.f32 0.0, %v1352
        %v1354 = vpop.f32.mrb[0].mxu0
        %1355 = vmatprep.mubr.bf16.mxu0 0
        %1356 = vmatmul.mubr.bf16.gmra.mrb[0].mxu0 %v1233
        %v1357 = vpop.f32.mrb[0].mxu0
        %v1358 = vadd.f32 0.0, %v1357
        %v1359 = vpop.f32.mrb[0].mxu0
        %v1360 = vpop.f32.mrb[0].mxu0
        %v1361 = vadd.f32 0.0, %v1360
        %v1362 = vpop.f32.mrb[0].mxu0
        %1363 = vmatprep.mubr.bf16.mxu0 0
        %1364 = vmatmul.mubr.bf16.gmra.mrb[0].mxu0 %v1236
        %v1365 = vpop.f32.mrb[0].mxu0
        %v1366 = vadd.f32 0.0, %v1365
        %v1367 = vpop.f32.mrb[0].mxu0
        %v1368 = vpop.f32.mrb[0].mxu0
        %v1369 = vadd.f32 0.0, %v1368
        %v1370 = vpop.f32.mrb[0].mxu0
        %1371 = vmatprep.mubr.bf16.mxu0 0
        %1372 = vmatmul.mubr.bf16.gmra.mrb[0].mxu0 %v1239
        %v1373 = vpop.f32.mrb[0].mxu0
        %v1374 = vadd.f32 0.0, %v1373
        %v1375 = vpop.f32.mrb[0].mxu0
        %v1376 = vpop.f32.mrb[0].mxu0
        %v1377 = vadd.f32 0.0, %v1376
        %v1378 = vpop.f32.mrb[0].mxu0
        %1379 = vmatprep.mubr.bf16.mxu0 0
        %1380 = vmatmul.mubr.bf16.gmra.mrb[0].mxu0 %v1242
        %v1381 = vpop.f32.mrb[0].mxu0
        %v1382 = vadd.f32 0.0, %v1381
        %v1383 = vpop.f32.mrb[0].mxu0
        %v1384 = vpop.f32.mrb[0].mxu0
        %v1385 = vadd.f32 0.0, %v1384
        %v1386 = vpop.f32.mrb[0].mxu0
        %1387 = vmatprep.mubr.bf16.mxu0 0
        %1388 = vmatmul.mubr.bf16.gmra.mrb[0].mxu0 %v1245
        %v1389 = vpop.f32.mrb[0].mxu0
        %v1390 = vadd.f32 0.0, %v1389
        %v1391 = vpop.f32.mrb[0].mxu0
        %v1392 = vpop.f32.mrb[0].mxu0
        %v1393 = vadd.f32 0.0, %v1392
        %v1394 = vpop.f32.mrb[0].mxu0
        %1395 = vmatprep.mubr.bf16.mxu0 0
        %1396 = vmatmul.mubr.bf16.gmra.mrb[0].mxu0 %v1248
        %v1397 = vpop.f32.mrb[0].mxu0
        %v1398 = vadd.f32 0.0, %v1397
        %v1399 = vpop.f32.mrb[0].mxu0
        %v1400 = vpop.f32.mrb[0].mxu0
        %v1401 = vadd.f32 0.0, %v1400
        %v1402 = vpop.f32.mrb[0].mxu0
        %1403 = vmatprep.mubr.bf16.mxu0 0
        %1404 = vmatmul.mubr.bf16.gmra.mrb[0].mxu0 %v1251
        %v1405 = vpop.f32.mrb[0].mxu0
        %v1406 = vadd.f32 0.0, %v1405
        %v1407 = vpop.f32.mrb[0].mxu0
        %v1408 = vpop.f32.mrb[0].mxu0
        %v1409 = vadd.f32 0.0, %v1408
        %v1410 = vpop.f32.mrb[0].mxu0
        %1411 = vmatprep.mubr.bf16.mxu0 0
        %1412 = vmatmul.mubr.bf16.gmra.mrb[0].mxu0 %v1254
        %v1413 = vpop.f32.mrb[0].mxu0
        %v1414 = vadd.f32 0.0, %v1413
        %v1415 = vpop.f32.mrb[0].mxu0
        %v1416 = vpop.f32.mrb[0].mxu0
        %v1417 = vadd.f32 0.0, %v1416
        %v1418 = vpop.f32.mrb[0].mxu0
        %1419 = vdwg.mxu0
        %v1420 = vadd.f32 %v1032, %v1294
        %v1421 = vadd.f32 %v1035, %v1297
        %v1422 = vadd.f32 %v1040, %v1302
        %v1423 = vadd.f32 %v1043, %v1305
        %v1424 = vadd.f32 %v1048, %v1310
        %v1425 = vadd.f32 %v1051, %v1313
        %v1426 = vadd.f32 %v1056, %v1318
        %v1427 = vadd.f32 %v1059, %v1321
        %v1428 = vadd.f32 %v1064, %v1326
        %v1429 = vadd.f32 %v1067, %v1329
        %v1430 = vadd.f32 %v1072, %v1334
        %v1431 = vadd.f32 %v1075, %v1337
        %v1432 = vadd.f32 %v1080, %v1342
        %v1433 = vadd.f32 %v1083, %v1345
        %v1434 = vadd.f32 %v1088, %v1350
        %v1435 = vadd.f32 %v1091, %v1353
        %v1436 = vadd.f32 %v1096, %v1358
        %v1437 = vadd.f32 %v1099, %v1361
        %v1438 = vadd.f32 %v1104, %v1366
        %v1439 = vadd.f32 %v1107, %v1369
        %v1440 = vadd.f32 %v1112, %v1374
        %v1441 = vadd.f32 %v1115, %v1377
        %v1442 = vadd.f32 %v1120, %v1382
        %v1443 = vadd.f32 %v1123, %v1385
        %v1444 = vadd.f32 %v1128, %v1390
        %v1445 = vadd.f32 %v1131, %v1393
        %v1446 = vadd.f32 %v1136, %v1398
        %v1447 = vadd.f32 %v1139, %v1401
        %v1448 = vadd.f32 %v1144, %v1406
        %v1449 = vadd.f32 %v1147, %v1409
        %v1450 = vadd.f32 %v1152, %v1414
        %v1451 = vadd.f32 %v1155, %v1417
        %v1452 = vld [vmem:[%s598 + $0x7] sm:$0xff]
        %v1453 = vld [vmem:[%s598 + $0xf] sm:$0xff]
        %v1454 = vld [vmem:[%s598 + $0x27] sm:$0xff]
        %v1455 = vld [vmem:[%s598 + $0x2f] sm:$0xff]
        %v1456 = vld [vmem:[%s598 + $0x47] sm:$0xff]
        %v1457 = vld [vmem:[%s598 + $0x4f] sm:$0xff]
        %v1458 = vld [vmem:[%s598 + $0x67] sm:$0xff]
        %v1459 = vld [vmem:[%s598 + $0x6f] sm:$0xff]
        %v1460 = vld [vmem:[%s598 + $0x87] sm:$0xff]
        %v1461 = vld [vmem:[%s598 + $0x8f] sm:$0xff]
        %v1462 = vld [vmem:[%s598 + $0xa7] sm:$0xff]
        %v1463 = vld [vmem:[%s598 + $0xaf] sm:$0xff]
        %v1464 = vld [vmem:[%s598 + $0xc7] sm:$0xff]
        %v1465 = vld [vmem:[%s598 + $0xcf] sm:$0xff]
        %v1466 = vld [vmem:[%s598 + $0xe7] sm:$0xff]
        %v1467 = vld [vmem:[%s598 + $0xef] sm:$0xff]
        %v1468 = vld [vmem:[%s598 + $0x107] sm:$0xff]
        %v1469 = vld [vmem:[%s598 + $0x10f] sm:$0xff]
        %v1470 = vld [vmem:[%s598 + $0x127] sm:$0xff]
        %v1471 = vld [vmem:[%s598 + $0x12f] sm:$0xff]
        %v1472 = vld [vmem:[%s598 + $0x147] sm:$0xff]
        %v1473 = vld [vmem:[%s598 + $0x14f] sm:$0xff]
        %v1474 = vld [vmem:[%s598 + $0x167] sm:$0xff]
        %v1475 = vld [vmem:[%s598 + $0x16f] sm:$0xff]
        %v1476 = vld [vmem:[%s598 + $0x187] sm:$0xff]
        %v1477 = vld [vmem:[%s598 + $0x18f] sm:$0xff]
        %v1478 = vld [vmem:[%s598 + $0x1a7] sm:$0xff]
        %v1479 = vld [vmem:[%s598 + $0x1af] sm:$0xff]
        %v1480 = vld [vmem:[%s598 + $0x1c7] sm:$0xff]
        %v1481 = vld [vmem:[%s598 + $0x1cf] sm:$0xff]
        %v1482 = vld [vmem:[%s598 + $0x1e7] sm:$0xff]
        %v1483 = vld [vmem:[%s598 + $0x1ef] sm:$0xff]
        %v1484 = vpack.c.bf16 %v1453, %v1452
        %v1485 = vpack.c.bf16 %v1455, %v1454
        %v1486 = vpack.c.bf16 %v1457, %v1456
        %v1487 = vpack.c.bf16 %v1459, %v1458
        %v1488 = vpack.c.bf16 %v1461, %v1460
        %v1489 = vpack.c.bf16 %v1463, %v1462
        %v1490 = vpack.c.bf16 %v1465, %v1464
        %v1491 = vpack.c.bf16 %v1467, %v1466
        %v1492 = vpack.c.bf16 %v1469, %v1468
        %v1493 = vpack.c.bf16 %v1471, %v1470
        %v1494 = vpack.c.bf16 %v1473, %v1472
        %v1495 = vpack.c.bf16 %v1475, %v1474
        %v1496 = vpack.c.bf16 %v1477, %v1476
        %v1497 = vpack.c.bf16 %v1479, %v1478
        %v1498 = vpack.c.bf16 %v1481, %v1480
        %v1499 = vpack.c.bf16 %v1483, %v1482
        %s1500 = scalar_lea.vmem %s1, 6
        %v1501 = vld [vmem:[%s1500] sm:$0x3]
        %v1503 = vsel %vm525, %v1484, 0
        %v1506 = vsel %vm525, %v1485, 0
        %v1509 = vsel %vm525, %v1486, 0
        %v1512 = vsel %vm525, %v1487, 0
        %v1515 = vsel %vm525, %v1488, 0
        %v1518 = vsel %vm525, %v1489, 0
        %v1521 = vsel %vm525, %v1490, 0
        %v1524 = vsel %vm525, %v1491, 0
        %v1527 = vsel %vm525, %v1492, 0
        %v1530 = vsel %vm525, %v1493, 0
        %v1533 = vsel %vm525, %v1494, 0
        %v1536 = vsel %vm525, %v1495, 0
        %v1539 = vsel %vm525, %v1496, 0
        %v1542 = vsel %vm525, %v1497, 0
        %v1545 = vsel %vm525, %v1498, 0
        %v1548 = vsel %vm525, %v1499, 0
        %v1551 = vand.u32 %v1501, %v781
        %1553 = vmatprep.subr.bf16.mxu0 0
        %1554 = vmatpush1.bf16.msra.mxu0 %v1551
        %1555 = vmatprep.subr.bf16.mxu0 0
        %1556 = vmatpush1.bf16.msra.mxu0 0
        %1557 = vmatprep.subr.bf16.mxu0 0
        %1558 = vmatpush1.bf16.msra.mxu0 0
        %1559 = vmatprep.subr.bf16.mxu0 0
        %1560 = vmatpush1.bf16.msra.mxu0 0
        %1561 = vmatprep.subr.bf16.mxu0 0
        %1562 = vmatpush1.bf16.msra.mxu0 0
        %1563 = vmatprep.subr.bf16.mxu0 0
        %1564 = vmatpush1.bf16.msra.mxu0 0
        %1565 = vmatprep.subr.bf16.mxu0 0
        %1566 = vmatpush1.bf16.msra.mxu0 0
        %1567 = vmatprep.subr.bf16.mxu0 0
        %1568 = vmatpush1.bf16.msra.mxu0 0
        %1569 = vmatprep.subr.bf16.mxu0 0
        %1570 = vmatpush1.bf16.msra.mxu0 0
        %1571 = vmatprep.subr.bf16.mxu0 0
        %1572 = vmatpush1.bf16.msra.mxu0 0
        %1573 = vmatprep.subr.bf16.mxu0 0
        %1574 = vmatpush1.bf16.msra.mxu0 0
        %1575 = vmatprep.subr.bf16.mxu0 0
        %1576 = vmatpush1.bf16.msra.mxu0 0
        %1577 = vmatprep.subr.bf16.mxu0 0
        %1578 = vmatpush1.bf16.msra.mxu0 0
        %1579 = vmatprep.subr.bf16.mxu0 0
        %1580 = vmatpush1.bf16.msra.mxu0 0
        %1581 = vmatprep.subr.bf16.mxu0 0
        %1582 = vmatpush1.bf16.msra.mxu0 0
        %1583 = vmatprep.subr.bf16.mxu0 0
        %1584 = vmatpush1.bf16.msra.mxu0 0
        %1585 = vmatprep.mubr.bf16.mxu0 0
        %1586 = vmatmul.mubr.bf16.gmra.mrb[0].mxu0 %v1503
        %v1587 = vpop.f32.mrb[0].mxu0
        %v1588 = vadd.f32 0.0, %v1587
        %v1589 = vpop.f32.mrb[0].mxu0
        %v1590 = vpop.f32.mrb[0].mxu0
        %v1591 = vadd.f32 0.0, %v1590
        %v1592 = vpop.f32.mrb[0].mxu0
        %1593 = vmatprep.mubr.bf16.mxu0 0
        %1594 = vmatmul.mubr.bf16.gmra.mrb[0].mxu0 %v1506
        %v1595 = vpop.f32.mrb[0].mxu0
        %v1596 = vadd.f32 0.0, %v1595
        %v1597 = vpop.f32.mrb[0].mxu0
        %v1598 = vpop.f32.mrb[0].mxu0
        %v1599 = vadd.f32 0.0, %v1598
        %v1600 = vpop.f32.mrb[0].mxu0
        %1601 = vmatprep.mubr.bf16.mxu0 0
        %1602 = vmatmul.mubr.bf16.gmra.mrb[0].mxu0 %v1509
        %v1603 = vpop.f32.mrb[0].mxu0
        %v1604 = vadd.f32 0.0, %v1603
        %v1605 = vpop.f32.mrb[0].mxu0
        %v1606 = vpop.f32.mrb[0].mxu0
        %v1607 = vadd.f32 0.0, %v1606
        %v1608 = vpop.f32.mrb[0].mxu0
        %1609 = vmatprep.mubr.bf16.mxu0 0
        %1610 = vmatmul.mubr.bf16.gmra.mrb[0].mxu0 %v1512
        %v1611 = vpop.f32.mrb[0].mxu0
        %v1612 = vadd.f32 0.0, %v1611
        %v1613 = vpop.f32.mrb[0].mxu0
        %v1614 = vpop.f32.mrb[0].mxu0
        %v1615 = vadd.f32 0.0, %v1614
        %v1616 = vpop.f32.mrb[0].mxu0
        %1617 = vmatprep.mubr.bf16.mxu0 0
        %1618 = vmatmul.mubr.bf16.gmra.mrb[0].mxu0 %v1515
        %v1619 = vpop.f32.mrb[0].mxu0
        %v1620 = vadd.f32 0.0, %v1619
        %v1621 = vpop.f32.mrb[0].mxu0
        %v1622 = vpop.f32.mrb[0].mxu0
        %v1623 = vadd.f32 0.0, %v1622
        %v1624 = vpop.f32.mrb[0].mxu0
        %1625 = vmatprep.mubr.bf16.mxu0 0
        %1626 = vmatmul.mubr.bf16.gmra.mrb[0].mxu0 %v1518
        %v1627 = vpop.f32.mrb[0].mxu0
        %v1628 = vadd.f32 0.0, %v1627
        %v1629 = vpop.f32.mrb[0].mxu0
        %v1630 = vpop.f32.mrb[0].mxu0
        %v1631 = vadd.f32 0.0, %v1630
        %v1632 = vpop.f32.mrb[0].mxu0
        %1633 = vmatprep.mubr.bf16.mxu0 0
        %1634 = vmatmul.mubr.bf16.gmra.mrb[0].mxu0 %v1521
        %v1635 = vpop.f32.mrb[0].mxu0
        %v1636 = vadd.f32 0.0, %v1635
        %v1637 = vpop.f32.mrb[0].mxu0
        %v1638 = vpop.f32.mrb[0].mxu0
        %v1639 = vadd.f32 0.0, %v1638
        %v1640 = vpop.f32.mrb[0].mxu0
        %1641 = vmatprep.mubr.bf16.mxu0 0
        %1642 = vmatmul.mubr.bf16.gmra.mrb[0].mxu0 %v1524
        %v1643 = vpop.f32.mrb[0].mxu0
        %v1644 = vadd.f32 0.0, %v1643
        %v1645 = vpop.f32.mrb[0].mxu0
        %v1646 = vpop.f32.mrb[0].mxu0
        %v1647 = vadd.f32 0.0, %v1646
        %v1648 = vpop.f32.mrb[0].mxu0
        %1649 = vmatprep.mubr.bf16.mxu0 0
        %1650 = vmatmul.mubr.bf16.gmra.mrb[0].mxu0 %v1527
        %v1651 = vpop.f32.mrb[0].mxu0
        %v1652 = vadd.f32 0.0, %v1651
        %v1653 = vpop.f32.mrb[0].mxu0
        %v1654 = vpop.f32.mrb[0].mxu0
        %v1655 = vadd.f32 0.0, %v1654
        %v1656 = vpop.f32.mrb[0].mxu0
        %1657 = vmatprep.mubr.bf16.mxu0 0
        %1658 = vmatmul.mubr.bf16.gmra.mrb[0].mxu0 %v1530
        %v1659 = vpop.f32.mrb[0].mxu0
        %v1660 = vadd.f32 0.0, %v1659
        %v1661 = vpop.f32.mrb[0].mxu0
        %v1662 = vpop.f32.mrb[0].mxu0
        %v1663 = vadd.f32 0.0, %v1662
        %v1664 = vpop.f32.mrb[0].mxu0
        %1665 = vmatprep.mubr.bf16.mxu0 0
        %1666 = vmatmul.mubr.bf16.gmra.mrb[0].mxu0 %v1533
        %v1667 = vpop.f32.mrb[0].mxu0
        %v1668 = vadd.f32 0.0, %v1667
        %v1669 = vpop.f32.mrb[0].mxu0
        %v1670 = vpop.f32.mrb[0].mxu0
        %v1671 = vadd.f32 0.0, %v1670
        %v1672 = vpop.f32.mrb[0].mxu0
        %1673 = vmatprep.mubr.bf16.mxu0 0
        %1674 = vmatmul.mubr.bf16.gmra.mrb[0].mxu0 %v1536
        %v1675 = vpop.f32.mrb[0].mxu0
        %v1676 = vadd.f32 0.0, %v1675
        %v1677 = vpop.f32.mrb[0].mxu0
        %v1678 = vpop.f32.mrb[0].mxu0
        %v1679 = vadd.f32 0.0, %v1678
        %v1680 = vpop.f32.mrb[0].mxu0
        %1681 = vmatprep.mubr.bf16.mxu0 0
        %1682 = vmatmul.mubr.bf16.gmra.mrb[0].mxu0 %v1539
        %v1683 = vpop.f32.mrb[0].mxu0
        %v1684 = vadd.f32 0.0, %v1683
        %v1685 = vpop.f32.mrb[0].mxu0
        %v1686 = vpop.f32.mrb[0].mxu0
        %v1687 = vadd.f32 0.0, %v1686
        %v1688 = vpop.f32.mrb[0].mxu0
        %1689 = vmatprep.mubr.bf16.mxu0 0
        %1690 = vmatmul.mubr.bf16.gmra.mrb[0].mxu0 %v1542
        %v1691 = vpop.f32.mrb[0].mxu0
        %v1692 = vadd.f32 0.0, %v1691
        %v1693 = vpop.f32.mrb[0].mxu0
        %v1694 = vpop.f32.mrb[0].mxu0
        %v1695 = vadd.f32 0.0, %v1694
        %v1696 = vpop.f32.mrb[0].mxu0
        %1697 = vmatprep.mubr.bf16.mxu0 0
        %1698 = vmatmul.mubr.bf16.gmra.mrb[0].mxu0 %v1545
        %v1699 = vpop.f32.mrb[0].mxu0
        %v1700 = vadd.f32 0.0, %v1699
        %v1701 = vpop.f32.mrb[0].mxu0
        %v1702 = vpop.f32.mrb[0].mxu0
        %v1703 = vadd.f32 0.0, %v1702
        %v1704 = vpop.f32.mrb[0].mxu0
        %1705 = vmatprep.mubr.bf16.mxu0 0
        %1706 = vmatmul.mubr.bf16.gmra.mrb[0].mxu0 %v1548
        %v1707 = vpop.f32.mrb[0].mxu0
        %v1708 = vadd.f32 0.0, %v1707
        %v1709 = vpop.f32.mrb[0].mxu0
        %v1710 = vpop.f32.mrb[0].mxu0
        %v1711 = vadd.f32 0.0, %v1710
        %v1712 = vpop.f32.mrb[0].mxu0
        %1713 = vdwg.mxu0
        %v1714 = vadd.f32 %v1420, %v1588
        %v1715 = vadd.f32 %v1421, %v1591
        %v1716 = vadd.f32 %v1422, %v1596
        %v1717 = vadd.f32 %v1423, %v1599
        %v1718 = vadd.f32 %v1424, %v1604
        %v1719 = vadd.f32 %v1425, %v1607
        %v1720 = vadd.f32 %v1426, %v1612
        %v1721 = vadd.f32 %v1427, %v1615
        %v1722 = vadd.f32 %v1428, %v1620
        %v1723 = vadd.f32 %v1429, %v1623
        %v1724 = vadd.f32 %v1430, %v1628
        %v1725 = vadd.f32 %v1431, %v1631
        %v1726 = vadd.f32 %v1432, %v1636
        %v1727 = vadd.f32 %v1433, %v1639
        %v1728 = vadd.f32 %v1434, %v1644
        %v1729 = vadd.f32 %v1435, %v1647
        %v1730 = vadd.f32 %v1436, %v1652
        %v1731 = vadd.f32 %v1437, %v1655
        %v1732 = vadd.f32 %v1438, %v1660
        %v1733 = vadd.f32 %v1439, %v1663
        %v1734 = vadd.f32 %v1440, %v1668
        %v1735 = vadd.f32 %v1441, %v1671
        %v1736 = vadd.f32 %v1442, %v1676
        %v1737 = vadd.f32 %v1443, %v1679
        %v1738 = vadd.f32 %v1444, %v1684
        %v1739 = vadd.f32 %v1445, %v1687
        %v1740 = vadd.f32 %v1446, %v1692
        %v1741 = vadd.f32 %v1447, %v1695
        %v1742 = vadd.f32 %v1448, %v1700
        %v1743 = vadd.f32 %v1449, %v1703
        %v1744 = vadd.f32 %v1450, %v1708
        %v1745 = vadd.f32 %v1451, %v1711
        %v1746 = vld [vmem:[%s598 + $0x8] sm:$0xff]
        %v1747 = vld [vmem:[%s598 + $0x10] sm:$0xff]
        %v1748 = vld [vmem:[%s598 + $0x28] sm:$0xff]
        %v1749 = vld [vmem:[%s598 + $0x30] sm:$0xff]
        %v1750 = vld [vmem:[%s598 + $0x48] sm:$0xff]
        %v1751 = vld [vmem:[%s598 + $0x50] sm:$0xff]
        %v1752 = vld [vmem:[%s598 + $0x68] sm:$0xff]
        %v1753 = vld [vmem:[%s598 + $0x70] sm:$0xff]
        %v1754 = vld [vmem:[%s598 + $0x88] sm:$0xff]
        %v1755 = vld [vmem:[%s598 + $0x90] sm:$0xff]
        %v1756 = vld [vmem:[%s598 + $0xa8] sm:$0xff]
        %v1757 = vld [vmem:[%s598 + $0xb0] sm:$0xff]
        %v1758 = vld [vmem:[%s598 + $0xc8] sm:$0xff]
        %v1759 = vld [vmem:[%s598 + $0xd0] sm:$0xff]
        %v1760 = vld [vmem:[%s598 + $0xe8] sm:$0xff]
        %v1761 = vld [vmem:[%s598 + $0xf0] sm:$0xff]
        %v1762 = vld [vmem:[%s598 + $0x108] sm:$0xff]
        %v1763 = vld [vmem:[%s598 + $0x110] sm:$0xff]
        %v1764 = vld [vmem:[%s598 + $0x128] sm:$0xff]
        %v1765 = vld [vmem:[%s598 + $0x130] sm:$0xff]
        %v1766 = vld [vmem:[%s598 + $0x148] sm:$0xff]
        %v1767 = vld [vmem:[%s598 + $0x150] sm:$0xff]
        %v1768 = vld [vmem:[%s598 + $0x168] sm:$0xff]
        %v1769 = vld [vmem:[%s598 + $0x170] sm:$0xff]
        %v1770 = vld [vmem:[%s598 + $0x188] sm:$0xff]
        %v1771 = vld [vmem:[%s598 + $0x190] sm:$0xff]
        %v1772 = vld [vmem:[%s598 + $0x1a8] sm:$0xff]
        %v1773 = vld [vmem:[%s598 + $0x1b0] sm:$0xff]
        %v1774 = vld [vmem:[%s598 + $0x1c8] sm:$0xff]
        %v1775 = vld [vmem:[%s598 + $0x1d0] sm:$0xff]
        %v1776 = vld [vmem:[%s598 + $0x1e8] sm:$0xff]
        %v1777 = vld [vmem:[%s598 + $0x1f0] sm:$0xff]
        %v1778 = vpack.c.bf16 %v1747, %v1746
        %v1779 = vpack.c.bf16 %v1749, %v1748
        %v1780 = vpack.c.bf16 %v1751, %v1750
        %v1781 = vpack.c.bf16 %v1753, %v1752
        %v1782 = vpack.c.bf16 %v1755, %v1754
        %v1783 = vpack.c.bf16 %v1757, %v1756
        %v1784 = vpack.c.bf16 %v1759, %v1758
        %v1785 = vpack.c.bf16 %v1761, %v1760
        %v1786 = vpack.c.bf16 %v1763, %v1762
        %v1787 = vpack.c.bf16 %v1765, %v1764
        %v1788 = vpack.c.bf16 %v1767, %v1766
        %v1789 = vpack.c.bf16 %v1769, %v1768
        %v1790 = vpack.c.bf16 %v1771, %v1770
        %v1791 = vpack.c.bf16 %v1773, %v1772
        %v1792 = vpack.c.bf16 %v1775, %v1774
        %v1793 = vpack.c.bf16 %v1777, %v1776
        %s1794 = scalar_lea.vmem %s1, 8
        %v1795 = vld [vmem:[%s1794] sm:$0x3]
        %v1797 = vsel %vm525, %v1778, 0
        %v1800 = vsel %vm525, %v1779, 0
        %v1803 = vsel %vm525, %v1780, 0
        %v1806 = vsel %vm525, %v1781, 0
        %v1809 = vsel %vm525, %v1782, 0
        %v1812 = vsel %vm525, %v1783, 0
        %v1815 = vsel %vm525, %v1784, 0
        %v1818 = vsel %vm525, %v1785, 0
        %v1821 = vsel %vm525, %v1786, 0
        %v1824 = vsel %vm525, %v1787, 0
        %v1827 = vsel %vm525, %v1788, 0
        %v1830 = vsel %vm525, %v1789, 0
        %v1833 = vsel %vm525, %v1790, 0
        %v1836 = vsel %vm525, %v1791, 0
        %v1839 = vsel %vm525, %v1792, 0
        %v1842 = vsel %vm525, %v1793, 0
        %v1845 = vand.u32 %v1795, %v781
        %1847 = vmatprep.subr.bf16.mxu0 0
        %1848 = vmatpush1.bf16.msra.mxu0 %v1845
        %1849 = vmatprep.subr.bf16.mxu0 0
        %1850 = vmatpush1.bf16.msra.mxu0 0
        %1851 = vmatprep.subr.bf16.mxu0 0
        %1852 = vmatpush1.bf16.msra.mxu0 0
        %1853 = vmatprep.subr.bf16.mxu0 0
        %1854 = vmatpush1.bf16.msra.mxu0 0
        %1855 = vmatprep.subr.bf16.mxu0 0
        %1856 = vmatpush1.bf16.msra.mxu0 0
        %1857 = vmatprep.subr.bf16.mxu0 0
        %1858 = vmatpush1.bf16.msra.mxu0 0
        %1859 = vmatprep.subr.bf16.mxu0 0
        %1860 = vmatpush1.bf16.msra.mxu0 0
        %1861 = vmatprep.subr.bf16.mxu0 0
        %1862 = vmatpush1.bf16.msra.mxu0 0
        %1863 = vmatprep.subr.bf16.mxu0 0
        %1864 = vmatpush1.bf16.msra.mxu0 0
        %1865 = vmatprep.subr.bf16.mxu0 0
        %1866 = vmatpush1.bf16.msra.mxu0 0
        %1867 = vmatprep.subr.bf16.mxu0 0
        %1868 = vmatpush1.bf16.msra.mxu0 0
        %1869 = vmatprep.subr.bf16.mxu0 0
        %1870 = vmatpush1.bf16.msra.mxu0 0
        %1871 = vmatprep.subr.bf16.mxu0 0
        %1872 = vmatpush1.bf16.msra.mxu0 0
        %1873 = vmatprep.subr.bf16.mxu0 0
        %1874 = vmatpush1.bf16.msra.mxu0 0
        %1875 = vmatprep.subr.bf16.mxu0 0
        %1876 = vmatpush1.bf16.msra.mxu0 0
        %1877 = vmatprep.subr.bf16.mxu0 0
        %1878 = vmatpush1.bf16.msra.mxu0 0
        %1879 = vmatprep.mubr.bf16.mxu0 0
        %1880 = vmatmul.mubr.bf16.gmra.mrb[0].mxu0 %v1797
        %v1881 = vpop.f32.mrb[0].mxu0
        %v1882 = vadd.f32 0.0, %v1881
        %v1883 = vpop.f32.mrb[0].mxu0
        %v1884 = vpop.f32.mrb[0].mxu0
        %v1885 = vadd.f32 0.0, %v1884
        %v1886 = vpop.f32.mrb[0].mxu0
        %1887 = vmatprep.mubr.bf16.mxu0 0
        %1888 = vmatmul.mubr.bf16.gmra.mrb[0].mxu0 %v1800
        %v1889 = vpop.f32.mrb[0].mxu0
        %v1890 = vadd.f32 0.0, %v1889
        %v1891 = vpop.f32.mrb[0].mxu0
        %v1892 = vpop.f32.mrb[0].mxu0
        %v1893 = vadd.f32 0.0, %v1892
        %v1894 = vpop.f32.mrb[0].mxu0
        %1895 = vmatprep.mubr.bf16.mxu0 0
        %1896 = vmatmul.mubr.bf16.gmra.mrb[0].mxu0 %v1803
        %v1897 = vpop.f32.mrb[0].mxu0
        %v1898 = vadd.f32 0.0, %v1897
        %v1899 = vpop.f32.mrb[0].mxu0
        %v1900 = vpop.f32.mrb[0].mxu0
        %v1901 = vadd.f32 0.0, %v1900
        %v1902 = vpop.f32.mrb[0].mxu0
        %1903 = vmatprep.mubr.bf16.mxu0 0
        %1904 = vmatmul.mubr.bf16.gmra.mrb[0].mxu0 %v1806
        %v1905 = vpop.f32.mrb[0].mxu0
        %v1906 = vadd.f32 0.0, %v1905
        %v1907 = vpop.f32.mrb[0].mxu0
        %v1908 = vpop.f32.mrb[0].mxu0
        %v1909 = vadd.f32 0.0, %v1908
        %v1910 = vpop.f32.mrb[0].mxu0
        %1911 = vmatprep.mubr.bf16.mxu0 0
        %1912 = vmatmul.mubr.bf16.gmra.mrb[0].mxu0 %v1809
        %v1913 = vpop.f32.mrb[0].mxu0
        %v1914 = vadd.f32 0.0, %v1913
        %v1915 = vpop.f32.mrb[0].mxu0
        %v1916 = vpop.f32.mrb[0].mxu0
        %v1917 = vadd.f32 0.0, %v1916
        %v1918 = vpop.f32.mrb[0].mxu0
        %1919 = vmatprep.mubr.bf16.mxu0 0
        %1920 = vmatmul.mubr.bf16.gmra.mrb[0].mxu0 %v1812
        %v1921 = vpop.f32.mrb[0].mxu0
        %v1922 = vadd.f32 0.0, %v1921
        %v1923 = vpop.f32.mrb[0].mxu0
        %v1924 = vpop.f32.mrb[0].mxu0
        %v1925 = vadd.f32 0.0, %v1924
        %v1926 = vpop.f32.mrb[0].mxu0
        %1927 = vmatprep.mubr.bf16.mxu0 0
        %1928 = vmatmul.mubr.bf16.gmra.mrb[0].mxu0 %v1815
        %v1929 = vpop.f32.mrb[0].mxu0
        %v1930 = vadd.f32 0.0, %v1929
        %v1931 = vpop.f32.mrb[0].mxu0
        %v1932 = vpop.f32.mrb[0].mxu0
        %v1933 = vadd.f32 0.0, %v1932
        %v1934 = vpop.f32.mrb[0].mxu0
        %1935 = vmatprep.mubr.bf16.mxu0 0
        %1936 = vmatmul.mubr.bf16.gmra.mrb[0].mxu0 %v1818
        %v1937 = vpop.f32.mrb[0].mxu0
        %v1938 = vadd.f32 0.0, %v1937
        %v1939 = vpop.f32.mrb[0].mxu0
        %v1940 = vpop.f32.mrb[0].mxu0
        %v1941 = vadd.f32 0.0, %v1940
        %v1942 = vpop.f32.mrb[0].mxu0
        %1943 = vmatprep.mubr.bf16.mxu0 0
        %1944 = vmatmul.mubr.bf16.gmra.mrb[0].mxu0 %v1821
        %v1945 = vpop.f32.mrb[0].mxu0
        %v1946 = vadd.f32 0.0, %v1945
        %v1947 = vpop.f32.mrb[0].mxu0
        %v1948 = vpop.f32.mrb[0].mxu0
        %v1949 = vadd.f32 0.0, %v1948
        %v1950 = vpop.f32.mrb[0].mxu0
        %1951 = vmatprep.mubr.bf16.mxu0 0
        %1952 = vmatmul.mubr.bf16.gmra.mrb[0].mxu0 %v1824
        %v1953 = vpop.f32.mrb[0].mxu0
        %v1954 = vadd.f32 0.0, %v1953
        %v1955 = vpop.f32.mrb[0].mxu0
        %v1956 = vpop.f32.mrb[0].mxu0
        %v1957 = vadd.f32 0.0, %v1956
        %v1958 = vpop.f32.mrb[0].mxu0
        %1959 = vmatprep.mubr.bf16.mxu0 0
        %1960 = vmatmul.mubr.bf16.gmra.mrb[0].mxu0 %v1827
        %v1961 = vpop.f32.mrb[0].mxu0
        %v1962 = vadd.f32 0.0, %v1961
        %v1963 = vpop.f32.mrb[0].mxu0
        %v1964 = vpop.f32.mrb[0].mxu0
        %v1965 = vadd.f32 0.0, %v1964
        %v1966 = vpop.f32.mrb[0].mxu0
        %1967 = vmatprep.mubr.bf16.mxu0 0
        %1968 = vmatmul.mubr.bf16.gmra.mrb[0].mxu0 %v1830
        %v1969 = vpop.f32.mrb[0].mxu0
        %v1970 = vadd.f32 0.0, %v1969
        %v1971 = vpop.f32.mrb[0].mxu0
        %v1972 = vpop.f32.mrb[0].mxu0
        %v1973 = vadd.f32 0.0, %v1972
        %v1974 = vpop.f32.mrb[0].mxu0
        %1975 = vmatprep.mubr.bf16.mxu0 0
        %1976 = vmatmul.mubr.bf16.gmra.mrb[0].mxu0 %v1833
        %v1977 = vpop.f32.mrb[0].mxu0
        %v1978 = vadd.f32 0.0, %v1977
        %v1979 = vpop.f32.mrb[0].mxu0
        %v1980 = vpop.f32.mrb[0].mxu0
        %v1981 = vadd.f32 0.0, %v1980
        %v1982 = vpop.f32.mrb[0].mxu0
        %1983 = vmatprep.mubr.bf16.mxu0 0
        %1984 = vmatmul.mubr.bf16.gmra.mrb[0].mxu0 %v1836
        %v1985 = vpop.f32.mrb[0].mxu0
        %v1986 = vadd.f32 0.0, %v1985
        %v1987 = vpop.f32.mrb[0].mxu0
        %v1988 = vpop.f32.mrb[0].mxu0
        %v1989 = vadd.f32 0.0, %v1988
        %v1990 = vpop.f32.mrb[0].mxu0
        %1991 = vmatprep.mubr.bf16.mxu0 0
        %1992 = vmatmul.mubr.bf16.gmra.mrb[0].mxu0 %v1839
        %v1993 = vpop.f32.mrb[0].mxu0
        %v1994 = vadd.f32 0.0, %v1993
        %v1995 = vpop.f32.mrb[0].mxu0
        %v1996 = vpop.f32.mrb[0].mxu0
        %v1997 = vadd.f32 0.0, %v1996
        %v1998 = vpop.f32.mrb[0].mxu0
        %1999 = vmatprep.mubr.bf16.mxu0 0
        %2000 = vmatmul.mubr.bf16.gmra.mrb[0].mxu0 %v1842
        %v2001 = vpop.f32.mrb[0].mxu0
        %v2002 = vadd.f32 0.0, %v2001
        %v2003 = vpop.f32.mrb[0].mxu0
        %v2004 = vpop.f32.mrb[0].mxu0
        %v2005 = vadd.f32 0.0, %v2004
        %v2006 = vpop.f32.mrb[0].mxu0
        %2007 = vdwg.mxu0
        %v2008 = vadd.f32 %v1714, %v1882
        %v2009 = vadd.f32 %v1715, %v1885
        %v2010 = vadd.f32 %v1716, %v1890
        %v2011 = vadd.f32 %v1717, %v1893
        %v2012 = vadd.f32 %v1718, %v1898
        %v2013 = vadd.f32 %v1719, %v1901
        %v2014 = vadd.f32 %v1720, %v1906
        %v2015 = vadd.f32 %v1721, %v1909
        %v2016 = vadd.f32 %v1722, %v1914
        %v2017 = vadd.f32 %v1723, %v1917
        %v2018 = vadd.f32 %v1724, %v1922
        %v2019 = vadd.f32 %v1725, %v1925
        %v2020 = vadd.f32 %v1726, %v1930
        %v2021 = vadd.f32 %v1727, %v1933
        %v2022 = vadd.f32 %v1728, %v1938
        %v2023 = vadd.f32 %v1729, %v1941
        %v2024 = vadd.f32 %v1730, %v1946
        %v2025 = vadd.f32 %v1731, %v1949
        %v2026 = vadd.f32 %v1732, %v1954
        %v2027 = vadd.f32 %v1733, %v1957
        %v2028 = vadd.f32 %v1734, %v1962
        %v2029 = vadd.f32 %v1735, %v1965
        %v2030 = vadd.f32 %v1736, %v1970
        %v2031 = vadd.f32 %v1737, %v1973
        %v2032 = vadd.f32 %v1738, %v1978
        %v2033 = vadd.f32 %v1739, %v1981
        %v2034 = vadd.f32 %v1740, %v1986
        %v2035 = vadd.f32 %v1741, %v1989
        %v2036 = vadd.f32 %v1742, %v1994
        %v2037 = vadd.f32 %v1743, %v1997
        %v2038 = vadd.f32 %v1744, %v2002
        %v2039 = vadd.f32 %v1745, %v2005
        %v2040 = vld [vmem:[%s598 + $0x9] sm:$0xff]
        %v2041 = vld [vmem:[%s598 + $0x11] sm:$0xff]
        %v2042 = vld [vmem:[%s598 + $0x29] sm:$0xff]
        %v2043 = vld [vmem:[%s598 + $0x31] sm:$0xff]
        %v2044 = vld [vmem:[%s598 + $0x49] sm:$0xff]
        %v2045 = vld [vmem:[%s598 + $0x51] sm:$0xff]
        %v2046 = vld [vmem:[%s598 + $0x69] sm:$0xff]
        %v2047 = vld [vmem:[%s598 + $0x71] sm:$0xff]
        %v2048 = vld [vmem:[%s598 + $0x89] sm:$0xff]
        %v2049 = vld [vmem:[%s598 + $0x91] sm:$0xff]
        %v2050 = vld [vmem:[%s598 + $0xa9] sm:$0xff]
        %v2051 = vld [vmem:[%s598 + $0xb1] sm:$0xff]
        %v2052 = vld [vmem:[%s598 + $0xc9] sm:$0xff]
        %v2053 = vld [vmem:[%s598 + $0xd1] sm:$0xff]
        %v2054 = vld [vmem:[%s598 + $0xe9] sm:$0xff]
        %v2055 = vld [vmem:[%s598 + $0xf1] sm:$0xff]
        %v2056 = vld [vmem:[%s598 + $0x109] sm:$0xff]
        %v2057 = vld [vmem:[%s598 + $0x111] sm:$0xff]
        %v2058 = vld [vmem:[%s598 + $0x129] sm:$0xff]
        %v2059 = vld [vmem:[%s598 + $0x131] sm:$0xff]
        %v2060 = vld [vmem:[%s598 + $0x149] sm:$0xff]
        %v2061 = vld [vmem:[%s598 + $0x151] sm:$0xff]
        %v2062 = vld [vmem:[%s598 + $0x169] sm:$0xff]
        %v2063 = vld [vmem:[%s598 + $0x171] sm:$0xff]
        %v2064 = vld [vmem:[%s598 + $0x189] sm:$0xff]
        %v2065 = vld [vmem:[%s598 + $0x191] sm:$0xff]
        %v2066 = vld [vmem:[%s598 + $0x1a9] sm:$0xff]
        %v2067 = vld [vmem:[%s598 + $0x1b1] sm:$0xff]
        %v2068 = vld [vmem:[%s598 + $0x1c9] sm:$0xff]
        %v2069 = vld [vmem:[%s598 + $0x1d1] sm:$0xff]
        %v2070 = vld [vmem:[%s598 + $0x1e9] sm:$0xff]
        %v2071 = vld [vmem:[%s598 + $0x1f1] sm:$0xff]
        %v2072 = vpack.c.bf16 %v2041, %v2040
        %v2073 = vpack.c.bf16 %v2043, %v2042
        %v2074 = vpack.c.bf16 %v2045, %v2044
        %v2075 = vpack.c.bf16 %v2047, %v2046
        %v2076 = vpack.c.bf16 %v2049, %v2048
        %v2077 = vpack.c.bf16 %v2051, %v2050
        %v2078 = vpack.c.bf16 %v2053, %v2052
        %v2079 = vpack.c.bf16 %v2055, %v2054
        %v2080 = vpack.c.bf16 %v2057, %v2056
        %v2081 = vpack.c.bf16 %v2059, %v2058
        %v2082 = vpack.c.bf16 %v2061, %v2060
        %v2083 = vpack.c.bf16 %v2063, %v2062
        %v2084 = vpack.c.bf16 %v2065, %v2064
        %v2085 = vpack.c.bf16 %v2067, %v2066
        %v2086 = vpack.c.bf16 %v2069, %v2068
        %v2087 = vpack.c.bf16 %v2071, %v2070
        %s2088 = scalar_lea.vmem %s1, 10
        %v2089 = vld [vmem:[%s2088] sm:$0x3]
        %v2091 = vsel %vm525, %v2072, 0
        %v2094 = vsel %vm525, %v2073, 0
        %v2097 = vsel %vm525, %v2074, 0
        %v2100 = vsel %vm525, %v2075, 0
        %v2103 = vsel %vm525, %v2076, 0
        %v2106 = vsel %vm525, %v2077, 0
        %v2109 = vsel %vm525, %v2078, 0
        %v2112 = vsel %vm525, %v2079, 0
        %v2115 = vsel %vm525, %v2080, 0
        %v2118 = vsel %vm525, %v2081, 0
        %v2121 = vsel %vm525, %v2082, 0
        %v2124 = vsel %vm525, %v2083, 0
        %v2127 = vsel %vm525, %v2084, 0
        %v2130 = vsel %vm525, %v2085, 0
        %v2133 = vsel %vm525, %v2086, 0
        %v2136 = vsel %vm525, %v2087, 0
        %v2139 = vand.u32 %v2089, %v781
        %2141 = vmatprep.subr.bf16.mxu0 0
        %2142 = vmatpush1.bf16.msra.mxu0 %v2139
        %2143 = vmatprep.subr.bf16.mxu0 0
        %2144 = vmatpush1.bf16.msra.mxu0 0
        %2145 = vmatprep.subr.bf16.mxu0 0
        %2146 = vmatpush1.bf16.msra.mxu0 0
        %2147 = vmatprep.subr.bf16.mxu0 0
        %2148 = vmatpush1.bf16.msra.mxu0 0
        %2149 = vmatprep.subr.bf16.mxu0 0
        %2150 = vmatpush1.bf16.msra.mxu0 0
        %2151 = vmatprep.subr.bf16.mxu0 0
        %2152 = vmatpush1.bf16.msra.mxu0 0
        %2153 = vmatprep.subr.bf16.mxu0 0
        %2154 = vmatpush1.bf16.msra.mxu0 0
        %2155 = vmatprep.subr.bf16.mxu0 0
        %2156 = vmatpush1.bf16.msra.mxu0 0
        %2157 = vmatprep.subr.bf16.mxu0 0
        %2158 = vmatpush1.bf16.msra.mxu0 0
        %2159 = vmatprep.subr.bf16.mxu0 0
        %2160 = vmatpush1.bf16.msra.mxu0 0
        %2161 = vmatprep.subr.bf16.mxu0 0
        %2162 = vmatpush1.bf16.msra.mxu0 0
        %2163 = vmatprep.subr.bf16.mxu0 0
        %2164 = vmatpush1.bf16.msra.mxu0 0
        %2165 = vmatprep.subr.bf16.mxu0 0
        %2166 = vmatpush1.bf16.msra.mxu0 0
        %2167 = vmatprep.subr.bf16.mxu0 0
        %2168 = vmatpush1.bf16.msra.mxu0 0
        %2169 = vmatprep.subr.bf16.mxu0 0
        %2170 = vmatpush1.bf16.msra.mxu0 0
        %2171 = vmatprep.subr.bf16.mxu0 0
        %2172 = vmatpush1.bf16.msra.mxu0 0
        %2173 = vmatprep.mubr.bf16.mxu0 0
        %2174 = vmatmul.mubr.bf16.gmra.mrb[0].mxu0 %v2091
        %v2175 = vpop.f32.mrb[0].mxu0
        %v2176 = vadd.f32 0.0, %v2175
        %v2177 = vpop.f32.mrb[0].mxu0
        %v2178 = vpop.f32.mrb[0].mxu0
        %v2179 = vadd.f32 0.0, %v2178
        %v2180 = vpop.f32.mrb[0].mxu0
        %2181 = vmatprep.mubr.bf16.mxu0 0
        %2182 = vmatmul.mubr.bf16.gmra.mrb[0].mxu0 %v2094
        %v2183 = vpop.f32.mrb[0].mxu0
        %v2184 = vadd.f32 0.0, %v2183
        %v2185 = vpop.f32.mrb[0].mxu0
        %v2186 = vpop.f32.mrb[0].mxu0
        %v2187 = vadd.f32 0.0, %v2186
        %v2188 = vpop.f32.mrb[0].mxu0
        %2189 = vmatprep.mubr.bf16.mxu0 0
        %2190 = vmatmul.mubr.bf16.gmra.mrb[0].mxu0 %v2097
        %v2191 = vpop.f32.mrb[0].mxu0
        %v2192 = vadd.f32 0.0, %v2191
        %v2193 = vpop.f32.mrb[0].mxu0
        %v2194 = vpop.f32.mrb[0].mxu0
        %v2195 = vadd.f32 0.0, %v2194
        %v2196 = vpop.f32.mrb[0].mxu0
        %2197 = vmatprep.mubr.bf16.mxu0 0
        %2198 = vmatmul.mubr.bf16.gmra.mrb[0].mxu0 %v2100
        %v2199 = vpop.f32.mrb[0].mxu0
        %v2200 = vadd.f32 0.0, %v2199
        %v2201 = vpop.f32.mrb[0].mxu0
        %v2202 = vpop.f32.mrb[0].mxu0
        %v2203 = vadd.f32 0.0, %v2202
        %v2204 = vpop.f32.mrb[0].mxu0
        %2205 = vmatprep.mubr.bf16.mxu0 0
        %2206 = vmatmul.mubr.bf16.gmra.mrb[0].mxu0 %v2103
        %v2207 = vpop.f32.mrb[0].mxu0
        %v2208 = vadd.f32 0.0, %v2207
        %v2209 = vpop.f32.mrb[0].mxu0
        %v2210 = vpop.f32.mrb[0].mxu0
        %v2211 = vadd.f32 0.0, %v2210
        %v2212 = vpop.f32.mrb[0].mxu0
        %2213 = vmatprep.mubr.bf16.mxu0 0
        %2214 = vmatmul.mubr.bf16.gmra.mrb[0].mxu0 %v2106
        %v2215 = vpop.f32.mrb[0].mxu0
        %v2216 = vadd.f32 0.0, %v2215
        %v2217 = vpop.f32.mrb[0].mxu0
        %v2218 = vpop.f32.mrb[0].mxu0
        %v2219 = vadd.f32 0.0, %v2218
        %v2220 = vpop.f32.mrb[0].mxu0
        %2221 = vmatprep.mubr.bf16.mxu0 0
        %2222 = vmatmul.mubr.bf16.gmra.mrb[0].mxu0 %v2109
        %v2223 = vpop.f32.mrb[0].mxu0
        %v2224 = vadd.f32 0.0, %v2223
        %v2225 = vpop.f32.mrb[0].mxu0
        %v2226 = vpop.f32.mrb[0].mxu0
        %v2227 = vadd.f32 0.0, %v2226
        %v2228 = vpop.f32.mrb[0].mxu0
        %2229 = vmatprep.mubr.bf16.mxu0 0
        %2230 = vmatmul.mubr.bf16.gmra.mrb[0].mxu0 %v2112
        %v2231 = vpop.f32.mrb[0].mxu0
        %v2232 = vadd.f32 0.0, %v2231
        %v2233 = vpop.f32.mrb[0].mxu0
        %v2234 = vpop.f32.mrb[0].mxu0
        %v2235 = vadd.f32 0.0, %v2234
        %v2236 = vpop.f32.mrb[0].mxu0
        %2237 = vmatprep.mubr.bf16.mxu0 0
        %2238 = vmatmul.mubr.bf16.gmra.mrb[0].mxu0 %v2115
        %v2239 = vpop.f32.mrb[0].mxu0
        %v2240 = vadd.f32 0.0, %v2239
        %v2241 = vpop.f32.mrb[0].mxu0
        %v2242 = vpop.f32.mrb[0].mxu0
        %v2243 = vadd.f32 0.0, %v2242
        %v2244 = vpop.f32.mrb[0].mxu0
        %2245 = vmatprep.mubr.bf16.mxu0 0
        %2246 = vmatmul.mubr.bf16.gmra.mrb[0].mxu0 %v2118
        %v2247 = vpop.f32.mrb[0].mxu0
        %v2248 = vadd.f32 0.0, %v2247
        %v2249 = vpop.f32.mrb[0].mxu0
        %v2250 = vpop.f32.mrb[0].mxu0
        %v2251 = vadd.f32 0.0, %v2250
        %v2252 = vpop.f32.mrb[0].mxu0
        %2253 = vmatprep.mubr.bf16.mxu0 0
        %2254 = vmatmul.mubr.bf16.gmra.mrb[0].mxu0 %v2121
        %v2255 = vpop.f32.mrb[0].mxu0
        %v2256 = vadd.f32 0.0, %v2255
        %v2257 = vpop.f32.mrb[0].mxu0
        %v2258 = vpop.f32.mrb[0].mxu0
        %v2259 = vadd.f32 0.0, %v2258
        %v2260 = vpop.f32.mrb[0].mxu0
        %2261 = vmatprep.mubr.bf16.mxu0 0
        %2262 = vmatmul.mubr.bf16.gmra.mrb[0].mxu0 %v2124
        %v2263 = vpop.f32.mrb[0].mxu0
        %v2264 = vadd.f32 0.0, %v2263
        %v2265 = vpop.f32.mrb[0].mxu0
        %v2266 = vpop.f32.mrb[0].mxu0
        %v2267 = vadd.f32 0.0, %v2266
        %v2268 = vpop.f32.mrb[0].mxu0
        %2269 = vmatprep.mubr.bf16.mxu0 0
        %2270 = vmatmul.mubr.bf16.gmra.mrb[0].mxu0 %v2127
        %v2271 = vpop.f32.mrb[0].mxu0
        %v2272 = vadd.f32 0.0, %v2271
        %v2273 = vpop.f32.mrb[0].mxu0
        %v2274 = vpop.f32.mrb[0].mxu0
        %v2275 = vadd.f32 0.0, %v2274
        %v2276 = vpop.f32.mrb[0].mxu0
        %2277 = vmatprep.mubr.bf16.mxu0 0
        %2278 = vmatmul.mubr.bf16.gmra.mrb[0].mxu0 %v2130
        %v2279 = vpop.f32.mrb[0].mxu0
        %v2280 = vadd.f32 0.0, %v2279
        %v2281 = vpop.f32.mrb[0].mxu0
        %v2282 = vpop.f32.mrb[0].mxu0
        %v2283 = vadd.f32 0.0, %v2282
        %v2284 = vpop.f32.mrb[0].mxu0
        %2285 = vmatprep.mubr.bf16.mxu0 0
        %2286 = vmatmul.mubr.bf16.gmra.mrb[0].mxu0 %v2133
        %v2287 = vpop.f32.mrb[0].mxu0
        %v2288 = vadd.f32 0.0, %v2287
        %v2289 = vpop.f32.mrb[0].mxu0
        %v2290 = vpop.f32.mrb[0].mxu0
        %v2291 = vadd.f32 0.0, %v2290
        %v2292 = vpop.f32.mrb[0].mxu0
        %2293 = vmatprep.mubr.bf16.mxu0 0
        %2294 = vmatmul.mubr.bf16.gmra.mrb[0].mxu0 %v2136
        %v2295 = vpop.f32.mrb[0].mxu0
        %v2296 = vadd.f32 0.0, %v2295
        %v2297 = vpop.f32.mrb[0].mxu0
        %v2298 = vpop.f32.mrb[0].mxu0
        %v2299 = vadd.f32 0.0, %v2298
        %v2300 = vpop.f32.mrb[0].mxu0
        %2301 = vdwg.mxu0
        %v2302 = vadd.f32 %v2008, %v2176
        %v2303 = vadd.f32 %v2009, %v2179
        %v2304 = vadd.f32 %v2010, %v2184
        %v2305 = vadd.f32 %v2011, %v2187
        %v2306 = vadd.f32 %v2012, %v2192
        %v2307 = vadd.f32 %v2013, %v2195
        %v2308 = vadd.f32 %v2014, %v2200
        %v2309 = vadd.f32 %v2015, %v2203
        %v2310 = vadd.f32 %v2016, %v2208
        %v2311 = vadd.f32 %v2017, %v2211
        %v2312 = vadd.f32 %v2018, %v2216
        %v2313 = vadd.f32 %v2019, %v2219
        %v2314 = vadd.f32 %v2020, %v2224
        %v2315 = vadd.f32 %v2021, %v2227
        %v2316 = vadd.f32 %v2022, %v2232
        %v2317 = vadd.f32 %v2023, %v2235
        %v2318 = vadd.f32 %v2024, %v2240
        %v2319 = vadd.f32 %v2025, %v2243
        %v2320 = vadd.f32 %v2026, %v2248
        %v2321 = vadd.f32 %v2027, %v2251
        %v2322 = vadd.f32 %v2028, %v2256
        %v2323 = vadd.f32 %v2029, %v2259
        %v2324 = vadd.f32 %v2030, %v2264
        %v2325 = vadd.f32 %v2031, %v2267
        %v2326 = vadd.f32 %v2032, %v2272
        %v2327 = vadd.f32 %v2033, %v2275
        %v2328 = vadd.f32 %v2034, %v2280
        %v2329 = vadd.f32 %v2035, %v2283
        %v2330 = vadd.f32 %v2036, %v2288
        %v2331 = vadd.f32 %v2037, %v2291
        %v2332 = vadd.f32 %v2038, %v2296
        %v2333 = vadd.f32 %v2039, %v2299
        %s2334 = scalar_lea.vmem [#allocation2], 64
        %v2335 = vld [vmem:[%s2334 + $0x7] sm:$0xff]
        %v2336 = vld [vmem:[%s2334 + $0xf] sm:$0xff]
        %v2337 = vld [vmem:[%s2334 + $0x27] sm:$0xff]
        %v2338 = vld [vmem:[%s2334 + $0x2f] sm:$0xff]
        %v2339 = vld [vmem:[%s2334 + $0x47] sm:$0xff]
        %v2340 = vld [vmem:[%s2334 + $0x4f] sm:$0xff]
        %v2341 = vld [vmem:[%s2334 + $0x67] sm:$0xff]
        %v2342 = vld [vmem:[%s2334 + $0x6f] sm:$0xff]
        %v2343 = vld [vmem:[%s2334 + $0x87] sm:$0xff]
        %v2344 = vld [vmem:[%s2334 + $0x8f] sm:$0xff]
        %v2345 = vld [vmem:[%s2334 + $0xa7] sm:$0xff]
        %v2346 = vld [vmem:[%s2334 + $0xaf] sm:$0xff]
        %v2347 = vld [vmem:[%s2334 + $0xc7] sm:$0xff]
        %v2348 = vld [vmem:[%s2334 + $0xcf] sm:$0xff]
        %v2349 = vld [vmem:[%s2334 + $0xe7] sm:$0xff]
        %v2350 = vld [vmem:[%s2334 + $0xef] sm:$0xff]
        %v2351 = vld [vmem:[%s2334 + $0x107] sm:$0xff]
        %v2352 = vld [vmem:[%s2334 + $0x10f] sm:$0xff]
        %v2353 = vld [vmem:[%s2334 + $0x127] sm:$0xff]
        %v2354 = vld [vmem:[%s2334 + $0x12f] sm:$0xff]
        %v2355 = vld [vmem:[%s2334 + $0x147] sm:$0xff]
        %v2356 = vld [vmem:[%s2334 + $0x14f] sm:$0xff]
        %v2357 = vld [vmem:[%s2334 + $0x167] sm:$0xff]
        %v2358 = vld [vmem:[%s2334 + $0x16f] sm:$0xff]
        %v2359 = vld [vmem:[%s2334 + $0x187] sm:$0xff]
        %v2360 = vld [vmem:[%s2334 + $0x18f] sm:$0xff]
        %v2361 = vld [vmem:[%s2334 + $0x1a7] sm:$0xff]
        %v2362 = vld [vmem:[%s2334 + $0x1af] sm:$0xff]
        %v2363 = vld [vmem:[%s2334 + $0x1c7] sm:$0xff]
        %v2364 = vld [vmem:[%s2334 + $0x1cf] sm:$0xff]
        %v2365 = vld [vmem:[%s2334 + $0x1e7] sm:$0xff]
        %v2366 = vld [vmem:[%s2334 + $0x1ef] sm:$0xff]
        %v2367 = vpack.c.bf16 %v2336, %v2335
        %v2368 = vpack.c.bf16 %v2338, %v2337
        %v2369 = vpack.c.bf16 %v2340, %v2339
        %v2370 = vpack.c.bf16 %v2342, %v2341
        %v2371 = vpack.c.bf16 %v2344, %v2343
        %v2372 = vpack.c.bf16 %v2346, %v2345
        %v2373 = vpack.c.bf16 %v2348, %v2347
        %v2374 = vpack.c.bf16 %v2350, %v2349
        %v2375 = vpack.c.bf16 %v2352, %v2351
        %v2376 = vpack.c.bf16 %v2354, %v2353
        %v2377 = vpack.c.bf16 %v2356, %v2355
        %v2378 = vpack.c.bf16 %v2358, %v2357
        %v2379 = vpack.c.bf16 %v2360, %v2359
        %v2380 = vpack.c.bf16 %v2362, %v2361
        %v2381 = vpack.c.bf16 %v2364, %v2363
        %v2382 = vpack.c.bf16 %v2366, %v2365
        %s2383 = scalar_lea.vmem %s1, 12
        %v2384 = vld [vmem:[%s2383] sm:$0x3]
        %v2386 = vsel %vm525, %v2367, 0
        %v2389 = vsel %vm525, %v2368, 0
        %v2392 = vsel %vm525, %v2369, 0
        %v2395 = vsel %vm525, %v2370, 0
        %v2398 = vsel %vm525, %v2371, 0
        %v2401 = vsel %vm525, %v2372, 0
        %v2404 = vsel %vm525, %v2373, 0
        %v2407 = vsel %vm525, %v2374, 0
        %v2410 = vsel %vm525, %v2375, 0
        %v2413 = vsel %vm525, %v2376, 0
        %v2416 = vsel %vm525, %v2377, 0
        %v2419 = vsel %vm525, %v2378, 0
        %v2422 = vsel %vm525, %v2379, 0
        %v2425 = vsel %vm525, %v2380, 0
        %v2428 = vsel %vm525, %v2381, 0
        %v2431 = vsel %vm525, %v2382, 0
        %v2434 = vand.u32 %v2384, %v781
        %2436 = vmatprep.subr.bf16.mxu0 0
        %2437 = vmatpush1.bf16.msra.mxu0 %v2434
        %2438 = vmatprep.subr.bf16.mxu0 0
        %2439 = vmatpush1.bf16.msra.mxu0 0
        %2440 = vmatprep.subr.bf16.mxu0 0
        %2441 = vmatpush1.bf16.msra.mxu0 0
        %2442 = vmatprep.subr.bf16.mxu0 0
        %2443 = vmatpush1.bf16.msra.mxu0 0
        %2444 = vmatprep.subr.bf16.mxu0 0
        %2445 = vmatpush1.bf16.msra.mxu0 0
        %2446 = vmatprep.subr.bf16.mxu0 0
        %2447 = vmatpush1.bf16.msra.mxu0 0
        %2448 = vmatprep.subr.bf16.mxu0 0
        %2449 = vmatpush1.bf16.msra.mxu0 0
        %2450 = vmatprep.subr.bf16.mxu0 0
        %2451 = vmatpush1.bf16.msra.mxu0 0
        %2452 = vmatprep.subr.bf16.mxu0 0
        %2453 = vmatpush1.bf16.msra.mxu0 0
        %2454 = vmatprep.subr.bf16.mxu0 0
        %2455 = vmatpush1.bf16.msra.mxu0 0
        %2456 = vmatprep.subr.bf16.mxu0 0
        %2457 = vmatpush1.bf16.msra.mxu0 0
        %2458 = vmatprep.subr.bf16.mxu0 0
        %2459 = vmatpush1.bf16.msra.mxu0 0
        %2460 = vmatprep.subr.bf16.mxu0 0
        %2461 = vmatpush1.bf16.msra.mxu0 0
        %2462 = vmatprep.subr.bf16.mxu0 0
        %2463 = vmatpush1.bf16.msra.mxu0 0
        %2464 = vmatprep.subr.bf16.mxu0 0
        %2465 = vmatpush1.bf16.msra.mxu0 0
        %2466 = vmatprep.subr.bf16.mxu0 0
        %2467 = vmatpush1.bf16.msra.mxu0 0
        %2468 = vmatprep.mubr.bf16.mxu0 0
        %2469 = vmatmul.mubr.bf16.gmra.mrb[0].mxu0 %v2386
        %v2470 = vpop.f32.mrb[0].mxu0
        %v2471 = vadd.f32 0.0, %v2470
        %v2472 = vpop.f32.mrb[0].mxu0
        %v2473 = vpop.f32.mrb[0].mxu0
        %v2474 = vadd.f32 0.0, %v2473
        %v2475 = vpop.f32.mrb[0].mxu0
        %2476 = vmatprep.mubr.bf16.mxu0 0
        %2477 = vmatmul.mubr.bf16.gmra.mrb[0].mxu0 %v2389
        %v2478 = vpop.f32.mrb[0].mxu0
        %v2479 = vadd.f32 0.0, %v2478
        %v2480 = vpop.f32.mrb[0].mxu0
        %v2481 = vpop.f32.mrb[0].mxu0
        %v2482 = vadd.f32 0.0, %v2481
        %v2483 = vpop.f32.mrb[0].mxu0
        %2484 = vmatprep.mubr.bf16.mxu0 0
        %2485 = vmatmul.mubr.bf16.gmra.mrb[0].mxu0 %v2392
        %v2486 = vpop.f32.mrb[0].mxu0
        %v2487 = vadd.f32 0.0, %v2486
        %v2488 = vpop.f32.mrb[0].mxu0
        %v2489 = vpop.f32.mrb[0].mxu0
        %v2490 = vadd.f32 0.0, %v2489
        %v2491 = vpop.f32.mrb[0].mxu0
        %2492 = vmatprep.mubr.bf16.mxu0 0
        %2493 = vmatmul.mubr.bf16.gmra.mrb[0].mxu0 %v2395
        %v2494 = vpop.f32.mrb[0].mxu0
        %v2495 = vadd.f32 0.0, %v2494
        %v2496 = vpop.f32.mrb[0].mxu0
        %v2497 = vpop.f32.mrb[0].mxu0
        %v2498 = vadd.f32 0.0, %v2497
        %v2499 = vpop.f32.mrb[0].mxu0
        %2500 = vmatprep.mubr.bf16.mxu0 0
        %2501 = vmatmul.mubr.bf16.gmra.mrb[0].mxu0 %v2398
        %v2502 = vpop.f32.mrb[0].mxu0
        %v2503 = vadd.f32 0.0, %v2502
        %v2504 = vpop.f32.mrb[0].mxu0
        %v2505 = vpop.f32.mrb[0].mxu0
        %v2506 = vadd.f32 0.0, %v2505
        %v2507 = vpop.f32.mrb[0].mxu0
        %2508 = vmatprep.mubr.bf16.mxu0 0
        %2509 = vmatmul.mubr.bf16.gmra.mrb[0].mxu0 %v2401
        %v2510 = vpop.f32.mrb[0].mxu0
        %v2511 = vadd.f32 0.0, %v2510
        %v2512 = vpop.f32.mrb[0].mxu0
        %v2513 = vpop.f32.mrb[0].mxu0
        %v2514 = vadd.f32 0.0, %v2513
        %v2515 = vpop.f32.mrb[0].mxu0
        %2516 = vmatprep.mubr.bf16.mxu0 0
        %2517 = vmatmul.mubr.bf16.gmra.mrb[0].mxu0 %v2404
        %v2518 = vpop.f32.mrb[0].mxu0
        %v2519 = vadd.f32 0.0, %v2518
        %v2520 = vpop.f32.mrb[0].mxu0
        %v2521 = vpop.f32.mrb[0].mxu0
        %v2522 = vadd.f32 0.0, %v2521
        %v2523 = vpop.f32.mrb[0].mxu0
        %2524 = vmatprep.mubr.bf16.mxu0 0
        %2525 = vmatmul.mubr.bf16.gmra.mrb[0].mxu0 %v2407
        %v2526 = vpop.f32.mrb[0].mxu0
        %v2527 = vadd.f32 0.0, %v2526
        %v2528 = vpop.f32.mrb[0].mxu0
        %v2529 = vpop.f32.mrb[0].mxu0
        %v2530 = vadd.f32 0.0, %v2529
        %v2531 = vpop.f32.mrb[0].mxu0
        %2532 = vmatprep.mubr.bf16.mxu0 0
        %2533 = vmatmul.mubr.bf16.gmra.mrb[0].mxu0 %v2410
        %v2534 = vpop.f32.mrb[0].mxu0
        %v2535 = vadd.f32 0.0, %v2534
        %v2536 = vpop.f32.mrb[0].mxu0
        %v2537 = vpop.f32.mrb[0].mxu0
        %v2538 = vadd.f32 0.0, %v2537
        %v2539 = vpop.f32.mrb[0].mxu0
        %2540 = vmatprep.mubr.bf16.mxu0 0
        %2541 = vmatmul.mubr.bf16.gmra.mrb[0].mxu0 %v2413
        %v2542 = vpop.f32.mrb[0].mxu0
        %v2543 = vadd.f32 0.0, %v2542
        %v2544 = vpop.f32.mrb[0].mxu0
        %v2545 = vpop.f32.mrb[0].mxu0
        %v2546 = vadd.f32 0.0, %v2545
        %v2547 = vpop.f32.mrb[0].mxu0
        %2548 = vmatprep.mubr.bf16.mxu0 0
        %2549 = vmatmul.mubr.bf16.gmra.mrb[0].mxu0 %v2416
        %v2550 = vpop.f32.mrb[0].mxu0
        %v2551 = vadd.f32 0.0, %v2550
        %v2552 = vpop.f32.mrb[0].mxu0
        %v2553 = vpop.f32.mrb[0].mxu0
        %v2554 = vadd.f32 0.0, %v2553
        %v2555 = vpop.f32.mrb[0].mxu0
        %2556 = vmatprep.mubr.bf16.mxu0 0
        %2557 = vmatmul.mubr.bf16.gmra.mrb[0].mxu0 %v2419
        %v2558 = vpop.f32.mrb[0].mxu0
        %v2559 = vadd.f32 0.0, %v2558
        %v2560 = vpop.f32.mrb[0].mxu0
        %v2561 = vpop.f32.mrb[0].mxu0
        %v2562 = vadd.f32 0.0, %v2561
        %v2563 = vpop.f32.mrb[0].mxu0
        %2564 = vmatprep.mubr.bf16.mxu0 0
        %2565 = vmatmul.mubr.bf16.gmra.mrb[0].mxu0 %v2422
        %v2566 = vpop.f32.mrb[0].mxu0
        %v2567 = vadd.f32 0.0, %v2566
        %v2568 = vpop.f32.mrb[0].mxu0
        %v2569 = vpop.f32.mrb[0].mxu0
        %v2570 = vadd.f32 0.0, %v2569
        %v2571 = vpop.f32.mrb[0].mxu0
        %2572 = vmatprep.mubr.bf16.mxu0 0
        %2573 = vmatmul.mubr.bf16.gmra.mrb[0].mxu0 %v2425
        %v2574 = vpop.f32.mrb[0].mxu0
        %v2575 = vadd.f32 0.0, %v2574
        %v2576 = vpop.f32.mrb[0].mxu0
        %v2577 = vpop.f32.mrb[0].mxu0
        %v2578 = vadd.f32 0.0, %v2577
        %v2579 = vpop.f32.mrb[0].mxu0
        %2580 = vmatprep.mubr.bf16.mxu0 0
        %2581 = vmatmul.mubr.bf16.gmra.mrb[0].mxu0 %v2428
        %v2582 = vpop.f32.mrb[0].mxu0
        %v2583 = vadd.f32 0.0, %v2582
        %v2584 = vpop.f32.mrb[0].mxu0
        %v2585 = vpop.f32.mrb[0].mxu0
        %v2586 = vadd.f32 0.0, %v2585
        %v2587 = vpop.f32.mrb[0].mxu0
        %2588 = vmatprep.mubr.bf16.mxu0 0
        %2589 = vmatmul.mubr.bf16.gmra.mrb[0].mxu0 %v2431
        %v2590 = vpop.f32.mrb[0].mxu0
        %v2591 = vadd.f32 0.0, %v2590
        %v2592 = vpop.f32.mrb[0].mxu0
        %v2593 = vpop.f32.mrb[0].mxu0
        %v2594 = vadd.f32 0.0, %v2593
        %v2595 = vpop.f32.mrb[0].mxu0
        %2596 = vdwg.mxu0
        %v2597 = vadd.f32 %v2302, %v2471
        %v2598 = vadd.f32 %v2303, %v2474
        %v2599 = vadd.f32 %v2304, %v2479
        %v2600 = vadd.f32 %v2305, %v2482
        %v2601 = vadd.f32 %v2306, %v2487
        %v2602 = vadd.f32 %v2307, %v2490
        %v2603 = vadd.f32 %v2308, %v2495
        %v2604 = vadd.f32 %v2309, %v2498
        %v2605 = vadd.f32 %v2310, %v2503
        %v2606 = vadd.f32 %v2311, %v2506
        %v2607 = vadd.f32 %v2312, %v2511
        %v2608 = vadd.f32 %v2313, %v2514
        %v2609 = vadd.f32 %v2314, %v2519
        %v2610 = vadd.f32 %v2315, %v2522
        %v2611 = vadd.f32 %v2316, %v2527
        %v2612 = vadd.f32 %v2317, %v2530
        %v2613 = vadd.f32 %v2318, %v2535
        %v2614 = vadd.f32 %v2319, %v2538
        %v2615 = vadd.f32 %v2320, %v2543
        %v2616 = vadd.f32 %v2321, %v2546
        %v2617 = vadd.f32 %v2322, %v2551
        %v2618 = vadd.f32 %v2323, %v2554
        %v2619 = vadd.f32 %v2324, %v2559
        %v2620 = vadd.f32 %v2325, %v2562
        %v2621 = vadd.f32 %v2326, %v2567
        %v2622 = vadd.f32 %v2327, %v2570
        %v2623 = vadd.f32 %v2328, %v2575
        %v2624 = vadd.f32 %v2329, %v2578
        %v2625 = vadd.f32 %v2330, %v2583
        %v2626 = vadd.f32 %v2331, %v2586
        %v2627 = vadd.f32 %v2332, %v2591
        %v2628 = vadd.f32 %v2333, %v2594
        %v2629 = vld [vmem:[%s2334 + $0x8] sm:$0xff]
        %v2630 = vld [vmem:[%s2334 + $0x10] sm:$0xff]
        %v2631 = vld [vmem:[%s2334 + $0x28] sm:$0xff]
        %v2632 = vld [vmem:[%s2334 + $0x30] sm:$0xff]
        %v2633 = vld [vmem:[%s2334 + $0x48] sm:$0xff]
        %v2634 = vld [vmem:[%s2334 + $0x50] sm:$0xff]
        %v2635 = vld [vmem:[%s2334 + $0x68] sm:$0xff]
        %v2636 = vld [vmem:[%s2334 + $0x70] sm:$0xff]
        %v2637 = vld [vmem:[%s2334 + $0x88] sm:$0xff]
        %v2638 = vld [vmem:[%s2334 + $0x90] sm:$0xff]
        %v2639 = vld [vmem:[%s2334 + $0xa8] sm:$0xff]
        %v2640 = vld [vmem:[%s2334 + $0xb0] sm:$0xff]
        %v2641 = vld [vmem:[%s2334 + $0xc8] sm:$0xff]
        %v2642 = vld [vmem:[%s2334 + $0xd0] sm:$0xff]
        %v2643 = vld [vmem:[%s2334 + $0xe8] sm:$0xff]
        %v2644 = vld [vmem:[%s2334 + $0xf0] sm:$0xff]
        %v2645 = vld [vmem:[%s2334 + $0x108] sm:$0xff]
        %v2646 = vld [vmem:[%s2334 + $0x110] sm:$0xff]
        %v2647 = vld [vmem:[%s2334 + $0x128] sm:$0xff]
        %v2648 = vld [vmem:[%s2334 + $0x130] sm:$0xff]
        %v2649 = vld [vmem:[%s2334 + $0x148] sm:$0xff]
        %v2650 = vld [vmem:[%s2334 + $0x150] sm:$0xff]
        %v2651 = vld [vmem:[%s2334 + $0x168] sm:$0xff]
        %v2652 = vld [vmem:[%s2334 + $0x170] sm:$0xff]
        %v2653 = vld [vmem:[%s2334 + $0x188] sm:$0xff]
        %v2654 = vld [vmem:[%s2334 + $0x190] sm:$0xff]
        %v2655 = vld [vmem:[%s2334 + $0x1a8] sm:$0xff]
        %v2656 = vld [vmem:[%s2334 + $0x1b0] sm:$0xff]
        %v2657 = vld [vmem:[%s2334 + $0x1c8] sm:$0xff]
        %v2658 = vld [vmem:[%s2334 + $0x1d0] sm:$0xff]
        %v2659 = vld [vmem:[%s2334 + $0x1e8] sm:$0xff]
        %v2660 = vld [vmem:[%s2334 + $0x1f0] sm:$0xff]
        %v2661 = vpack.c.bf16 %v2630, %v2629
        %v2662 = vpack.c.bf16 %v2632, %v2631
        %v2663 = vpack.c.bf16 %v2634, %v2633
        %v2664 = vpack.c.bf16 %v2636, %v2635
        %v2665 = vpack.c.bf16 %v2638, %v2637
        %v2666 = vpack.c.bf16 %v2640, %v2639
        %v2667 = vpack.c.bf16 %v2642, %v2641
        %v2668 = vpack.c.bf16 %v2644, %v2643
        %v2669 = vpack.c.bf16 %v2646, %v2645
        %v2670 = vpack.c.bf16 %v2648, %v2647
        %v2671 = vpack.c.bf16 %v2650, %v2649
        %v2672 = vpack.c.bf16 %v2652, %v2651
        %v2673 = vpack.c.bf16 %v2654, %v2653
        %v2674 = vpack.c.bf16 %v2656, %v2655
        %v2675 = vpack.c.bf16 %v2658, %v2657
        %v2676 = vpack.c.bf16 %v2660, %v2659
        %s2677 = scalar_lea.vmem %s1, 14
        %v2678 = vld [vmem:[%s2677] sm:$0x3]
        %v2680 = vsel %vm525, %v2661, 0
        %v2683 = vsel %vm525, %v2662, 0
        %v2686 = vsel %vm525, %v2663, 0
        %v2689 = vsel %vm525, %v2664, 0
        %v2692 = vsel %vm525, %v2665, 0
        %v2695 = vsel %vm525, %v2666, 0
        %v2698 = vsel %vm525, %v2667, 0
        %v2701 = vsel %vm525, %v2668, 0
        %v2704 = vsel %vm525, %v2669, 0
        %v2707 = vsel %vm525, %v2670, 0
        %v2710 = vsel %vm525, %v2671, 0
        %v2713 = vsel %vm525, %v2672, 0
        %v2716 = vsel %vm525, %v2673, 0
        %v2719 = vsel %vm525, %v2674, 0
        %v2722 = vsel %vm525, %v2675, 0
        %v2725 = vsel %vm525, %v2676, 0
        %v2728 = vand.u32 %v2678, %v781
        %2730 = vmatprep.subr.bf16.mxu0 0
        %2731 = vmatpush1.bf16.msra.mxu0 %v2728
        %2732 = vmatprep.subr.bf16.mxu0 0
        %2733 = vmatpush1.bf16.msra.mxu0 0
        %2734 = vmatprep.subr.bf16.mxu0 0
        %2735 = vmatpush1.bf16.msra.mxu0 0
        %2736 = vmatprep.subr.bf16.mxu0 0
        %2737 = vmatpush1.bf16.msra.mxu0 0
        %2738 = vmatprep.subr.bf16.mxu0 0
        %2739 = vmatpush1.bf16.msra.mxu0 0
        %2740 = vmatprep.subr.bf16.mxu0 0
        %2741 = vmatpush1.bf16.msra.mxu0 0
        %2742 = vmatprep.subr.bf16.mxu0 0
        %2743 = vmatpush1.bf16.msra.mxu0 0
        %2744 = vmatprep.subr.bf16.mxu0 0
        %2745 = vmatpush1.bf16.msra.mxu0 0
        %2746 = vmatprep.subr.bf16.mxu0 0
        %2747 = vmatpush1.bf16.msra.mxu0 0
        %2748 = vmatprep.subr.bf16.mxu0 0
        %2749 = vmatpush1.bf16.msra.mxu0 0
        %2750 = vmatprep.subr.bf16.mxu0 0
        %2751 = vmatpush1.bf16.msra.mxu0 0
        %2752 = vmatprep.subr.bf16.mxu0 0
        %2753 = vmatpush1.bf16.msra.mxu0 0
        %2754 = vmatprep.subr.bf16.mxu0 0
        %2755 = vmatpush1.bf16.msra.mxu0 0
        %2756 = vmatprep.subr.bf16.mxu0 0
        %2757 = vmatpush1.bf16.msra.mxu0 0
        %2758 = vmatprep.subr.bf16.mxu0 0
        %2759 = vmatpush1.bf16.msra.mxu0 0
        %2760 = vmatprep.subr.bf16.mxu0 0
        %2761 = vmatpush1.bf16.msra.mxu0 0
        %2762 = vmatprep.mubr.bf16.mxu0 0
        %2763 = vmatmul.mubr.bf16.gmra.mrb[0].mxu0 %v2680
        %v2764 = vpop.f32.mrb[0].mxu0
        %v2765 = vadd.f32 0.0, %v2764
        %v2766 = vpop.f32.mrb[0].mxu0
        %v2767 = vpop.f32.mrb[0].mxu0
        %v2768 = vadd.f32 0.0, %v2767
        %v2769 = vpop.f32.mrb[0].mxu0
        %2770 = vmatprep.mubr.bf16.mxu0 0
        %2771 = vmatmul.mubr.bf16.gmra.mrb[0].mxu0 %v2683
        %v2772 = vpop.f32.mrb[0].mxu0
        %v2773 = vadd.f32 0.0, %v2772
        %v2774 = vpop.f32.mrb[0].mxu0
        %v2775 = vpop.f32.mrb[0].mxu0
        %v2776 = vadd.f32 0.0, %v2775
        %v2777 = vpop.f32.mrb[0].mxu0
        %2778 = vmatprep.mubr.bf16.mxu0 0
        %2779 = vmatmul.mubr.bf16.gmra.mrb[0].mxu0 %v2686
        %v2780 = vpop.f32.mrb[0].mxu0
        %v2781 = vadd.f32 0.0, %v2780
        %v2782 = vpop.f32.mrb[0].mxu0
        %v2783 = vpop.f32.mrb[0].mxu0
        %v2784 = vadd.f32 0.0, %v2783
        %v2785 = vpop.f32.mrb[0].mxu0
        %2786 = vmatprep.mubr.bf16.mxu0 0
        %2787 = vmatmul.mubr.bf16.gmra.mrb[0].mxu0 %v2689
        %v2788 = vpop.f32.mrb[0].mxu0
        %v2789 = vadd.f32 0.0, %v2788
        %v2790 = vpop.f32.mrb[0].mxu0
        %v2791 = vpop.f32.mrb[0].mxu0
        %v2792 = vadd.f32 0.0, %v2791
        %v2793 = vpop.f32.mrb[0].mxu0
        %2794 = vmatprep.mubr.bf16.mxu0 0
        %2795 = vmatmul.mubr.bf16.gmra.mrb[0].mxu0 %v2692
        %v2796 = vpop.f32.mrb[0].mxu0
        %v2797 = vadd.f32 0.0, %v2796
        %v2798 = vpop.f32.mrb[0].mxu0
        %v2799 = vpop.f32.mrb[0].mxu0
        %v2800 = vadd.f32 0.0, %v2799
        %v2801 = vpop.f32.mrb[0].mxu0
        %2802 = vmatprep.mubr.bf16.mxu0 0
        %2803 = vmatmul.mubr.bf16.gmra.mrb[0].mxu0 %v2695
        %v2804 = vpop.f32.mrb[0].mxu0
        %v2805 = vadd.f32 0.0, %v2804
        %v2806 = vpop.f32.mrb[0].mxu0
        %v2807 = vpop.f32.mrb[0].mxu0
        %v2808 = vadd.f32 0.0, %v2807
        %v2809 = vpop.f32.mrb[0].mxu0
        %2810 = vmatprep.mubr.bf16.mxu0 0
        %2811 = vmatmul.mubr.bf16.gmra.mrb[0].mxu0 %v2698
        %v2812 = vpop.f32.mrb[0].mxu0
        %v2813 = vadd.f32 0.0, %v2812
        %v2814 = vpop.f32.mrb[0].mxu0
        %v2815 = vpop.f32.mrb[0].mxu0
        %v2816 = vadd.f32 0.0, %v2815
        %v2817 = vpop.f32.mrb[0].mxu0
        %2818 = vmatprep.mubr.bf16.mxu0 0
        %2819 = vmatmul.mubr.bf16.gmra.mrb[0].mxu0 %v2701
        %v2820 = vpop.f32.mrb[0].mxu0
        %v2821 = vadd.f32 0.0, %v2820
        %v2822 = vpop.f32.mrb[0].mxu0
        %v2823 = vpop.f32.mrb[0].mxu0
        %v2824 = vadd.f32 0.0, %v2823
        %v2825 = vpop.f32.mrb[0].mxu0
        %2826 = vmatprep.mubr.bf16.mxu0 0
        %2827 = vmatmul.mubr.bf16.gmra.mrb[0].mxu0 %v2704
        %v2828 = vpop.f32.mrb[0].mxu0
        %v2829 = vadd.f32 0.0, %v2828
        %v2830 = vpop.f32.mrb[0].mxu0
        %v2831 = vpop.f32.mrb[0].mxu0
        %v2832 = vadd.f32 0.0, %v2831
        %v2833 = vpop.f32.mrb[0].mxu0
        %2834 = vmatprep.mubr.bf16.mxu0 0
        %2835 = vmatmul.mubr.bf16.gmra.mrb[0].mxu0 %v2707
        %v2836 = vpop.f32.mrb[0].mxu0
        %v2837 = vadd.f32 0.0, %v2836
        %v2838 = vpop.f32.mrb[0].mxu0
        %v2839 = vpop.f32.mrb[0].mxu0
        %v2840 = vadd.f32 0.0, %v2839
        %v2841 = vpop.f32.mrb[0].mxu0
        %2842 = vmatprep.mubr.bf16.mxu0 0
        %2843 = vmatmul.mubr.bf16.gmra.mrb[0].mxu0 %v2710
        %v2844 = vpop.f32.mrb[0].mxu0
        %v2845 = vadd.f32 0.0, %v2844
        %v2846 = vpop.f32.mrb[0].mxu0
        %v2847 = vpop.f32.mrb[0].mxu0
        %v2848 = vadd.f32 0.0, %v2847
        %v2849 = vpop.f32.mrb[0].mxu0
        %2850 = vmatprep.mubr.bf16.mxu0 0
        %2851 = vmatmul.mubr.bf16.gmra.mrb[0].mxu0 %v2713
        %v2852 = vpop.f32.mrb[0].mxu0
        %v2853 = vadd.f32 0.0, %v2852
        %v2854 = vpop.f32.mrb[0].mxu0
        %v2855 = vpop.f32.mrb[0].mxu0
        %v2856 = vadd.f32 0.0, %v2855
        %v2857 = vpop.f32.mrb[0].mxu0
        %2858 = vmatprep.mubr.bf16.mxu0 0
        %2859 = vmatmul.mubr.bf16.gmra.mrb[0].mxu0 %v2716
        %v2860 = vpop.f32.mrb[0].mxu0
        %v2861 = vadd.f32 0.0, %v2860
        %v2862 = vpop.f32.mrb[0].mxu0
        %v2863 = vpop.f32.mrb[0].mxu0
        %v2864 = vadd.f32 0.0, %v2863
        %v2865 = vpop.f32.mrb[0].mxu0
        %2866 = vmatprep.mubr.bf16.mxu0 0
        %2867 = vmatmul.mubr.bf16.gmra.mrb[0].mxu0 %v2719
        %v2868 = vpop.f32.mrb[0].mxu0
        %v2869 = vadd.f32 0.0, %v2868
        %v2870 = vpop.f32.mrb[0].mxu0
        %v2871 = vpop.f32.mrb[0].mxu0
        %v2872 = vadd.f32 0.0, %v2871
        %v2873 = vpop.f32.mrb[0].mxu0
        %2874 = vmatprep.mubr.bf16.mxu0 0
        %2875 = vmatmul.mubr.bf16.gmra.mrb[0].mxu0 %v2722
        %v2876 = vpop.f32.mrb[0].mxu0
        %v2877 = vadd.f32 0.0, %v2876
        %v2878 = vpop.f32.mrb[0].mxu0
        %v2879 = vpop.f32.mrb[0].mxu0
        %v2880 = vadd.f32 0.0, %v2879
        %v2881 = vpop.f32.mrb[0].mxu0
        %2882 = vmatprep.mubr.bf16.mxu0 0
        %2883 = vmatmul.mubr.bf16.gmra.mrb[0].mxu0 %v2725
        %v2884 = vpop.f32.mrb[0].mxu0
        %v2885 = vadd.f32 0.0, %v2884
        %v2886 = vpop.f32.mrb[0].mxu0
        %v2887 = vpop.f32.mrb[0].mxu0
        %v2888 = vadd.f32 0.0, %v2887
        %v2889 = vpop.f32.mrb[0].mxu0
        %2890 = vdwg.mxu0
        %v2891 = vadd.f32 %v2597, %v2765
        %v2892 = vadd.f32 %v2598, %v2768
        %v2893 = vadd.f32 %v2599, %v2773
        %v2894 = vadd.f32 %v2600, %v2776
        %v2895 = vadd.f32 %v2601, %v2781
        %v2896 = vadd.f32 %v2602, %v2784
        %v2897 = vadd.f32 %v2603, %v2789
        %v2898 = vadd.f32 %v2604, %v2792
        %v2899 = vadd.f32 %v2605, %v2797
        %v2900 = vadd.f32 %v2606, %v2800
        %v2901 = vadd.f32 %v2607, %v2805
        %v2902 = vadd.f32 %v2608, %v2808
        %v2903 = vadd.f32 %v2609, %v2813
        %v2904 = vadd.f32 %v2610, %v2816
        %v2905 = vadd.f32 %v2611, %v2821
        %v2906 = vadd.f32 %v2612, %v2824
        %v2907 = vadd.f32 %v2613, %v2829
        %v2908 = vadd.f32 %v2614, %v2832
        %v2909 = vadd.f32 %v2615, %v2837
        %v2910 = vadd.f32 %v2616, %v2840
        %v2911 = vadd.f32 %v2617, %v2845
        %v2912 = vadd.f32 %v2618, %v2848
        %v2913 = vadd.f32 %v2619, %v2853
        %v2914 = vadd.f32 %v2620, %v2856
        %v2915 = vadd.f32 %v2621, %v2861
        %v2916 = vadd.f32 %v2622, %v2864
        %v2917 = vadd.f32 %v2623, %v2869
        %v2918 = vadd.f32 %v2624, %v2872
        %v2919 = vadd.f32 %v2625, %v2877
        %v2920 = vadd.f32 %v2626, %v2880
        %v2921 = vadd.f32 %v2627, %v2885
        %v2922 = vadd.f32 %v2628, %v2888
        %v2923 = vld [vmem:[%s2334 + $0x9] sm:$0xff]
        %v2924 = vld [vmem:[%s2334 + $0x11] sm:$0xff]
        %v2925 = vld [vmem:[%s2334 + $0x29] sm:$0xff]
        %v2926 = vld [vmem:[%s2334 + $0x31] sm:$0xff]
        %v2927 = vld [vmem:[%s2334 + $0x49] sm:$0xff]
        %v2928 = vld [vmem:[%s2334 + $0x51] sm:$0xff]
        %v2929 = vld [vmem:[%s2334 + $0x69] sm:$0xff]
        %v2930 = vld [vmem:[%s2334 + $0x71] sm:$0xff]
        %v2931 = vld [vmem:[%s2334 + $0x89] sm:$0xff]
        %v2932 = vld [vmem:[%s2334 + $0x91] sm:$0xff]
        %v2933 = vld [vmem:[%s2334 + $0xa9] sm:$0xff]
        %v2934 = vld [vmem:[%s2334 + $0xb1] sm:$0xff]
        %v2935 = vld [vmem:[%s2334 + $0xc9] sm:$0xff]
        %v2936 = vld [vmem:[%s2334 + $0xd1] sm:$0xff]
        %v2937 = vld [vmem:[%s2334 + $0xe9] sm:$0xff]
        %v2938 = vld [vmem:[%s2334 + $0xf1] sm:$0xff]
        %v2939 = vld [vmem:[%s2334 + $0x109] sm:$0xff]
        %v2940 = vld [vmem:[%s2334 + $0x111] sm:$0xff]
        %v2941 = vld [vmem:[%s2334 + $0x129] sm:$0xff]
        %v2942 = vld [vmem:[%s2334 + $0x131] sm:$0xff]
        %v2943 = vld [vmem:[%s2334 + $0x149] sm:$0xff]
        %v2944 = vld [vmem:[%s2334 + $0x151] sm:$0xff]
        %v2945 = vld [vmem:[%s2334 + $0x169] sm:$0xff]
        %v2946 = vld [vmem:[%s2334 + $0x171] sm:$0xff]
        %v2947 = vld [vmem:[%s2334 + $0x189] sm:$0xff]
        %v2948 = vld [vmem:[%s2334 + $0x191] sm:$0xff]
        %v2949 = vld [vmem:[%s2334 + $0x1a9] sm:$0xff]
        %v2950 = vld [vmem:[%s2334 + $0x1b1] sm:$0xff]
        %v2951 = vld [vmem:[%s2334 + $0x1c9] sm:$0xff]
        %v2952 = vld [vmem:[%s2334 + $0x1d1] sm:$0xff]
        %v2953 = vld [vmem:[%s2334 + $0x1e9] sm:$0xff]
        %v2954 = vld [vmem:[%s2334 + $0x1f1] sm:$0xff]
        %v2955 = vpack.c.bf16 %v2924, %v2923
        %v2956 = vpack.c.bf16 %v2926, %v2925
        %v2957 = vpack.c.bf16 %v2928, %v2927
        %v2958 = vpack.c.bf16 %v2930, %v2929
        %v2959 = vpack.c.bf16 %v2932, %v2931
        %v2960 = vpack.c.bf16 %v2934, %v2933
        %v2961 = vpack.c.bf16 %v2936, %v2935
        %v2962 = vpack.c.bf16 %v2938, %v2937
        %v2963 = vpack.c.bf16 %v2940, %v2939
        %v2964 = vpack.c.bf16 %v2942, %v2941
        %v2965 = vpack.c.bf16 %v2944, %v2943
        %v2966 = vpack.c.bf16 %v2946, %v2945
        %v2967 = vpack.c.bf16 %v2948, %v2947
        %v2968 = vpack.c.bf16 %v2950, %v2949
        %v2969 = vpack.c.bf16 %v2952, %v2951
        %v2970 = vpack.c.bf16 %v2954, %v2953
        %s2971 = scalar_lea.vmem %s1, 16
        %v2972 = vld [vmem:[%s2971] sm:$0x3]
        %v2974 = vsel %vm525, %v2955, 0
        %v2977 = vsel %vm525, %v2956, 0
        %v2980 = vsel %vm525, %v2957, 0
        %v2983 = vsel %vm525, %v2958, 0
        %v2986 = vsel %vm525, %v2959, 0
        %v2989 = vsel %vm525, %v2960, 0
        %v2992 = vsel %vm525, %v2961, 0
        %v2995 = vsel %vm525, %v2962, 0
        %v2998 = vsel %vm525, %v2963, 0
        %v3001 = vsel %vm525, %v2964, 0
        %v3004 = vsel %vm525, %v2965, 0
        %v3007 = vsel %vm525, %v2966, 0
        %v3010 = vsel %vm525, %v2967, 0
        %v3013 = vsel %vm525, %v2968, 0
        %v3016 = vsel %vm525, %v2969, 0
        %v3019 = vsel %vm525, %v2970, 0
        %v3022 = vand.u32 %v2972, %v781
        %3024 = vmatprep.subr.bf16.mxu0 0
        %3025 = vmatpush1.bf16.msra.mxu0 %v3022
        %3026 = vmatprep.subr.bf16.mxu0 0
        %3027 = vmatpush1.bf16.msra.mxu0 0
        %3028 = vmatprep.subr.bf16.mxu0 0
        %3029 = vmatpush1.bf16.msra.mxu0 0
        %3030 = vmatprep.subr.bf16.mxu0 0
        %3031 = vmatpush1.bf16.msra.mxu0 0
        %3032 = vmatprep.subr.bf16.mxu0 0
        %3033 = vmatpush1.bf16.msra.mxu0 0
        %3034 = vmatprep.subr.bf16.mxu0 0
        %3035 = vmatpush1.bf16.msra.mxu0 0
        %3036 = vmatprep.subr.bf16.mxu0 0
        %3037 = vmatpush1.bf16.msra.mxu0 0
        %3038 = vmatprep.subr.bf16.mxu0 0
        %3039 = vmatpush1.bf16.msra.mxu0 0
        %3040 = vmatprep.subr.bf16.mxu0 0
        %3041 = vmatpush1.bf16.msra.mxu0 0
        %3042 = vmatprep.subr.bf16.mxu0 0
        %3043 = vmatpush1.bf16.msra.mxu0 0
        %3044 = vmatprep.subr.bf16.mxu0 0
        %3045 = vmatpush1.bf16.msra.mxu0 0
        %3046 = vmatprep.subr.bf16.mxu0 0
        %3047 = vmatpush1.bf16.msra.mxu0 0
        %3048 = vmatprep.subr.bf16.mxu0 0
        %3049 = vmatpush1.bf16.msra.mxu0 0
        %3050 = vmatprep.subr.bf16.mxu0 0
        %3051 = vmatpush1.bf16.msra.mxu0 0
        %3052 = vmatprep.subr.bf16.mxu0 0
        %3053 = vmatpush1.bf16.msra.mxu0 0
        %3054 = vmatprep.subr.bf16.mxu0 0
        %3055 = vmatpush1.bf16.msra.mxu0 0
        %3056 = vmatprep.mubr.bf16.mxu0 0
        %3057 = vmatmul.mubr.bf16.gmra.mrb[0].mxu0 %v2974
        %v3058 = vpop.f32.mrb[0].mxu0
        %v3059 = vadd.f32 0.0, %v3058
        %v3060 = vpop.f32.mrb[0].mxu0
        %v3061 = vpop.f32.mrb[0].mxu0
        %v3062 = vadd.f32 0.0, %v3061
        %v3063 = vpop.f32.mrb[0].mxu0
        %3064 = vmatprep.mubr.bf16.mxu0 0
        %3065 = vmatmul.mubr.bf16.gmra.mrb[0].mxu0 %v2977
        %v3066 = vpop.f32.mrb[0].mxu0
        %v3067 = vadd.f32 0.0, %v3066
        %v3068 = vpop.f32.mrb[0].mxu0
        %v3069 = vpop.f32.mrb[0].mxu0
        %v3070 = vadd.f32 0.0, %v3069
        %v3071 = vpop.f32.mrb[0].mxu0
        %3072 = vmatprep.mubr.bf16.mxu0 0
        %3073 = vmatmul.mubr.bf16.gmra.mrb[0].mxu0 %v2980
        %v3074 = vpop.f32.mrb[0].mxu0
        %v3075 = vadd.f32 0.0, %v3074
        %v3076 = vpop.f32.mrb[0].mxu0
        %v3077 = vpop.f32.mrb[0].mxu0
        %v3078 = vadd.f32 0.0, %v3077
        %v3079 = vpop.f32.mrb[0].mxu0
        %3080 = vmatprep.mubr.bf16.mxu0 0
        %3081 = vmatmul.mubr.bf16.gmra.mrb[0].mxu0 %v2983
        %v3082 = vpop.f32.mrb[0].mxu0
        %v3083 = vadd.f32 0.0, %v3082
        %v3084 = vpop.f32.mrb[0].mxu0
        %v3085 = vpop.f32.mrb[0].mxu0
        %v3086 = vadd.f32 0.0, %v3085
        %v3087 = vpop.f32.mrb[0].mxu0
        %3088 = vmatprep.mubr.bf16.mxu0 0
        %3089 = vmatmul.mubr.bf16.gmra.mrb[0].mxu0 %v2986
        %v3090 = vpop.f32.mrb[0].mxu0
        %v3091 = vadd.f32 0.0, %v3090
        %v3092 = vpop.f32.mrb[0].mxu0
        %v3093 = vpop.f32.mrb[0].mxu0
        %v3094 = vadd.f32 0.0, %v3093
        %v3095 = vpop.f32.mrb[0].mxu0
        %3096 = vmatprep.mubr.bf16.mxu0 0
        %3097 = vmatmul.mubr.bf16.gmra.mrb[0].mxu0 %v2989
        %v3098 = vpop.f32.mrb[0].mxu0
        %v3099 = vadd.f32 0.0, %v3098
        %v3100 = vpop.f32.mrb[0].mxu0
        %v3101 = vpop.f32.mrb[0].mxu0
        %v3102 = vadd.f32 0.0, %v3101
        %v3103 = vpop.f32.mrb[0].mxu0
        %3104 = vmatprep.mubr.bf16.mxu0 0
        %3105 = vmatmul.mubr.bf16.gmra.mrb[0].mxu0 %v2992
        %v3106 = vpop.f32.mrb[0].mxu0
        %v3107 = vadd.f32 0.0, %v3106
        %v3108 = vpop.f32.mrb[0].mxu0
        %v3109 = vpop.f32.mrb[0].mxu0
        %v3110 = vadd.f32 0.0, %v3109
        %v3111 = vpop.f32.mrb[0].mxu0
        %3112 = vmatprep.mubr.bf16.mxu0 0
        %3113 = vmatmul.mubr.bf16.gmra.mrb[0].mxu0 %v2995
        %v3114 = vpop.f32.mrb[0].mxu0
        %v3115 = vadd.f32 0.0, %v3114
        %v3116 = vpop.f32.mrb[0].mxu0
        %v3117 = vpop.f32.mrb[0].mxu0
        %v3118 = vadd.f32 0.0, %v3117
        %v3119 = vpop.f32.mrb[0].mxu0
        %3120 = vmatprep.mubr.bf16.mxu0 0
        %3121 = vmatmul.mubr.bf16.gmra.mrb[0].mxu0 %v2998
        %v3122 = vpop.f32.mrb[0].mxu0
        %v3123 = vadd.f32 0.0, %v3122
        %v3124 = vpop.f32.mrb[0].mxu0
        %v3125 = vpop.f32.mrb[0].mxu0
        %v3126 = vadd.f32 0.0, %v3125
        %v3127 = vpop.f32.mrb[0].mxu0
        %3128 = vmatprep.mubr.bf16.mxu0 0
        %3129 = vmatmul.mubr.bf16.gmra.mrb[0].mxu0 %v3001
        %v3130 = vpop.f32.mrb[0].mxu0
        %v3131 = vadd.f32 0.0, %v3130
        %v3132 = vpop.f32.mrb[0].mxu0
        %v3133 = vpop.f32.mrb[0].mxu0
        %v3134 = vadd.f32 0.0, %v3133
        %v3135 = vpop.f32.mrb[0].mxu0
        %3136 = vmatprep.mubr.bf16.mxu0 0
        %3137 = vmatmul.mubr.bf16.gmra.mrb[0].mxu0 %v3004
        %v3138 = vpop.f32.mrb[0].mxu0
        %v3139 = vadd.f32 0.0, %v3138
        %v3140 = vpop.f32.mrb[0].mxu0
        %v3141 = vpop.f32.mrb[0].mxu0
        %v3142 = vadd.f32 0.0, %v3141
        %v3143 = vpop.f32.mrb[0].mxu0
        %3144 = vmatprep.mubr.bf16.mxu0 0
        %3145 = vmatmul.mubr.bf16.gmra.mrb[0].mxu0 %v3007
        %v3146 = vpop.f32.mrb[0].mxu0
        %v3147 = vadd.f32 0.0, %v3146
        %v3148 = vpop.f32.mrb[0].mxu0
        %v3149 = vpop.f32.mrb[0].mxu0
        %v3150 = vadd.f32 0.0, %v3149
        %v3151 = vpop.f32.mrb[0].mxu0
        %3152 = vmatprep.mubr.bf16.mxu0 0
        %3153 = vmatmul.mubr.bf16.gmra.mrb[0].mxu0 %v3010
        %v3154 = vpop.f32.mrb[0].mxu0
        %v3155 = vadd.f32 0.0, %v3154
        %v3156 = vpop.f32.mrb[0].mxu0
        %v3157 = vpop.f32.mrb[0].mxu0
        %v3158 = vadd.f32 0.0, %v3157
        %v3159 = vpop.f32.mrb[0].mxu0
        %3160 = vmatprep.mubr.bf16.mxu0 0
        %3161 = vmatmul.mubr.bf16.gmra.mrb[0].mxu0 %v3013
        %v3162 = vpop.f32.mrb[0].mxu0
        %v3163 = vadd.f32 0.0, %v3162
        %v3164 = vpop.f32.mrb[0].mxu0
        %v3165 = vpop.f32.mrb[0].mxu0
        %v3166 = vadd.f32 0.0, %v3165
        %v3167 = vpop.f32.mrb[0].mxu0
        %3168 = vmatprep.mubr.bf16.mxu0 0
        %3169 = vmatmul.mubr.bf16.gmra.mrb[0].mxu0 %v3016
        %v3170 = vpop.f32.mrb[0].mxu0
        %v3171 = vadd.f32 0.0, %v3170
        %v3172 = vpop.f32.mrb[0].mxu0
        %v3173 = vpop.f32.mrb[0].mxu0
        %v3174 = vadd.f32 0.0, %v3173
        %v3175 = vpop.f32.mrb[0].mxu0
        %3176 = vmatprep.mubr.bf16.mxu0 0
        %3177 = vmatmul.mubr.bf16.gmra.mrb[0].mxu0 %v3019
        %v3178 = vpop.f32.mrb[0].mxu0
        %v3179 = vadd.f32 0.0, %v3178
        %v3180 = vpop.f32.mrb[0].mxu0
        %v3181 = vpop.f32.mrb[0].mxu0
        %v3182 = vadd.f32 0.0, %v3181
        %v3183 = vpop.f32.mrb[0].mxu0
        %3184 = vdwg.mxu0
        %v3185 = vadd.f32 %v2891, %v3059
        %v3186 = vadd.f32 %v2892, %v3062
        %v3187 = vadd.f32 %v2893, %v3067
        %v3188 = vadd.f32 %v2894, %v3070
        %v3189 = vadd.f32 %v2895, %v3075
        %v3190 = vadd.f32 %v2896, %v3078
        %v3191 = vadd.f32 %v2897, %v3083
        %v3192 = vadd.f32 %v2898, %v3086
        %v3193 = vadd.f32 %v2899, %v3091
        %v3194 = vadd.f32 %v2900, %v3094
        %v3195 = vadd.f32 %v2901, %v3099
        %v3196 = vadd.f32 %v2902, %v3102
        %v3197 = vadd.f32 %v2903, %v3107
        %v3198 = vadd.f32 %v2904, %v3110
        %v3199 = vadd.f32 %v2905, %v3115
        %v3200 = vadd.f32 %v2906, %v3118
        %v3201 = vadd.f32 %v2907, %v3123
        %v3202 = vadd.f32 %v2908, %v3126
        %v3203 = vadd.f32 %v2909, %v3131
        %v3204 = vadd.f32 %v2910, %v3134
        %v3205 = vadd.f32 %v2911, %v3139
        %v3206 = vadd.f32 %v2912, %v3142
        %v3207 = vadd.f32 %v2913, %v3147
        %v3208 = vadd.f32 %v2914, %v3150
        %v3209 = vadd.f32 %v2915, %v3155
        %v3210 = vadd.f32 %v2916, %v3158
        %v3211 = vadd.f32 %v2917, %v3163
        %v3212 = vadd.f32 %v2918, %v3166
        %v3213 = vadd.f32 %v2919, %v3171
        %v3214 = vadd.f32 %v2920, %v3174
        %v3215 = vadd.f32 %v2921, %v3179
        %v3216 = vadd.f32 %v2922, %v3182
        %v3217 = vld [vmem:[%s2] sm:$0x1]
        %v3219 = vlaneseq
        %v3220 = vshrl.u32 %v3219, 7
        %v3221 = vsub.s32 0, %v3220
        %v3222 = vrot.slane %v3217, %v3221
        %v3224 = vadd.f32 %v3185, %v3222
        %v3225 = vadd.f32 %v3186, %v3222
        %v3226 = vadd.f32 %v3187, %v3222
        %v3227 = vadd.f32 %v3188, %v3222
        %v3228 = vadd.f32 %v3189, %v3222
        %v3229 = vadd.f32 %v3190, %v3222
        %v3230 = vadd.f32 %v3191, %v3222
        %v3231 = vadd.f32 %v3192, %v3222
        %v3232 = vadd.f32 %v3193, %v3222
        %v3233 = vadd.f32 %v3194, %v3222
        %v3234 = vadd.f32 %v3195, %v3222
        %v3235 = vadd.f32 %v3196, %v3222
        %v3236 = vadd.f32 %v3197, %v3222
        %v3237 = vadd.f32 %v3198, %v3222
        %v3238 = vadd.f32 %v3199, %v3222
        %v3239 = vadd.f32 %v3200, %v3222
        %v3240 = vadd.f32 %v3201, %v3222
        %v3241 = vadd.f32 %v3202, %v3222
        %v3242 = vadd.f32 %v3203, %v3222
        %v3243 = vadd.f32 %v3204, %v3222
        %v3244 = vadd.f32 %v3205, %v3222
        %v3245 = vadd.f32 %v3206, %v3222
        %v3246 = vadd.f32 %v3207, %v3222
        %v3247 = vadd.f32 %v3208, %v3222
        %v3248 = vadd.f32 %v3209, %v3222
        %v3249 = vadd.f32 %v3210, %v3222
        %v3250 = vadd.f32 %v3211, %v3222
        %v3251 = vadd.f32 %v3212, %v3222
        %v3252 = vadd.f32 %v3213, %v3222
        %v3253 = vadd.f32 %v3214, %v3222
        %v3254 = vadd.f32 %v3215, %v3222
        %v3255 = vadd.f32 %v3216, %v3222
        %v3256 = vmax.f32 %v3224, 0.0
        %v3257 = vmax.f32 %v3225, 0.0
        %v3258 = vmax.f32 %v3226, 0.0
        %v3259 = vmax.f32 %v3227, 0.0
        %v3260 = vmax.f32 %v3228, 0.0
        %v3261 = vmax.f32 %v3229, 0.0
        %v3262 = vmax.f32 %v3230, 0.0
        %v3263 = vmax.f32 %v3231, 0.0
        %v3264 = vmax.f32 %v3232, 0.0
        %v3265 = vmax.f32 %v3233, 0.0
        %v3266 = vmax.f32 %v3234, 0.0
        %v3267 = vmax.f32 %v3235, 0.0
        %v3268 = vmax.f32 %v3236, 0.0
        %v3269 = vmax.f32 %v3237, 0.0
        %v3270 = vmax.f32 %v3238, 0.0
        %v3271 = vmax.f32 %v3239, 0.0
        %v3272 = vmax.f32 %v3240, 0.0
        %v3273 = vmax.f32 %v3241, 0.0
        %v3274 = vmax.f32 %v3242, 0.0
        %v3275 = vmax.f32 %v3243, 0.0
        %v3276 = vmax.f32 %v3244, 0.0
        %v3277 = vmax.f32 %v3245, 0.0
        %v3278 = vmax.f32 %v3246, 0.0
        %v3279 = vmax.f32 %v3247, 0.0
        %v3280 = vmax.f32 %v3248, 0.0
        %v3281 = vmax.f32 %v3249, 0.0
        %v3282 = vmax.f32 %v3250, 0.0
        %v3283 = vmax.f32 %v3251, 0.0
        %v3284 = vmax.f32 %v3252, 0.0
        %v3285 = vmax.f32 %v3253, 0.0
        %v3286 = vmax.f32 %v3254, 0.0
        %v3287 = vmax.f32 %v3255, 0.0
        %vm3288 = vcmask 64512
        %3289 = vst.msk [vmem:[#allocation3] sm:$0xff] %vm3288, 0.0
        %3290 = vst.msk [vmem:[#allocation3 + $0x8] sm:$0xff] %vm3288, 0.0
        %3291 = vst.msk [vmem:[#allocation3 + $0x10] sm:$0xff] %vm3288, 0.0
        %3292 = vst.msk [vmem:[#allocation3 + $0x18] sm:$0xff] %vm3288, 0.0
        %3293 = vst.msk [vmem:[#allocation3 + $0x20] sm:$0xff] %vm3288, 0.0
        %3294 = vst.msk [vmem:[#allocation3 + $0x28] sm:$0xff] %vm3288, 0.0
        %3295 = vst.msk [vmem:[#allocation3 + $0x30] sm:$0xff] %vm3288, 0.0
        %3296 = vst.msk [vmem:[#allocation3 + $0x38] sm:$0xff] %vm3288, 0.0
        %3297 = vst.msk [vmem:[#allocation3 + $0x40] sm:$0xff] %vm3288, 0.0
        %3298 = vst.msk [vmem:[#allocation3 + $0x48] sm:$0xff] %vm3288, 0.0
        %3299 = vst.msk [vmem:[#allocation3 + $0x50] sm:$0xff] %vm3288, 0.0
        %3300 = vst.msk [vmem:[#allocation3 + $0x58] sm:$0xff] %vm3288, 0.0
        %3301 = vst.msk [vmem:[#allocation3 + $0x60] sm:$0xff] %vm3288, 0.0
        %3302 = vst.msk [vmem:[#allocation3 + $0x68] sm:$0xff] %vm3288, 0.0
        %3303 = vst.msk [vmem:[#allocation3 + $0x70] sm:$0xff] %vm3288, 0.0
        %3304 = vst.msk [vmem:[#allocation3 + $0x78] sm:$0xff] %vm3288, 0.0
        %3305 = vst.msk [vmem:[#allocation3 + $0x80] sm:$0xff] %vm3288, 0.0
        %3306 = vst.msk [vmem:[#allocation3 + $0x88] sm:$0xff] %vm3288, 0.0
        %3307 = vst.msk [vmem:[#allocation3 + $0x90] sm:$0xff] %vm3288, 0.0
        %3308 = vst.msk [vmem:[#allocation3 + $0x98] sm:$0xff] %vm3288, 0.0
        %3309 = vst.msk [vmem:[#allocation3 + $0xa0] sm:$0xff] %vm3288, 0.0
        %3310 = vst.msk [vmem:[#allocation3 + $0xa8] sm:$0xff] %vm3288, 0.0
        %3311 = vst.msk [vmem:[#allocation3 + $0xb0] sm:$0xff] %vm3288, 0.0
        %3312 = vst.msk [vmem:[#allocation3 + $0xb8] sm:$0xff] %vm3288, 0.0
        %3313 = vst.msk [vmem:[#allocation3 + $0xc0] sm:$0xff] %vm3288, 0.0
        %3314 = vst.msk [vmem:[#allocation3 + $0xc8] sm:$0xff] %vm3288, 0.0
        %3315 = vst.msk [vmem:[#allocation3 + $0xd0] sm:$0xff] %vm3288, 0.0
        %3316 = vst.msk [vmem:[#allocation3 + $0xd8] sm:$0xff] %vm3288, 0.0
        %3317 = vst.msk [vmem:[#allocation3 + $0xe0] sm:$0xff] %vm3288, 0.0
        %3318 = vst.msk [vmem:[#allocation3 + $0xe8] sm:$0xff] %vm3288, 0.0
        %3319 = vst.msk [vmem:[#allocation3 + $0xf0] sm:$0xff] %vm3288, 0.0
        %3320 = vst.msk [vmem:[#allocation3 + $0xf8] sm:$0xff] %vm3288, 0.0
        %3321 = vst.msk [vmem:[#allocation3 + $0x100] sm:$0xff] %vm3288, 0.0
        %3322 = vst.msk [vmem:[#allocation3 + $0x108] sm:$0xff] %vm3288, 0.0
        %3323 = vst.msk [vmem:[#allocation3 + $0x110] sm:$0xff] %vm3288, 0.0
        %3324 = vst.msk [vmem:[#allocation3 + $0x118] sm:$0xff] %vm3288, 0.0
        %3325 = vst.msk [vmem:[#allocation3 + $0x120] sm:$0xff] %vm3288, 0.0
        %3326 = vst.msk [vmem:[#allocation3 + $0x128] sm:$0xff] %vm3288, 0.0
        %3327 = vst.msk [vmem:[#allocation3 + $0x130] sm:$0xff] %vm3288, 0.0
        %3328 = vst.msk [vmem:[#allocation3 + $0x138] sm:$0xff] %vm3288, 0.0
        %3329 = vst.msk [vmem:[#allocation3 + $0x140] sm:$0xff] %vm3288, 0.0
        %3330 = vst.msk [vmem:[#allocation3 + $0x148] sm:$0xff] %vm3288, 0.0
        %3331 = vst.msk [vmem:[#allocation3 + $0x150] sm:$0xff] %vm3288, 0.0
        %3332 = vst.msk [vmem:[#allocation3 + $0x158] sm:$0xff] %vm3288, 0.0
        %3333 = vst.msk [vmem:[#allocation3 + $0x160] sm:$0xff] %vm3288, 0.0
        %3334 = vst.msk [vmem:[#allocation3 + $0x168] sm:$0xff] %vm3288, 0.0
        %3335 = vst.msk [vmem:[#allocation3 + $0x170] sm:$0xff] %vm3288, 0.0
        %3336 = vst.msk [vmem:[#allocation3 + $0x178] sm:$0xff] %vm3288, 0.0
        %3337 = vst.msk [vmem:[#allocation3 + $0x180] sm:$0xff] %vm3288, 0.0
        %3338 = vst.msk [vmem:[#allocation3 + $0x188] sm:$0xff] %vm3288, 0.0
        %3339 = vst.msk [vmem:[#allocation3 + $0x190] sm:$0xff] %vm3288, 0.0
        %3340 = vst.msk [vmem:[#allocation3 + $0x198] sm:$0xff] %vm3288, 0.0
        %3341 = vst.msk [vmem:[#allocation3 + $0x1a0] sm:$0xff] %vm3288, 0.0
        %3342 = vst.msk [vmem:[#allocation3 + $0x1a8] sm:$0xff] %vm3288, 0.0
        %3343 = vst.msk [vmem:[#allocation3 + $0x1b0] sm:$0xff] %vm3288, 0.0
        %3344 = vst.msk [vmem:[#allocation3 + $0x1b8] sm:$0xff] %vm3288, 0.0
        %3345 = vst.msk [vmem:[#allocation3 + $0x1c0] sm:$0xff] %vm3288, 0.0
        %3346 = vst.msk [vmem:[#allocation3 + $0x1c8] sm:$0xff] %vm3288, 0.0
        %3347 = vst.msk [vmem:[#allocation3 + $0x1d0] sm:$0xff] %vm3288, 0.0
        %3348 = vst.msk [vmem:[#allocation3 + $0x1d8] sm:$0xff] %vm3288, 0.0
        %3349 = vst.msk [vmem:[#allocation3 + $0x1e0] sm:$0xff] %vm3288, 0.0
        %3350 = vst.msk [vmem:[#allocation3 + $0x1e8] sm:$0xff] %vm3288, 0.0
        %3351 = vst.msk [vmem:[#allocation3 + $0x1f0] sm:$0xff] %vm3288, 0.0
        %3352 = vst.msk [vmem:[#allocation3 + $0x1f8] sm:$0xff] %vm3288, 0.0
        %3353 = vst.msk [vmem:[#allocation3 + $0x200] sm:$0xff] %vm3288, 0.0
        %3354 = vst.msk [vmem:[#allocation3 + $0x208] sm:$0xff] %vm3288, 0.0
        %3355 = vst.msk [vmem:[#allocation3 + $0x210] sm:$0xff] %vm3288, 0.0
        %3356 = vst.msk [vmem:[#allocation3 + $0x218] sm:$0xff] %vm3288, 0.0
        %3357 = vst.msk [vmem:[#allocation3 + $0x220] sm:$0xff] %vm3288, 0.0
        %3358 = vst.msk [vmem:[#allocation3 + $0x228] sm:$0xff] %vm3288, 0.0
        %3359 = vst.msk [vmem:[#allocation3 + $0x230] sm:$0xff] %vm3288, 0.0
        %3360 = vst.msk [vmem:[#allocation3 + $0x238] sm:$0xff] %vm3288, 0.0
        %s3361 = scalar_lea.vmem [#allocation3], 32
        %3362 = vst.msk [vmem:[%s3361 + $0x8] sm:$0xff] %vm3288, %v3256
        %3363 = vst.msk [vmem:[%s3361 + $0x10] sm:$0xff] %vm3288, %v3257
        %3364 = vst.msk [vmem:[%s3361 + $0x28] sm:$0xff] %vm3288, %v3258
        %3365 = vst.msk [vmem:[%s3361 + $0x30] sm:$0xff] %vm3288, %v3259
        %3366 = vst.msk [vmem:[%s3361 + $0x48] sm:$0xff] %vm3288, %v3260
        %3367 = vst.msk [vmem:[%s3361 + $0x50] sm:$0xff] %vm3288, %v3261
        %3368 = vst.msk [vmem:[%s3361 + $0x68] sm:$0xff] %vm3288, %v3262
        %3369 = vst.msk [vmem:[%s3361 + $0x70] sm:$0xff] %vm3288, %v3263
        %3370 = vst.msk [vmem:[%s3361 + $0x88] sm:$0xff] %vm3288, %v3264
        %3371 = vst.msk [vmem:[%s3361 + $0x90] sm:$0xff] %vm3288, %v3265
        %3372 = vst.msk [vmem:[%s3361 + $0xa8] sm:$0xff] %vm3288, %v3266
        %3373 = vst.msk [vmem:[%s3361 + $0xb0] sm:$0xff] %vm3288, %v3267
        %3374 = vst.msk [vmem:[%s3361 + $0xc8] sm:$0xff] %vm3288, %v3268
        %3375 = vst.msk [vmem:[%s3361 + $0xd0] sm:$0xff] %vm3288, %v3269
        %3376 = vst.msk [vmem:[%s3361 + $0xe8] sm:$0xff] %vm3288, %v3270
        %3377 = vst.msk [vmem:[%s3361 + $0xf0] sm:$0xff] %vm3288, %v3271
        %3378 = vst.msk [vmem:[%s3361 + $0x108] sm:$0xff] %vm3288, %v3272
        %3379 = vst.msk [vmem:[%s3361 + $0x110] sm:$0xff] %vm3288, %v3273
        %3380 = vst.msk [vmem:[%s3361 + $0x128] sm:$0xff] %vm3288, %v3274
        %3381 = vst.msk [vmem:[%s3361 + $0x130] sm:$0xff] %vm3288, %v3275
        %3382 = vst.msk [vmem:[%s3361 + $0x148] sm:$0xff] %vm3288, %v3276
        %3383 = vst.msk [vmem:[%s3361 + $0x150] sm:$0xff] %vm3288, %v3277
        %3384 = vst.msk [vmem:[%s3361 + $0x168] sm:$0xff] %vm3288, %v3278
        %3385 = vst.msk [vmem:[%s3361 + $0x170] sm:$0xff] %vm3288, %v3279
        %3386 = vst.msk [vmem:[%s3361 + $0x188] sm:$0xff] %vm3288, %v3280
        %3387 = vst.msk [vmem:[%s3361 + $0x190] sm:$0xff] %vm3288, %v3281
        %3388 = vst.msk [vmem:[%s3361 + $0x1a8] sm:$0xff] %vm3288, %v3282
        %3389 = vst.msk [vmem:[%s3361 + $0x1b0] sm:$0xff] %vm3288, %v3283
        %3390 = vst.msk [vmem:[%s3361 + $0x1c8] sm:$0xff] %vm3288, %v3284
        %3391 = vst.msk [vmem:[%s3361 + $0x1d0] sm:$0xff] %vm3288, %v3285
        %3392 = vst.msk [vmem:[%s3361 + $0x1e8] sm:$0xff] %vm3288, %v3286
        %3393 = vst.msk [vmem:[%s3361 + $0x1f0] sm:$0xff] %vm3288, %v3287
        %v3394 = vld [vmem:[#allocation3 + $0x7] sm:$0xff]
        %v3395 = vld [vmem:[#allocation3 + $0xf] sm:$0xff]
        %v3396 = vld [vmem:[#allocation3 + $0x27] sm:$0xff]
        %v3397 = vld [vmem:[#allocation3 + $0x2f] sm:$0xff]
        %v3398 = vld [vmem:[#allocation3 + $0x47] sm:$0xff]
        %v3399 = vld [vmem:[#allocation3 + $0x4f] sm:$0xff]
        %v3400 = vld [vmem:[#allocation3 + $0x67] sm:$0xff]
        %v3401 = vld [vmem:[#allocation3 + $0x6f] sm:$0xff]
        %v3402 = vld [vmem:[#allocation3 + $0x87] sm:$0xff]
        %v3403 = vld [vmem:[#allocation3 + $0x8f] sm:$0xff]
        %v3404 = vld [vmem:[#allocation3 + $0xa7] sm:$0xff]
        %v3405 = vld [vmem:[#allocation3 + $0xaf] sm:$0xff]
        %v3406 = vld [vmem:[#allocation3 + $0xc7] sm:$0xff]
        %v3407 = vld [vmem:[#allocation3 + $0xcf] sm:$0xff]
        %v3408 = vld [vmem:[#allocation3 + $0xe7] sm:$0xff]
        %v3409 = vld [vmem:[#allocation3 + $0xef] sm:$0xff]
        %v3410 = vld [vmem:[#allocation3 + $0x107] sm:$0xff]
        %v3411 = vld [vmem:[#allocation3 + $0x10f] sm:$0xff]
        %v3412 = vld [vmem:[#allocation3 + $0x127] sm:$0xff]
        %v3413 = vld [vmem:[#allocation3 + $0x12f] sm:$0xff]
        %v3414 = vld [vmem:[#allocation3 + $0x147] sm:$0xff]
        %v3415 = vld [vmem:[#allocation3 + $0x14f] sm:$0xff]
        %v3416 = vld [vmem:[#allocation3 + $0x167] sm:$0xff]
        %v3417 = vld [vmem:[#allocation3 + $0x16f] sm:$0xff]
        %v3418 = vld [vmem:[#allocation3 + $0x187] sm:$0xff]
        %v3419 = vld [vmem:[#allocation3 + $0x18f] sm:$0xff]
        %v3420 = vld [vmem:[#allocation3 + $0x1a7] sm:$0xff]
        %v3421 = vld [vmem:[#allocation3 + $0x1af] sm:$0xff]
        %v3422 = vld [vmem:[#allocation3 + $0x1c7] sm:$0xff]
        %v3423 = vld [vmem:[#allocation3 + $0x1cf] sm:$0xff]
        %v3424 = vld [vmem:[#allocation3 + $0x1e7] sm:$0xff]
        %v3425 = vld [vmem:[#allocation3 + $0x1ef] sm:$0xff]
        %v3426 = vpack.c.bf16 %v3395, %v3394
        %v3427 = vpack.c.bf16 %v3397, %v3396
        %v3428 = vpack.c.bf16 %v3399, %v3398
        %v3429 = vpack.c.bf16 %v3401, %v3400
        %v3430 = vpack.c.bf16 %v3403, %v3402
        %v3431 = vpack.c.bf16 %v3405, %v3404
        %v3432 = vpack.c.bf16 %v3407, %v3406
        %v3433 = vpack.c.bf16 %v3409, %v3408
        %v3434 = vpack.c.bf16 %v3411, %v3410
        %v3435 = vpack.c.bf16 %v3413, %v3412
        %v3436 = vpack.c.bf16 %v3415, %v3414
        %v3437 = vpack.c.bf16 %v3417, %v3416
        %v3438 = vpack.c.bf16 %v3419, %v3418
        %v3439 = vpack.c.bf16 %v3421, %v3420
        %v3440 = vpack.c.bf16 %v3423, %v3422
        %v3441 = vpack.c.bf16 %v3425, %v3424
        %v3442 = vld [vmem:[%s3] sm:$0xf]
        %v3443 = vld [vmem:[#allocation3 + $0x8] sm:$0xff]
        %v3444 = vld [vmem:[#allocation3 + $0x10] sm:$0xff]
        %v3445 = vld [vmem:[#allocation3 + $0x28] sm:$0xff]
        %v3446 = vld [vmem:[#allocation3 + $0x30] sm:$0xff]
        %v3447 = vld [vmem:[#allocation3 + $0x48] sm:$0xff]
        %v3448 = vld [vmem:[#allocation3 + $0x50] sm:$0xff]
        %v3449 = vld [vmem:[#allocation3 + $0x68] sm:$0xff]
        %v3450 = vld [vmem:[#allocation3 + $0x70] sm:$0xff]
        %v3451 = vld [vmem:[#allocation3 + $0x88] sm:$0xff]
        %v3452 = vld [vmem:[#allocation3 + $0x90] sm:$0xff]
        %v3453 = vld [vmem:[#allocation3 + $0xa8] sm:$0xff]
        %v3454 = vld [vmem:[#allocation3 + $0xb0] sm:$0xff]
        %v3455 = vld [vmem:[#allocation3 + $0xc8] sm:$0xff]
        %v3456 = vld [vmem:[#allocation3 + $0xd0] sm:$0xff]
        %v3457 = vld [vmem:[#allocation3 + $0xe8] sm:$0xff]
        %v3458 = vld [vmem:[#allocation3 + $0xf0] sm:$0xff]
        %v3459 = vld [vmem:[#allocation3 + $0x108] sm:$0xff]
        %v3460 = vld [vmem:[#allocation3 + $0x110] sm:$0xff]
        %v3461 = vld [vmem:[#allocation3 + $0x128] sm:$0xff]
        %v3462 = vld [vmem:[#allocation3 + $0x130] sm:$0xff]
        %v3463 = vld [vmem:[#allocation3 + $0x148] sm:$0xff]
        %v3464 = vld [vmem:[#allocation3 + $0x150] sm:$0xff]
        %v3465 = vld [vmem:[#allocation3 + $0x168] sm:$0xff]
        %v3466 = vld [vmem:[#allocation3 + $0x170] sm:$0xff]
        %v3467 = vld [vmem:[#allocation3 + $0x188] sm:$0xff]
        %v3468 = vld [vmem:[#allocation3 + $0x190] sm:$0xff]
        %v3469 = vld [vmem:[#allocation3 + $0x1a8] sm:$0xff]
        %v3470 = vld [vmem:[#allocation3 + $0x1b0] sm:$0xff]
        %v3471 = vld [vmem:[#allocation3 + $0x1c8] sm:$0xff]
        %v3472 = vld [vmem:[#allocation3 + $0x1d0] sm:$0xff]
        %v3473 = vld [vmem:[#allocation3 + $0x1e8] sm:$0xff]
        %v3474 = vld [vmem:[#allocation3 + $0x1f0] sm:$0xff]
        %v3475 = vpack.c.bf16 %v3444, %v3443
        %v3476 = vpack.c.bf16 %v3446, %v3445
        %v3477 = vpack.c.bf16 %v3448, %v3447
        %v3478 = vpack.c.bf16 %v3450, %v3449
        %v3479 = vpack.c.bf16 %v3452, %v3451
        %v3480 = vpack.c.bf16 %v3454, %v3453
        %v3481 = vpack.c.bf16 %v3456, %v3455
        %v3482 = vpack.c.bf16 %v3458, %v3457
        %v3483 = vpack.c.bf16 %v3460, %v3459
        %v3484 = vpack.c.bf16 %v3462, %v3461
        %v3485 = vpack.c.bf16 %v3464, %v3463
        %v3486 = vpack.c.bf16 %v3466, %v3465
        %v3487 = vpack.c.bf16 %v3468, %v3467
        %v3488 = vpack.c.bf16 %v3470, %v3469
        %v3489 = vpack.c.bf16 %v3472, %v3471
        %v3490 = vpack.c.bf16 %v3474, %v3473
        %s3491 = scalar_lea.vmem %s3, 4
        %v3492 = vld [vmem:[%s3491] sm:$0xf]
        %v3494 = vsel %vm3288, %v3475, 0
        %v3497 = vsel %vm3288, %v3476, 0
        %v3500 = vsel %vm3288, %v3477, 0
        %v3503 = vsel %vm3288, %v3478, 0
        %v3506 = vsel %vm3288, %v3479, 0
        %v3509 = vsel %vm3288, %v3480, 0
        %v3512 = vsel %vm3288, %v3481, 0
        %v3515 = vsel %vm3288, %v3482, 0
        %v3518 = vsel %vm3288, %v3483, 0
        %v3521 = vsel %vm3288, %v3484, 0
        %v3524 = vsel %vm3288, %v3485, 0
        %v3527 = vsel %vm3288, %v3486, 0
        %v3530 = vsel %vm3288, %v3487, 0
        %v3533 = vsel %vm3288, %v3488, 0
        %v3536 = vsel %vm3288, %v3489, 0
        %v3539 = vsel %vm3288, %v3490, 0
        %vm3541 = vcmask 1043456
        %v3543 = vsel %vm3541, %v3492, 0
        %3545 = vmatprep.subr.bf16.mxu0 0
        %3546 = vmatpush1.bf16.msra.mxu0 %v3543
        %3547 = vmatprep.subr.bf16.mxu0 0
        %3548 = vmatpush1.bf16.msra.mxu0 0
        %3549 = vmatprep.subr.bf16.mxu0 0
        %3550 = vmatpush1.bf16.msra.mxu0 0
        %3551 = vmatprep.subr.bf16.mxu0 0
        %3552 = vmatpush1.bf16.msra.mxu0 0
        %3553 = vmatprep.subr.bf16.mxu0 0
        %3554 = vmatpush1.bf16.msra.mxu0 0
        %3555 = vmatprep.subr.bf16.mxu0 0
        %3556 = vmatpush1.bf16.msra.mxu0 0
        %3557 = vmatprep.subr.bf16.mxu0 0
        %3558 = vmatpush1.bf16.msra.mxu0 0
        %3559 = vmatprep.subr.bf16.mxu0 0
        %3560 = vmatpush1.bf16.msra.mxu0 0
        %3561 = vmatprep.subr.bf16.mxu0 0
        %3562 = vmatpush1.bf16.msra.mxu0 0
        %3563 = vmatprep.subr.bf16.mxu0 0
        %3564 = vmatpush1.bf16.msra.mxu0 0
        %3565 = vmatprep.subr.bf16.mxu0 0
        %3566 = vmatpush1.bf16.msra.mxu0 0
        %3567 = vmatprep.subr.bf16.mxu0 0
        %3568 = vmatpush1.bf16.msra.mxu0 0
        %3569 = vmatprep.subr.bf16.mxu0 0
        %3570 = vmatpush1.bf16.msra.mxu0 0
        %3571 = vmatprep.subr.bf16.mxu0 0
        %3572 = vmatpush1.bf16.msra.mxu0 0
        %3573 = vmatprep.subr.bf16.mxu0 0
        %3574 = vmatpush1.bf16.msra.mxu0 0
        %3575 = vmatprep.subr.bf16.mxu0 0
        %3576 = vmatpush1.bf16.msra.mxu0 0
        %3577 = vmatprep.mubr.bf16.mxu0 0
        %3578 = vmatmul.mubr.bf16.gmra.mrb[0].mxu0 %v3494
        %v3579 = vpop.f32.mrb[0].mxu0
        %v3580 = vadd.f32 0.0, %v3579
        %v3581 = vpop.f32.mrb[0].mxu0
        %v3582 = vpop.f32.mrb[0].mxu0
        %v3583 = vadd.f32 0.0, %v3582
        %v3584 = vpop.f32.mrb[0].mxu0
        %3585 = vmatprep.mubr.bf16.mxu0 0
        %3586 = vmatmul.mubr.bf16.gmra.mrb[0].mxu0 %v3497
        %v3587 = vpop.f32.mrb[0].mxu0
        %v3588 = vadd.f32 0.0, %v3587
        %v3589 = vpop.f32.mrb[0].mxu0
        %v3590 = vpop.f32.mrb[0].mxu0
        %v3591 = vadd.f32 0.0, %v3590
        %v3592 = vpop.f32.mrb[0].mxu0
        %3593 = vmatprep.mubr.bf16.mxu0 0
        %3594 = vmatmul.mubr.bf16.gmra.mrb[0].mxu0 %v3500
        %v3595 = vpop.f32.mrb[0].mxu0
        %v3596 = vadd.f32 0.0, %v3595
        %v3597 = vpop.f32.mrb[0].mxu0
        %v3598 = vpop.f32.mrb[0].mxu0
        %v3599 = vadd.f32 0.0, %v3598
        %v3600 = vpop.f32.mrb[0].mxu0
        %3601 = vmatprep.mubr.bf16.mxu0 0
        %3602 = vmatmul.mubr.bf16.gmra.mrb[0].mxu0 %v3503
        %v3603 = vpop.f32.mrb[0].mxu0
        %v3604 = vadd.f32 0.0, %v3603
        %v3605 = vpop.f32.mrb[0].mxu0
        %v3606 = vpop.f32.mrb[0].mxu0
        %v3607 = vadd.f32 0.0, %v3606
        %v3608 = vpop.f32.mrb[0].mxu0
        %3609 = vmatprep.mubr.bf16.mxu0 0
        %3610 = vmatmul.mubr.bf16.gmra.mrb[0].mxu0 %v3506
        %v3611 = vpop.f32.mrb[0].mxu0
        %v3612 = vadd.f32 0.0, %v3611
        %v3613 = vpop.f32.mrb[0].mxu0
        %v3614 = vpop.f32.mrb[0].mxu0
        %v3615 = vadd.f32 0.0, %v3614
        %v3616 = vpop.f32.mrb[0].mxu0
        %3617 = vmatprep.mubr.bf16.mxu0 0
        %3618 = vmatmul.mubr.bf16.gmra.mrb[0].mxu0 %v3509
        %v3619 = vpop.f32.mrb[0].mxu0
        %v3620 = vadd.f32 0.0, %v3619
        %v3621 = vpop.f32.mrb[0].mxu0
        %v3622 = vpop.f32.mrb[0].mxu0
        %v3623 = vadd.f32 0.0, %v3622
        %v3624 = vpop.f32.mrb[0].mxu0
        %3625 = vmatprep.mubr.bf16.mxu0 0
        %3626 = vmatmul.mubr.bf16.gmra.mrb[0].mxu0 %v3512
        %v3627 = vpop.f32.mrb[0].mxu0
        %v3628 = vadd.f32 0.0, %v3627
        %v3629 = vpop.f32.mrb[0].mxu0
        %v3630 = vpop.f32.mrb[0].mxu0
        %v3631 = vadd.f32 0.0, %v3630
        %v3632 = vpop.f32.mrb[0].mxu0
        %3633 = vmatprep.mubr.bf16.mxu0 0
        %3634 = vmatmul.mubr.bf16.gmra.mrb[0].mxu0 %v3515
        %v3635 = vpop.f32.mrb[0].mxu0
        %v3636 = vadd.f32 0.0, %v3635
        %v3637 = vpop.f32.mrb[0].mxu0
        %v3638 = vpop.f32.mrb[0].mxu0
        %v3639 = vadd.f32 0.0, %v3638
        %v3640 = vpop.f32.mrb[0].mxu0
        %3641 = vmatprep.mubr.bf16.mxu0 0
        %3642 = vmatmul.mubr.bf16.gmra.mrb[0].mxu0 %v3518
        %v3643 = vpop.f32.mrb[0].mxu0
        %v3644 = vadd.f32 0.0, %v3643
        %v3645 = vpop.f32.mrb[0].mxu0
        %v3646 = vpop.f32.mrb[0].mxu0
        %v3647 = vadd.f32 0.0, %v3646
        %v3648 = vpop.f32.mrb[0].mxu0
        %3649 = vmatprep.mubr.bf16.mxu0 0
        %3650 = vmatmul.mubr.bf16.gmra.mrb[0].mxu0 %v3521
        %v3651 = vpop.f32.mrb[0].mxu0
        %v3652 = vadd.f32 0.0, %v3651
        %v3653 = vpop.f32.mrb[0].mxu0
        %v3654 = vpop.f32.mrb[0].mxu0
        %v3655 = vadd.f32 0.0, %v3654
        %v3656 = vpop.f32.mrb[0].mxu0
        %3657 = vmatprep.mubr.bf16.mxu0 0
        %3658 = vmatmul.mubr.bf16.gmra.mrb[0].mxu0 %v3524
        %v3659 = vpop.f32.mrb[0].mxu0
        %v3660 = vadd.f32 0.0, %v3659
        %v3661 = vpop.f32.mrb[0].mxu0
        %v3662 = vpop.f32.mrb[0].mxu0
        %v3663 = vadd.f32 0.0, %v3662
        %v3664 = vpop.f32.mrb[0].mxu0
        %3665 = vmatprep.mubr.bf16.mxu0 0
        %3666 = vmatmul.mubr.bf16.gmra.mrb[0].mxu0 %v3527
        %v3667 = vpop.f32.mrb[0].mxu0
        %v3668 = vadd.f32 0.0, %v3667
        %v3669 = vpop.f32.mrb[0].mxu0
        %v3670 = vpop.f32.mrb[0].mxu0
        %v3671 = vadd.f32 0.0, %v3670
        %v3672 = vpop.f32.mrb[0].mxu0
        %3673 = vmatprep.mubr.bf16.mxu0 0
        %3674 = vmatmul.mubr.bf16.gmra.mrb[0].mxu0 %v3530
        %v3675 = vpop.f32.mrb[0].mxu0
        %v3676 = vadd.f32 0.0, %v3675
        %v3677 = vpop.f32.mrb[0].mxu0
        %v3678 = vpop.f32.mrb[0].mxu0
        %v3679 = vadd.f32 0.0, %v3678
        %v3680 = vpop.f32.mrb[0].mxu0
        %3681 = vmatprep.mubr.bf16.mxu0 0
        %3682 = vmatmul.mubr.bf16.gmra.mrb[0].mxu0 %v3533
        %v3683 = vpop.f32.mrb[0].mxu0
        %v3684 = vadd.f32 0.0, %v3683
        %v3685 = vpop.f32.mrb[0].mxu0
        %v3686 = vpop.f32.mrb[0].mxu0
        %v3687 = vadd.f32 0.0, %v3686
        %v3688 = vpop.f32.mrb[0].mxu0
        %3689 = vmatprep.mubr.bf16.mxu0 0
        %3690 = vmatmul.mubr.bf16.gmra.mrb[0].mxu0 %v3536
        %v3691 = vpop.f32.mrb[0].mxu0
        %v3692 = vadd.f32 0.0, %v3691
        %v3693 = vpop.f32.mrb[0].mxu0
        %v3694 = vpop.f32.mrb[0].mxu0
        %v3695 = vadd.f32 0.0, %v3694
        %v3696 = vpop.f32.mrb[0].mxu0
        %3697 = vmatprep.mubr.bf16.mxu0 0
        %3698 = vmatmul.mubr.bf16.gmra.mrb[0].mxu0 %v3539
        %v3699 = vpop.f32.mrb[0].mxu0
        %v3700 = vadd.f32 0.0, %v3699
        %v3701 = vpop.f32.mrb[0].mxu0
        %v3702 = vpop.f32.mrb[0].mxu0
        %v3703 = vadd.f32 0.0, %v3702
        %v3704 = vpop.f32.mrb[0].mxu0
        %3705 = vdwg.mxu0
        %v3707 = vsel %vm3288, %v3426, 0
        %v3710 = vsel %vm3288, %v3427, 0
        %v3713 = vsel %vm3288, %v3428, 0
        %v3716 = vsel %vm3288, %v3429, 0
        %v3719 = vsel %vm3288, %v3430, 0
        %v3722 = vsel %vm3288, %v3431, 0
        %v3725 = vsel %vm3288, %v3432, 0
        %v3728 = vsel %vm3288, %v3433, 0
        %v3731 = vsel %vm3288, %v3434, 0
        %v3734 = vsel %vm3288, %v3435, 0
        %v3737 = vsel %vm3288, %v3436, 0
        %v3740 = vsel %vm3288, %v3437, 0
        %v3743 = vsel %vm3288, %v3438, 0
        %v3746 = vsel %vm3288, %v3439, 0
        %v3749 = vsel %vm3288, %v3440, 0
        %v3752 = vsel %vm3288, %v3441, 0
        %v3755 = vsel %vm3541, %v3442, 0
        %3757 = vmatprep.subr.bf16.mxu0 0
        %3758 = vmatpush1.bf16.msra.mxu0 %v3755
        %3759 = vmatprep.subr.bf16.mxu0 0
        %3760 = vmatpush1.bf16.msra.mxu0 0
        %3761 = vmatprep.subr.bf16.mxu0 0
        %3762 = vmatpush1.bf16.msra.mxu0 0
        %3763 = vmatprep.subr.bf16.mxu0 0
        %3764 = vmatpush1.bf16.msra.mxu0 0
        %3765 = vmatprep.subr.bf16.mxu0 0
        %3766 = vmatpush1.bf16.msra.mxu0 0
        %3767 = vmatprep.subr.bf16.mxu0 0
        %3768 = vmatpush1.bf16.msra.mxu0 0
        %3769 = vmatprep.subr.bf16.mxu0 0
        %3770 = vmatpush1.bf16.msra.mxu0 0
        %3771 = vmatprep.subr.bf16.mxu0 0
        %3772 = vmatpush1.bf16.msra.mxu0 0
        %3773 = vmatprep.subr.bf16.mxu0 0
        %3774 = vmatpush1.bf16.msra.mxu0 0
        %3775 = vmatprep.subr.bf16.mxu0 0
        %3776 = vmatpush1.bf16.msra.mxu0 0
        %3777 = vmatprep.subr.bf16.mxu0 0
        %3778 = vmatpush1.bf16.msra.mxu0 0
        %3779 = vmatprep.subr.bf16.mxu0 0
        %3780 = vmatpush1.bf16.msra.mxu0 0
        %3781 = vmatprep.subr.bf16.mxu0 0
        %3782 = vmatpush1.bf16.msra.mxu0 0
        %3783 = vmatprep.subr.bf16.mxu0 0
        %3784 = vmatpush1.bf16.msra.mxu0 0
        %3785 = vmatprep.subr.bf16.mxu0 0
        %3786 = vmatpush1.bf16.msra.mxu0 0
        %3787 = vmatprep.subr.bf16.mxu0 0
        %3788 = vmatpush1.bf16.msra.mxu0 0
        %3789 = vmatprep.mubr.bf16.mxu0 0
        %3790 = vmatmul.mubr.bf16.gmra.mrb[0].mxu0 %v3707
        %v3791 = vpop.f32.mrb[0].mxu0
        %v3792 = vadd.f32 %v3580, %v3791
        %v3793 = vpop.f32.mrb[0].mxu0
        %v3794 = vpop.f32.mrb[0].mxu0
        %v3795 = vadd.f32 %v3583, %v3794
        %v3796 = vpop.f32.mrb[0].mxu0
        %3797 = vmatprep.mubr.bf16.mxu0 0
        %3798 = vmatmul.mubr.bf16.gmra.mrb[0].mxu0 %v3710
        %v3799 = vpop.f32.mrb[0].mxu0
        %v3800 = vadd.f32 %v3588, %v3799
        %v3801 = vpop.f32.mrb[0].mxu0
        %v3802 = vpop.f32.mrb[0].mxu0
        %v3803 = vadd.f32 %v3591, %v3802
        %v3804 = vpop.f32.mrb[0].mxu0
        %3805 = vmatprep.mubr.bf16.mxu0 0
        %3806 = vmatmul.mubr.bf16.gmra.mrb[0].mxu0 %v3713
        %v3807 = vpop.f32.mrb[0].mxu0
        %v3808 = vadd.f32 %v3596, %v3807
        %v3809 = vpop.f32.mrb[0].mxu0
        %v3810 = vpop.f32.mrb[0].mxu0
        %v3811 = vadd.f32 %v3599, %v3810
        %v3812 = vpop.f32.mrb[0].mxu0
        %3813 = vmatprep.mubr.bf16.mxu0 0
        %3814 = vmatmul.mubr.bf16.gmra.mrb[0].mxu0 %v3716
        %v3815 = vpop.f32.mrb[0].mxu0
        %v3816 = vadd.f32 %v3604, %v3815
        %v3817 = vpop.f32.mrb[0].mxu0
        %v3818 = vpop.f32.mrb[0].mxu0
        %v3819 = vadd.f32 %v3607, %v3818
        %v3820 = vpop.f32.mrb[0].mxu0
        %3821 = vmatprep.mubr.bf16.mxu0 0
        %3822 = vmatmul.mubr.bf16.gmra.mrb[0].mxu0 %v3719
        %v3823 = vpop.f32.mrb[0].mxu0
        %v3824 = vadd.f32 %v3612, %v3823
        %v3825 = vpop.f32.mrb[0].mxu0
        %v3826 = vpop.f32.mrb[0].mxu0
        %v3827 = vadd.f32 %v3615, %v3826
        %v3828 = vpop.f32.mrb[0].mxu0
        %3829 = vmatprep.mubr.bf16.mxu0 0
        %3830 = vmatmul.mubr.bf16.gmra.mrb[0].mxu0 %v3722
        %v3831 = vpop.f32.mrb[0].mxu0
        %v3832 = vadd.f32 %v3620, %v3831
        %v3833 = vpop.f32.mrb[0].mxu0
        %v3834 = vpop.f32.mrb[0].mxu0
        %v3835 = vadd.f32 %v3623, %v3834
        %v3836 = vpop.f32.mrb[0].mxu0
        %3837 = vmatprep.mubr.bf16.mxu0 0
        %3838 = vmatmul.mubr.bf16.gmra.mrb[0].mxu0 %v3725
        %v3839 = vpop.f32.mrb[0].mxu0
        %v3840 = vadd.f32 %v3628, %v3839
        %v3841 = vpop.f32.mrb[0].mxu0
        %v3842 = vpop.f32.mrb[0].mxu0
        %v3843 = vadd.f32 %v3631, %v3842
        %v3844 = vpop.f32.mrb[0].mxu0
        %3845 = vmatprep.mubr.bf16.mxu0 0
        %3846 = vmatmul.mubr.bf16.gmra.mrb[0].mxu0 %v3728
        %v3847 = vpop.f32.mrb[0].mxu0
        %v3848 = vadd.f32 %v3636, %v3847
        %v3849 = vpop.f32.mrb[0].mxu0
        %v3850 = vpop.f32.mrb[0].mxu0
        %v3851 = vadd.f32 %v3639, %v3850
        %v3852 = vpop.f32.mrb[0].mxu0
        %3853 = vmatprep.mubr.bf16.mxu0 0
        %3854 = vmatmul.mubr.bf16.gmra.mrb[0].mxu0 %v3731
        %v3855 = vpop.f32.mrb[0].mxu0
        %v3856 = vadd.f32 %v3644, %v3855
        %v3857 = vpop.f32.mrb[0].mxu0
        %v3858 = vpop.f32.mrb[0].mxu0
        %v3859 = vadd.f32 %v3647, %v3858
        %v3860 = vpop.f32.mrb[0].mxu0
        %3861 = vmatprep.mubr.bf16.mxu0 0
        %3862 = vmatmul.mubr.bf16.gmra.mrb[0].mxu0 %v3734
        %v3863 = vpop.f32.mrb[0].mxu0
        %v3864 = vadd.f32 %v3652, %v3863
        %v3865 = vpop.f32.mrb[0].mxu0
        %v3866 = vpop.f32.mrb[0].mxu0
        %v3867 = vadd.f32 %v3655, %v3866
        %v3868 = vpop.f32.mrb[0].mxu0
        %3869 = vmatprep.mubr.bf16.mxu0 0
        %3870 = vmatmul.mubr.bf16.gmra.mrb[0].mxu0 %v3737
        %v3871 = vpop.f32.mrb[0].mxu0
        %v3872 = vadd.f32 %v3660, %v3871
        %v3873 = vpop.f32.mrb[0].mxu0
        %v3874 = vpop.f32.mrb[0].mxu0
        %v3875 = vadd.f32 %v3663, %v3874
        %v3876 = vpop.f32.mrb[0].mxu0
        %3877 = vmatprep.mubr.bf16.mxu0 0
        %3878 = vmatmul.mubr.bf16.gmra.mrb[0].mxu0 %v3740
        %v3879 = vpop.f32.mrb[0].mxu0
        %v3880 = vadd.f32 %v3668, %v3879
        %v3881 = vpop.f32.mrb[0].mxu0
        %v3882 = vpop.f32.mrb[0].mxu0
        %v3883 = vadd.f32 %v3671, %v3882
        %v3884 = vpop.f32.mrb[0].mxu0
        %3885 = vmatprep.mubr.bf16.mxu0 0
        %3886 = vmatmul.mubr.bf16.gmra.mrb[0].mxu0 %v3743
        %v3887 = vpop.f32.mrb[0].mxu0
        %v3888 = vadd.f32 %v3676, %v3887
        %v3889 = vpop.f32.mrb[0].mxu0
        %v3890 = vpop.f32.mrb[0].mxu0
        %v3891 = vadd.f32 %v3679, %v3890
        %v3892 = vpop.f32.mrb[0].mxu0
        %3893 = vmatprep.mubr.bf16.mxu0 0
        %3894 = vmatmul.mubr.bf16.gmra.mrb[0].mxu0 %v3746
        %v3895 = vpop.f32.mrb[0].mxu0
        %v3896 = vadd.f32 %v3684, %v3895
        %v3897 = vpop.f32.mrb[0].mxu0
        %v3898 = vpop.f32.mrb[0].mxu0
        %v3899 = vadd.f32 %v3687, %v3898
        %v3900 = vpop.f32.mrb[0].mxu0
        %3901 = vmatprep.mubr.bf16.mxu0 0
        %3902 = vmatmul.mubr.bf16.gmra.mrb[0].mxu0 %v3749
        %v3903 = vpop.f32.mrb[0].mxu0
        %v3904 = vadd.f32 %v3692, %v3903
        %v3905 = vpop.f32.mrb[0].mxu0
        %v3906 = vpop.f32.mrb[0].mxu0
        %v3907 = vadd.f32 %v3695, %v3906
        %v3908 = vpop.f32.mrb[0].mxu0
        %3909 = vmatprep.mubr.bf16.mxu0 0
        %3910 = vmatmul.mubr.bf16.gmra.mrb[0].mxu0 %v3752
        %v3911 = vpop.f32.mrb[0].mxu0
        %v3912 = vadd.f32 %v3700, %v3911
        %v3913 = vpop.f32.mrb[0].mxu0
        %v3914 = vpop.f32.mrb[0].mxu0
        %v3915 = vadd.f32 %v3703, %v3914
        %v3916 = vpop.f32.mrb[0].mxu0
        %3917 = vdwg.mxu0
        %v3918 = vld [vmem:[#allocation3 + $0x9] sm:$0xff]
        %v3919 = vld [vmem:[#allocation3 + $0x11] sm:$0xff]
        %v3920 = vld [vmem:[#allocation3 + $0x29] sm:$0xff]
        %v3921 = vld [vmem:[#allocation3 + $0x31] sm:$0xff]
        %v3922 = vld [vmem:[#allocation3 + $0x49] sm:$0xff]
        %v3923 = vld [vmem:[#allocation3 + $0x51] sm:$0xff]
        %v3924 = vld [vmem:[#allocation3 + $0x69] sm:$0xff]
        %v3925 = vld [vmem:[#allocation3 + $0x71] sm:$0xff]
        %v3926 = vld [vmem:[#allocation3 + $0x89] sm:$0xff]
        %v3927 = vld [vmem:[#allocation3 + $0x91] sm:$0xff]
        %v3928 = vld [vmem:[#allocation3 + $0xa9] sm:$0xff]
        %v3929 = vld [vmem:[#allocation3 + $0xb1] sm:$0xff]
        %v3930 = vld [vmem:[#allocation3 + $0xc9] sm:$0xff]
        %v3931 = vld [vmem:[#allocation3 + $0xd1] sm:$0xff]
        %v3932 = vld [vmem:[#allocation3 + $0xe9] sm:$0xff]
        %v3933 = vld [vmem:[#allocation3 + $0xf1] sm:$0xff]
        %v3934 = vld [vmem:[#allocation3 + $0x109] sm:$0xff]
        %v3935 = vld [vmem:[#allocation3 + $0x111] sm:$0xff]
        %v3936 = vld [vmem:[#allocation3 + $0x129] sm:$0xff]
        %v3937 = vld [vmem:[#allocation3 + $0x131] sm:$0xff]
        %v3938 = vld [vmem:[#allocation3 + $0x149] sm:$0xff]
        %v3939 = vld [vmem:[#allocation3 + $0x151] sm:$0xff]
        %v3940 = vld [vmem:[#allocation3 + $0x169] sm:$0xff]
        %v3941 = vld [vmem:[#allocation3 + $0x171] sm:$0xff]
        %v3942 = vld [vmem:[#allocation3 + $0x189] sm:$0xff]
        %v3943 = vld [vmem:[#allocation3 + $0x191] sm:$0xff]
        %v3944 = vld [vmem:[#allocation3 + $0x1a9] sm:$0xff]
        %v3945 = vld [vmem:[#allocation3 + $0x1b1] sm:$0xff]
        %v3946 = vld [vmem:[#allocation3 + $0x1c9] sm:$0xff]
        %v3947 = vld [vmem:[#allocation3 + $0x1d1] sm:$0xff]
        %v3948 = vld [vmem:[#allocation3 + $0x1e9] sm:$0xff]
        %v3949 = vld [vmem:[#allocation3 + $0x1f1] sm:$0xff]
        %v3950 = vpack.c.bf16 %v3919, %v3918
        %v3951 = vpack.c.bf16 %v3921, %v3920
        %v3952 = vpack.c.bf16 %v3923, %v3922
        %v3953 = vpack.c.bf16 %v3925, %v3924
        %v3954 = vpack.c.bf16 %v3927, %v3926
        %v3955 = vpack.c.bf16 %v3929, %v3928
        %v3956 = vpack.c.bf16 %v3931, %v3930
        %v3957 = vpack.c.bf16 %v3933, %v3932
        %v3958 = vpack.c.bf16 %v3935, %v3934
        %v3959 = vpack.c.bf16 %v3937, %v3936
        %v3960 = vpack.c.bf16 %v3939, %v3938
        %v3961 = vpack.c.bf16 %v3941, %v3940
        %v3962 = vpack.c.bf16 %v3943, %v3942
        %v3963 = vpack.c.bf16 %v3945, %v3944
        %v3964 = vpack.c.bf16 %v3947, %v3946
        %v3965 = vpack.c.bf16 %v3949, %v3948
        %s3966 = scalar_lea.vmem %s3, 8
        %v3967 = vld [vmem:[%s3966] sm:$0xf]
        %v3969 = vsel %vm3288, %v3950, 0
        %v3972 = vsel %vm3288, %v3951, 0
        %v3975 = vsel %vm3288, %v3952, 0
        %v3978 = vsel %vm3288, %v3953, 0
        %v3981 = vsel %vm3288, %v3954, 0
        %v3984 = vsel %vm3288, %v3955, 0
        %v3987 = vsel %vm3288, %v3956, 0
        %v3990 = vsel %vm3288, %v3957, 0
        %v3993 = vsel %vm3288, %v3958, 0
        %v3996 = vsel %vm3288, %v3959, 0
        %v3999 = vsel %vm3288, %v3960, 0
        %v4002 = vsel %vm3288, %v3961, 0
        %v4005 = vsel %vm3288, %v3962, 0
        %v4008 = vsel %vm3288, %v3963, 0
        %v4011 = vsel %vm3288, %v3964, 0
        %v4014 = vsel %vm3288, %v3965, 0
        %v4017 = vsel %vm3541, %v3967, 0
        %4019 = vmatprep.subr.bf16.mxu0 0
        %4020 = vmatpush1.bf16.msra.mxu0 %v4017
        %4021 = vmatprep.subr.bf16.mxu0 0
        %4022 = vmatpush1.bf16.msra.mxu0 0
        %4023 = vmatprep.subr.bf16.mxu0 0
        %4024 = vmatpush1.bf16.msra.mxu0 0
        %4025 = vmatprep.subr.bf16.mxu0 0
        %4026 = vmatpush1.bf16.msra.mxu0 0
        %4027 = vmatprep.subr.bf16.mxu0 0
        %4028 = vmatpush1.bf16.msra.mxu0 0
        %4029 = vmatprep.subr.bf16.mxu0 0
        %4030 = vmatpush1.bf16.msra.mxu0 0
        %4031 = vmatprep.subr.bf16.mxu0 0
        %4032 = vmatpush1.bf16.msra.mxu0 0
        %4033 = vmatprep.subr.bf16.mxu0 0
        %4034 = vmatpush1.bf16.msra.mxu0 0
        %4035 = vmatprep.subr.bf16.mxu0 0
        %4036 = vmatpush1.bf16.msra.mxu0 0
        %4037 = vmatprep.subr.bf16.mxu0 0
        %4038 = vmatpush1.bf16.msra.mxu0 0
        %4039 = vmatprep.subr.bf16.mxu0 0
        %4040 = vmatpush1.bf16.msra.mxu0 0
        %4041 = vmatprep.subr.bf16.mxu0 0
        %4042 = vmatpush1.bf16.msra.mxu0 0
        %4043 = vmatprep.subr.bf16.mxu0 0
        %4044 = vmatpush1.bf16.msra.mxu0 0
        %4045 = vmatprep.subr.bf16.mxu0 0
        %4046 = vmatpush1.bf16.msra.mxu0 0
        %4047 = vmatprep.subr.bf16.mxu0 0
        %4048 = vmatpush1.bf16.msra.mxu0 0
        %4049 = vmatprep.subr.bf16.mxu0 0
        %4050 = vmatpush1.bf16.msra.mxu0 0
        %4051 = vmatprep.mubr.bf16.mxu0 0
        %4052 = vmatmul.mubr.bf16.gmra.mrb[0].mxu0 %v3969
        %v4053 = vpop.f32.mrb[0].mxu0
        %v4054 = vadd.f32 0.0, %v4053
        %v4055 = vpop.f32.mrb[0].mxu0
        %v4056 = vpop.f32.mrb[0].mxu0
        %v4057 = vadd.f32 0.0, %v4056
        %v4058 = vpop.f32.mrb[0].mxu0
        %4059 = vmatprep.mubr.bf16.mxu0 0
        %4060 = vmatmul.mubr.bf16.gmra.mrb[0].mxu0 %v3972
        %v4061 = vpop.f32.mrb[0].mxu0
        %v4062 = vadd.f32 0.0, %v4061
        %v4063 = vpop.f32.mrb[0].mxu0
        %v4064 = vpop.f32.mrb[0].mxu0
        %v4065 = vadd.f32 0.0, %v4064
        %v4066 = vpop.f32.mrb[0].mxu0
        %4067 = vmatprep.mubr.bf16.mxu0 0
        %4068 = vmatmul.mubr.bf16.gmra.mrb[0].mxu0 %v3975
        %v4069 = vpop.f32.mrb[0].mxu0
        %v4070 = vadd.f32 0.0, %v4069
        %v4071 = vpop.f32.mrb[0].mxu0
        %v4072 = vpop.f32.mrb[0].mxu0
        %v4073 = vadd.f32 0.0, %v4072
        %v4074 = vpop.f32.mrb[0].mxu0
        %4075 = vmatprep.mubr.bf16.mxu0 0
        %4076 = vmatmul.mubr.bf16.gmra.mrb[0].mxu0 %v3978
        %v4077 = vpop.f32.mrb[0].mxu0
        %v4078 = vadd.f32 0.0, %v4077
        %v4079 = vpop.f32.mrb[0].mxu0
        %v4080 = vpop.f32.mrb[0].mxu0
        %v4081 = vadd.f32 0.0, %v4080
        %v4082 = vpop.f32.mrb[0].mxu0
        %4083 = vmatprep.mubr.bf16.mxu0 0
        %4084 = vmatmul.mubr.bf16.gmra.mrb[0].mxu0 %v3981
        %v4085 = vpop.f32.mrb[0].mxu0
        %v4086 = vadd.f32 0.0, %v4085
        %v4087 = vpop.f32.mrb[0].mxu0
        %v4088 = vpop.f32.mrb[0].mxu0
        %v4089 = vadd.f32 0.0, %v4088
        %v4090 = vpop.f32.mrb[0].mxu0
        %4091 = vmatprep.mubr.bf16.mxu0 0
        %4092 = vmatmul.mubr.bf16.gmra.mrb[0].mxu0 %v3984
        %v4093 = vpop.f32.mrb[0].mxu0
        %v4094 = vadd.f32 0.0, %v4093
        %v4095 = vpop.f32.mrb[0].mxu0
        %v4096 = vpop.f32.mrb[0].mxu0
        %v4097 = vadd.f32 0.0, %v4096
        %v4098 = vpop.f32.mrb[0].mxu0
        %4099 = vmatprep.mubr.bf16.mxu0 0
        %4100 = vmatmul.mubr.bf16.gmra.mrb[0].mxu0 %v3987
        %v4101 = vpop.f32.mrb[0].mxu0
        %v4102 = vadd.f32 0.0, %v4101
        %v4103 = vpop.f32.mrb[0].mxu0
        %v4104 = vpop.f32.mrb[0].mxu0
        %v4105 = vadd.f32 0.0, %v4104
        %v4106 = vpop.f32.mrb[0].mxu0
        %4107 = vmatprep.mubr.bf16.mxu0 0
        %4108 = vmatmul.mubr.bf16.gmra.mrb[0].mxu0 %v3990
        %v4109 = vpop.f32.mrb[0].mxu0
        %v4110 = vadd.f32 0.0, %v4109
        %v4111 = vpop.f32.mrb[0].mxu0
        %v4112 = vpop.f32.mrb[0].mxu0
        %v4113 = vadd.f32 0.0, %v4112
        %v4114 = vpop.f32.mrb[0].mxu0
        %4115 = vmatprep.mubr.bf16.mxu0 0
        %4116 = vmatmul.mubr.bf16.gmra.mrb[0].mxu0 %v3993
        %v4117 = vpop.f32.mrb[0].mxu0
        %v4118 = vadd.f32 0.0, %v4117
        %v4119 = vpop.f32.mrb[0].mxu0
        %v4120 = vpop.f32.mrb[0].mxu0
        %v4121 = vadd.f32 0.0, %v4120
        %v4122 = vpop.f32.mrb[0].mxu0
        %4123 = vmatprep.mubr.bf16.mxu0 0
        %4124 = vmatmul.mubr.bf16.gmra.mrb[0].mxu0 %v3996
        %v4125 = vpop.f32.mrb[0].mxu0
        %v4126 = vadd.f32 0.0, %v4125
        %v4127 = vpop.f32.mrb[0].mxu0
        %v4128 = vpop.f32.mrb[0].mxu0
        %v4129 = vadd.f32 0.0, %v4128
        %v4130 = vpop.f32.mrb[0].mxu0
        %4131 = vmatprep.mubr.bf16.mxu0 0
        %4132 = vmatmul.mubr.bf16.gmra.mrb[0].mxu0 %v3999
        %v4133 = vpop.f32.mrb[0].mxu0
        %v4134 = vadd.f32 0.0, %v4133
        %v4135 = vpop.f32.mrb[0].mxu0
        %v4136 = vpop.f32.mrb[0].mxu0
        %v4137 = vadd.f32 0.0, %v4136
        %v4138 = vpop.f32.mrb[0].mxu0
        %4139 = vmatprep.mubr.bf16.mxu0 0
        %4140 = vmatmul.mubr.bf16.gmra.mrb[0].mxu0 %v4002
        %v4141 = vpop.f32.mrb[0].mxu0
        %v4142 = vadd.f32 0.0, %v4141
        %v4143 = vpop.f32.mrb[0].mxu0
        %v4144 = vpop.f32.mrb[0].mxu0
        %v4145 = vadd.f32 0.0, %v4144
        %v4146 = vpop.f32.mrb[0].mxu0
        %4147 = vmatprep.mubr.bf16.mxu0 0
        %4148 = vmatmul.mubr.bf16.gmra.mrb[0].mxu0 %v4005
        %v4149 = vpop.f32.mrb[0].mxu0
        %v4150 = vadd.f32 0.0, %v4149
        %v4151 = vpop.f32.mrb[0].mxu0
        %v4152 = vpop.f32.mrb[0].mxu0
        %v4153 = vadd.f32 0.0, %v4152
        %v4154 = vpop.f32.mrb[0].mxu0
        %4155 = vmatprep.mubr.bf16.mxu0 0
        %4156 = vmatmul.mubr.bf16.gmra.mrb[0].mxu0 %v4008
        %v4157 = vpop.f32.mrb[0].mxu0
        %v4158 = vadd.f32 0.0, %v4157
        %v4159 = vpop.f32.mrb[0].mxu0
        %v4160 = vpop.f32.mrb[0].mxu0
        %v4161 = vadd.f32 0.0, %v4160
        %v4162 = vpop.f32.mrb[0].mxu0
        %4163 = vmatprep.mubr.bf16.mxu0 0
        %4164 = vmatmul.mubr.bf16.gmra.mrb[0].mxu0 %v4011
        %v4165 = vpop.f32.mrb[0].mxu0
        %v4166 = vadd.f32 0.0, %v4165
        %v4167 = vpop.f32.mrb[0].mxu0
        %v4168 = vpop.f32.mrb[0].mxu0
        %v4169 = vadd.f32 0.0, %v4168
        %v4170 = vpop.f32.mrb[0].mxu0
        %4171 = vmatprep.mubr.bf16.mxu0 0
        %4172 = vmatmul.mubr.bf16.gmra.mrb[0].mxu0 %v4014
        %v4173 = vpop.f32.mrb[0].mxu0
        %v4174 = vadd.f32 0.0, %v4173
        %v4175 = vpop.f32.mrb[0].mxu0
        %v4176 = vpop.f32.mrb[0].mxu0
        %v4177 = vadd.f32 0.0, %v4176
        %v4178 = vpop.f32.mrb[0].mxu0
        %4179 = vdwg.mxu0
        %v4180 = vadd.f32 %v3792, %v4054
        %v4181 = vadd.f32 %v3795, %v4057
        %v4182 = vadd.f32 %v3800, %v4062
        %v4183 = vadd.f32 %v3803, %v4065
        %v4184 = vadd.f32 %v3808, %v4070
        %v4185 = vadd.f32 %v3811, %v4073
        %v4186 = vadd.f32 %v3816, %v4078
        %v4187 = vadd.f32 %v3819, %v4081
        %v4188 = vadd.f32 %v3824, %v4086
        %v4189 = vadd.f32 %v3827, %v4089
        %v4190 = vadd.f32 %v3832, %v4094
        %v4191 = vadd.f32 %v3835, %v4097
        %v4192 = vadd.f32 %v3840, %v4102
        %v4193 = vadd.f32 %v3843, %v4105
        %v4194 = vadd.f32 %v3848, %v4110
        %v4195 = vadd.f32 %v3851, %v4113
        %v4196 = vadd.f32 %v3856, %v4118
        %v4197 = vadd.f32 %v3859, %v4121
        %v4198 = vadd.f32 %v3864, %v4126
        %v4199 = vadd.f32 %v3867, %v4129
        %v4200 = vadd.f32 %v3872, %v4134
        %v4201 = vadd.f32 %v3875, %v4137
        %v4202 = vadd.f32 %v3880, %v4142
        %v4203 = vadd.f32 %v3883, %v4145
        %v4204 = vadd.f32 %v3888, %v4150
        %v4205 = vadd.f32 %v3891, %v4153
        %v4206 = vadd.f32 %v3896, %v4158
        %v4207 = vadd.f32 %v3899, %v4161
        %v4208 = vadd.f32 %v3904, %v4166
        %v4209 = vadd.f32 %v3907, %v4169
        %v4210 = vadd.f32 %v3912, %v4174
        %v4211 = vadd.f32 %v3915, %v4177
        %v4212 = vld [vmem:[%s3361 + $0x7] sm:$0xff]
        %v4213 = vld [vmem:[%s3361 + $0xf] sm:$0xff]
        %v4214 = vld [vmem:[%s3361 + $0x27] sm:$0xff]
        %v4215 = vld [vmem:[%s3361 + $0x2f] sm:$0xff]
        %v4216 = vld [vmem:[%s3361 + $0x47] sm:$0xff]
        %v4217 = vld [vmem:[%s3361 + $0x4f] sm:$0xff]
        %v4218 = vld [vmem:[%s3361 + $0x67] sm:$0xff]
        %v4219 = vld [vmem:[%s3361 + $0x6f] sm:$0xff]
        %v4220 = vld [vmem:[%s3361 + $0x87] sm:$0xff]
        %v4221 = vld [vmem:[%s3361 + $0x8f] sm:$0xff]
        %v4222 = vld [vmem:[%s3361 + $0xa7] sm:$0xff]
        %v4223 = vld [vmem:[%s3361 + $0xaf] sm:$0xff]
        %v4224 = vld [vmem:[%s3361 + $0xc7] sm:$0xff]
        %v4225 = vld [vmem:[%s3361 + $0xcf] sm:$0xff]
        %v4226 = vld [vmem:[%s3361 + $0xe7] sm:$0xff]
        %v4227 = vld [vmem:[%s3361 + $0xef] sm:$0xff]
        %v4228 = vld [vmem:[%s3361 + $0x107] sm:$0xff]
        %v4229 = vld [vmem:[%s3361 + $0x10f] sm:$0xff]
        %v4230 = vld [vmem:[%s3361 + $0x127] sm:$0xff]
        %v4231 = vld [vmem:[%s3361 + $0x12f] sm:$0xff]
        %v4232 = vld [vmem:[%s3361 + $0x147] sm:$0xff]
        %v4233 = vld [vmem:[%s3361 + $0x14f] sm:$0xff]
        %v4234 = vld [vmem:[%s3361 + $0x167] sm:$0xff]
        %v4235 = vld [vmem:[%s3361 + $0x16f] sm:$0xff]
        %v4236 = vld [vmem:[%s3361 + $0x187] sm:$0xff]
        %v4237 = vld [vmem:[%s3361 + $0x18f] sm:$0xff]
        %v4238 = vld [vmem:[%s3361 + $0x1a7] sm:$0xff]
        %v4239 = vld [vmem:[%s3361 + $0x1af] sm:$0xff]
        %v4240 = vld [vmem:[%s3361 + $0x1c7] sm:$0xff]
        %v4241 = vld [vmem:[%s3361 + $0x1cf] sm:$0xff]
        %v4242 = vld [vmem:[%s3361 + $0x1e7] sm:$0xff]
        %v4243 = vld [vmem:[%s3361 + $0x1ef] sm:$0xff]
        %v4244 = vpack.c.bf16 %v4213, %v4212
        %v4245 = vpack.c.bf16 %v4215, %v4214
        %v4246 = vpack.c.bf16 %v4217, %v4216
        %v4247 = vpack.c.bf16 %v4219, %v4218
        %v4248 = vpack.c.bf16 %v4221, %v4220
        %v4249 = vpack.c.bf16 %v4223, %v4222
        %v4250 = vpack.c.bf16 %v4225, %v4224
        %v4251 = vpack.c.bf16 %v4227, %v4226
        %v4252 = vpack.c.bf16 %v4229, %v4228
        %v4253 = vpack.c.bf16 %v4231, %v4230
        %v4254 = vpack.c.bf16 %v4233, %v4232
        %v4255 = vpack.c.bf16 %v4235, %v4234
        %v4256 = vpack.c.bf16 %v4237, %v4236
        %v4257 = vpack.c.bf16 %v4239, %v4238
        %v4258 = vpack.c.bf16 %v4241, %v4240
        %v4259 = vpack.c.bf16 %v4243, %v4242
        %s4260 = scalar_lea.vmem %s3, 12
        %v4261 = vld [vmem:[%s4260] sm:$0xf]
        %v4263 = vsel %vm3288, %v4244, 0
        %v4266 = vsel %vm3288, %v4245, 0
        %v4269 = vsel %vm3288, %v4246, 0
        %v4272 = vsel %vm3288, %v4247, 0
        %v4275 = vsel %vm3288, %v4248, 0
        %v4278 = vsel %vm3288, %v4249, 0
        %v4281 = vsel %vm3288, %v4250, 0
        %v4284 = vsel %vm3288, %v4251, 0
        %v4287 = vsel %vm3288, %v4252, 0
        %v4290 = vsel %vm3288, %v4253, 0
        %v4293 = vsel %vm3288, %v4254, 0
        %v4296 = vsel %vm3288, %v4255, 0
        %v4299 = vsel %vm3288, %v4256, 0
        %v4302 = vsel %vm3288, %v4257, 0
        %v4305 = vsel %vm3288, %v4258, 0
        %v4308 = vsel %vm3288, %v4259, 0
        %v4311 = vsel %vm3541, %v4261, 0
        %4313 = vmatprep.subr.bf16.mxu0 0
        %4314 = vmatpush1.bf16.msra.mxu0 %v4311
        %4315 = vmatprep.subr.bf16.mxu0 0
        %4316 = vmatpush1.bf16.msra.mxu0 0
        %4317 = vmatprep.subr.bf16.mxu0 0
        %4318 = vmatpush1.bf16.msra.mxu0 0
        %4319 = vmatprep.subr.bf16.mxu0 0
        %4320 = vmatpush1.bf16.msra.mxu0 0
        %4321 = vmatprep.subr.bf16.mxu0 0
        %4322 = vmatpush1.bf16.msra.mxu0 0
        %4323 = vmatprep.subr.bf16.mxu0 0
        %4324 = vmatpush1.bf16.msra.mxu0 0
        %4325 = vmatprep.subr.bf16.mxu0 0
        %4326 = vmatpush1.bf16.msra.mxu0 0
        %4327 = vmatprep.subr.bf16.mxu0 0
        %4328 = vmatpush1.bf16.msra.mxu0 0
        %4329 = vmatprep.subr.bf16.mxu0 0
        %4330 = vmatpush1.bf16.msra.mxu0 0
        %4331 = vmatprep.subr.bf16.mxu0 0
        %4332 = vmatpush1.bf16.msra.mxu0 0
        %4333 = vmatprep.subr.bf16.mxu0 0
        %4334 = vmatpush1.bf16.msra.mxu0 0
        %4335 = vmatprep.subr.bf16.mxu0 0
        %4336 = vmatpush1.bf16.msra.mxu0 0
        %4337 = vmatprep.subr.bf16.mxu0 0
        %4338 = vmatpush1.bf16.msra.mxu0 0
        %4339 = vmatprep.subr.bf16.mxu0 0
        %4340 = vmatpush1.bf16.msra.mxu0 0
        %4341 = vmatprep.subr.bf16.mxu0 0
        %4342 = vmatpush1.bf16.msra.mxu0 0
        %4343 = vmatprep.subr.bf16.mxu0 0
        %4344 = vmatpush1.bf16.msra.mxu0 0
        %4345 = vmatprep.mubr.bf16.mxu0 0
        %4346 = vmatmul.mubr.bf16.gmra.mrb[0].mxu0 %v4263
        %v4347 = vpop.f32.mrb[0].mxu0
        %v4348 = vadd.f32 0.0, %v4347
        %v4349 = vpop.f32.mrb[0].mxu0
        %v4350 = vpop.f32.mrb[0].mxu0
        %v4351 = vadd.f32 0.0, %v4350
        %v4352 = vpop.f32.mrb[0].mxu0
        %4353 = vmatprep.mubr.bf16.mxu0 0
        %4354 = vmatmul.mubr.bf16.gmra.mrb[0].mxu0 %v4266
        %v4355 = vpop.f32.mrb[0].mxu0
        %v4356 = vadd.f32 0.0, %v4355
        %v4357 = vpop.f32.mrb[0].mxu0
        %v4358 = vpop.f32.mrb[0].mxu0
        %v4359 = vadd.f32 0.0, %v4358
        %v4360 = vpop.f32.mrb[0].mxu0
        %4361 = vmatprep.mubr.bf16.mxu0 0
        %4362 = vmatmul.mubr.bf16.gmra.mrb[0].mxu0 %v4269
        %v4363 = vpop.f32.mrb[0].mxu0
        %v4364 = vadd.f32 0.0, %v4363
        %v4365 = vpop.f32.mrb[0].mxu0
        %v4366 = vpop.f32.mrb[0].mxu0
        %v4367 = vadd.f32 0.0, %v4366
        %v4368 = vpop.f32.mrb[0].mxu0
        %4369 = vmatprep.mubr.bf16.mxu0 0
        %4370 = vmatmul.mubr.bf16.gmra.mrb[0].mxu0 %v4272
        %v4371 = vpop.f32.mrb[0].mxu0
        %v4372 = vadd.f32 0.0, %v4371
        %v4373 = vpop.f32.mrb[0].mxu0
        %v4374 = vpop.f32.mrb[0].mxu0
        %v4375 = vadd.f32 0.0, %v4374
        %v4376 = vpop.f32.mrb[0].mxu0
        %4377 = vmatprep.mubr.bf16.mxu0 0
        %4378 = vmatmul.mubr.bf16.gmra.mrb[0].mxu0 %v4275
        %v4379 = vpop.f32.mrb[0].mxu0
        %v4380 = vadd.f32 0.0, %v4379
        %v4381 = vpop.f32.mrb[0].mxu0
        %v4382 = vpop.f32.mrb[0].mxu0
        %v4383 = vadd.f32 0.0, %v4382
        %v4384 = vpop.f32.mrb[0].mxu0
        %4385 = vmatprep.mubr.bf16.mxu0 0
        %4386 = vmatmul.mubr.bf16.gmra.mrb[0].mxu0 %v4278
        %v4387 = vpop.f32.mrb[0].mxu0
        %v4388 = vadd.f32 0.0, %v4387
        %v4389 = vpop.f32.mrb[0].mxu0
        %v4390 = vpop.f32.mrb[0].mxu0
        %v4391 = vadd.f32 0.0, %v4390
        %v4392 = vpop.f32.mrb[0].mxu0
        %4393 = vmatprep.mubr.bf16.mxu0 0
        %4394 = vmatmul.mubr.bf16.gmra.mrb[0].mxu0 %v4281
        %v4395 = vpop.f32.mrb[0].mxu0
        %v4396 = vadd.f32 0.0, %v4395
        %v4397 = vpop.f32.mrb[0].mxu0
        %v4398 = vpop.f32.mrb[0].mxu0
        %v4399 = vadd.f32 0.0, %v4398
        %v4400 = vpop.f32.mrb[0].mxu0
        %4401 = vmatprep.mubr.bf16.mxu0 0
        %4402 = vmatmul.mubr.bf16.gmra.mrb[0].mxu0 %v4284
        %v4403 = vpop.f32.mrb[0].mxu0
        %v4404 = vadd.f32 0.0, %v4403
        %v4405 = vpop.f32.mrb[0].mxu0
        %v4406 = vpop.f32.mrb[0].mxu0
        %v4407 = vadd.f32 0.0, %v4406
        %v4408 = vpop.f32.mrb[0].mxu0
        %4409 = vmatprep.mubr.bf16.mxu0 0
        %4410 = vmatmul.mubr.bf16.gmra.mrb[0].mxu0 %v4287
        %v4411 = vpop.f32.mrb[0].mxu0
        %v4412 = vadd.f32 0.0, %v4411
        %v4413 = vpop.f32.mrb[0].mxu0
        %v4414 = vpop.f32.mrb[0].mxu0
        %v4415 = vadd.f32 0.0, %v4414
        %v4416 = vpop.f32.mrb[0].mxu0
        %4417 = vmatprep.mubr.bf16.mxu0 0
        %4418 = vmatmul.mubr.bf16.gmra.mrb[0].mxu0 %v4290
        %v4419 = vpop.f32.mrb[0].mxu0
        %v4420 = vadd.f32 0.0, %v4419
        %v4421 = vpop.f32.mrb[0].mxu0
        %v4422 = vpop.f32.mrb[0].mxu0
        %v4423 = vadd.f32 0.0, %v4422
        %v4424 = vpop.f32.mrb[0].mxu0
        %4425 = vmatprep.mubr.bf16.mxu0 0
        %4426 = vmatmul.mubr.bf16.gmra.mrb[0].mxu0 %v4293
        %v4427 = vpop.f32.mrb[0].mxu0
        %v4428 = vadd.f32 0.0, %v4427
        %v4429 = vpop.f32.mrb[0].mxu0
        %v4430 = vpop.f32.mrb[0].mxu0
        %v4431 = vadd.f32 0.0, %v4430
        %v4432 = vpop.f32.mrb[0].mxu0
        %4433 = vmatprep.mubr.bf16.mxu0 0
        %4434 = vmatmul.mubr.bf16.gmra.mrb[0].mxu0 %v4296
        %v4435 = vpop.f32.mrb[0].mxu0
        %v4436 = vadd.f32 0.0, %v4435
        %v4437 = vpop.f32.mrb[0].mxu0
        %v4438 = vpop.f32.mrb[0].mxu0
        %v4439 = vadd.f32 0.0, %v4438
        %v4440 = vpop.f32.mrb[0].mxu0
        %4441 = vmatprep.mubr.bf16.mxu0 0
        %4442 = vmatmul.mubr.bf16.gmra.mrb[0].mxu0 %v4299
        %v4443 = vpop.f32.mrb[0].mxu0
        %v4444 = vadd.f32 0.0, %v4443
        %v4445 = vpop.f32.mrb[0].mxu0
        %v4446 = vpop.f32.mrb[0].mxu0
        %v4447 = vadd.f32 0.0, %v4446
        %v4448 = vpop.f32.mrb[0].mxu0
        %4449 = vmatprep.mubr.bf16.mxu0 0
        %4450 = vmatmul.mubr.bf16.gmra.mrb[0].mxu0 %v4302
        %v4451 = vpop.f32.mrb[0].mxu0
        %v4452 = vadd.f32 0.0, %v4451
        %v4453 = vpop.f32.mrb[0].mxu0
        %v4454 = vpop.f32.mrb[0].mxu0
        %v4455 = vadd.f32 0.0, %v4454
        %v4456 = vpop.f32.mrb[0].mxu0
        %4457 = vmatprep.mubr.bf16.mxu0 0
        %4458 = vmatmul.mubr.bf16.gmra.mrb[0].mxu0 %v4305
        %v4459 = vpop.f32.mrb[0].mxu0
        %v4460 = vadd.f32 0.0, %v4459
        %v4461 = vpop.f32.mrb[0].mxu0
        %v4462 = vpop.f32.mrb[0].mxu0
        %v4463 = vadd.f32 0.0, %v4462
        %v4464 = vpop.f32.mrb[0].mxu0
        %4465 = vmatprep.mubr.bf16.mxu0 0
        %4466 = vmatmul.mubr.bf16.gmra.mrb[0].mxu0 %v4308
        %v4467 = vpop.f32.mrb[0].mxu0
        %v4468 = vadd.f32 0.0, %v4467
        %v4469 = vpop.f32.mrb[0].mxu0
        %v4470 = vpop.f32.mrb[0].mxu0
        %v4471 = vadd.f32 0.0, %v4470
        %v4472 = vpop.f32.mrb[0].mxu0
        %4473 = vdwg.mxu0
        %v4474 = vadd.f32 %v4180, %v4348
        %v4475 = vadd.f32 %v4181, %v4351
        %v4476 = vadd.f32 %v4182, %v4356
        %v4477 = vadd.f32 %v4183, %v4359
        %v4478 = vadd.f32 %v4184, %v4364
        %v4479 = vadd.f32 %v4185, %v4367
        %v4480 = vadd.f32 %v4186, %v4372
        %v4481 = vadd.f32 %v4187, %v4375
        %v4482 = vadd.f32 %v4188, %v4380
        %v4483 = vadd.f32 %v4189, %v4383
        %v4484 = vadd.f32 %v4190, %v4388
        %v4485 = vadd.f32 %v4191, %v4391
        %v4486 = vadd.f32 %v4192, %v4396
        %v4487 = vadd.f32 %v4193, %v4399
        %v4488 = vadd.f32 %v4194, %v4404
        %v4489 = vadd.f32 %v4195, %v4407
        %v4490 = vadd.f32 %v4196, %v4412
        %v4491 = vadd.f32 %v4197, %v4415
        %v4492 = vadd.f32 %v4198, %v4420
        %v4493 = vadd.f32 %v4199, %v4423
        %v4494 = vadd.f32 %v4200, %v4428
        %v4495 = vadd.f32 %v4201, %v4431
        %v4496 = vadd.f32 %v4202, %v4436
        %v4497 = vadd.f32 %v4203, %v4439
        %v4498 = vadd.f32 %v4204, %v4444
        %v4499 = vadd.f32 %v4205, %v4447
        %v4500 = vadd.f32 %v4206, %v4452
        %v4501 = vadd.f32 %v4207, %v4455
        %v4502 = vadd.f32 %v4208, %v4460
        %v4503 = vadd.f32 %v4209, %v4463
        %v4504 = vadd.f32 %v4210, %v4468
        %v4505 = vadd.f32 %v4211, %v4471
        %v4506 = vld [vmem:[%s3361 + $0x8] sm:$0xff]
        %v4507 = vld [vmem:[%s3361 + $0x10] sm:$0xff]
        %v4508 = vld [vmem:[%s3361 + $0x28] sm:$0xff]
        %v4509 = vld [vmem:[%s3361 + $0x30] sm:$0xff]
        %v4510 = vld [vmem:[%s3361 + $0x48] sm:$0xff]
        %v4511 = vld [vmem:[%s3361 + $0x50] sm:$0xff]
        %v4512 = vld [vmem:[%s3361 + $0x68] sm:$0xff]
        %v4513 = vld [vmem:[%s3361 + $0x70] sm:$0xff]
        %v4514 = vld [vmem:[%s3361 + $0x88] sm:$0xff]
        %v4515 = vld [vmem:[%s3361 + $0x90] sm:$0xff]
        %v4516 = vld [vmem:[%s3361 + $0xa8] sm:$0xff]
        %v4517 = vld [vmem:[%s3361 + $0xb0] sm:$0xff]
        %v4518 = vld [vmem:[%s3361 + $0xc8] sm:$0xff]
        %v4519 = vld [vmem:[%s3361 + $0xd0] sm:$0xff]
        %v4520 = vld [vmem:[%s3361 + $0xe8] sm:$0xff]
        %v4521 = vld [vmem:[%s3361 + $0xf0] sm:$0xff]
        %v4522 = vld [vmem:[%s3361 + $0x108] sm:$0xff]
        %v4523 = vld [vmem:[%s3361 + $0x110] sm:$0xff]
        %v4524 = vld [vmem:[%s3361 + $0x128] sm:$0xff]
        %v4525 = vld [vmem:[%s3361 + $0x130] sm:$0xff]
        %v4526 = vld [vmem:[%s3361 + $0x148] sm:$0xff]
        %v4527 = vld [vmem:[%s3361 + $0x150] sm:$0xff]
        %v4528 = vld [vmem:[%s3361 + $0x168] sm:$0xff]
        %v4529 = vld [vmem:[%s3361 + $0x170] sm:$0xff]
        %v4530 = vld [vmem:[%s3361 + $0x188] sm:$0xff]
        %v4531 = vld [vmem:[%s3361 + $0x190] sm:$0xff]
        %v4532 = vld [vmem:[%s3361 + $0x1a8] sm:$0xff]
        %v4533 = vld [vmem:[%s3361 + $0x1b0] sm:$0xff]
        %v4534 = vld [vmem:[%s3361 + $0x1c8] sm:$0xff]
        %v4535 = vld [vmem:[%s3361 + $0x1d0] sm:$0xff]
        %v4536 = vld [vmem:[%s3361 + $0x1e8] sm:$0xff]
        %v4537 = vld [vmem:[%s3361 + $0x1f0] sm:$0xff]
        %v4538 = vpack.c.bf16 %v4507, %v4506
        %v4539 = vpack.c.bf16 %v4509, %v4508
        %v4540 = vpack.c.bf16 %v4511, %v4510
        %v4541 = vpack.c.bf16 %v4513, %v4512
        %v4542 = vpack.c.bf16 %v4515, %v4514
        %v4543 = vpack.c.bf16 %v4517, %v4516
        %v4544 = vpack.c.bf16 %v4519, %v4518
        %v4545 = vpack.c.bf16 %v4521, %v4520
        %v4546 = vpack.c.bf16 %v4523, %v4522
        %v4547 = vpack.c.bf16 %v4525, %v4524
        %v4548 = vpack.c.bf16 %v4527, %v4526
        %v4549 = vpack.c.bf16 %v4529, %v4528
        %v4550 = vpack.c.bf16 %v4531, %v4530
        %v4551 = vpack.c.bf16 %v4533, %v4532
        %v4552 = vpack.c.bf16 %v4535, %v4534
        %v4553 = vpack.c.bf16 %v4537, %v4536
        %s4554 = scalar_lea.vmem %s3, 16
        %v4555 = vld [vmem:[%s4554] sm:$0xf]
        %v4557 = vsel %vm3288, %v4538, 0
        %v4560 = vsel %vm3288, %v4539, 0
        %v4563 = vsel %vm3288, %v4540, 0
        %v4566 = vsel %vm3288, %v4541, 0
        %v4569 = vsel %vm3288, %v4542, 0
        %v4572 = vsel %vm3288, %v4543, 0
        %v4575 = vsel %vm3288, %v4544, 0
        %v4578 = vsel %vm3288, %v4545, 0
        %v4581 = vsel %vm3288, %v4546, 0
        %v4584 = vsel %vm3288, %v4547, 0
        %v4587 = vsel %vm3288, %v4548, 0
        %v4590 = vsel %vm3288, %v4549, 0
        %v4593 = vsel %vm3288, %v4550, 0
        %v4596 = vsel %vm3288, %v4551, 0
        %v4599 = vsel %vm3288, %v4552, 0
        %v4602 = vsel %vm3288, %v4553, 0
        %v4605 = vsel %vm3541, %v4555, 0
        %4607 = vmatprep.subr.bf16.mxu0 0
        %4608 = vmatpush1.bf16.msra.mxu0 %v4605
        %4609 = vmatprep.subr.bf16.mxu0 0
        %4610 = vmatpush1.bf16.msra.mxu0 0
        %4611 = vmatprep.subr.bf16.mxu0 0
        %4612 = vmatpush1.bf16.msra.mxu0 0
        %4613 = vmatprep.subr.bf16.mxu0 0
        %4614 = vmatpush1.bf16.msra.mxu0 0
        %4615 = vmatprep.subr.bf16.mxu0 0
        %4616 = vmatpush1.bf16.msra.mxu0 0
        %4617 = vmatprep.subr.bf16.mxu0 0
        %4618 = vmatpush1.bf16.msra.mxu0 0
        %4619 = vmatprep.subr.bf16.mxu0 0
        %4620 = vmatpush1.bf16.msra.mxu0 0
        %4621 = vmatprep.subr.bf16.mxu0 0
        %4622 = vmatpush1.bf16.msra.mxu0 0
        %4623 = vmatprep.subr.bf16.mxu0 0
        %4624 = vmatpush1.bf16.msra.mxu0 0
        %4625 = vmatprep.subr.bf16.mxu0 0
        %4626 = vmatpush1.bf16.msra.mxu0 0
        %4627 = vmatprep.subr.bf16.mxu0 0
        %4628 = vmatpush1.bf16.msra.mxu0 0
        %4629 = vmatprep.subr.bf16.mxu0 0
        %4630 = vmatpush1.bf16.msra.mxu0 0
        %4631 = vmatprep.subr.bf16.mxu0 0
        %4632 = vmatpush1.bf16.msra.mxu0 0
        %4633 = vmatprep.subr.bf16.mxu0 0
        %4634 = vmatpush1.bf16.msra.mxu0 0
        %4635 = vmatprep.subr.bf16.mxu0 0
        %4636 = vmatpush1.bf16.msra.mxu0 0
        %4637 = vmatprep.subr.bf16.mxu0 0
        %4638 = vmatpush1.bf16.msra.mxu0 0
        %4639 = vmatprep.mubr.bf16.mxu0 0
        %4640 = vmatmul.mubr.bf16.gmra.mrb[0].mxu0 %v4557
        %v4641 = vpop.f32.mrb[0].mxu0
        %v4642 = vadd.f32 0.0, %v4641
        %v4643 = vpop.f32.mrb[0].mxu0
        %v4644 = vpop.f32.mrb[0].mxu0
        %v4645 = vadd.f32 0.0, %v4644
        %v4646 = vpop.f32.mrb[0].mxu0
        %4647 = vmatprep.mubr.bf16.mxu0 0
        %4648 = vmatmul.mubr.bf16.gmra.mrb[0].mxu0 %v4560
        %v4649 = vpop.f32.mrb[0].mxu0
        %v4650 = vadd.f32 0.0, %v4649
        %v4651 = vpop.f32.mrb[0].mxu0
        %v4652 = vpop.f32.mrb[0].mxu0
        %v4653 = vadd.f32 0.0, %v4652
        %v4654 = vpop.f32.mrb[0].mxu0
        %4655 = vmatprep.mubr.bf16.mxu0 0
        %4656 = vmatmul.mubr.bf16.gmra.mrb[0].mxu0 %v4563
        %v4657 = vpop.f32.mrb[0].mxu0
        %v4658 = vadd.f32 0.0, %v4657
        %v4659 = vpop.f32.mrb[0].mxu0
        %v4660 = vpop.f32.mrb[0].mxu0
        %v4661 = vadd.f32 0.0, %v4660
        %v4662 = vpop.f32.mrb[0].mxu0
        %4663 = vmatprep.mubr.bf16.mxu0 0
        %4664 = vmatmul.mubr.bf16.gmra.mrb[0].mxu0 %v4566
        %v4665 = vpop.f32.mrb[0].mxu0
        %v4666 = vadd.f32 0.0, %v4665
        %v4667 = vpop.f32.mrb[0].mxu0
        %v4668 = vpop.f32.mrb[0].mxu0
        %v4669 = vadd.f32 0.0, %v4668
        %v4670 = vpop.f32.mrb[0].mxu0
        %4671 = vmatprep.mubr.bf16.mxu0 0
        %4672 = vmatmul.mubr.bf16.gmra.mrb[0].mxu0 %v4569
        %v4673 = vpop.f32.mrb[0].mxu0
        %v4674 = vadd.f32 0.0, %v4673
        %v4675 = vpop.f32.mrb[0].mxu0
        %v4676 = vpop.f32.mrb[0].mxu0
        %v4677 = vadd.f32 0.0, %v4676
        %v4678 = vpop.f32.mrb[0].mxu0
        %4679 = vmatprep.mubr.bf16.mxu0 0
        %4680 = vmatmul.mubr.bf16.gmra.mrb[0].mxu0 %v4572
        %v4681 = vpop.f32.mrb[0].mxu0
        %v4682 = vadd.f32 0.0, %v4681
        %v4683 = vpop.f32.mrb[0].mxu0
        %v4684 = vpop.f32.mrb[0].mxu0
        %v4685 = vadd.f32 0.0, %v4684
        %v4686 = vpop.f32.mrb[0].mxu0
        %4687 = vmatprep.mubr.bf16.mxu0 0
        %4688 = vmatmul.mubr.bf16.gmra.mrb[0].mxu0 %v4575
        %v4689 = vpop.f32.mrb[0].mxu0
        %v4690 = vadd.f32 0.0, %v4689
        %v4691 = vpop.f32.mrb[0].mxu0
        %v4692 = vpop.f32.mrb[0].mxu0
        %v4693 = vadd.f32 0.0, %v4692
        %v4694 = vpop.f32.mrb[0].mxu0
        %4695 = vmatprep.mubr.bf16.mxu0 0
        %4696 = vmatmul.mubr.bf16.gmra.mrb[0].mxu0 %v4578
        %v4697 = vpop.f32.mrb[0].mxu0
        %v4698 = vadd.f32 0.0, %v4697
        %v4699 = vpop.f32.mrb[0].mxu0
        %v4700 = vpop.f32.mrb[0].mxu0
        %v4701 = vadd.f32 0.0, %v4700
        %v4702 = vpop.f32.mrb[0].mxu0
        %4703 = vmatprep.mubr.bf16.mxu0 0
        %4704 = vmatmul.mubr.bf16.gmra.mrb[0].mxu0 %v4581
        %v4705 = vpop.f32.mrb[0].mxu0
        %v4706 = vadd.f32 0.0, %v4705
        %v4707 = vpop.f32.mrb[0].mxu0
        %v4708 = vpop.f32.mrb[0].mxu0
        %v4709 = vadd.f32 0.0, %v4708
        %v4710 = vpop.f32.mrb[0].mxu0
        %4711 = vmatprep.mubr.bf16.mxu0 0
        %4712 = vmatmul.mubr.bf16.gmra.mrb[0].mxu0 %v4584
        %v4713 = vpop.f32.mrb[0].mxu0
        %v4714 = vadd.f32 0.0, %v4713
        %v4715 = vpop.f32.mrb[0].mxu0
        %v4716 = vpop.f32.mrb[0].mxu0
        %v4717 = vadd.f32 0.0, %v4716
        %v4718 = vpop.f32.mrb[0].mxu0
        %4719 = vmatprep.mubr.bf16.mxu0 0
        %4720 = vmatmul.mubr.bf16.gmra.mrb[0].mxu0 %v4587
        %v4721 = vpop.f32.mrb[0].mxu0
        %v4722 = vadd.f32 0.0, %v4721
        %v4723 = vpop.f32.mrb[0].mxu0
        %v4724 = vpop.f32.mrb[0].mxu0
        %v4725 = vadd.f32 0.0, %v4724
        %v4726 = vpop.f32.mrb[0].mxu0
        %4727 = vmatprep.mubr.bf16.mxu0 0
        %4728 = vmatmul.mubr.bf16.gmra.mrb[0].mxu0 %v4590
        %v4729 = vpop.f32.mrb[0].mxu0
        %v4730 = vadd.f32 0.0, %v4729
        %v4731 = vpop.f32.mrb[0].mxu0
        %v4732 = vpop.f32.mrb[0].mxu0
        %v4733 = vadd.f32 0.0, %v4732
        %v4734 = vpop.f32.mrb[0].mxu0
        %4735 = vmatprep.mubr.bf16.mxu0 0
        %4736 = vmatmul.mubr.bf16.gmra.mrb[0].mxu0 %v4593
        %v4737 = vpop.f32.mrb[0].mxu0
        %v4738 = vadd.f32 0.0, %v4737
        %v4739 = vpop.f32.mrb[0].mxu0
        %v4740 = vpop.f32.mrb[0].mxu0
        %v4741 = vadd.f32 0.0, %v4740
        %v4742 = vpop.f32.mrb[0].mxu0
        %4743 = vmatprep.mubr.bf16.mxu0 0
        %4744 = vmatmul.mubr.bf16.gmra.mrb[0].mxu0 %v4596
        %v4745 = vpop.f32.mrb[0].mxu0
        %v4746 = vadd.f32 0.0, %v4745
        %v4747 = vpop.f32.mrb[0].mxu0
        %v4748 = vpop.f32.mrb[0].mxu0
        %v4749 = vadd.f32 0.0, %v4748
        %v4750 = vpop.f32.mrb[0].mxu0
        %4751 = vmatprep.mubr.bf16.mxu0 0
        %4752 = vmatmul.mubr.bf16.gmra.mrb[0].mxu0 %v4599
        %v4753 = vpop.f32.mrb[0].mxu0
        %v4754 = vadd.f32 0.0, %v4753
        %v4755 = vpop.f32.mrb[0].mxu0
        %v4756 = vpop.f32.mrb[0].mxu0
        %v4757 = vadd.f32 0.0, %v4756
        %v4758 = vpop.f32.mrb[0].mxu0
        %4759 = vmatprep.mubr.bf16.mxu0 0
        %4760 = vmatmul.mubr.bf16.gmra.mrb[0].mxu0 %v4602
        %v4761 = vpop.f32.mrb[0].mxu0
        %v4762 = vadd.f32 0.0, %v4761
        %v4763 = vpop.f32.mrb[0].mxu0
        %v4764 = vpop.f32.mrb[0].mxu0
        %v4765 = vadd.f32 0.0, %v4764
        %v4766 = vpop.f32.mrb[0].mxu0
        %4767 = vdwg.mxu0
        %v4768 = vadd.f32 %v4474, %v4642
        %v4769 = vadd.f32 %v4475, %v4645
        %v4770 = vadd.f32 %v4476, %v4650
        %v4771 = vadd.f32 %v4477, %v4653
        %v4772 = vadd.f32 %v4478, %v4658
        %v4773 = vadd.f32 %v4479, %v4661
        %v4774 = vadd.f32 %v4480, %v4666
        %v4775 = vadd.f32 %v4481, %v4669
        %v4776 = vadd.f32 %v4482, %v4674
        %v4777 = vadd.f32 %v4483, %v4677
        %v4778 = vadd.f32 %v4484, %v4682
        %v4779 = vadd.f32 %v4485, %v4685
        %v4780 = vadd.f32 %v4486, %v4690
        %v4781 = vadd.f32 %v4487, %v4693
        %v4782 = vadd.f32 %v4488, %v4698
        %v4783 = vadd.f32 %v4489, %v4701
        %v4784 = vadd.f32 %v4490, %v4706
        %v4785 = vadd.f32 %v4491, %v4709
        %v4786 = vadd.f32 %v4492, %v4714
        %v4787 = vadd.f32 %v4493, %v4717
        %v4788 = vadd.f32 %v4494, %v4722
        %v4789 = vadd.f32 %v4495, %v4725
        %v4790 = vadd.f32 %v4496, %v4730
        %v4791 = vadd.f32 %v4497, %v4733
        %v4792 = vadd.f32 %v4498, %v4738
        %v4793 = vadd.f32 %v4499, %v4741
        %v4794 = vadd.f32 %v4500, %v4746
        %v4795 = vadd.f32 %v4501, %v4749
        %v4796 = vadd.f32 %v4502, %v4754
        %v4797 = vadd.f32 %v4503, %v4757
        %v4798 = vadd.f32 %v4504, %v4762
        %v4799 = vadd.f32 %v4505, %v4765
        %v4800 = vld [vmem:[%s3361 + $0x9] sm:$0xff]
        %v4801 = vld [vmem:[%s3361 + $0x11] sm:$0xff]
        %v4802 = vld [vmem:[%s3361 + $0x29] sm:$0xff]
        %v4803 = vld [vmem:[%s3361 + $0x31] sm:$0xff]
        %v4804 = vld [vmem:[%s3361 + $0x49] sm:$0xff]
        %v4805 = vld [vmem:[%s3361 + $0x51] sm:$0xff]
        %v4806 = vld [vmem:[%s3361 + $0x69] sm:$0xff]
        %v4807 = vld [vmem:[%s3361 + $0x71] sm:$0xff]
        %v4808 = vld [vmem:[%s3361 + $0x89] sm:$0xff]
        %v4809 = vld [vmem:[%s3361 + $0x91] sm:$0xff]
        %v4810 = vld [vmem:[%s3361 + $0xa9] sm:$0xff]
        %v4811 = vld [vmem:[%s3361 + $0xb1] sm:$0xff]
        %v4812 = vld [vmem:[%s3361 + $0xc9] sm:$0xff]
        %v4813 = vld [vmem:[%s3361 + $0xd1] sm:$0xff]
        %v4814 = vld [vmem:[%s3361 + $0xe9] sm:$0xff]
        %v4815 = vld [vmem:[%s3361 + $0xf1] sm:$0xff]
        %v4816 = vld [vmem:[%s3361 + $0x109] sm:$0xff]
        %v4817 = vld [vmem:[%s3361 + $0x111] sm:$0xff]
        %v4818 = vld [vmem:[%s3361 + $0x129] sm:$0xff]
        %v4819 = vld [vmem:[%s3361 + $0x131] sm:$0xff]
        %v4820 = vld [vmem:[%s3361 + $0x149] sm:$0xff]
        %v4821 = vld [vmem:[%s3361 + $0x151] sm:$0xff]
        %v4822 = vld [vmem:[%s3361 + $0x169] sm:$0xff]
        %v4823 = vld [vmem:[%s3361 + $0x171] sm:$0xff]
        %v4824 = vld [vmem:[%s3361 + $0x189] sm:$0xff]
        %v4825 = vld [vmem:[%s3361 + $0x191] sm:$0xff]
        %v4826 = vld [vmem:[%s3361 + $0x1a9] sm:$0xff]
        %v4827 = vld [vmem:[%s3361 + $0x1b1] sm:$0xff]
        %v4828 = vld [vmem:[%s3361 + $0x1c9] sm:$0xff]
        %v4829 = vld [vmem:[%s3361 + $0x1d1] sm:$0xff]
        %v4830 = vld [vmem:[%s3361 + $0x1e9] sm:$0xff]
        %v4831 = vld [vmem:[%s3361 + $0x1f1] sm:$0xff]
        %v4832 = vpack.c.bf16 %v4801, %v4800
        %v4833 = vpack.c.bf16 %v4803, %v4802
        %v4834 = vpack.c.bf16 %v4805, %v4804
        %v4835 = vpack.c.bf16 %v4807, %v4806
        %v4836 = vpack.c.bf16 %v4809, %v4808
        %v4837 = vpack.c.bf16 %v4811, %v4810
        %v4838 = vpack.c.bf16 %v4813, %v4812
        %v4839 = vpack.c.bf16 %v4815, %v4814
        %v4840 = vpack.c.bf16 %v4817, %v4816
        %v4841 = vpack.c.bf16 %v4819, %v4818
        %v4842 = vpack.c.bf16 %v4821, %v4820
        %v4843 = vpack.c.bf16 %v4823, %v4822
        %v4844 = vpack.c.bf16 %v4825, %v4824
        %v4845 = vpack.c.bf16 %v4827, %v4826
        %v4846 = vpack.c.bf16 %v4829, %v4828
        %v4847 = vpack.c.bf16 %v4831, %v4830
        %s4848 = scalar_lea.vmem %s3, 20
        %v4849 = vld [vmem:[%s4848] sm:$0xf]
        %v4851 = vsel %vm3288, %v4832, 0
        %v4854 = vsel %vm3288, %v4833, 0
        %v4857 = vsel %vm3288, %v4834, 0
        %v4860 = vsel %vm3288, %v4835, 0
        %v4863 = vsel %vm3288, %v4836, 0
        %v4866 = vsel %vm3288, %v4837, 0
        %v4869 = vsel %vm3288, %v4838, 0
        %v4872 = vsel %vm3288, %v4839, 0
        %v4875 = vsel %vm3288, %v4840, 0
        %v4878 = vsel %vm3288, %v4841, 0
        %v4881 = vsel %vm3288, %v4842, 0
        %v4884 = vsel %vm3288, %v4843, 0
        %v4887 = vsel %vm3288, %v4844, 0
        %v4890 = vsel %vm3288, %v4845, 0
        %v4893 = vsel %vm3288, %v4846, 0
        %v4896 = vsel %vm3288, %v4847, 0
        %v4899 = vsel %vm3541, %v4849, 0
        %4901 = vmatprep.subr.bf16.mxu0 0
        %4902 = vmatpush1.bf16.msra.mxu0 %v4899
        %4903 = vmatprep.subr.bf16.mxu0 0
        %4904 = vmatpush1.bf16.msra.mxu0 0
        %4905 = vmatprep.subr.bf16.mxu0 0
        %4906 = vmatpush1.bf16.msra.mxu0 0
        %4907 = vmatprep.subr.bf16.mxu0 0
        %4908 = vmatpush1.bf16.msra.mxu0 0
        %4909 = vmatprep.subr.bf16.mxu0 0
        %4910 = vmatpush1.bf16.msra.mxu0 0
        %4911 = vmatprep.subr.bf16.mxu0 0
        %4912 = vmatpush1.bf16.msra.mxu0 0
        %4913 = vmatprep.subr.bf16.mxu0 0
        %4914 = vmatpush1.bf16.msra.mxu0 0
        %4915 = vmatprep.subr.bf16.mxu0 0
        %4916 = vmatpush1.bf16.msra.mxu0 0
        %4917 = vmatprep.subr.bf16.mxu0 0
        %4918 = vmatpush1.bf16.msra.mxu0 0
        %4919 = vmatprep.subr.bf16.mxu0 0
        %4920 = vmatpush1.bf16.msra.mxu0 0
        %4921 = vmatprep.subr.bf16.mxu0 0
        %4922 = vmatpush1.bf16.msra.mxu0 0
        %4923 = vmatprep.subr.bf16.mxu0 0
        %4924 = vmatpush1.bf16.msra.mxu0 0
        %4925 = vmatprep.subr.bf16.mxu0 0
        %4926 = vmatpush1.bf16.msra.mxu0 0
        %4927 = vmatprep.subr.bf16.mxu0 0
        %4928 = vmatpush1.bf16.msra.mxu0 0
        %4929 = vmatprep.subr.bf16.mxu0 0
        %4930 = vmatpush1.bf16.msra.mxu0 0
        %4931 = vmatprep.subr.bf16.mxu0 0
        %4932 = vmatpush1.bf16.msra.mxu0 0
        %4933 = vmatprep.mubr.bf16.mxu0 0
        %4934 = vmatmul.mubr.bf16.gmra.mrb[0].mxu0 %v4851
        %v4935 = vpop.f32.mrb[0].mxu0
        %v4936 = vadd.f32 0.0, %v4935
        %v4937 = vpop.f32.mrb[0].mxu0
        %v4938 = vpop.f32.mrb[0].mxu0
        %v4939 = vadd.f32 0.0, %v4938
        %v4940 = vpop.f32.mrb[0].mxu0
        %4941 = vmatprep.mubr.bf16.mxu0 0
        %4942 = vmatmul.mubr.bf16.gmra.mrb[0].mxu0 %v4854
        %v4943 = vpop.f32.mrb[0].mxu0
        %v4944 = vadd.f32 0.0, %v4943
        %v4945 = vpop.f32.mrb[0].mxu0
        %v4946 = vpop.f32.mrb[0].mxu0
        %v4947 = vadd.f32 0.0, %v4946
        %v4948 = vpop.f32.mrb[0].mxu0
        %4949 = vmatprep.mubr.bf16.mxu0 0
        %4950 = vmatmul.mubr.bf16.gmra.mrb[0].mxu0 %v4857
        %v4951 = vpop.f32.mrb[0].mxu0
        %v4952 = vadd.f32 0.0, %v4951
        %v4953 = vpop.f32.mrb[0].mxu0
        %v4954 = vpop.f32.mrb[0].mxu0
        %v4955 = vadd.f32 0.0, %v4954
        %v4956 = vpop.f32.mrb[0].mxu0
        %4957 = vmatprep.mubr.bf16.mxu0 0
        %4958 = vmatmul.mubr.bf16.gmra.mrb[0].mxu0 %v4860
        %v4959 = vpop.f32.mrb[0].mxu0
        %v4960 = vadd.f32 0.0, %v4959
        %v4961 = vpop.f32.mrb[0].mxu0
        %v4962 = vpop.f32.mrb[0].mxu0
        %v4963 = vadd.f32 0.0, %v4962
        %v4964 = vpop.f32.mrb[0].mxu0
        %4965 = vmatprep.mubr.bf16.mxu0 0
        %4966 = vmatmul.mubr.bf16.gmra.mrb[0].mxu0 %v4863
        %v4967 = vpop.f32.mrb[0].mxu0
        %v4968 = vadd.f32 0.0, %v4967
        %v4969 = vpop.f32.mrb[0].mxu0
        %v4970 = vpop.f32.mrb[0].mxu0
        %v4971 = vadd.f32 0.0, %v4970
        %v4972 = vpop.f32.mrb[0].mxu0
        %4973 = vmatprep.mubr.bf16.mxu0 0
        %4974 = vmatmul.mubr.bf16.gmra.mrb[0].mxu0 %v4866
        %v4975 = vpop.f32.mrb[0].mxu0
        %v4976 = vadd.f32 0.0, %v4975
        %v4977 = vpop.f32.mrb[0].mxu0
        %v4978 = vpop.f32.mrb[0].mxu0
        %v4979 = vadd.f32 0.0, %v4978
        %v4980 = vpop.f32.mrb[0].mxu0
        %4981 = vmatprep.mubr.bf16.mxu0 0
        %4982 = vmatmul.mubr.bf16.gmra.mrb[0].mxu0 %v4869
        %v4983 = vpop.f32.mrb[0].mxu0
        %v4984 = vadd.f32 0.0, %v4983
        %v4985 = vpop.f32.mrb[0].mxu0
        %v4986 = vpop.f32.mrb[0].mxu0
        %v4987 = vadd.f32 0.0, %v4986
        %v4988 = vpop.f32.mrb[0].mxu0
        %4989 = vmatprep.mubr.bf16.mxu0 0
        %4990 = vmatmul.mubr.bf16.gmra.mrb[0].mxu0 %v4872
        %v4991 = vpop.f32.mrb[0].mxu0
        %v4992 = vadd.f32 0.0, %v4991
        %v4993 = vpop.f32.mrb[0].mxu0
        %v4994 = vpop.f32.mrb[0].mxu0
        %v4995 = vadd.f32 0.0, %v4994
        %v4996 = vpop.f32.mrb[0].mxu0
        %4997 = vmatprep.mubr.bf16.mxu0 0
        %4998 = vmatmul.mubr.bf16.gmra.mrb[0].mxu0 %v4875
        %v4999 = vpop.f32.mrb[0].mxu0
        %v5000 = vadd.f32 0.0, %v4999
        %v5001 = vpop.f32.mrb[0].mxu0
        %v5002 = vpop.f32.mrb[0].mxu0
        %v5003 = vadd.f32 0.0, %v5002
        %v5004 = vpop.f32.mrb[0].mxu0
        %5005 = vmatprep.mubr.bf16.mxu0 0
        %5006 = vmatmul.mubr.bf16.gmra.mrb[0].mxu0 %v4878
        %v5007 = vpop.f32.mrb[0].mxu0
        %v5008 = vadd.f32 0.0, %v5007
        %v5009 = vpop.f32.mrb[0].mxu0
        %v5010 = vpop.f32.mrb[0].mxu0
        %v5011 = vadd.f32 0.0, %v5010
        %v5012 = vpop.f32.mrb[0].mxu0
        %5013 = vmatprep.mubr.bf16.mxu0 0
        %5014 = vmatmul.mubr.bf16.gmra.mrb[0].mxu0 %v4881
        %v5015 = vpop.f32.mrb[0].mxu0
        %v5016 = vadd.f32 0.0, %v5015
        %v5017 = vpop.f32.mrb[0].mxu0
        %v5018 = vpop.f32.mrb[0].mxu0
        %v5019 = vadd.f32 0.0, %v5018
        %v5020 = vpop.f32.mrb[0].mxu0
        %5021 = vmatprep.mubr.bf16.mxu0 0
        %5022 = vmatmul.mubr.bf16.gmra.mrb[0].mxu0 %v4884
        %v5023 = vpop.f32.mrb[0].mxu0
        %v5024 = vadd.f32 0.0, %v5023
        %v5025 = vpop.f32.mrb[0].mxu0
        %v5026 = vpop.f32.mrb[0].mxu0
        %v5027 = vadd.f32 0.0, %v5026
        %v5028 = vpop.f32.mrb[0].mxu0
        %5029 = vmatprep.mubr.bf16.mxu0 0
        %5030 = vmatmul.mubr.bf16.gmra.mrb[0].mxu0 %v4887
        %v5031 = vpop.f32.mrb[0].mxu0
        %v5032 = vadd.f32 0.0, %v5031
        %v5033 = vpop.f32.mrb[0].mxu0
        %v5034 = vpop.f32.mrb[0].mxu0
        %v5035 = vadd.f32 0.0, %v5034
        %v5036 = vpop.f32.mrb[0].mxu0
        %5037 = vmatprep.mubr.bf16.mxu0 0
        %5038 = vmatmul.mubr.bf16.gmra.mrb[0].mxu0 %v4890
        %v5039 = vpop.f32.mrb[0].mxu0
        %v5040 = vadd.f32 0.0, %v5039
        %v5041 = vpop.f32.mrb[0].mxu0
        %v5042 = vpop.f32.mrb[0].mxu0
        %v5043 = vadd.f32 0.0, %v5042
        %v5044 = vpop.f32.mrb[0].mxu0
        %5045 = vmatprep.mubr.bf16.mxu0 0
        %5046 = vmatmul.mubr.bf16.gmra.mrb[0].mxu0 %v4893
        %v5047 = vpop.f32.mrb[0].mxu0
        %v5048 = vadd.f32 0.0, %v5047
        %v5049 = vpop.f32.mrb[0].mxu0
        %v5050 = vpop.f32.mrb[0].mxu0
        %v5051 = vadd.f32 0.0, %v5050
        %v5052 = vpop.f32.mrb[0].mxu0
        %5053 = vmatprep.mubr.bf16.mxu0 0
        %5054 = vmatmul.mubr.bf16.gmra.mrb[0].mxu0 %v4896
        %v5055 = vpop.f32.mrb[0].mxu0
        %v5056 = vadd.f32 0.0, %v5055
        %v5057 = vpop.f32.mrb[0].mxu0
        %v5058 = vpop.f32.mrb[0].mxu0
        %v5059 = vadd.f32 0.0, %v5058
        %v5060 = vpop.f32.mrb[0].mxu0
        %5061 = vdwg.mxu0
        %v5062 = vadd.f32 %v4768, %v4936
        %v5063 = vadd.f32 %v4769, %v4939
        %v5064 = vadd.f32 %v4770, %v4944
        %v5065 = vadd.f32 %v4771, %v4947
        %v5066 = vadd.f32 %v4772, %v4952
        %v5067 = vadd.f32 %v4773, %v4955
        %v5068 = vadd.f32 %v4774, %v4960
        %v5069 = vadd.f32 %v4775, %v4963
        %v5070 = vadd.f32 %v4776, %v4968
        %v5071 = vadd.f32 %v4777, %v4971
        %v5072 = vadd.f32 %v4778, %v4976
        %v5073 = vadd.f32 %v4779, %v4979
        %v5074 = vadd.f32 %v4780, %v4984
        %v5075 = vadd.f32 %v4781, %v4987
        %v5076 = vadd.f32 %v4782, %v4992
        %v5077 = vadd.f32 %v4783, %v4995
        %v5078 = vadd.f32 %v4784, %v5000
        %v5079 = vadd.f32 %v4785, %v5003
        %v5080 = vadd.f32 %v4786, %v5008
        %v5081 = vadd.f32 %v4787, %v5011
        %v5082 = vadd.f32 %v4788, %v5016
        %v5083 = vadd.f32 %v4789, %v5019
        %v5084 = vadd.f32 %v4790, %v5024
        %v5085 = vadd.f32 %v4791, %v5027
        %v5086 = vadd.f32 %v4792, %v5032
        %v5087 = vadd.f32 %v4793, %v5035
        %v5088 = vadd.f32 %v4794, %v5040
        %v5089 = vadd.f32 %v4795, %v5043
        %v5090 = vadd.f32 %v4796, %v5048
        %v5091 = vadd.f32 %v4797, %v5051
        %v5092 = vadd.f32 %v4798, %v5056
        %v5093 = vadd.f32 %v4799, %v5059
        %s5094 = scalar_lea.vmem [#allocation3], 64
        %v5095 = vld [vmem:[%s5094 + $0x7] sm:$0xff]
        %v5096 = vld [vmem:[%s5094 + $0xf] sm:$0xff]
        %v5097 = vld [vmem:[%s5094 + $0x27] sm:$0xff]
        %v5098 = vld [vmem:[%s5094 + $0x2f] sm:$0xff]
        %v5099 = vld [vmem:[%s5094 + $0x47] sm:$0xff]
        %v5100 = vld [vmem:[%s5094 + $0x4f] sm:$0xff]
        %v5101 = vld [vmem:[%s5094 + $0x67] sm:$0xff]
        %v5102 = vld [vmem:[%s5094 + $0x6f] sm:$0xff]
        %v5103 = vld [vmem:[%s5094 + $0x87] sm:$0xff]
        %v5104 = vld [vmem:[%s5094 + $0x8f] sm:$0xff]
        %v5105 = vld [vmem:[%s5094 + $0xa7] sm:$0xff]
        %v5106 = vld [vmem:[%s5094 + $0xaf] sm:$0xff]
        %v5107 = vld [vmem:[%s5094 + $0xc7] sm:$0xff]
        %v5108 = vld [vmem:[%s5094 + $0xcf] sm:$0xff]
        %v5109 = vld [vmem:[%s5094 + $0xe7] sm:$0xff]
        %v5110 = vld [vmem:[%s5094 + $0xef] sm:$0xff]
        %v5111 = vld [vmem:[%s5094 + $0x107] sm:$0xff]
        %v5112 = vld [vmem:[%s5094 + $0x10f] sm:$0xff]
        %v5113 = vld [vmem:[%s5094 + $0x127] sm:$0xff]
        %v5114 = vld [vmem:[%s5094 + $0x12f] sm:$0xff]
        %v5115 = vld [vmem:[%s5094 + $0x147] sm:$0xff]
        %v5116 = vld [vmem:[%s5094 + $0x14f] sm:$0xff]
        %v5117 = vld [vmem:[%s5094 + $0x167] sm:$0xff]
        %v5118 = vld [vmem:[%s5094 + $0x16f] sm:$0xff]
        %v5119 = vld [vmem:[%s5094 + $0x187] sm:$0xff]
        %v5120 = vld [vmem:[%s5094 + $0x18f] sm:$0xff]
        %v5121 = vld [vmem:[%s5094 + $0x1a7] sm:$0xff]
        %v5122 = vld [vmem:[%s5094 + $0x1af] sm:$0xff]
        %v5123 = vld [vmem:[%s5094 + $0x1c7] sm:$0xff]
        %v5124 = vld [vmem:[%s5094 + $0x1cf] sm:$0xff]
        %v5125 = vld [vmem:[%s5094 + $0x1e7] sm:$0xff]
        %v5126 = vld [vmem:[%s5094 + $0x1ef] sm:$0xff]
        %v5127 = vpack.c.bf16 %v5096, %v5095
        %v5128 = vpack.c.bf16 %v5098, %v5097
        %v5129 = vpack.c.bf16 %v5100, %v5099
        %v5130 = vpack.c.bf16 %v5102, %v5101
        %v5131 = vpack.c.bf16 %v5104, %v5103
        %v5132 = vpack.c.bf16 %v5106, %v5105
        %v5133 = vpack.c.bf16 %v5108, %v5107
        %v5134 = vpack.c.bf16 %v5110, %v5109
        %v5135 = vpack.c.bf16 %v5112, %v5111
        %v5136 = vpack.c.bf16 %v5114, %v5113
        %v5137 = vpack.c.bf16 %v5116, %v5115
        %v5138 = vpack.c.bf16 %v5118, %v5117
        %v5139 = vpack.c.bf16 %v5120, %v5119
        %v5140 = vpack.c.bf16 %v5122, %v5121
        %v5141 = vpack.c.bf16 %v5124, %v5123
        %v5142 = vpack.c.bf16 %v5126, %v5125
        %s5143 = scalar_lea.vmem %s3, 24
        %v5144 = vld [vmem:[%s5143] sm:$0xf]
        %v5146 = vsel %vm3288, %v5127, 0
        %v5149 = vsel %vm3288, %v5128, 0
        %v5152 = vsel %vm3288, %v5129, 0
        %v5155 = vsel %vm3288, %v5130, 0
        %v5158 = vsel %vm3288, %v5131, 0
        %v5161 = vsel %vm3288, %v5132, 0
        %v5164 = vsel %vm3288, %v5133, 0
        %v5167 = vsel %vm3288, %v5134, 0
        %v5170 = vsel %vm3288, %v5135, 0
        %v5173 = vsel %vm3288, %v5136, 0
        %v5176 = vsel %vm3288, %v5137, 0
        %v5179 = vsel %vm3288, %v5138, 0
        %v5182 = vsel %vm3288, %v5139, 0
        %v5185 = vsel %vm3288, %v5140, 0
        %v5188 = vsel %vm3288, %v5141, 0
        %v5191 = vsel %vm3288, %v5142, 0
        %v5194 = vsel %vm3541, %v5144, 0
        %5196 = vmatprep.subr.bf16.mxu0 0
        %5197 = vmatpush1.bf16.msra.mxu0 %v5194
        %5198 = vmatprep.subr.bf16.mxu0 0
        %5199 = vmatpush1.bf16.msra.mxu0 0
        %5200 = vmatprep.subr.bf16.mxu0 0
        %5201 = vmatpush1.bf16.msra.mxu0 0
        %5202 = vmatprep.subr.bf16.mxu0 0
        %5203 = vmatpush1.bf16.msra.mxu0 0
        %5204 = vmatprep.subr.bf16.mxu0 0
        %5205 = vmatpush1.bf16.msra.mxu0 0
        %5206 = vmatprep.subr.bf16.mxu0 0
        %5207 = vmatpush1.bf16.msra.mxu0 0
        %5208 = vmatprep.subr.bf16.mxu0 0
        %5209 = vmatpush1.bf16.msra.mxu0 0
        %5210 = vmatprep.subr.bf16.mxu0 0
        %5211 = vmatpush1.bf16.msra.mxu0 0
        %5212 = vmatprep.subr.bf16.mxu0 0
        %5213 = vmatpush1.bf16.msra.mxu0 0
        %5214 = vmatprep.subr.bf16.mxu0 0
        %5215 = vmatpush1.bf16.msra.mxu0 0
        %5216 = vmatprep.subr.bf16.mxu0 0
        %5217 = vmatpush1.bf16.msra.mxu0 0
        %5218 = vmatprep.subr.bf16.mxu0 0
        %5219 = vmatpush1.bf16.msra.mxu0 0
        %5220 = vmatprep.subr.bf16.mxu0 0
        %5221 = vmatpush1.bf16.msra.mxu0 0
        %5222 = vmatprep.subr.bf16.mxu0 0
        %5223 = vmatpush1.bf16.msra.mxu0 0
        %5224 = vmatprep.subr.bf16.mxu0 0
        %5225 = vmatpush1.bf16.msra.mxu0 0
        %5226 = vmatprep.subr.bf16.mxu0 0
        %5227 = vmatpush1.bf16.msra.mxu0 0
        %5228 = vmatprep.mubr.bf16.mxu0 0
        %5229 = vmatmul.mubr.bf16.gmra.mrb[0].mxu0 %v5146
        %v5230 = vpop.f32.mrb[0].mxu0
        %v5231 = vadd.f32 0.0, %v5230
        %v5232 = vpop.f32.mrb[0].mxu0
        %v5233 = vpop.f32.mrb[0].mxu0
        %v5234 = vadd.f32 0.0, %v5233
        %v5235 = vpop.f32.mrb[0].mxu0
        %5236 = vmatprep.mubr.bf16.mxu0 0
        %5237 = vmatmul.mubr.bf16.gmra.mrb[0].mxu0 %v5149
        %v5238 = vpop.f32.mrb[0].mxu0
        %v5239 = vadd.f32 0.0, %v5238
        %v5240 = vpop.f32.mrb[0].mxu0
        %v5241 = vpop.f32.mrb[0].mxu0
        %v5242 = vadd.f32 0.0, %v5241
        %v5243 = vpop.f32.mrb[0].mxu0
        %5244 = vmatprep.mubr.bf16.mxu0 0
        %5245 = vmatmul.mubr.bf16.gmra.mrb[0].mxu0 %v5152
        %v5246 = vpop.f32.mrb[0].mxu0
        %v5247 = vadd.f32 0.0, %v5246
        %v5248 = vpop.f32.mrb[0].mxu0
        %v5249 = vpop.f32.mrb[0].mxu0
        %v5250 = vadd.f32 0.0, %v5249
        %v5251 = vpop.f32.mrb[0].mxu0
        %5252 = vmatprep.mubr.bf16.mxu0 0
        %5253 = vmatmul.mubr.bf16.gmra.mrb[0].mxu0 %v5155
        %v5254 = vpop.f32.mrb[0].mxu0
        %v5255 = vadd.f32 0.0, %v5254
        %v5256 = vpop.f32.mrb[0].mxu0
        %v5257 = vpop.f32.mrb[0].mxu0
        %v5258 = vadd.f32 0.0, %v5257
        %v5259 = vpop.f32.mrb[0].mxu0
        %5260 = vmatprep.mubr.bf16.mxu0 0
        %5261 = vmatmul.mubr.bf16.gmra.mrb[0].mxu0 %v5158
        %v5262 = vpop.f32.mrb[0].mxu0
        %v5263 = vadd.f32 0.0, %v5262
        %v5264 = vpop.f32.mrb[0].mxu0
        %v5265 = vpop.f32.mrb[0].mxu0
        %v5266 = vadd.f32 0.0, %v5265
        %v5267 = vpop.f32.mrb[0].mxu0
        %5268 = vmatprep.mubr.bf16.mxu0 0
        %5269 = vmatmul.mubr.bf16.gmra.mrb[0].mxu0 %v5161
        %v5270 = vpop.f32.mrb[0].mxu0
        %v5271 = vadd.f32 0.0, %v5270
        %v5272 = vpop.f32.mrb[0].mxu0
        %v5273 = vpop.f32.mrb[0].mxu0
        %v5274 = vadd.f32 0.0, %v5273
        %v5275 = vpop.f32.mrb[0].mxu0
        %5276 = vmatprep.mubr.bf16.mxu0 0
        %5277 = vmatmul.mubr.bf16.gmra.mrb[0].mxu0 %v5164
        %v5278 = vpop.f32.mrb[0].mxu0
        %v5279 = vadd.f32 0.0, %v5278
        %v5280 = vpop.f32.mrb[0].mxu0
        %v5281 = vpop.f32.mrb[0].mxu0
        %v5282 = vadd.f32 0.0, %v5281
        %v5283 = vpop.f32.mrb[0].mxu0
        %5284 = vmatprep.mubr.bf16.mxu0 0
        %5285 = vmatmul.mubr.bf16.gmra.mrb[0].mxu0 %v5167
        %v5286 = vpop.f32.mrb[0].mxu0
        %v5287 = vadd.f32 0.0, %v5286
        %v5288 = vpop.f32.mrb[0].mxu0
        %v5289 = vpop.f32.mrb[0].mxu0
        %v5290 = vadd.f32 0.0, %v5289
        %v5291 = vpop.f32.mrb[0].mxu0
        %5292 = vmatprep.mubr.bf16.mxu0 0
        %5293 = vmatmul.mubr.bf16.gmra.mrb[0].mxu0 %v5170
        %v5294 = vpop.f32.mrb[0].mxu0
        %v5295 = vadd.f32 0.0, %v5294
        %v5296 = vpop.f32.mrb[0].mxu0
        %v5297 = vpop.f32.mrb[0].mxu0
        %v5298 = vadd.f32 0.0, %v5297
        %v5299 = vpop.f32.mrb[0].mxu0
        %5300 = vmatprep.mubr.bf16.mxu0 0
        %5301 = vmatmul.mubr.bf16.gmra.mrb[0].mxu0 %v5173
        %v5302 = vpop.f32.mrb[0].mxu0
        %v5303 = vadd.f32 0.0, %v5302
        %v5304 = vpop.f32.mrb[0].mxu0
        %v5305 = vpop.f32.mrb[0].mxu0
        %v5306 = vadd.f32 0.0, %v5305
        %v5307 = vpop.f32.mrb[0].mxu0
        %5308 = vmatprep.mubr.bf16.mxu0 0
        %5309 = vmatmul.mubr.bf16.gmra.mrb[0].mxu0 %v5176
        %v5310 = vpop.f32.mrb[0].mxu0
        %v5311 = vadd.f32 0.0, %v5310
        %v5312 = vpop.f32.mrb[0].mxu0
        %v5313 = vpop.f32.mrb[0].mxu0
        %v5314 = vadd.f32 0.0, %v5313
        %v5315 = vpop.f32.mrb[0].mxu0
        %5316 = vmatprep.mubr.bf16.mxu0 0
        %5317 = vmatmul.mubr.bf16.gmra.mrb[0].mxu0 %v5179
        %v5318 = vpop.f32.mrb[0].mxu0
        %v5319 = vadd.f32 0.0, %v5318
        %v5320 = vpop.f32.mrb[0].mxu0
        %v5321 = vpop.f32.mrb[0].mxu0
        %v5322 = vadd.f32 0.0, %v5321
        %v5323 = vpop.f32.mrb[0].mxu0
        %5324 = vmatprep.mubr.bf16.mxu0 0
        %5325 = vmatmul.mubr.bf16.gmra.mrb[0].mxu0 %v5182
        %v5326 = vpop.f32.mrb[0].mxu0
        %v5327 = vadd.f32 0.0, %v5326
        %v5328 = vpop.f32.mrb[0].mxu0
        %v5329 = vpop.f32.mrb[0].mxu0
        %v5330 = vadd.f32 0.0, %v5329
        %v5331 = vpop.f32.mrb[0].mxu0
        %5332 = vmatprep.mubr.bf16.mxu0 0
        %5333 = vmatmul.mubr.bf16.gmra.mrb[0].mxu0 %v5185
        %v5334 = vpop.f32.mrb[0].mxu0
        %v5335 = vadd.f32 0.0, %v5334
        %v5336 = vpop.f32.mrb[0].mxu0
        %v5337 = vpop.f32.mrb[0].mxu0
        %v5338 = vadd.f32 0.0, %v5337
        %v5339 = vpop.f32.mrb[0].mxu0
        %5340 = vmatprep.mubr.bf16.mxu0 0
        %5341 = vmatmul.mubr.bf16.gmra.mrb[0].mxu0 %v5188
        %v5342 = vpop.f32.mrb[0].mxu0
        %v5343 = vadd.f32 0.0, %v5342
        %v5344 = vpop.f32.mrb[0].mxu0
        %v5345 = vpop.f32.mrb[0].mxu0
        %v5346 = vadd.f32 0.0, %v5345
        %v5347 = vpop.f32.mrb[0].mxu0
        %5348 = vmatprep.mubr.bf16.mxu0 0
        %5349 = vmatmul.mubr.bf16.gmra.mrb[0].mxu0 %v5191
        %v5350 = vpop.f32.mrb[0].mxu0
        %v5351 = vadd.f32 0.0, %v5350
        %v5352 = vpop.f32.mrb[0].mxu0
        %v5353 = vpop.f32.mrb[0].mxu0
        %v5354 = vadd.f32 0.0, %v5353
        %v5355 = vpop.f32.mrb[0].mxu0
        %5356 = vdwg.mxu0
        %v5357 = vadd.f32 %v5062, %v5231
        %v5358 = vadd.f32 %v5063, %v5234
        %v5359 = vadd.f32 %v5064, %v5239
        %v5360 = vadd.f32 %v5065, %v5242
        %v5361 = vadd.f32 %v5066, %v5247
        %v5362 = vadd.f32 %v5067, %v5250
        %v5363 = vadd.f32 %v5068, %v5255
        %v5364 = vadd.f32 %v5069, %v5258
        %v5365 = vadd.f32 %v5070, %v5263
        %v5366 = vadd.f32 %v5071, %v5266
        %v5367 = vadd.f32 %v5072, %v5271
        %v5368 = vadd.f32 %v5073, %v5274
        %v5369 = vadd.f32 %v5074, %v5279
        %v5370 = vadd.f32 %v5075, %v5282
        %v5371 = vadd.f32 %v5076, %v5287
        %v5372 = vadd.f32 %v5077, %v5290
        %v5373 = vadd.f32 %v5078, %v5295
        %v5374 = vadd.f32 %v5079, %v5298
        %v5375 = vadd.f32 %v5080, %v5303
        %v5376 = vadd.f32 %v5081, %v5306
        %v5377 = vadd.f32 %v5082, %v5311
        %v5378 = vadd.f32 %v5083, %v5314
        %v5379 = vadd.f32 %v5084, %v5319
        %v5380 = vadd.f32 %v5085, %v5322
        %v5381 = vadd.f32 %v5086, %v5327
        %v5382 = vadd.f32 %v5087, %v5330
        %v5383 = vadd.f32 %v5088, %v5335
        %v5384 = vadd.f32 %v5089, %v5338
        %v5385 = vadd.f32 %v5090, %v5343
        %v5386 = vadd.f32 %v5091, %v5346
        %v5387 = vadd.f32 %v5092, %v5351
        %v5388 = vadd.f32 %v5093, %v5354
        %v5389 = vld [vmem:[%s5094 + $0x8] sm:$0xff]
        %v5390 = vld [vmem:[%s5094 + $0x10] sm:$0xff]
        %v5391 = vld [vmem:[%s5094 + $0x28] sm:$0xff]
        %v5392 = vld [vmem:[%s5094 + $0x30] sm:$0xff]
        %v5393 = vld [vmem:[%s5094 + $0x48] sm:$0xff]
        %v5394 = vld [vmem:[%s5094 + $0x50] sm:$0xff]
        %v5395 = vld [vmem:[%s5094 + $0x68] sm:$0xff]
        %v5396 = vld [vmem:[%s5094 + $0x70] sm:$0xff]
        %v5397 = vld [vmem:[%s5094 + $0x88] sm:$0xff]
        %v5398 = vld [vmem:[%s5094 + $0x90] sm:$0xff]
        %v5399 = vld [vmem:[%s5094 + $0xa8] sm:$0xff]
        %v5400 = vld [vmem:[%s5094 + $0xb0] sm:$0xff]
        %v5401 = vld [vmem:[%s5094 + $0xc8] sm:$0xff]
        %v5402 = vld [vmem:[%s5094 + $0xd0] sm:$0xff]
        %v5403 = vld [vmem:[%s5094 + $0xe8] sm:$0xff]
        %v5404 = vld [vmem:[%s5094 + $0xf0] sm:$0xff]
        %v5405 = vld [vmem:[%s5094 + $0x108] sm:$0xff]
        %v5406 = vld [vmem:[%s5094 + $0x110] sm:$0xff]
        %v5407 = vld [vmem:[%s5094 + $0x128] sm:$0xff]
        %v5408 = vld [vmem:[%s5094 + $0x130] sm:$0xff]
        %v5409 = vld [vmem:[%s5094 + $0x148] sm:$0xff]
        %v5410 = vld [vmem:[%s5094 + $0x150] sm:$0xff]
        %v5411 = vld [vmem:[%s5094 + $0x168] sm:$0xff]
        %v5412 = vld [vmem:[%s5094 + $0x170] sm:$0xff]
        %v5413 = vld [vmem:[%s5094 + $0x188] sm:$0xff]
        %v5414 = vld [vmem:[%s5094 + $0x190] sm:$0xff]
        %v5415 = vld [vmem:[%s5094 + $0x1a8] sm:$0xff]
        %v5416 = vld [vmem:[%s5094 + $0x1b0] sm:$0xff]
        %v5417 = vld [vmem:[%s5094 + $0x1c8] sm:$0xff]
        %v5418 = vld [vmem:[%s5094 + $0x1d0] sm:$0xff]
        %v5419 = vld [vmem:[%s5094 + $0x1e8] sm:$0xff]
        %v5420 = vld [vmem:[%s5094 + $0x1f0] sm:$0xff]
        %v5421 = vpack.c.bf16 %v5390, %v5389
        %v5422 = vpack.c.bf16 %v5392, %v5391
        %v5423 = vpack.c.bf16 %v5394, %v5393
        %v5424 = vpack.c.bf16 %v5396, %v5395
        %v5425 = vpack.c.bf16 %v5398, %v5397
        %v5426 = vpack.c.bf16 %v5400, %v5399
        %v5427 = vpack.c.bf16 %v5402, %v5401
        %v5428 = vpack.c.bf16 %v5404, %v5403
        %v5429 = vpack.c.bf16 %v5406, %v5405
        %v5430 = vpack.c.bf16 %v5408, %v5407
        %v5431 = vpack.c.bf16 %v5410, %v5409
        %v5432 = vpack.c.bf16 %v5412, %v5411
        %v5433 = vpack.c.bf16 %v5414, %v5413
        %v5434 = vpack.c.bf16 %v5416, %v5415
        %v5435 = vpack.c.bf16 %v5418, %v5417
        %v5436 = vpack.c.bf16 %v5420, %v5419
        %s5437 = scalar_lea.vmem %s3, 28
        %v5438 = vld [vmem:[%s5437] sm:$0xf]
        %v5440 = vsel %vm3288, %v5421, 0
        %v5443 = vsel %vm3288, %v5422, 0
        %v5446 = vsel %vm3288, %v5423, 0
        %v5449 = vsel %vm3288, %v5424, 0
        %v5452 = vsel %vm3288, %v5425, 0
        %v5455 = vsel %vm3288, %v5426, 0
        %v5458 = vsel %vm3288, %v5427, 0
        %v5461 = vsel %vm3288, %v5428, 0
        %v5464 = vsel %vm3288, %v5429, 0
        %v5467 = vsel %vm3288, %v5430, 0
        %v5470 = vsel %vm3288, %v5431, 0
        %v5473 = vsel %vm3288, %v5432, 0
        %v5476 = vsel %vm3288, %v5433, 0
        %v5479 = vsel %vm3288, %v5434, 0
        %v5482 = vsel %vm3288, %v5435, 0
        %v5485 = vsel %vm3288, %v5436, 0
        %v5488 = vsel %vm3541, %v5438, 0
        %5490 = vmatprep.subr.bf16.mxu0 0
        %5491 = vmatpush1.bf16.msra.mxu0 %v5488
        %5492 = vmatprep.subr.bf16.mxu0 0
        %5493 = vmatpush1.bf16.msra.mxu0 0
        %5494 = vmatprep.subr.bf16.mxu0 0
        %5495 = vmatpush1.bf16.msra.mxu0 0
        %5496 = vmatprep.subr.bf16.mxu0 0
        %5497 = vmatpush1.bf16.msra.mxu0 0
        %5498 = vmatprep.subr.bf16.mxu0 0
        %5499 = vmatpush1.bf16.msra.mxu0 0
        %5500 = vmatprep.subr.bf16.mxu0 0
        %5501 = vmatpush1.bf16.msra.mxu0 0
        %5502 = vmatprep.subr.bf16.mxu0 0
        %5503 = vmatpush1.bf16.msra.mxu0 0
        %5504 = vmatprep.subr.bf16.mxu0 0
        %5505 = vmatpush1.bf16.msra.mxu0 0
        %5506 = vmatprep.subr.bf16.mxu0 0
        %5507 = vmatpush1.bf16.msra.mxu0 0
        %5508 = vmatprep.subr.bf16.mxu0 0
        %5509 = vmatpush1.bf16.msra.mxu0 0
        %5510 = vmatprep.subr.bf16.mxu0 0
        %5511 = vmatpush1.bf16.msra.mxu0 0
        %5512 = vmatprep.subr.bf16.mxu0 0
        %5513 = vmatpush1.bf16.msra.mxu0 0
        %5514 = vmatprep.subr.bf16.mxu0 0
        %5515 = vmatpush1.bf16.msra.mxu0 0
        %5516 = vmatprep.subr.bf16.mxu0 0
        %5517 = vmatpush1.bf16.msra.mxu0 0
        %5518 = vmatprep.subr.bf16.mxu0 0
        %5519 = vmatpush1.bf16.msra.mxu0 0
        %5520 = vmatprep.subr.bf16.mxu0 0
        %5521 = vmatpush1.bf16.msra.mxu0 0
        %5522 = vmatprep.mubr.bf16.mxu0 0
        %5523 = vmatmul.mubr.bf16.gmra.mrb[0].mxu0 %v5440
        %v5524 = vpop.f32.mrb[0].mxu0
        %v5525 = vadd.f32 0.0, %v5524
        %v5526 = vpop.f32.mrb[0].mxu0
        %v5527 = vpop.f32.mrb[0].mxu0
        %v5528 = vadd.f32 0.0, %v5527
        %v5529 = vpop.f32.mrb[0].mxu0
        %5530 = vmatprep.mubr.bf16.mxu0 0
        %5531 = vmatmul.mubr.bf16.gmra.mrb[0].mxu0 %v5443
        %v5532 = vpop.f32.mrb[0].mxu0
        %v5533 = vadd.f32 0.0, %v5532
        %v5534 = vpop.f32.mrb[0].mxu0
        %v5535 = vpop.f32.mrb[0].mxu0
        %v5536 = vadd.f32 0.0, %v5535
        %v5537 = vpop.f32.mrb[0].mxu0
        %5538 = vmatprep.mubr.bf16.mxu0 0
        %5539 = vmatmul.mubr.bf16.gmra.mrb[0].mxu0 %v5446
        %v5540 = vpop.f32.mrb[0].mxu0
        %v5541 = vadd.f32 0.0, %v5540
        %v5542 = vpop.f32.mrb[0].mxu0
        %v5543 = vpop.f32.mrb[0].mxu0
        %v5544 = vadd.f32 0.0, %v5543
        %v5545 = vpop.f32.mrb[0].mxu0
        %5546 = vmatprep.mubr.bf16.mxu0 0
        %5547 = vmatmul.mubr.bf16.gmra.mrb[0].mxu0 %v5449
        %v5548 = vpop.f32.mrb[0].mxu0
        %v5549 = vadd.f32 0.0, %v5548
        %v5550 = vpop.f32.mrb[0].mxu0
        %v5551 = vpop.f32.mrb[0].mxu0
        %v5552 = vadd.f32 0.0, %v5551
        %v5553 = vpop.f32.mrb[0].mxu0
        %5554 = vmatprep.mubr.bf16.mxu0 0
        %5555 = vmatmul.mubr.bf16.gmra.mrb[0].mxu0 %v5452
        %v5556 = vpop.f32.mrb[0].mxu0
        %v5557 = vadd.f32 0.0, %v5556
        %v5558 = vpop.f32.mrb[0].mxu0
        %v5559 = vpop.f32.mrb[0].mxu0
        %v5560 = vadd.f32 0.0, %v5559
        %v5561 = vpop.f32.mrb[0].mxu0
        %5562 = vmatprep.mubr.bf16.mxu0 0
        %5563 = vmatmul.mubr.bf16.gmra.mrb[0].mxu0 %v5455
        %v5564 = vpop.f32.mrb[0].mxu0
        %v5565 = vadd.f32 0.0, %v5564
        %v5566 = vpop.f32.mrb[0].mxu0
        %v5567 = vpop.f32.mrb[0].mxu0
        %v5568 = vadd.f32 0.0, %v5567
        %v5569 = vpop.f32.mrb[0].mxu0
        %5570 = vmatprep.mubr.bf16.mxu0 0
        %5571 = vmatmul.mubr.bf16.gmra.mrb[0].mxu0 %v5458
        %v5572 = vpop.f32.mrb[0].mxu0
        %v5573 = vadd.f32 0.0, %v5572
        %v5574 = vpop.f32.mrb[0].mxu0
        %v5575 = vpop.f32.mrb[0].mxu0
        %v5576 = vadd.f32 0.0, %v5575
        %v5577 = vpop.f32.mrb[0].mxu0
        %5578 = vmatprep.mubr.bf16.mxu0 0
        %5579 = vmatmul.mubr.bf16.gmra.mrb[0].mxu0 %v5461
        %v5580 = vpop.f32.mrb[0].mxu0
        %v5581 = vadd.f32 0.0, %v5580
        %v5582 = vpop.f32.mrb[0].mxu0
        %v5583 = vpop.f32.mrb[0].mxu0
        %v5584 = vadd.f32 0.0, %v5583
        %v5585 = vpop.f32.mrb[0].mxu0
        %5586 = vmatprep.mubr.bf16.mxu0 0
        %5587 = vmatmul.mubr.bf16.gmra.mrb[0].mxu0 %v5464
        %v5588 = vpop.f32.mrb[0].mxu0
        %v5589 = vadd.f32 0.0, %v5588
        %v5590 = vpop.f32.mrb[0].mxu0
        %v5591 = vpop.f32.mrb[0].mxu0
        %v5592 = vadd.f32 0.0, %v5591
        %v5593 = vpop.f32.mrb[0].mxu0
        %5594 = vmatprep.mubr.bf16.mxu0 0
        %5595 = vmatmul.mubr.bf16.gmra.mrb[0].mxu0 %v5467
        %v5596 = vpop.f32.mrb[0].mxu0
        %v5597 = vadd.f32 0.0, %v5596
        %v5598 = vpop.f32.mrb[0].mxu0
        %v5599 = vpop.f32.mrb[0].mxu0
        %v5600 = vadd.f32 0.0, %v5599
        %v5601 = vpop.f32.mrb[0].mxu0
        %5602 = vmatprep.mubr.bf16.mxu0 0
        %5603 = vmatmul.mubr.bf16.gmra.mrb[0].mxu0 %v5470
        %v5604 = vpop.f32.mrb[0].mxu0
        %v5605 = vadd.f32 0.0, %v5604
        %v5606 = vpop.f32.mrb[0].mxu0
        %v5607 = vpop.f32.mrb[0].mxu0
        %v5608 = vadd.f32 0.0, %v5607
        %v5609 = vpop.f32.mrb[0].mxu0
        %5610 = vmatprep.mubr.bf16.mxu0 0
        %5611 = vmatmul.mubr.bf16.gmra.mrb[0].mxu0 %v5473
        %v5612 = vpop.f32.mrb[0].mxu0
        %v5613 = vadd.f32 0.0, %v5612
        %v5614 = vpop.f32.mrb[0].mxu0
        %v5615 = vpop.f32.mrb[0].mxu0
        %v5616 = vadd.f32 0.0, %v5615
        %v5617 = vpop.f32.mrb[0].mxu0
        %5618 = vmatprep.mubr.bf16.mxu0 0
        %5619 = vmatmul.mubr.bf16.gmra.mrb[0].mxu0 %v5476
        %v5620 = vpop.f32.mrb[0].mxu0
        %v5621 = vadd.f32 0.0, %v5620
        %v5622 = vpop.f32.mrb[0].mxu0
        %v5623 = vpop.f32.mrb[0].mxu0
        %v5624 = vadd.f32 0.0, %v5623
        %v5625 = vpop.f32.mrb[0].mxu0
        %5626 = vmatprep.mubr.bf16.mxu0 0
        %5627 = vmatmul.mubr.bf16.gmra.mrb[0].mxu0 %v5479
        %v5628 = vpop.f32.mrb[0].mxu0
        %v5629 = vadd.f32 0.0, %v5628
        %v5630 = vpop.f32.mrb[0].mxu0
        %v5631 = vpop.f32.mrb[0].mxu0
        %v5632 = vadd.f32 0.0, %v5631
        %v5633 = vpop.f32.mrb[0].mxu0
        %5634 = vmatprep.mubr.bf16.mxu0 0
        %5635 = vmatmul.mubr.bf16.gmra.mrb[0].mxu0 %v5482
        %v5636 = vpop.f32.mrb[0].mxu0
        %v5637 = vadd.f32 0.0, %v5636
        %v5638 = vpop.f32.mrb[0].mxu0
        %v5639 = vpop.f32.mrb[0].mxu0
        %v5640 = vadd.f32 0.0, %v5639
        %v5641 = vpop.f32.mrb[0].mxu0
        %5642 = vmatprep.mubr.bf16.mxu0 0
        %5643 = vmatmul.mubr.bf16.gmra.mrb[0].mxu0 %v5485
        %v5644 = vpop.f32.mrb[0].mxu0
        %v5645 = vadd.f32 0.0, %v5644
        %v5646 = vpop.f32.mrb[0].mxu0
        %v5647 = vpop.f32.mrb[0].mxu0
        %v5648 = vadd.f32 0.0, %v5647
        %v5649 = vpop.f32.mrb[0].mxu0
        %5650 = vdwg.mxu0
        %v5651 = vadd.f32 %v5357, %v5525
        %v5652 = vadd.f32 %v5358, %v5528
        %v5653 = vadd.f32 %v5359, %v5533
        %v5654 = vadd.f32 %v5360, %v5536
        %v5655 = vadd.f32 %v5361, %v5541
        %v5656 = vadd.f32 %v5362, %v5544
        %v5657 = vadd.f32 %v5363, %v5549
        %v5658 = vadd.f32 %v5364, %v5552
        %v5659 = vadd.f32 %v5365, %v5557
        %v5660 = vadd.f32 %v5366, %v5560
        %v5661 = vadd.f32 %v5367, %v5565
        %v5662 = vadd.f32 %v5368, %v5568
        %v5663 = vadd.f32 %v5369, %v5573
        %v5664 = vadd.f32 %v5370, %v5576
        %v5665 = vadd.f32 %v5371, %v5581
        %v5666 = vadd.f32 %v5372, %v5584
        %v5667 = vadd.f32 %v5373, %v5589
        %v5668 = vadd.f32 %v5374, %v5592
        %v5669 = vadd.f32 %v5375, %v5597
        %v5670 = vadd.f32 %v5376, %v5600
        %v5671 = vadd.f32 %v5377, %v5605
        %v5672 = vadd.f32 %v5378, %v5608
        %v5673 = vadd.f32 %v5379, %v5613
        %v5674 = vadd.f32 %v5380, %v5616
        %v5675 = vadd.f32 %v5381, %v5621
        %v5676 = vadd.f32 %v5382, %v5624
        %v5677 = vadd.f32 %v5383, %v5629
        %v5678 = vadd.f32 %v5384, %v5632
        %v5679 = vadd.f32 %v5385, %v5637
        %v5680 = vadd.f32 %v5386, %v5640
        %v5681 = vadd.f32 %v5387, %v5645
        %v5682 = vadd.f32 %v5388, %v5648
        %v5683 = vld [vmem:[%s5094 + $0x9] sm:$0xff]
        %v5684 = vld [vmem:[%s5094 + $0x11] sm:$0xff]
        %v5685 = vld [vmem:[%s5094 + $0x29] sm:$0xff]
        %v5686 = vld [vmem:[%s5094 + $0x31] sm:$0xff]
        %v5687 = vld [vmem:[%s5094 + $0x49] sm:$0xff]
        %v5688 = vld [vmem:[%s5094 + $0x51] sm:$0xff]
        %v5689 = vld [vmem:[%s5094 + $0x69] sm:$0xff]
        %v5690 = vld [vmem:[%s5094 + $0x71] sm:$0xff]
        %v5691 = vld [vmem:[%s5094 + $0x89] sm:$0xff]
        %v5692 = vld [vmem:[%s5094 + $0x91] sm:$0xff]
        %v5693 = vld [vmem:[%s5094 + $0xa9] sm:$0xff]
        %v5694 = vld [vmem:[%s5094 + $0xb1] sm:$0xff]
        %v5695 = vld [vmem:[%s5094 + $0xc9] sm:$0xff]
        %v5696 = vld [vmem:[%s5094 + $0xd1] sm:$0xff]
        %v5697 = vld [vmem:[%s5094 + $0xe9] sm:$0xff]
        %v5698 = vld [vmem:[%s5094 + $0xf1] sm:$0xff]
        %v5699 = vld [vmem:[%s5094 + $0x109] sm:$0xff]
        %v5700 = vld [vmem:[%s5094 + $0x111] sm:$0xff]
        %v5701 = vld [vmem:[%s5094 + $0x129] sm:$0xff]
        %v5702 = vld [vmem:[%s5094 + $0x131] sm:$0xff]
        %v5703 = vld [vmem:[%s5094 + $0x149] sm:$0xff]
        %v5704 = vld [vmem:[%s5094 + $0x151] sm:$0xff]
        %v5705 = vld [vmem:[%s5094 + $0x169] sm:$0xff]
        %v5706 = vld [vmem:[%s5094 + $0x171] sm:$0xff]
        %v5707 = vld [vmem:[%s5094 + $0x189] sm:$0xff]
        %v5708 = vld [vmem:[%s5094 + $0x191] sm:$0xff]
        %v5709 = vld [vmem:[%s5094 + $0x1a9] sm:$0xff]
        %v5710 = vld [vmem:[%s5094 + $0x1b1] sm:$0xff]
        %v5711 = vld [vmem:[%s5094 + $0x1c9] sm:$0xff]
        %v5712 = vld [vmem:[%s5094 + $0x1d1] sm:$0xff]
        %v5713 = vld [vmem:[%s5094 + $0x1e9] sm:$0xff]
        %v5714 = vld [vmem:[%s5094 + $0x1f1] sm:$0xff]
        %v5715 = vpack.c.bf16 %v5684, %v5683
        %v5716 = vpack.c.bf16 %v5686, %v5685
        %v5717 = vpack.c.bf16 %v5688, %v5687
        %v5718 = vpack.c.bf16 %v5690, %v5689
        %v5719 = vpack.c.bf16 %v5692, %v5691
        %v5720 = vpack.c.bf16 %v5694, %v5693
        %v5721 = vpack.c.bf16 %v5696, %v5695
        %v5722 = vpack.c.bf16 %v5698, %v5697
        %v5723 = vpack.c.bf16 %v5700, %v5699
        %v5724 = vpack.c.bf16 %v5702, %v5701
        %v5725 = vpack.c.bf16 %v5704, %v5703
        %v5726 = vpack.c.bf16 %v5706, %v5705
        %v5727 = vpack.c.bf16 %v5708, %v5707
        %v5728 = vpack.c.bf16 %v5710, %v5709
        %v5729 = vpack.c.bf16 %v5712, %v5711
        %v5730 = vpack.c.bf16 %v5714, %v5713
        %s5731 = scalar_lea.vmem %s3, 32
        %v5732 = vld [vmem:[%s5731] sm:$0xf]
        %v5734 = vsel %vm3288, %v5715, 0
        %v5737 = vsel %vm3288, %v5716, 0
        %v5740 = vsel %vm3288, %v5717, 0
        %v5743 = vsel %vm3288, %v5718, 0
        %v5746 = vsel %vm3288, %v5719, 0
        %v5749 = vsel %vm3288, %v5720, 0
        %v5752 = vsel %vm3288, %v5721, 0
        %v5755 = vsel %vm3288, %v5722, 0
        %v5758 = vsel %vm3288, %v5723, 0
        %v5761 = vsel %vm3288, %v5724, 0
        %v5764 = vsel %vm3288, %v5725, 0
        %v5767 = vsel %vm3288, %v5726, 0
        %v5770 = vsel %vm3288, %v5727, 0
        %v5773 = vsel %vm3288, %v5728, 0
        %v5776 = vsel %vm3288, %v5729, 0
        %v5779 = vsel %vm3288, %v5730, 0
        %v5782 = vsel %vm3541, %v5732, 0
        %5784 = vmatprep.subr.bf16.mxu0 0
        %5785 = vmatpush1.bf16.msra.mxu0 %v5782
        %5786 = vmatprep.subr.bf16.mxu0 0
        %5787 = vmatpush1.bf16.msra.mxu0 0
        %5788 = vmatprep.subr.bf16.mxu0 0
        %5789 = vmatpush1.bf16.msra.mxu0 0
        %5790 = vmatprep.subr.bf16.mxu0 0
        %5791 = vmatpush1.bf16.msra.mxu0 0
        %5792 = vmatprep.subr.bf16.mxu0 0
        %5793 = vmatpush1.bf16.msra.mxu0 0
        %5794 = vmatprep.subr.bf16.mxu0 0
        %5795 = vmatpush1.bf16.msra.mxu0 0
        %5796 = vmatprep.subr.bf16.mxu0 0
        %5797 = vmatpush1.bf16.msra.mxu0 0
        %5798 = vmatprep.subr.bf16.mxu0 0
        %5799 = vmatpush1.bf16.msra.mxu0 0
        %5800 = vmatprep.subr.bf16.mxu0 0
        %5801 = vmatpush1.bf16.msra.mxu0 0
        %5802 = vmatprep.subr.bf16.mxu0 0
        %5803 = vmatpush1.bf16.msra.mxu0 0
        %5804 = vmatprep.subr.bf16.mxu0 0
        %5805 = vmatpush1.bf16.msra.mxu0 0
        %5806 = vmatprep.subr.bf16.mxu0 0
        %5807 = vmatpush1.bf16.msra.mxu0 0
        %5808 = vmatprep.subr.bf16.mxu0 0
        %5809 = vmatpush1.bf16.msra.mxu0 0
        %5810 = vmatprep.subr.bf16.mxu0 0
        %5811 = vmatpush1.bf16.msra.mxu0 0
        %5812 = vmatprep.subr.bf16.mxu0 0
        %5813 = vmatpush1.bf16.msra.mxu0 0
        %5814 = vmatprep.subr.bf16.mxu0 0
        %5815 = vmatpush1.bf16.msra.mxu0 0
        %5816 = vmatprep.mubr.bf16.mxu0 0
        %5817 = vmatmul.mubr.bf16.gmra.mrb[0].mxu0 %v5734
        %v5818 = vpop.f32.mrb[0].mxu0
        %v5819 = vadd.f32 0.0, %v5818
        %v5820 = vpop.f32.mrb[0].mxu0
        %v5821 = vpop.f32.mrb[0].mxu0
        %v5822 = vadd.f32 0.0, %v5821
        %v5823 = vpop.f32.mrb[0].mxu0
        %5824 = vmatprep.mubr.bf16.mxu0 0
        %5825 = vmatmul.mubr.bf16.gmra.mrb[0].mxu0 %v5737
        %v5826 = vpop.f32.mrb[0].mxu0
        %v5827 = vadd.f32 0.0, %v5826
        %v5828 = vpop.f32.mrb[0].mxu0
        %v5829 = vpop.f32.mrb[0].mxu0
        %v5830 = vadd.f32 0.0, %v5829
        %v5831 = vpop.f32.mrb[0].mxu0
        %5832 = vmatprep.mubr.bf16.mxu0 0
        %5833 = vmatmul.mubr.bf16.gmra.mrb[0].mxu0 %v5740
        %v5834 = vpop.f32.mrb[0].mxu0
        %v5835 = vadd.f32 0.0, %v5834
        %v5836 = vpop.f32.mrb[0].mxu0
        %v5837 = vpop.f32.mrb[0].mxu0
        %v5838 = vadd.f32 0.0, %v5837
        %v5839 = vpop.f32.mrb[0].mxu0
        %5840 = vmatprep.mubr.bf16.mxu0 0
        %5841 = vmatmul.mubr.bf16.gmra.mrb[0].mxu0 %v5743
        %v5842 = vpop.f32.mrb[0].mxu0
        %v5843 = vadd.f32 0.0, %v5842
        %v5844 = vpop.f32.mrb[0].mxu0
        %v5845 = vpop.f32.mrb[0].mxu0
        %v5846 = vadd.f32 0.0, %v5845
        %v5847 = vpop.f32.mrb[0].mxu0
        %5848 = vmatprep.mubr.bf16.mxu0 0
        %5849 = vmatmul.mubr.bf16.gmra.mrb[0].mxu0 %v5746
        %v5850 = vpop.f32.mrb[0].mxu0
        %v5851 = vadd.f32 0.0, %v5850
        %v5852 = vpop.f32.mrb[0].mxu0
        %v5853 = vpop.f32.mrb[0].mxu0
        %v5854 = vadd.f32 0.0, %v5853
        %v5855 = vpop.f32.mrb[0].mxu0
        %5856 = vmatprep.mubr.bf16.mxu0 0
        %5857 = vmatmul.mubr.bf16.gmra.mrb[0].mxu0 %v5749
        %v5858 = vpop.f32.mrb[0].mxu0
        %v5859 = vadd.f32 0.0, %v5858
        %v5860 = vpop.f32.mrb[0].mxu0
        %v5861 = vpop.f32.mrb[0].mxu0
        %v5862 = vadd.f32 0.0, %v5861
        %v5863 = vpop.f32.mrb[0].mxu0
        %5864 = vmatprep.mubr.bf16.mxu0 0
        %5865 = vmatmul.mubr.bf16.gmra.mrb[0].mxu0 %v5752
        %v5866 = vpop.f32.mrb[0].mxu0
        %v5867 = vadd.f32 0.0, %v5866
        %v5868 = vpop.f32.mrb[0].mxu0
        %v5869 = vpop.f32.mrb[0].mxu0
        %v5870 = vadd.f32 0.0, %v5869
        %v5871 = vpop.f32.mrb[0].mxu0
        %5872 = vmatprep.mubr.bf16.mxu0 0
        %5873 = vmatmul.mubr.bf16.gmra.mrb[0].mxu0 %v5755
        %v5874 = vpop.f32.mrb[0].mxu0
        %v5875 = vadd.f32 0.0, %v5874
        %v5876 = vpop.f32.mrb[0].mxu0
        %v5877 = vpop.f32.mrb[0].mxu0
        %v5878 = vadd.f32 0.0, %v5877
        %v5879 = vpop.f32.mrb[0].mxu0
        %5880 = vmatprep.mubr.bf16.mxu0 0
        %5881 = vmatmul.mubr.bf16.gmra.mrb[0].mxu0 %v5758
        %v5882 = vpop.f32.mrb[0].mxu0
        %v5883 = vadd.f32 0.0, %v5882
        %v5884 = vpop.f32.mrb[0].mxu0
        %v5885 = vpop.f32.mrb[0].mxu0
        %v5886 = vadd.f32 0.0, %v5885
        %v5887 = vpop.f32.mrb[0].mxu0
        %5888 = vmatprep.mubr.bf16.mxu0 0
        %5889 = vmatmul.mubr.bf16.gmra.mrb[0].mxu0 %v5761
        %v5890 = vpop.f32.mrb[0].mxu0
        %v5891 = vadd.f32 0.0, %v5890
        %v5892 = vpop.f32.mrb[0].mxu0
        %v5893 = vpop.f32.mrb[0].mxu0
        %v5894 = vadd.f32 0.0, %v5893
        %v5895 = vpop.f32.mrb[0].mxu0
        %5896 = vmatprep.mubr.bf16.mxu0 0
        %5897 = vmatmul.mubr.bf16.gmra.mrb[0].mxu0 %v5764
        %v5898 = vpop.f32.mrb[0].mxu0
        %v5899 = vadd.f32 0.0, %v5898
        %v5900 = vpop.f32.mrb[0].mxu0
        %v5901 = vpop.f32.mrb[0].mxu0
        %v5902 = vadd.f32 0.0, %v5901
        %v5903 = vpop.f32.mrb[0].mxu0
        %5904 = vmatprep.mubr.bf16.mxu0 0
        %5905 = vmatmul.mubr.bf16.gmra.mrb[0].mxu0 %v5767
        %v5906 = vpop.f32.mrb[0].mxu0
        %v5907 = vadd.f32 0.0, %v5906
        %v5908 = vpop.f32.mrb[0].mxu0
        %v5909 = vpop.f32.mrb[0].mxu0
        %v5910 = vadd.f32 0.0, %v5909
        %v5911 = vpop.f32.mrb[0].mxu0
        %5912 = vmatprep.mubr.bf16.mxu0 0
        %5913 = vmatmul.mubr.bf16.gmra.mrb[0].mxu0 %v5770
        %v5914 = vpop.f32.mrb[0].mxu0
        %v5915 = vadd.f32 0.0, %v5914
        %v5916 = vpop.f32.mrb[0].mxu0
        %v5917 = vpop.f32.mrb[0].mxu0
        %v5918 = vadd.f32 0.0, %v5917
        %v5919 = vpop.f32.mrb[0].mxu0
        %5920 = vmatprep.mubr.bf16.mxu0 0
        %5921 = vmatmul.mubr.bf16.gmra.mrb[0].mxu0 %v5773
        %v5922 = vpop.f32.mrb[0].mxu0
        %v5923 = vadd.f32 0.0, %v5922
        %v5924 = vpop.f32.mrb[0].mxu0
        %v5925 = vpop.f32.mrb[0].mxu0
        %v5926 = vadd.f32 0.0, %v5925
        %v5927 = vpop.f32.mrb[0].mxu0
        %5928 = vmatprep.mubr.bf16.mxu0 0
        %5929 = vmatmul.mubr.bf16.gmra.mrb[0].mxu0 %v5776
        %v5930 = vpop.f32.mrb[0].mxu0
        %v5931 = vadd.f32 0.0, %v5930
        %v5932 = vpop.f32.mrb[0].mxu0
        %v5933 = vpop.f32.mrb[0].mxu0
        %v5934 = vadd.f32 0.0, %v5933
        %v5935 = vpop.f32.mrb[0].mxu0
        %5936 = vmatprep.mubr.bf16.mxu0 0
        %5937 = vmatmul.mubr.bf16.gmra.mrb[0].mxu0 %v5779
        %v5938 = vpop.f32.mrb[0].mxu0
        %v5939 = vadd.f32 0.0, %v5938
        %v5940 = vpop.f32.mrb[0].mxu0
        %v5941 = vpop.f32.mrb[0].mxu0
        %v5942 = vadd.f32 0.0, %v5941
        %v5943 = vpop.f32.mrb[0].mxu0
        %5944 = vdwg.mxu0
        %v5945 = vadd.f32 %v5651, %v5819
        %v5946 = vadd.f32 %v5652, %v5822
        %v5947 = vadd.f32 %v5653, %v5827
        %v5948 = vadd.f32 %v5654, %v5830
        %v5949 = vadd.f32 %v5655, %v5835
        %v5950 = vadd.f32 %v5656, %v5838
        %v5951 = vadd.f32 %v5657, %v5843
        %v5952 = vadd.f32 %v5658, %v5846
        %v5953 = vadd.f32 %v5659, %v5851
        %v5954 = vadd.f32 %v5660, %v5854
        %v5955 = vadd.f32 %v5661, %v5859
        %v5956 = vadd.f32 %v5662, %v5862
        %v5957 = vadd.f32 %v5663, %v5867
        %v5958 = vadd.f32 %v5664, %v5870
        %v5959 = vadd.f32 %v5665, %v5875
        %v5960 = vadd.f32 %v5666, %v5878
        %v5961 = vadd.f32 %v5667, %v5883
        %v5962 = vadd.f32 %v5668, %v5886
        %v5963 = vadd.f32 %v5669, %v5891
        %v5964 = vadd.f32 %v5670, %v5894
        %v5965 = vadd.f32 %v5671, %v5899
        %v5966 = vadd.f32 %v5672, %v5902
        %v5967 = vadd.f32 %v5673, %v5907
        %v5968 = vadd.f32 %v5674, %v5910
        %v5969 = vadd.f32 %v5675, %v5915
        %v5970 = vadd.f32 %v5676, %v5918
        %v5971 = vadd.f32 %v5677, %v5923
        %v5972 = vadd.f32 %v5678, %v5926
        %v5973 = vadd.f32 %v5679, %v5931
        %v5974 = vadd.f32 %v5680, %v5934
        %v5975 = vadd.f32 %v5681, %v5939
        %v5976 = vadd.f32 %v5682, %v5942
        %v5977 = vld [vmem:[%s4] sm:$0x1]
        %v5979 = vlaneseq
        %v5980 = vshrl.u32 %v5979, 7
        %v5981 = vsub.s32 0, %v5980
        %v5982 = vrot.slane %v5977, %v5981
        %v5984 = vadd.f32 %v5945, %v5982
        %v5985 = vadd.f32 %v5946, %v5982
        %v5986 = vadd.f32 %v5947, %v5982
        %v5987 = vadd.f32 %v5948, %v5982
        %v5988 = vadd.f32 %v5949, %v5982
        %v5989 = vadd.f32 %v5950, %v5982
        %v5990 = vadd.f32 %v5951, %v5982
        %v5991 = vadd.f32 %v5952, %v5982
        %v5992 = vadd.f32 %v5953, %v5982
        %v5993 = vadd.f32 %v5954, %v5982
        %v5994 = vadd.f32 %v5955, %v5982
        %v5995 = vadd.f32 %v5956, %v5982
        %v5996 = vadd.f32 %v5957, %v5982
        %v5997 = vadd.f32 %v5958, %v5982
        %v5998 = vadd.f32 %v5959, %v5982
        %v5999 = vadd.f32 %v5960, %v5982
        %v6000 = vadd.f32 %v5961, %v5982
        %v6001 = vadd.f32 %v5962, %v5982
        %v6002 = vadd.f32 %v5963, %v5982
        %v6003 = vadd.f32 %v5964, %v5982
        %v6004 = vadd.f32 %v5965, %v5982
        %v6005 = vadd.f32 %v5966, %v5982
        %v6006 = vadd.f32 %v5967, %v5982
        %v6007 = vadd.f32 %v5968, %v5982
        %v6008 = vadd.f32 %v5969, %v5982
        %v6009 = vadd.f32 %v5970, %v5982
        %v6010 = vadd.f32 %v5971, %v5982
        %v6011 = vadd.f32 %v5972, %v5982
        %v6012 = vadd.f32 %v5973, %v5982
        %v6013 = vadd.f32 %v5974, %v5982
        %v6014 = vadd.f32 %v5975, %v5982
        %v6015 = vadd.f32 %v5976, %v5982
        %v6016 = vmax.f32 %v5984, 0.0
        %v6017 = vmax.f32 %v5985, 0.0
        %v6018 = vmax.f32 %v5986, 0.0
        %v6019 = vmax.f32 %v5987, 0.0
        %v6020 = vmax.f32 %v5988, 0.0
        %v6021 = vmax.f32 %v5989, 0.0
        %v6022 = vmax.f32 %v5990, 0.0
        %v6023 = vmax.f32 %v5991, 0.0
        %v6024 = vmax.f32 %v5992, 0.0
        %v6025 = vmax.f32 %v5993, 0.0
        %v6026 = vmax.f32 %v5994, 0.0
        %v6027 = vmax.f32 %v5995, 0.0
        %v6028 = vmax.f32 %v5996, 0.0
        %v6029 = vmax.f32 %v5997, 0.0
        %v6030 = vmax.f32 %v5998, 0.0
        %v6031 = vmax.f32 %v5999, 0.0
        %v6032 = vmax.f32 %v6000, 0.0
        %v6033 = vmax.f32 %v6001, 0.0
        %v6034 = vmax.f32 %v6002, 0.0
        %v6035 = vmax.f32 %v6003, 0.0
        %v6036 = vmax.f32 %v6004, 0.0
        %v6037 = vmax.f32 %v6005, 0.0
        %v6038 = vmax.f32 %v6006, 0.0
        %v6039 = vmax.f32 %v6007, 0.0
        %v6040 = vmax.f32 %v6008, 0.0
        %v6041 = vmax.f32 %v6009, 0.0
        %v6042 = vmax.f32 %v6010, 0.0
        %v6043 = vmax.f32 %v6011, 0.0
        %v6044 = vmax.f32 %v6012, 0.0
        %v6045 = vmax.f32 %v6013, 0.0
        %v6046 = vmax.f32 %v6014, 0.0
        %v6047 = vmax.f32 %v6015, 0.0
        %6048 = vst.msk [vmem:[#allocation6] sm:$0xff] %vm3288, %v6016
        %6049 = vst.msk [vmem:[#allocation6 + $0x8] sm:$0xff] %vm3288, %v6017
        %6050 = vst.msk [vmem:[#allocation6 + $0x10] sm:$0xff] %vm3288, %v6018
        %6051 = vst.msk [vmem:[#allocation6 + $0x18] sm:$0xff] %vm3288, %v6019
        %6052 = vst.msk [vmem:[#allocation6 + $0x20] sm:$0xff] %vm3288, %v6020
        %6053 = vst.msk [vmem:[#allocation6 + $0x28] sm:$0xff] %vm3288, %v6021
        %6054 = vst.msk [vmem:[#allocation6 + $0x30] sm:$0xff] %vm3288, %v6022
        %6055 = vst.msk [vmem:[#allocation6 + $0x38] sm:$0xff] %vm3288, %v6023
        %6056 = vst.msk [vmem:[#allocation6 + $0x40] sm:$0xff] %vm3288, %v6024
        %6057 = vst.msk [vmem:[#allocation6 + $0x48] sm:$0xff] %vm3288, %v6025
        %6058 = vst.msk [vmem:[#allocation6 + $0x50] sm:$0xff] %vm3288, %v6026
        %6059 = vst.msk [vmem:[#allocation6 + $0x58] sm:$0xff] %vm3288, %v6027
        %6060 = vst.msk [vmem:[#allocation6 + $0x60] sm:$0xff] %vm3288, %v6028
        %6061 = vst.msk [vmem:[#allocation6 + $0x68] sm:$0xff] %vm3288, %v6029
        %6062 = vst.msk [vmem:[#allocation6 + $0x70] sm:$0xff] %vm3288, %v6030
        %6063 = vst.msk [vmem:[#allocation6 + $0x78] sm:$0xff] %vm3288, %v6031
        %6064 = vst.msk [vmem:[#allocation6 + $0x80] sm:$0xff] %vm3288, %v6032
        %6065 = vst.msk [vmem:[#allocation6 + $0x88] sm:$0xff] %vm3288, %v6033
        %6066 = vst.msk [vmem:[#allocation6 + $0x90] sm:$0xff] %vm3288, %v6034
        %6067 = vst.msk [vmem:[#allocation6 + $0x98] sm:$0xff] %vm3288, %v6035
        %6068 = vst.msk [vmem:[#allocation6 + $0xa0] sm:$0xff] %vm3288, %v6036
        %6069 = vst.msk [vmem:[#allocation6 + $0xa8] sm:$0xff] %vm3288, %v6037
        %6070 = vst.msk [vmem:[#allocation6 + $0xb0] sm:$0xff] %vm3288, %v6038
        %6071 = vst.msk [vmem:[#allocation6 + $0xb8] sm:$0xff] %vm3288, %v6039
        %6072 = vst.msk [vmem:[#allocation6 + $0xc0] sm:$0xff] %vm3288, %v6040
        %6073 = vst.msk [vmem:[#allocation6 + $0xc8] sm:$0xff] %vm3288, %v6041
        %6074 = vst.msk [vmem:[#allocation6 + $0xd0] sm:$0xff] %vm3288, %v6042
        %6075 = vst.msk [vmem:[#allocation6 + $0xd8] sm:$0xff] %vm3288, %v6043
        %6076 = vst.msk [vmem:[#allocation6 + $0xe0] sm:$0xff] %vm3288, %v6044
        %6077 = vst.msk [vmem:[#allocation6 + $0xe8] sm:$0xff] %vm3288, %v6045
        %6078 = vst.msk [vmem:[#allocation6 + $0xf0] sm:$0xff] %vm3288, %v6046
        %6079 = vst.msk [vmem:[#allocation6 + $0xf8] sm:$0xff] %vm3288, %v6047
        %v6080 = vld [vmem:[#allocation6] ss:$2 sm:$0xff]
        %s6081 = scalar_lea.vmem [#allocation6], 16
        %v6082 = vld [vmem:[%s6081] ss:$2 sm:$0xff]
        %s6083 = scalar_lea.vmem [#allocation6], 32
        %v6084 = vld [vmem:[%s6083] ss:$2 sm:$0xff]
        %s6085 = scalar_lea.vmem [#allocation6], 48
        %v6086 = vld [vmem:[%s6085] ss:$2 sm:$0xff]
        %s6087 = scalar_lea.vmem [#allocation6], 64
        %v6088 = vld [vmem:[%s6087] ss:$2 sm:$0xff]
        %s6089 = scalar_lea.vmem [#allocation6], 80
        %v6090 = vld [vmem:[%s6089] ss:$2 sm:$0xff]
        %s6091 = scalar_lea.vmem [#allocation6], 96
        %v6092 = vld [vmem:[%s6091] ss:$2 sm:$0xff]
        %s6093 = scalar_lea.vmem [#allocation6], 112
        %v6094 = vld [vmem:[%s6093] ss:$2 sm:$0xff]
        %s6095 = scalar_lea.vmem [#allocation6], 128
        %v6096 = vld [vmem:[%s6095] ss:$2 sm:$0xff]
        %s6097 = scalar_lea.vmem [#allocation6], 144
        %v6098 = vld [vmem:[%s6097] ss:$2 sm:$0xff]
        %s6099 = scalar_lea.vmem [#allocation6], 160
        %v6100 = vld [vmem:[%s6099] ss:$2 sm:$0xff]
        %s6101 = scalar_lea.vmem [#allocation6], 176
        %v6102 = vld [vmem:[%s6101] ss:$2 sm:$0xff]
        %s6103 = scalar_lea.vmem [#allocation6], 192
        %v6104 = vld [vmem:[%s6103] ss:$2 sm:$0xff]
        %s6105 = scalar_lea.vmem [#allocation6], 208
        %v6106 = vld [vmem:[%s6105] ss:$2 sm:$0xff]
        %s6107 = scalar_lea.vmem [#allocation6], 224
        %v6108 = vld [vmem:[%s6107] ss:$2 sm:$0xff]
        %s6109 = scalar_lea.vmem [#allocation6], 240
        %v6110 = vld [vmem:[%s6109] ss:$2 sm:$0xff]
        %s6111 = scalar_lea.vmem [#allocation6], 1
        %v6112 = vld [vmem:[%s6111] ss:$2 sm:$0xff]
        %s6113 = scalar_lea.vmem [#allocation6], 17
        %v6114 = vld [vmem:[%s6113] ss:$2 sm:$0xff]
        %s6115 = scalar_lea.vmem [#allocation6], 33
        %v6116 = vld [vmem:[%s6115] ss:$2 sm:$0xff]
        %s6117 = scalar_lea.vmem [#allocation6], 49
        %v6118 = vld [vmem:[%s6117] ss:$2 sm:$0xff]
        %s6119 = scalar_lea.vmem [#allocation6], 65
        %v6120 = vld [vmem:[%s6119] ss:$2 sm:$0xff]
        %s6121 = scalar_lea.vmem [#allocation6], 81
        %v6122 = vld [vmem:[%s6121] ss:$2 sm:$0xff]
        %s6123 = scalar_lea.vmem [#allocation6], 97
        %v6124 = vld [vmem:[%s6123] ss:$2 sm:$0xff]
        %s6125 = scalar_lea.vmem [#allocation6], 113
        %v6126 = vld [vmem:[%s6125] ss:$2 sm:$0xff]
        %s6127 = scalar_lea.vmem [#allocation6], 129
        %v6128 = vld [vmem:[%s6127] ss:$2 sm:$0xff]
        %s6129 = scalar_lea.vmem [#allocation6], 145
        %v6130 = vld [vmem:[%s6129] ss:$2 sm:$0xff]
        %s6131 = scalar_lea.vmem [#allocation6], 161
        %v6132 = vld [vmem:[%s6131] ss:$2 sm:$0xff]
        %s6133 = scalar_lea.vmem [#allocation6], 177
        %v6134 = vld [vmem:[%s6133] ss:$2 sm:$0xff]
        %s6135 = scalar_lea.vmem [#allocation6], 193
        %v6136 = vld [vmem:[%s6135] ss:$2 sm:$0xff]
        %s6137 = scalar_lea.vmem [#allocation6], 209
        %v6138 = vld [vmem:[%s6137] ss:$2 sm:$0xff]
        %s6139 = scalar_lea.vmem [#allocation6], 225
        %v6140 = vld [vmem:[%s6139] ss:$2 sm:$0xff]
        %s6141 = scalar_lea.vmem [#allocation6], 241
        %v6142 = vld [vmem:[%s6141] ss:$2 sm:$0xff]
        %v6143 = vmax.f32 %v6080, %v6112
        %v6144 = vmax.f32 %v6082, %v6114
        %v6145 = vmax.f32 %v6084, %v6116
        %v6146 = vmax.f32 %v6086, %v6118
        %v6147 = vmax.f32 %v6088, %v6120
        %v6148 = vmax.f32 %v6090, %v6122
        %v6149 = vmax.f32 %v6092, %v6124
        %v6150 = vmax.f32 %v6094, %v6126
        %v6151 = vmax.f32 %v6096, %v6128
        %v6152 = vmax.f32 %v6098, %v6130
        %v6153 = vmax.f32 %v6100, %v6132
        %v6154 = vmax.f32 %v6102, %v6134
        %v6155 = vmax.f32 %v6104, %v6136
        %v6156 = vmax.f32 %v6106, %v6138
        %v6157 = vmax.f32 %v6108, %v6140
        %v6158 = vmax.f32 %v6110, %v6142
        %v6159 = vmax.f32 %v6143, %v6144
        %v6160 = vmax.f32 %v6145, %v6146
        %v6161 = vmax.f32 %v6147, %v6148
        %v6162 = vmax.f32 %v6149, %v6150
        %v6163 = vmax.f32 %v6151, %v6152
        %v6164 = vmax.f32 %v6153, %v6154
        %v6165 = vmax.f32 %v6155, %v6156
        %v6166 = vmax.f32 %v6157, %v6158
        %6167 = vst.msk [vmem:[#allocation4] sm:$0xff] %vm3288, 0.0
        %6168 = vst.msk [vmem:[#allocation4 + $0x8] sm:$0xff] %vm3288, 0.0
        %6169 = vst.msk [vmem:[#allocation4 + $0x10] sm:$0xff] %vm3288, 0.0
        %6170 = vst.msk [vmem:[#allocation4 + $0x18] sm:$0xff] %vm3288, 0.0
        %6171 = vst.msk [vmem:[#allocation4 + $0x20] sm:$0xff] %vm3288, 0.0
        %6172 = vst.msk [vmem:[#allocation4 + $0x28] sm:$0xff] %vm3288, 0.0
        %6173 = vst.msk [vmem:[#allocation4 + $0x30] sm:$0xff] %vm3288, 0.0
        %6174 = vst.msk [vmem:[#allocation4 + $0x38] sm:$0xff] %vm3288, 0.0
        %6175 = vst.msk [vmem:[#allocation4 + $0x40] sm:$0xff] %vm3288, 0.0
        %6176 = vst.msk [vmem:[#allocation4 + $0x48] sm:$0xff] %vm3288, 0.0
        %6177 = vst.msk [vmem:[#allocation4 + $0x50] sm:$0xff] %vm3288, 0.0
        %6178 = vst.msk [vmem:[#allocation4 + $0x58] sm:$0xff] %vm3288, 0.0
        %6179 = vst.msk [vmem:[#allocation4 + $0x60] sm:$0xff] %vm3288, 0.0
        %6180 = vst.msk [vmem:[#allocation4 + $0x68] sm:$0xff] %vm3288, 0.0
        %6181 = vst.msk [vmem:[#allocation4 + $0x70] sm:$0xff] %vm3288, 0.0
        %6182 = vst.msk [vmem:[#allocation4 + $0x78] sm:$0xff] %vm3288, 0.0
        %6183 = vst.msk [vmem:[#allocation4 + $0x80] sm:$0xff] %vm3288, 0.0
        %6184 = vst.msk [vmem:[#allocation4 + $0x88] sm:$0xff] %vm3288, 0.0
        %6185 = vst.msk [vmem:[#allocation4 + $0x90] sm:$0xff] %vm3288, 0.0
        %6186 = vst.msk [vmem:[#allocation4 + $0x98] sm:$0xff] %vm3288, 0.0
        %6187 = vst.msk [vmem:[#allocation4 + $0xa0] sm:$0xff] %vm3288, 0.0
        %6188 = vst.msk [vmem:[#allocation4 + $0xa8] sm:$0xff] %vm3288, 0.0
        %6189 = vst.msk [vmem:[#allocation4 + $0xb0] sm:$0xff] %vm3288, 0.0
        %6190 = vst.msk [vmem:[#allocation4 + $0xb8] sm:$0xff] %vm3288, 0.0
        %6191 = vst.msk [vmem:[#allocation4 + $0xc0] sm:$0xff] %vm3288, 0.0
        %6192 = vst.msk [vmem:[#allocation4 + $0xc8] sm:$0xff] %vm3288, 0.0
        %6193 = vst.msk [vmem:[#allocation4 + $0xd0] sm:$0xff] %vm3288, 0.0
        %6194 = vst.msk [vmem:[#allocation4 + $0xd8] sm:$0xff] %vm3288, 0.0
        %6195 = vst.msk [vmem:[#allocation4 + $0xe0] sm:$0xff] %vm3288, 0.0
        %6196 = vst.msk [vmem:[#allocation4 + $0xe8] sm:$0xff] %vm3288, 0.0
        %s6197 = scalar_lea.vmem [#allocation4], 24
        %6198 = vst.msk [vmem:[%s6197 + $0x8] sm:$0xff] %vm3288, %v6159
        %6199 = vst.msk [vmem:[%s6197 + $0x20] sm:$0xff] %vm3288, %v6160
        %6200 = vst.msk [vmem:[%s6197 + $0x38] sm:$0xff] %vm3288, %v6161
        %6201 = vst.msk [vmem:[%s6197 + $0x50] sm:$0xff] %vm3288, %v6162
        %6202 = vst.msk [vmem:[%s6197 + $0x68] sm:$0xff] %vm3288, %v6163
        %6203 = vst.msk [vmem:[%s6197 + $0x80] sm:$0xff] %vm3288, %v6164
        %6204 = vst.msk [vmem:[%s6197 + $0x98] sm:$0xff] %vm3288, %v6165
        %6205 = vst.msk [vmem:[%s6197 + $0xb0] sm:$0xff] %vm3288, %v6166
        %v6206 = vld [vmem:[#allocation4 + $0x7] sm:$0xff]
        %v6207 = vld [vmem:[#allocation4 + $0x1f] sm:$0xff]
        %v6208 = vld [vmem:[#allocation4 + $0x37] sm:$0xff]
        %v6209 = vld [vmem:[#allocation4 + $0x4f] sm:$0xff]
        %v6210 = vld [vmem:[#allocation4 + $0x67] sm:$0xff]
        %v6211 = vld [vmem:[#allocation4 + $0x7f] sm:$0xff]
        %v6212 = vld [vmem:[#allocation4 + $0x97] sm:$0xff]
        %v6213 = vld [vmem:[#allocation4 + $0xaf] sm:$0xff]
        %v6214 = vpack.c.bf16 %v6207, %v6206
        %v6215 = vpack.c.bf16 %v6209, %v6208
        %v6216 = vpack.c.bf16 %v6211, %v6210
        %v6217 = vpack.c.bf16 %v6213, %v6212
        %v6218 = vld [vmem:[%s5] sm:$0xf]
        %v6219 = vld [vmem:[#allocation4 + $0x8] sm:$0xff]
        %v6220 = vld [vmem:[#allocation4 + $0x20] sm:$0xff]
        %v6221 = vld [vmem:[#allocation4 + $0x38] sm:$0xff]
        %v6222 = vld [vmem:[#allocation4 + $0x50] sm:$0xff]
        %v6223 = vld [vmem:[#allocation4 + $0x68] sm:$0xff]
        %v6224 = vld [vmem:[#allocation4 + $0x80] sm:$0xff]
        %v6225 = vld [vmem:[#allocation4 + $0x98] sm:$0xff]
        %v6226 = vld [vmem:[#allocation4 + $0xb0] sm:$0xff]
        %v6227 = vpack.c.bf16 %v6220, %v6219
        %v6228 = vpack.c.bf16 %v6222, %v6221
        %v6229 = vpack.c.bf16 %v6224, %v6223
        %v6230 = vpack.c.bf16 %v6226, %v6225
        %s6231 = scalar_lea.vmem %s5, 4
        %v6232 = vld [vmem:[%s6231] sm:$0xf]
        %v6234 = vsel %vm3288, %v6227, 0
        %v6237 = vsel %vm3288, %v6228, 0
        %v6240 = vsel %vm3288, %v6229, 0
        %v6243 = vsel %vm3288, %v6230, 0
        %v6246 = vsel %vm3541, %v6232, 0
        %6248 = vmatprep.subr.bf16.mxu0 0
        %6249 = vmatpush1.bf16.msra.mxu0 %v6246
        %6250 = vmatprep.subr.bf16.mxu0 0
        %6251 = vmatpush1.bf16.msra.mxu0 0
        %6252 = vmatprep.subr.bf16.mxu0 0
        %6253 = vmatpush1.bf16.msra.mxu0 0
        %6254 = vmatprep.subr.bf16.mxu0 0
        %6255 = vmatpush1.bf16.msra.mxu0 0
        %6256 = vmatprep.subr.bf16.mxu0 0
        %6257 = vmatpush1.bf16.msra.mxu0 0
        %6258 = vmatprep.subr.bf16.mxu0 0
        %6259 = vmatpush1.bf16.msra.mxu0 0
        %6260 = vmatprep.subr.bf16.mxu0 0
        %6261 = vmatpush1.bf16.msra.mxu0 0
        %6262 = vmatprep.subr.bf16.mxu0 0
        %6263 = vmatpush1.bf16.msra.mxu0 0
        %6264 = vmatprep.subr.bf16.mxu0 0
        %6265 = vmatpush1.bf16.msra.mxu0 0
        %6266 = vmatprep.subr.bf16.mxu0 0
        %6267 = vmatpush1.bf16.msra.mxu0 0
        %6268 = vmatprep.subr.bf16.mxu0 0
        %6269 = vmatpush1.bf16.msra.mxu0 0
        %6270 = vmatprep.subr.bf16.mxu0 0
        %6271 = vmatpush1.bf16.msra.mxu0 0
        %6272 = vmatprep.subr.bf16.mxu0 0
        %6273 = vmatpush1.bf16.msra.mxu0 0
        %6274 = vmatprep.subr.bf16.mxu0 0
        %6275 = vmatpush1.bf16.msra.mxu0 0
        %6276 = vmatprep.subr.bf16.mxu0 0
        %6277 = vmatpush1.bf16.msra.mxu0 0
        %6278 = vmatprep.subr.bf16.mxu0 0
        %6279 = vmatpush1.bf16.msra.mxu0 0
        %6280 = vmatprep.mubr.bf16.mxu0 0
        %6281 = vmatmul.mubr.bf16.gmra.mrb[0].mxu0 %v6234
        %v6282 = vpop.f32.mrb[0].mxu0
        %v6283 = vadd.f32 0.0, %v6282
        %v6284 = vpop.f32.mrb[0].mxu0
        %v6285 = vpop.f32.mrb[0].mxu0
        %v6286 = vadd.f32 0.0, %v6285
        %v6287 = vpop.f32.mrb[0].mxu0
        %6288 = vmatprep.mubr.bf16.mxu0 0
        %6289 = vmatmul.mubr.bf16.gmra.mrb[0].mxu0 %v6237
        %v6290 = vpop.f32.mrb[0].mxu0
        %v6291 = vadd.f32 0.0, %v6290
        %v6292 = vpop.f32.mrb[0].mxu0
        %v6293 = vpop.f32.mrb[0].mxu0
        %v6294 = vadd.f32 0.0, %v6293
        %v6295 = vpop.f32.mrb[0].mxu0
        %6296 = vmatprep.mubr.bf16.mxu0 0
        %6297 = vmatmul.mubr.bf16.gmra.mrb[0].mxu0 %v6240
        %v6298 = vpop.f32.mrb[0].mxu0
        %v6299 = vadd.f32 0.0, %v6298
        %v6300 = vpop.f32.mrb[0].mxu0
        %v6301 = vpop.f32.mrb[0].mxu0
        %v6302 = vadd.f32 0.0, %v6301
        %v6303 = vpop.f32.mrb[0].mxu0
        %6304 = vmatprep.mubr.bf16.mxu0 0
        %6305 = vmatmul.mubr.bf16.gmra.mrb[0].mxu0 %v6243
        %v6306 = vpop.f32.mrb[0].mxu0
        %v6307 = vadd.f32 0.0, %v6306
        %v6308 = vpop.f32.mrb[0].mxu0
        %v6309 = vpop.f32.mrb[0].mxu0
        %v6310 = vadd.f32 0.0, %v6309
        %v6311 = vpop.f32.mrb[0].mxu0
        %6312 = vdwg.mxu0
        %v6314 = vsel %vm3288, %v6214, 0
        %v6317 = vsel %vm3288, %v6215, 0
        %v6320 = vsel %vm3288, %v6216, 0
        %v6323 = vsel %vm3288, %v6217, 0
        %v6326 = vsel %vm3541, %v6218, 0
        %6328 = vmatprep.subr.bf16.mxu0 0
        %6329 = vmatpush1.bf16.msra.mxu0 %v6326
        %6330 = vmatprep.subr.bf16.mxu0 0
        %6331 = vmatpush1.bf16.msra.mxu0 0
        %6332 = vmatprep.subr.bf16.mxu0 0
        %6333 = vmatpush1.bf16.msra.mxu0 0
        %6334 = vmatprep.subr.bf16.mxu0 0
        %6335 = vmatpush1.bf16.msra.mxu0 0
        %6336 = vmatprep.subr.bf16.mxu0 0
        %6337 = vmatpush1.bf16.msra.mxu0 0
        %6338 = vmatprep.subr.bf16.mxu0 0
        %6339 = vmatpush1.bf16.msra.mxu0 0
        %6340 = vmatprep.subr.bf16.mxu0 0
        %6341 = vmatpush1.bf16.msra.mxu0 0
        %6342 = vmatprep.subr.bf16.mxu0 0
        %6343 = vmatpush1.bf16.msra.mxu0 0
        %6344 = vmatprep.subr.bf16.mxu0 0
        %6345 = vmatpush1.bf16.msra.mxu0 0
        %6346 = vmatprep.subr.bf16.mxu0 0
        %6347 = vmatpush1.bf16.msra.mxu0 0
        %6348 = vmatprep.subr.bf16.mxu0 0
        %6349 = vmatpush1.bf16.msra.mxu0 0
        %6350 = vmatprep.subr.bf16.mxu0 0
        %6351 = vmatpush1.bf16.msra.mxu0 0
        %6352 = vmatprep.subr.bf16.mxu0 0
        %6353 = vmatpush1.bf16.msra.mxu0 0
        %6354 = vmatprep.subr.bf16.mxu0 0
        %6355 = vmatpush1.bf16.msra.mxu0 0
        %6356 = vmatprep.subr.bf16.mxu0 0
        %6357 = vmatpush1.bf16.msra.mxu0 0
        %6358 = vmatprep.subr.bf16.mxu0 0
        %6359 = vmatpush1.bf16.msra.mxu0 0
        %6360 = vmatprep.mubr.bf16.mxu0 0
        %6361 = vmatmul.mubr.bf16.gmra.mrb[0].mxu0 %v6314
        %v6362 = vpop.f32.mrb[0].mxu0
        %v6363 = vadd.f32 %v6283, %v6362
        %v6364 = vpop.f32.mrb[0].mxu0
        %v6365 = vpop.f32.mrb[0].mxu0
        %v6366 = vadd.f32 %v6286, %v6365
        %v6367 = vpop.f32.mrb[0].mxu0
        %6368 = vmatprep.mubr.bf16.mxu0 0
        %6369 = vmatmul.mubr.bf16.gmra.mrb[0].mxu0 %v6317
        %v6370 = vpop.f32.mrb[0].mxu0
        %v6371 = vadd.f32 %v6291, %v6370
        %v6372 = vpop.f32.mrb[0].mxu0
        %v6373 = vpop.f32.mrb[0].mxu0
        %v6374 = vadd.f32 %v6294, %v6373
        %v6375 = vpop.f32.mrb[0].mxu0
        %6376 = vmatprep.mubr.bf16.mxu0 0
        %6377 = vmatmul.mubr.bf16.gmra.mrb[0].mxu0 %v6320
        %v6378 = vpop.f32.mrb[0].mxu0
        %v6379 = vadd.f32 %v6299, %v6378
        %v6380 = vpop.f32.mrb[0].mxu0
        %v6381 = vpop.f32.mrb[0].mxu0
        %v6382 = vadd.f32 %v6302, %v6381
        %v6383 = vpop.f32.mrb[0].mxu0
        %6384 = vmatprep.mubr.bf16.mxu0 0
        %6385 = vmatmul.mubr.bf16.gmra.mrb[0].mxu0 %v6323
        %v6386 = vpop.f32.mrb[0].mxu0
        %v6387 = vadd.f32 %v6307, %v6386
        %v6388 = vpop.f32.mrb[0].mxu0
        %v6389 = vpop.f32.mrb[0].mxu0
        %v6390 = vadd.f32 %v6310, %v6389
        %v6391 = vpop.f32.mrb[0].mxu0
        %6392 = vdwg.mxu0
        %v6393 = vld [vmem:[#allocation4 + $0x9] sm:$0xff]
        %v6394 = vld [vmem:[#allocation4 + $0x21] sm:$0xff]
        %v6395 = vld [vmem:[#allocation4 + $0x39] sm:$0xff]
        %v6396 = vld [vmem:[#allocation4 + $0x51] sm:$0xff]
        %v6397 = vld [vmem:[#allocation4 + $0x69] sm:$0xff]
        %v6398 = vld [vmem:[#allocation4 + $0x81] sm:$0xff]
        %v6399 = vld [vmem:[#allocation4 + $0x99] sm:$0xff]
        %v6400 = vld [vmem:[#allocation4 + $0xb1] sm:$0xff]
        %v6401 = vpack.c.bf16 %v6394, %v6393
        %v6402 = vpack.c.bf16 %v6396, %v6395
        %v6403 = vpack.c.bf16 %v6398, %v6397
        %v6404 = vpack.c.bf16 %v6400, %v6399
        %s6405 = scalar_lea.vmem %s5, 8
        %v6406 = vld [vmem:[%s6405] sm:$0xf]
        %v6408 = vsel %vm3288, %v6401, 0
        %v6411 = vsel %vm3288, %v6402, 0
        %v6414 = vsel %vm3288, %v6403, 0
        %v6417 = vsel %vm3288, %v6404, 0
        %v6420 = vsel %vm3541, %v6406, 0
        %6422 = vmatprep.subr.bf16.mxu0 0
        %6423 = vmatpush1.bf16.msra.mxu0 %v6420
        %6424 = vmatprep.subr.bf16.mxu0 0
        %6425 = vmatpush1.bf16.msra.mxu0 0
        %6426 = vmatprep.subr.bf16.mxu0 0
        %6427 = vmatpush1.bf16.msra.mxu0 0
        %6428 = vmatprep.subr.bf16.mxu0 0
        %6429 = vmatpush1.bf16.msra.mxu0 0
        %6430 = vmatprep.subr.bf16.mxu0 0
        %6431 = vmatpush1.bf16.msra.mxu0 0
        %6432 = vmatprep.subr.bf16.mxu0 0
        %6433 = vmatpush1.bf16.msra.mxu0 0
        %6434 = vmatprep.subr.bf16.mxu0 0
        %6435 = vmatpush1.bf16.msra.mxu0 0
        %6436 = vmatprep.subr.bf16.mxu0 0
        %6437 = vmatpush1.bf16.msra.mxu0 0
        %6438 = vmatprep.subr.bf16.mxu0 0
        %6439 = vmatpush1.bf16.msra.mxu0 0
        %6440 = vmatprep.subr.bf16.mxu0 0
        %6441 = vmatpush1.bf16.msra.mxu0 0
        %6442 = vmatprep.subr.bf16.mxu0 0
        %6443 = vmatpush1.bf16.msra.mxu0 0
        %6444 = vmatprep.subr.bf16.mxu0 0
        %6445 = vmatpush1.bf16.msra.mxu0 0
        %6446 = vmatprep.subr.bf16.mxu0 0
        %6447 = vmatpush1.bf16.msra.mxu0 0
        %6448 = vmatprep.subr.bf16.mxu0 0
        %6449 = vmatpush1.bf16.msra.mxu0 0
        %6450 = vmatprep.subr.bf16.mxu0 0
        %6451 = vmatpush1.bf16.msra.mxu0 0
        %6452 = vmatprep.subr.bf16.mxu0 0
        %6453 = vmatpush1.bf16.msra.mxu0 0
        %6454 = vmatprep.mubr.bf16.mxu0 0
        %6455 = vmatmul.mubr.bf16.gmra.mrb[0].mxu0 %v6408
        %v6456 = vpop.f32.mrb[0].mxu0
        %v6457 = vadd.f32 0.0, %v6456
        %v6458 = vpop.f32.mrb[0].mxu0
        %v6459 = vpop.f32.mrb[0].mxu0
        %v6460 = vadd.f32 0.0, %v6459
        %v6461 = vpop.f32.mrb[0].mxu0
        %6462 = vmatprep.mubr.bf16.mxu0 0
        %6463 = vmatmul.mubr.bf16.gmra.mrb[0].mxu0 %v6411
        %v6464 = vpop.f32.mrb[0].mxu0
        %v6465 = vadd.f32 0.0, %v6464
        %v6466 = vpop.f32.mrb[0].mxu0
        %v6467 = vpop.f32.mrb[0].mxu0
        %v6468 = vadd.f32 0.0, %v6467
        %v6469 = vpop.f32.mrb[0].mxu0
        %6470 = vmatprep.mubr.bf16.mxu0 0
        %6471 = vmatmul.mubr.bf16.gmra.mrb[0].mxu0 %v6414
        %v6472 = vpop.f32.mrb[0].mxu0
        %v6473 = vadd.f32 0.0, %v6472
        %v6474 = vpop.f32.mrb[0].mxu0
        %v6475 = vpop.f32.mrb[0].mxu0
        %v6476 = vadd.f32 0.0, %v6475
        %v6477 = vpop.f32.mrb[0].mxu0
        %6478 = vmatprep.mubr.bf16.mxu0 0
        %6479 = vmatmul.mubr.bf16.gmra.mrb[0].mxu0 %v6417
        %v6480 = vpop.f32.mrb[0].mxu0
        %v6481 = vadd.f32 0.0, %v6480
        %v6482 = vpop.f32.mrb[0].mxu0
        %v6483 = vpop.f32.mrb[0].mxu0
        %v6484 = vadd.f32 0.0, %v6483
        %v6485 = vpop.f32.mrb[0].mxu0
        %6486 = vdwg.mxu0
        %v6487 = vadd.f32 %v6363, %v6457
        %v6488 = vadd.f32 %v6366, %v6460
        %v6489 = vadd.f32 %v6371, %v6465
        %v6490 = vadd.f32 %v6374, %v6468
        %v6491 = vadd.f32 %v6379, %v6473
        %v6492 = vadd.f32 %v6382, %v6476
        %v6493 = vadd.f32 %v6387, %v6481
        %v6494 = vadd.f32 %v6390, %v6484
        %v6495 = vld [vmem:[%s6197 + $0x7] sm:$0xff]
        %v6496 = vld [vmem:[%s6197 + $0x1f] sm:$0xff]
        %v6497 = vld [vmem:[%s6197 + $0x37] sm:$0xff]
        %v6498 = vld [vmem:[%s6197 + $0x4f] sm:$0xff]
        %v6499 = vld [vmem:[%s6197 + $0x67] sm:$0xff]
        %v6500 = vld [vmem:[%s6197 + $0x7f] sm:$0xff]
        %v6501 = vld [vmem:[%s6197 + $0x97] sm:$0xff]
        %v6502 = vld [vmem:[%s6197 + $0xaf] sm:$0xff]
        %v6503 = vpack.c.bf16 %v6496, %v6495
        %v6504 = vpack.c.bf16 %v6498, %v6497
        %v6505 = vpack.c.bf16 %v6500, %v6499
        %v6506 = vpack.c.bf16 %v6502, %v6501
        %s6507 = scalar_lea.vmem %s5, 12
        %v6508 = vld [vmem:[%s6507] sm:$0xf]
        %v6510 = vsel %vm3288, %v6503, 0
        %v6513 = vsel %vm3288, %v6504, 0
        %v6516 = vsel %vm3288, %v6505, 0
        %v6519 = vsel %vm3288, %v6506, 0
        %v6522 = vsel %vm3541, %v6508, 0
        %6524 = vmatprep.subr.bf16.mxu0 0
        %6525 = vmatpush1.bf16.msra.mxu0 %v6522
        %6526 = vmatprep.subr.bf16.mxu0 0
        %6527 = vmatpush1.bf16.msra.mxu0 0
        %6528 = vmatprep.subr.bf16.mxu0 0
        %6529 = vmatpush1.bf16.msra.mxu0 0
        %6530 = vmatprep.subr.bf16.mxu0 0
        %6531 = vmatpush1.bf16.msra.mxu0 0
        %6532 = vmatprep.subr.bf16.mxu0 0
        %6533 = vmatpush1.bf16.msra.mxu0 0
        %6534 = vmatprep.subr.bf16.mxu0 0
        %6535 = vmatpush1.bf16.msra.mxu0 0
        %6536 = vmatprep.subr.bf16.mxu0 0
        %6537 = vmatpush1.bf16.msra.mxu0 0
        %6538 = vmatprep.subr.bf16.mxu0 0
        %6539 = vmatpush1.bf16.msra.mxu0 0
        %6540 = vmatprep.subr.bf16.mxu0 0
        %6541 = vmatpush1.bf16.msra.mxu0 0
        %6542 = vmatprep.subr.bf16.mxu0 0
        %6543 = vmatpush1.bf16.msra.mxu0 0
        %6544 = vmatprep.subr.bf16.mxu0 0
        %6545 = vmatpush1.bf16.msra.mxu0 0
        %6546 = vmatprep.subr.bf16.mxu0 0
        %6547 = vmatpush1.bf16.msra.mxu0 0
        %6548 = vmatprep.subr.bf16.mxu0 0
        %6549 = vmatpush1.bf16.msra.mxu0 0
        %6550 = vmatprep.subr.bf16.mxu0 0
        %6551 = vmatpush1.bf16.msra.mxu0 0
        %6552 = vmatprep.subr.bf16.mxu0 0
        %6553 = vmatpush1.bf16.msra.mxu0 0
        %6554 = vmatprep.subr.bf16.mxu0 0
        %6555 = vmatpush1.bf16.msra.mxu0 0
        %6556 = vmatprep.mubr.bf16.mxu0 0
        %6557 = vmatmul.mubr.bf16.gmra.mrb[0].mxu0 %v6510
        %v6558 = vpop.f32.mrb[0].mxu0
        %v6559 = vadd.f32 0.0, %v6558
        %v6560 = vpop.f32.mrb[0].mxu0
        %v6561 = vpop.f32.mrb[0].mxu0
        %v6562 = vadd.f32 0.0, %v6561
        %v6563 = vpop.f32.mrb[0].mxu0
        %6564 = vmatprep.mubr.bf16.mxu0 0
        %6565 = vmatmul.mubr.bf16.gmra.mrb[0].mxu0 %v6513
        %v6566 = vpop.f32.mrb[0].mxu0
        %v6567 = vadd.f32 0.0, %v6566
        %v6568 = vpop.f32.mrb[0].mxu0
        %v6569 = vpop.f32.mrb[0].mxu0
        %v6570 = vadd.f32 0.0, %v6569
        %v6571 = vpop.f32.mrb[0].mxu0
        %6572 = vmatprep.mubr.bf16.mxu0 0
        %6573 = vmatmul.mubr.bf16.gmra.mrb[0].mxu0 %v6516
        %v6574 = vpop.f32.mrb[0].mxu0
        %v6575 = vadd.f32 0.0, %v6574
        %v6576 = vpop.f32.mrb[0].mxu0
        %v6577 = vpop.f32.mrb[0].mxu0
        %v6578 = vadd.f32 0.0, %v6577
        %v6579 = vpop.f32.mrb[0].mxu0
        %6580 = vmatprep.mubr.bf16.mxu0 0
        %6581 = vmatmul.mubr.bf16.gmra.mrb[0].mxu0 %v6519
        %v6582 = vpop.f32.mrb[0].mxu0
        %v6583 = vadd.f32 0.0, %v6582
        %v6584 = vpop.f32.mrb[0].mxu0
        %v6585 = vpop.f32.mrb[0].mxu0
        %v6586 = vadd.f32 0.0, %v6585
        %v6587 = vpop.f32.mrb[0].mxu0
        %6588 = vdwg.mxu0
        %v6589 = vadd.f32 %v6487, %v6559
        %v6590 = vadd.f32 %v6488, %v6562
        %v6591 = vadd.f32 %v6489, %v6567
        %v6592 = vadd.f32 %v6490, %v6570
        %v6593 = vadd.f32 %v6491, %v6575
        %v6594 = vadd.f32 %v6492, %v6578
        %v6595 = vadd.f32 %v6493, %v6583
        %v6596 = vadd.f32 %v6494, %v6586
        %v6597 = vld [vmem:[%s6197 + $0x8] sm:$0xff]
        %v6598 = vld [vmem:[%s6197 + $0x20] sm:$0xff]
        %v6599 = vld [vmem:[%s6197 + $0x38] sm:$0xff]
        %v6600 = vld [vmem:[%s6197 + $0x50] sm:$0xff]
        %v6601 = vld [vmem:[%s6197 + $0x68] sm:$0xff]
        %v6602 = vld [vmem:[%s6197 + $0x80] sm:$0xff]
        %v6603 = vld [vmem:[%s6197 + $0x98] sm:$0xff]
        %v6604 = vld [vmem:[%s6197 + $0xb0] sm:$0xff]
        %v6605 = vpack.c.bf16 %v6598, %v6597
        %v6606 = vpack.c.bf16 %v6600, %v6599
        %v6607 = vpack.c.bf16 %v6602, %v6601
        %v6608 = vpack.c.bf16 %v6604, %v6603
        %s6609 = scalar_lea.vmem %s5, 16
        %v6610 = vld [vmem:[%s6609] sm:$0xf]
        %v6612 = vsel %vm3288, %v6605, 0
        %v6615 = vsel %vm3288, %v6606, 0
        %v6618 = vsel %vm3288, %v6607, 0
        %v6621 = vsel %vm3288, %v6608, 0
        %v6624 = vsel %vm3541, %v6610, 0
        %6626 = vmatprep.subr.bf16.mxu0 0
        %6627 = vmatpush1.bf16.msra.mxu0 %v6624
        %6628 = vmatprep.subr.bf16.mxu0 0
        %6629 = vmatpush1.bf16.msra.mxu0 0
        %6630 = vmatprep.subr.bf16.mxu0 0
        %6631 = vmatpush1.bf16.msra.mxu0 0
        %6632 = vmatprep.subr.bf16.mxu0 0
        %6633 = vmatpush1.bf16.msra.mxu0 0
        %6634 = vmatprep.subr.bf16.mxu0 0
        %6635 = vmatpush1.bf16.msra.mxu0 0
        %6636 = vmatprep.subr.bf16.mxu0 0
        %6637 = vmatpush1.bf16.msra.mxu0 0
        %6638 = vmatprep.subr.bf16.mxu0 0
        %6639 = vmatpush1.bf16.msra.mxu0 0
        %6640 = vmatprep.subr.bf16.mxu0 0
        %6641 = vmatpush1.bf16.msra.mxu0 0
        %6642 = vmatprep.subr.bf16.mxu0 0
        %6643 = vmatpush1.bf16.msra.mxu0 0
        %6644 = vmatprep.subr.bf16.mxu0 0
        %6645 = vmatpush1.bf16.msra.mxu0 0
        %6646 = vmatprep.subr.bf16.mxu0 0
        %6647 = vmatpush1.bf16.msra.mxu0 0
        %6648 = vmatprep.subr.bf16.mxu0 0
        %6649 = vmatpush1.bf16.msra.mxu0 0
        %6650 = vmatprep.subr.bf16.mxu0 0
        %6651 = vmatpush1.bf16.msra.mxu0 0
        %6652 = vmatprep.subr.bf16.mxu0 0
        %6653 = vmatpush1.bf16.msra.mxu0 0
        %6654 = vmatprep.subr.bf16.mxu0 0
        %6655 = vmatpush1.bf16.msra.mxu0 0
        %6656 = vmatprep.subr.bf16.mxu0 0
        %6657 = vmatpush1.bf16.msra.mxu0 0
        %6658 = vmatprep.mubr.bf16.mxu0 0
        %6659 = vmatmul.mubr.bf16.gmra.mrb[0].mxu0 %v6612
        %v6660 = vpop.f32.mrb[0].mxu0
        %v6661 = vadd.f32 0.0, %v6660
        %v6662 = vpop.f32.mrb[0].mxu0
        %v6663 = vpop.f32.mrb[0].mxu0
        %v6664 = vadd.f32 0.0, %v6663
        %v6665 = vpop.f32.mrb[0].mxu0
        %6666 = vmatprep.mubr.bf16.mxu0 0
        %6667 = vmatmul.mubr.bf16.gmra.mrb[0].mxu0 %v6615
        %v6668 = vpop.f32.mrb[0].mxu0
        %v6669 = vadd.f32 0.0, %v6668
        %v6670 = vpop.f32.mrb[0].mxu0
        %v6671 = vpop.f32.mrb[0].mxu0
        %v6672 = vadd.f32 0.0, %v6671
        %v6673 = vpop.f32.mrb[0].mxu0
        %6674 = vmatprep.mubr.bf16.mxu0 0
        %6675 = vmatmul.mubr.bf16.gmra.mrb[0].mxu0 %v6618
        %v6676 = vpop.f32.mrb[0].mxu0
        %v6677 = vadd.f32 0.0, %v6676
        %v6678 = vpop.f32.mrb[0].mxu0
        %v6679 = vpop.f32.mrb[0].mxu0
        %v6680 = vadd.f32 0.0, %v6679
        %v6681 = vpop.f32.mrb[0].mxu0
        %6682 = vmatprep.mubr.bf16.mxu0 0
        %6683 = vmatmul.mubr.bf16.gmra.mrb[0].mxu0 %v6621
        %v6684 = vpop.f32.mrb[0].mxu0
        %v6685 = vadd.f32 0.0, %v6684
        %v6686 = vpop.f32.mrb[0].mxu0
        %v6687 = vpop.f32.mrb[0].mxu0
        %v6688 = vadd.f32 0.0, %v6687
        %v6689 = vpop.f32.mrb[0].mxu0
        %6690 = vdwg.mxu0
        %v6691 = vadd.f32 %v6589, %v6661
        %v6692 = vadd.f32 %v6590, %v6664
        %v6693 = vadd.f32 %v6591, %v6669
        %v6694 = vadd.f32 %v6592, %v6672
        %v6695 = vadd.f32 %v6593, %v6677
        %v6696 = vadd.f32 %v6594, %v6680
        %v6697 = vadd.f32 %v6595, %v6685
        %v6698 = vadd.f32 %v6596, %v6688
        %v6699 = vld [vmem:[%s6197 + $0x9] sm:$0xff]
        %v6700 = vld [vmem:[%s6197 + $0x21] sm:$0xff]
        %v6701 = vld [vmem:[%s6197 + $0x39] sm:$0xff]
        %v6702 = vld [vmem:[%s6197 + $0x51] sm:$0xff]
        %v6703 = vld [vmem:[%s6197 + $0x69] sm:$0xff]
        %v6704 = vld [vmem:[%s6197 + $0x81] sm:$0xff]
        %v6705 = vld [vmem:[%s6197 + $0x99] sm:$0xff]
        %v6706 = vld [vmem:[%s6197 + $0xb1] sm:$0xff]
        %v6707 = vpack.c.bf16 %v6700, %v6699
        %v6708 = vpack.c.bf16 %v6702, %v6701
        %v6709 = vpack.c.bf16 %v6704, %v6703
        %v6710 = vpack.c.bf16 %v6706, %v6705
        %s6711 = scalar_lea.vmem %s5, 20
        %v6712 = vld [vmem:[%s6711] sm:$0xf]
        %v6714 = vsel %vm3288, %v6707, 0
        %v6717 = vsel %vm3288, %v6708, 0
        %v6720 = vsel %vm3288, %v6709, 0
        %v6723 = vsel %vm3288, %v6710, 0
        %v6726 = vsel %vm3541, %v6712, 0
        %6728 = vmatprep.subr.bf16.mxu0 0
        %6729 = vmatpush1.bf16.msra.mxu0 %v6726
        %6730 = vmatprep.subr.bf16.mxu0 0
        %6731 = vmatpush1.bf16.msra.mxu0 0
        %6732 = vmatprep.subr.bf16.mxu0 0
        %6733 = vmatpush1.bf16.msra.mxu0 0
        %6734 = vmatprep.subr.bf16.mxu0 0
        %6735 = vmatpush1.bf16.msra.mxu0 0
        %6736 = vmatprep.subr.bf16.mxu0 0
        %6737 = vmatpush1.bf16.msra.mxu0 0
        %6738 = vmatprep.subr.bf16.mxu0 0
        %6739 = vmatpush1.bf16.msra.mxu0 0
        %6740 = vmatprep.subr.bf16.mxu0 0
        %6741 = vmatpush1.bf16.msra.mxu0 0
        %6742 = vmatprep.subr.bf16.mxu0 0
        %6743 = vmatpush1.bf16.msra.mxu0 0
        %6744 = vmatprep.subr.bf16.mxu0 0
        %6745 = vmatpush1.bf16.msra.mxu0 0
        %6746 = vmatprep.subr.bf16.mxu0 0
        %6747 = vmatpush1.bf16.msra.mxu0 0
        %6748 = vmatprep.subr.bf16.mxu0 0
        %6749 = vmatpush1.bf16.msra.mxu0 0
        %6750 = vmatprep.subr.bf16.mxu0 0
        %6751 = vmatpush1.bf16.msra.mxu0 0
        %6752 = vmatprep.subr.bf16.mxu0 0
        %6753 = vmatpush1.bf16.msra.mxu0 0
        %6754 = vmatprep.subr.bf16.mxu0 0
        %6755 = vmatpush1.bf16.msra.mxu0 0
        %6756 = vmatprep.subr.bf16.mxu0 0
        %6757 = vmatpush1.bf16.msra.mxu0 0
        %6758 = vmatprep.subr.bf16.mxu0 0
        %6759 = vmatpush1.bf16.msra.mxu0 0
        %6760 = vmatprep.mubr.bf16.mxu0 0
        %6761 = vmatmul.mubr.bf16.gmra.mrb[0].mxu0 %v6714
        %v6762 = vpop.f32.mrb[0].mxu0
        %v6763 = vadd.f32 0.0, %v6762
        %v6764 = vpop.f32.mrb[0].mxu0
        %v6765 = vpop.f32.mrb[0].mxu0
        %v6766 = vadd.f32 0.0, %v6765
        %v6767 = vpop.f32.mrb[0].mxu0
        %6768 = vmatprep.mubr.bf16.mxu0 0
        %6769 = vmatmul.mubr.bf16.gmra.mrb[0].mxu0 %v6717
        %v6770 = vpop.f32.mrb[0].mxu0
        %v6771 = vadd.f32 0.0, %v6770
        %v6772 = vpop.f32.mrb[0].mxu0
        %v6773 = vpop.f32.mrb[0].mxu0
        %v6774 = vadd.f32 0.0, %v6773
        %v6775 = vpop.f32.mrb[0].mxu0
        %6776 = vmatprep.mubr.bf16.mxu0 0
        %6777 = vmatmul.mubr.bf16.gmra.mrb[0].mxu0 %v6720
        %v6778 = vpop.f32.mrb[0].mxu0
        %v6779 = vadd.f32 0.0, %v6778
        %v6780 = vpop.f32.mrb[0].mxu0
        %v6781 = vpop.f32.mrb[0].mxu0
        %v6782 = vadd.f32 0.0, %v6781
        %v6783 = vpop.f32.mrb[0].mxu0
        %6784 = vmatprep.mubr.bf16.mxu0 0
        %6785 = vmatmul.mubr.bf16.gmra.mrb[0].mxu0 %v6723
        %v6786 = vpop.f32.mrb[0].mxu0
        %v6787 = vadd.f32 0.0, %v6786
        %v6788 = vpop.f32.mrb[0].mxu0
        %v6789 = vpop.f32.mrb[0].mxu0
        %v6790 = vadd.f32 0.0, %v6789
        %v6791 = vpop.f32.mrb[0].mxu0
        %6792 = vdwg.mxu0
        %v6793 = vadd.f32 %v6691, %v6763
        %v6794 = vadd.f32 %v6692, %v6766
        %v6795 = vadd.f32 %v6693, %v6771
        %v6796 = vadd.f32 %v6694, %v6774
        %v6797 = vadd.f32 %v6695, %v6779
        %v6798 = vadd.f32 %v6696, %v6782
        %v6799 = vadd.f32 %v6697, %v6787
        %v6800 = vadd.f32 %v6698, %v6790
        %s6801 = scalar_lea.vmem [#allocation4], 48
        %v6802 = vld [vmem:[%s6801 + $0x7] sm:$0xff]
        %v6803 = vld [vmem:[%s6801 + $0x1f] sm:$0xff]
        %v6804 = vld [vmem:[%s6801 + $0x37] sm:$0xff]
        %v6805 = vld [vmem:[%s6801 + $0x4f] sm:$0xff]
        %v6806 = vld [vmem:[%s6801 + $0x67] sm:$0xff]
        %v6807 = vld [vmem:[%s6801 + $0x7f] sm:$0xff]
        %v6808 = vld [vmem:[%s6801 + $0x97] sm:$0xff]
        %v6809 = vld [vmem:[%s6801 + $0xaf] sm:$0xff]
        %v6810 = vpack.c.bf16 %v6803, %v6802
        %v6811 = vpack.c.bf16 %v6805, %v6804
        %v6812 = vpack.c.bf16 %v6807, %v6806
        %v6813 = vpack.c.bf16 %v6809, %v6808
        %s6814 = scalar_lea.vmem %s5, 24
        %v6815 = vld [vmem:[%s6814] sm:$0xf]
        %v6817 = vsel %vm3288, %v6810, 0
        %v6820 = vsel %vm3288, %v6811, 0
        %v6823 = vsel %vm3288, %v6812, 0
        %v6826 = vsel %vm3288, %v6813, 0
        %v6829 = vsel %vm3541, %v6815, 0
        %6831 = vmatprep.subr.bf16.mxu0 0
        %6832 = vmatpush1.bf16.msra.mxu0 %v6829
        %6833 = vmatprep.subr.bf16.mxu0 0
        %6834 = vmatpush1.bf16.msra.mxu0 0
        %6835 = vmatprep.subr.bf16.mxu0 0
        %6836 = vmatpush1.bf16.msra.mxu0 0
        %6837 = vmatprep.subr.bf16.mxu0 0
        %6838 = vmatpush1.bf16.msra.mxu0 0
        %6839 = vmatprep.subr.bf16.mxu0 0
        %6840 = vmatpush1.bf16.msra.mxu0 0
        %6841 = vmatprep.subr.bf16.mxu0 0
        %6842 = vmatpush1.bf16.msra.mxu0 0
        %6843 = vmatprep.subr.bf16.mxu0 0
        %6844 = vmatpush1.bf16.msra.mxu0 0
        %6845 = vmatprep.subr.bf16.mxu0 0
        %6846 = vmatpush1.bf16.msra.mxu0 0
        %6847 = vmatprep.subr.bf16.mxu0 0
        %6848 = vmatpush1.bf16.msra.mxu0 0
        %6849 = vmatprep.subr.bf16.mxu0 0
        %6850 = vmatpush1.bf16.msra.mxu0 0
        %6851 = vmatprep.subr.bf16.mxu0 0
        %6852 = vmatpush1.bf16.msra.mxu0 0
        %6853 = vmatprep.subr.bf16.mxu0 0
        %6854 = vmatpush1.bf16.msra.mxu0 0
        %6855 = vmatprep.subr.bf16.mxu0 0
        %6856 = vmatpush1.bf16.msra.mxu0 0
        %6857 = vmatprep.subr.bf16.mxu0 0
        %6858 = vmatpush1.bf16.msra.mxu0 0
        %6859 = vmatprep.subr.bf16.mxu0 0
        %6860 = vmatpush1.bf16.msra.mxu0 0
        %6861 = vmatprep.subr.bf16.mxu0 0
        %6862 = vmatpush1.bf16.msra.mxu0 0
        %6863 = vmatprep.mubr.bf16.mxu0 0
        %6864 = vmatmul.mubr.bf16.gmra.mrb[0].mxu0 %v6817
        %v6865 = vpop.f32.mrb[0].mxu0
        %v6866 = vadd.f32 0.0, %v6865
        %v6867 = vpop.f32.mrb[0].mxu0
        %v6868 = vpop.f32.mrb[0].mxu0
        %v6869 = vadd.f32 0.0, %v6868
        %v6870 = vpop.f32.mrb[0].mxu0
        %6871 = vmatprep.mubr.bf16.mxu0 0
        %6872 = vmatmul.mubr.bf16.gmra.mrb[0].mxu0 %v6820
        %v6873 = vpop.f32.mrb[0].mxu0
        %v6874 = vadd.f32 0.0, %v6873
        %v6875 = vpop.f32.mrb[0].mxu0
        %v6876 = vpop.f32.mrb[0].mxu0
        %v6877 = vadd.f32 0.0, %v6876
        %v6878 = vpop.f32.mrb[0].mxu0
        %6879 = vmatprep.mubr.bf16.mxu0 0
        %6880 = vmatmul.mubr.bf16.gmra.mrb[0].mxu0 %v6823
        %v6881 = vpop.f32.mrb[0].mxu0
        %v6882 = vadd.f32 0.0, %v6881
        %v6883 = vpop.f32.mrb[0].mxu0
        %v6884 = vpop.f32.mrb[0].mxu0
        %v6885 = vadd.f32 0.0, %v6884
        %v6886 = vpop.f32.mrb[0].mxu0
        %6887 = vmatprep.mubr.bf16.mxu0 0
        %6888 = vmatmul.mubr.bf16.gmra.mrb[0].mxu0 %v6826
        %v6889 = vpop.f32.mrb[0].mxu0
        %v6890 = vadd.f32 0.0, %v6889
        %v6891 = vpop.f32.mrb[0].mxu0
        %v6892 = vpop.f32.mrb[0].mxu0
        %v6893 = vadd.f32 0.0, %v6892
        %v6894 = vpop.f32.mrb[0].mxu0
        %6895 = vdwg.mxu0
        %v6896 = vadd.f32 %v6793, %v6866
        %v6897 = vadd.f32 %v6794, %v6869
        %v6898 = vadd.f32 %v6795, %v6874
        %v6899 = vadd.f32 %v6796, %v6877
        %v6900 = vadd.f32 %v6797, %v6882
        %v6901 = vadd.f32 %v6798, %v6885
        %v6902 = vadd.f32 %v6799, %v6890
        %v6903 = vadd.f32 %v6800, %v6893
        %v6904 = vld [vmem:[%s6801 + $0x8] sm:$0xff]
        %v6905 = vld [vmem:[%s6801 + $0x20] sm:$0xff]
        %v6906 = vld [vmem:[%s6801 + $0x38] sm:$0xff]
        %v6907 = vld [vmem:[%s6801 + $0x50] sm:$0xff]
        %v6908 = vld [vmem:[%s6801 + $0x68] sm:$0xff]
        %v6909 = vld [vmem:[%s6801 + $0x80] sm:$0xff]
        %v6910 = vld [vmem:[%s6801 + $0x98] sm:$0xff]
        %v6911 = vld [vmem:[%s6801 + $0xb0] sm:$0xff]
        %v6912 = vpack.c.bf16 %v6905, %v6904
        %v6913 = vpack.c.bf16 %v6907, %v6906
        %v6914 = vpack.c.bf16 %v6909, %v6908
        %v6915 = vpack.c.bf16 %v6911, %v6910
        %s6916 = scalar_lea.vmem %s5, 28
        %v6917 = vld [vmem:[%s6916] sm:$0xf]
        %v6919 = vsel %vm3288, %v6912, 0
        %v6922 = vsel %vm3288, %v6913, 0
        %v6925 = vsel %vm3288, %v6914, 0
        %v6928 = vsel %vm3288, %v6915, 0
        %v6931 = vsel %vm3541, %v6917, 0
        %6933 = vmatprep.subr.bf16.mxu0 0
        %6934 = vmatpush1.bf16.msra.mxu0 %v6931
        %6935 = vmatprep.subr.bf16.mxu0 0
        %6936 = vmatpush1.bf16.msra.mxu0 0
        %6937 = vmatprep.subr.bf16.mxu0 0
        %6938 = vmatpush1.bf16.msra.mxu0 0
        %6939 = vmatprep.subr.bf16.mxu0 0
        %6940 = vmatpush1.bf16.msra.mxu0 0
        %6941 = vmatprep.subr.bf16.mxu0 0
        %6942 = vmatpush1.bf16.msra.mxu0 0
        %6943 = vmatprep.subr.bf16.mxu0 0
        %6944 = vmatpush1.bf16.msra.mxu0 0
        %6945 = vmatprep.subr.bf16.mxu0 0
        %6946 = vmatpush1.bf16.msra.mxu0 0
        %6947 = vmatprep.subr.bf16.mxu0 0
        %6948 = vmatpush1.bf16.msra.mxu0 0
        %6949 = vmatprep.subr.bf16.mxu0 0
        %6950 = vmatpush1.bf16.msra.mxu0 0
        %6951 = vmatprep.subr.bf16.mxu0 0
        %6952 = vmatpush1.bf16.msra.mxu0 0
        %6953 = vmatprep.subr.bf16.mxu0 0
        %6954 = vmatpush1.bf16.msra.mxu0 0
        %6955 = vmatprep.subr.bf16.mxu0 0
        %6956 = vmatpush1.bf16.msra.mxu0 0
        %6957 = vmatprep.subr.bf16.mxu0 0
        %6958 = vmatpush1.bf16.msra.mxu0 0
        %6959 = vmatprep.subr.bf16.mxu0 0
        %6960 = vmatpush1.bf16.msra.mxu0 0
        %6961 = vmatprep.subr.bf16.mxu0 0
        %6962 = vmatpush1.bf16.msra.mxu0 0
        %6963 = vmatprep.subr.bf16.mxu0 0
        %6964 = vmatpush1.bf16.msra.mxu0 0
        %6965 = vmatprep.mubr.bf16.mxu0 0
        %6966 = vmatmul.mubr.bf16.gmra.mrb[0].mxu0 %v6919
        %v6967 = vpop.f32.mrb[0].mxu0
        %v6968 = vadd.f32 0.0, %v6967
        %v6969 = vpop.f32.mrb[0].mxu0
        %v6970 = vpop.f32.mrb[0].mxu0
        %v6971 = vadd.f32 0.0, %v6970
        %v6972 = vpop.f32.mrb[0].mxu0
        %6973 = vmatprep.mubr.bf16.mxu0 0
        %6974 = vmatmul.mubr.bf16.gmra.mrb[0].mxu0 %v6922
        %v6975 = vpop.f32.mrb[0].mxu0
        %v6976 = vadd.f32 0.0, %v6975
        %v6977 = vpop.f32.mrb[0].mxu0
        %v6978 = vpop.f32.mrb[0].mxu0
        %v6979 = vadd.f32 0.0, %v6978
        %v6980 = vpop.f32.mrb[0].mxu0
        %6981 = vmatprep.mubr.bf16.mxu0 0
        %6982 = vmatmul.mubr.bf16.gmra.mrb[0].mxu0 %v6925
        %v6983 = vpop.f32.mrb[0].mxu0
        %v6984 = vadd.f32 0.0, %v6983
        %v6985 = vpop.f32.mrb[0].mxu0
        %v6986 = vpop.f32.mrb[0].mxu0
        %v6987 = vadd.f32 0.0, %v6986
        %v6988 = vpop.f32.mrb[0].mxu0
        %6989 = vmatprep.mubr.bf16.mxu0 0
        %6990 = vmatmul.mubr.bf16.gmra.mrb[0].mxu0 %v6928
        %v6991 = vpop.f32.mrb[0].mxu0
        %v6992 = vadd.f32 0.0, %v6991
        %v6993 = vpop.f32.mrb[0].mxu0
        %v6994 = vpop.f32.mrb[0].mxu0
        %v6995 = vadd.f32 0.0, %v6994
        %v6996 = vpop.f32.mrb[0].mxu0
        %6997 = vdwg.mxu0
        %v6998 = vadd.f32 %v6896, %v6968
        %v6999 = vadd.f32 %v6897, %v6971
        %v7000 = vadd.f32 %v6898, %v6976
        %v7001 = vadd.f32 %v6899, %v6979
        %v7002 = vadd.f32 %v6900, %v6984
        %v7003 = vadd.f32 %v6901, %v6987
        %v7004 = vadd.f32 %v6902, %v6992
        %v7005 = vadd.f32 %v6903, %v6995
        %v7006 = vld [vmem:[%s6801 + $0x9] sm:$0xff]
        %v7007 = vld [vmem:[%s6801 + $0x21] sm:$0xff]
        %v7008 = vld [vmem:[%s6801 + $0x39] sm:$0xff]
        %v7009 = vld [vmem:[%s6801 + $0x51] sm:$0xff]
        %v7010 = vld [vmem:[%s6801 + $0x69] sm:$0xff]
        %v7011 = vld [vmem:[%s6801 + $0x81] sm:$0xff]
        %v7012 = vld [vmem:[%s6801 + $0x99] sm:$0xff]
        %v7013 = vld [vmem:[%s6801 + $0xb1] sm:$0xff]
        %v7014 = vpack.c.bf16 %v7007, %v7006
        %v7015 = vpack.c.bf16 %v7009, %v7008
        %v7016 = vpack.c.bf16 %v7011, %v7010
        %v7017 = vpack.c.bf16 %v7013, %v7012
        %s7018 = scalar_lea.vmem %s5, 32
        %v7019 = vld [vmem:[%s7018] sm:$0xf]
        %v7021 = vsel %vm3288, %v7014, 0
        %v7024 = vsel %vm3288, %v7015, 0
        %v7027 = vsel %vm3288, %v7016, 0
        %v7030 = vsel %vm3288, %v7017, 0
        %v7033 = vsel %vm3541, %v7019, 0
        %7035 = vmatprep.subr.bf16.mxu0 0
        %7036 = vmatpush1.bf16.msra.mxu0 %v7033
        %7037 = vmatprep.subr.bf16.mxu0 0
        %7038 = vmatpush1.bf16.msra.mxu0 0
        %7039 = vmatprep.subr.bf16.mxu0 0
        %7040 = vmatpush1.bf16.msra.mxu0 0
        %7041 = vmatprep.subr.bf16.mxu0 0
        %7042 = vmatpush1.bf16.msra.mxu0 0
        %7043 = vmatprep.subr.bf16.mxu0 0
        %7044 = vmatpush1.bf16.msra.mxu0 0
        %7045 = vmatprep.subr.bf16.mxu0 0
        %7046 = vmatpush1.bf16.msra.mxu0 0
        %7047 = vmatprep.subr.bf16.mxu0 0
        %7048 = vmatpush1.bf16.msra.mxu0 0
        %7049 = vmatprep.subr.bf16.mxu0 0
        %7050 = vmatpush1.bf16.msra.mxu0 0
        %7051 = vmatprep.subr.bf16.mxu0 0
        %7052 = vmatpush1.bf16.msra.mxu0 0
        %7053 = vmatprep.subr.bf16.mxu0 0
        %7054 = vmatpush1.bf16.msra.mxu0 0
        %7055 = vmatprep.subr.bf16.mxu0 0
        %7056 = vmatpush1.bf16.msra.mxu0 0
        %7057 = vmatprep.subr.bf16.mxu0 0
        %7058 = vmatpush1.bf16.msra.mxu0 0
        %7059 = vmatprep.subr.bf16.mxu0 0
        %7060 = vmatpush1.bf16.msra.mxu0 0
        %7061 = vmatprep.subr.bf16.mxu0 0
        %7062 = vmatpush1.bf16.msra.mxu0 0
        %7063 = vmatprep.subr.bf16.mxu0 0
        %7064 = vmatpush1.bf16.msra.mxu0 0
        %7065 = vmatprep.subr.bf16.mxu0 0
        %7066 = vmatpush1.bf16.msra.mxu0 0
        %7067 = vmatprep.mubr.bf16.mxu0 0
        %7068 = vmatmul.mubr.bf16.gmra.mrb[0].mxu0 %v7021
        %v7069 = vpop.f32.mrb[0].mxu0
        %v7070 = vadd.f32 0.0, %v7069
        %v7071 = vpop.f32.mrb[0].mxu0
        %v7072 = vpop.f32.mrb[0].mxu0
        %v7073 = vadd.f32 0.0, %v7072
        %v7074 = vpop.f32.mrb[0].mxu0
        %7075 = vmatprep.mubr.bf16.mxu0 0
        %7076 = vmatmul.mubr.bf16.gmra.mrb[0].mxu0 %v7024
        %v7077 = vpop.f32.mrb[0].mxu0
        %v7078 = vadd.f32 0.0, %v7077
        %v7079 = vpop.f32.mrb[0].mxu0
        %v7080 = vpop.f32.mrb[0].mxu0
        %v7081 = vadd.f32 0.0, %v7080
        %v7082 = vpop.f32.mrb[0].mxu0
        %7083 = vmatprep.mubr.bf16.mxu0 0
        %7084 = vmatmul.mubr.bf16.gmra.mrb[0].mxu0 %v7027
        %v7085 = vpop.f32.mrb[0].mxu0
        %v7086 = vadd.f32 0.0, %v7085
        %v7087 = vpop.f32.mrb[0].mxu0
        %v7088 = vpop.f32.mrb[0].mxu0
        %v7089 = vadd.f32 0.0, %v7088
        %v7090 = vpop.f32.mrb[0].mxu0
        %7091 = vmatprep.mubr.bf16.mxu0 0
        %7092 = vmatmul.mubr.bf16.gmra.mrb[0].mxu0 %v7030
        %v7093 = vpop.f32.mrb[0].mxu0
        %v7094 = vadd.f32 0.0, %v7093
        %v7095 = vpop.f32.mrb[0].mxu0
        %v7096 = vpop.f32.mrb[0].mxu0
        %v7097 = vadd.f32 0.0, %v7096
        %v7098 = vpop.f32.mrb[0].mxu0
        %7099 = vdwg.mxu0
        %v7100 = vadd.f32 %v6998, %v7070
        %v7101 = vadd.f32 %v6999, %v7073
        %v7102 = vadd.f32 %v7000, %v7078
        %v7103 = vadd.f32 %v7001, %v7081
        %v7104 = vadd.f32 %v7002, %v7086
        %v7105 = vadd.f32 %v7003, %v7089
        %v7106 = vadd.f32 %v7004, %v7094
        %v7107 = vadd.f32 %v7005, %v7097
        %v7108 = vld [vmem:[%s6] sm:$0x1]
        %v7110 = vlaneseq
        %v7111 = vshrl.u32 %v7110, 7
        %v7112 = vsub.s32 0, %v7111
        %v7113 = vrot.slane %v7108, %v7112
        %v7115 = vadd.f32 %v7100, %v7113
        %v7116 = vadd.f32 %v7101, %v7113
        %v7117 = vadd.f32 %v7102, %v7113
        %v7118 = vadd.f32 %v7103, %v7113
        %v7119 = vadd.f32 %v7104, %v7113
        %v7120 = vadd.f32 %v7105, %v7113
        %v7121 = vadd.f32 %v7106, %v7113
        %v7122 = vadd.f32 %v7107, %v7113
        %v7123 = vmax.f32 %v7115, 0.0
        %v7124 = vmax.f32 %v7116, 0.0
        %v7125 = vmax.f32 %v7117, 0.0
        %v7126 = vmax.f32 %v7118, 0.0
        %v7127 = vmax.f32 %v7119, 0.0
        %v7128 = vmax.f32 %v7120, 0.0
        %v7129 = vmax.f32 %v7121, 0.0
        %v7130 = vmax.f32 %v7122, 0.0
        %vm7131 = vcmask 130048
        %7132 = vst.msk [vmem:[#allocation5] sm:$0xff] %vm7131, 0.0
        %7133 = vst.msk [vmem:[#allocation5 + $0x8] sm:$0xff] %vm7131, 0.0
        %7134 = vst.msk [vmem:[#allocation5 + $0x10] sm:$0xff] %vm7131, 0.0
        %7135 = vst.msk [vmem:[#allocation5 + $0x18] sm:$0xff] %vm7131, 0.0
        %7136 = vst.msk [vmem:[#allocation5 + $0x20] sm:$0xff] %vm7131, 0.0
        %7137 = vst.msk [vmem:[#allocation5 + $0x28] sm:$0xff] %vm7131, 0.0
        %7138 = vst.msk [vmem:[#allocation5 + $0x30] sm:$0xff] %vm7131, 0.0
        %7139 = vst.msk [vmem:[#allocation5 + $0x38] sm:$0xff] %vm7131, 0.0
        %7140 = vst.msk [vmem:[#allocation5 + $0x40] sm:$0xff] %vm7131, 0.0
        %7141 = vst.msk [vmem:[#allocation5 + $0x48] sm:$0xff] %vm7131, 0.0
        %7142 = vst.msk [vmem:[#allocation5 + $0x50] sm:$0xff] %vm7131, 0.0
        %7143 = vst.msk [vmem:[#allocation5 + $0x58] sm:$0xff] %vm7131, 0.0
        %7144 = vst.msk [vmem:[#allocation5 + $0x60] sm:$0xff] %vm7131, 0.0
        %7145 = vst.msk [vmem:[#allocation5 + $0x68] sm:$0xff] %vm7131, 0.0
        %7146 = vst.msk [vmem:[#allocation5 + $0x70] sm:$0xff] %vm7131, 0.0
        %7147 = vst.msk [vmem:[#allocation5 + $0x78] sm:$0xff] %vm7131, 0.0
        %7148 = vst.msk [vmem:[#allocation5 + $0x80] sm:$0xff] %vm7131, 0.0
        %7149 = vst.msk [vmem:[#allocation5 + $0x88] sm:$0xff] %vm7131, 0.0
        %7150 = vst.msk [vmem:[#allocation5 + $0x90] sm:$0xff] %vm7131, 0.0
        %7151 = vst.msk [vmem:[#allocation5 + $0x98] sm:$0xff] %vm7131, 0.0
        %7152 = vst.msk [vmem:[#allocation5 + $0xa0] sm:$0xff] %vm7131, 0.0
        %7153 = vst.msk [vmem:[#allocation5 + $0xa8] sm:$0xff] %vm7131, 0.0
        %7154 = vst.msk [vmem:[#allocation5 + $0xb0] sm:$0xff] %vm7131, 0.0
        %7155 = vst.msk [vmem:[#allocation5 + $0xb8] sm:$0xff] %vm7131, 0.0
        %7156 = vst.msk [vmem:[#allocation5 + $0xc0] sm:$0xff] %vm7131, 0.0
        %7157 = vst.msk [vmem:[#allocation5 + $0xc8] sm:$0xff] %vm7131, 0.0
        %7158 = vst.msk [vmem:[#allocation5 + $0xd0] sm:$0xff] %vm7131, 0.0
        %7159 = vst.msk [vmem:[#allocation5 + $0xd8] sm:$0xff] %vm7131, 0.0
        %7160 = vst.msk [vmem:[#allocation5 + $0xe0] sm:$0xff] %vm7131, 0.0
        %7161 = vst.msk [vmem:[#allocation5 + $0xe8] sm:$0xff] %vm7131, 0.0
        %s7162 = scalar_lea.vmem [#allocation5], 24
        %7163 = vst.msk [vmem:[%s7162 + $0x8] sm:$0xff] %vm7131, %v7123
        %7164 = vst.msk [vmem:[%s7162 + $0x20] sm:$0xff] %vm7131, %v7124
        %7165 = vst.msk [vmem:[%s7162 + $0x38] sm:$0xff] %vm7131, %v7125
        %7166 = vst.msk [vmem:[%s7162 + $0x50] sm:$0xff] %vm7131, %v7126
        %7167 = vst.msk [vmem:[%s7162 + $0x68] sm:$0xff] %vm7131, %v7127
        %7168 = vst.msk [vmem:[%s7162 + $0x80] sm:$0xff] %vm7131, %v7128
        %7169 = vst.msk [vmem:[%s7162 + $0x98] sm:$0xff] %vm7131, %v7129
        %7170 = vst.msk [vmem:[%s7162 + $0xb0] sm:$0xff] %vm7131, %v7130
        %v7171 = vld [vmem:[#allocation5 + $0x7] sm:$0xff]
        %v7172 = vld [vmem:[#allocation5 + $0x1f] sm:$0xff]
        %v7173 = vld [vmem:[#allocation5 + $0x37] sm:$0xff]
        %v7174 = vld [vmem:[#allocation5 + $0x4f] sm:$0xff]
        %v7175 = vld [vmem:[#allocation5 + $0x67] sm:$0xff]
        %v7176 = vld [vmem:[#allocation5 + $0x7f] sm:$0xff]
        %v7177 = vld [vmem:[#allocation5 + $0x97] sm:$0xff]
        %v7178 = vld [vmem:[#allocation5 + $0xaf] sm:$0xff]
        %v7179 = vpack.c.bf16 %v7172, %v7171
        %v7180 = vpack.c.bf16 %v7174, %v7173
        %v7181 = vpack.c.bf16 %v7176, %v7175
        %v7182 = vpack.c.bf16 %v7178, %v7177
        %v7183 = vld [vmem:[%s7] sm:$0xf]
        %v7184 = vld [vmem:[%s7 + $0x4] sm:$0xf]
        %v7185 = vld [vmem:[#allocation5 + $0x8] sm:$0xff]
        %v7186 = vld [vmem:[#allocation5 + $0x20] sm:$0xff]
        %v7187 = vld [vmem:[#allocation5 + $0x38] sm:$0xff]
        %v7188 = vld [vmem:[#allocation5 + $0x50] sm:$0xff]
        %v7189 = vld [vmem:[#allocation5 + $0x68] sm:$0xff]
        %v7190 = vld [vmem:[#allocation5 + $0x80] sm:$0xff]
        %v7191 = vld [vmem:[#allocation5 + $0x98] sm:$0xff]
        %v7192 = vld [vmem:[#allocation5 + $0xb0] sm:$0xff]
        %v7193 = vpack.c.bf16 %v7186, %v7185
        %v7194 = vpack.c.bf16 %v7188, %v7187
        %v7195 = vpack.c.bf16 %v7190, %v7189
        %v7196 = vpack.c.bf16 %v7192, %v7191
        %s7197 = scalar_lea.vmem %s7, 8
        %v7198 = vld [vmem:[%s7197] sm:$0xf]
        %v7199 = vld [vmem:[%s7197 + $0x4] sm:$0xf]
        %v7202 = vunpack.c.l.b16 %v7198
        %v7203 = vunpack.c.l.b16 %v7199
        %v7204 = vpack.c.b16 %v7203, %v7202
        %v7207 = vsel %vm7131, %v7193, 0
        %v7210 = vsel %vm7131, %v7194, 0
        %v7213 = vsel %vm7131, %v7195, 0
        %v7216 = vsel %vm7131, %v7196, 0
        %7218 = vmatprep.subr.bf16.mxu0 0
        %7219 = vmatpush1.bf16.msra.mxu0 %v7204
        %7220 = vmatprep.subr.bf16.mxu0 0
        %7221 = vmatpush1.bf16.msra.mxu0 0
        %7222 = vmatprep.subr.bf16.mxu0 0
        %7223 = vmatpush1.bf16.msra.mxu0 0
        %7224 = vmatprep.subr.bf16.mxu0 0
        %7225 = vmatpush1.bf16.msra.mxu0 0
        %7226 = vmatprep.subr.bf16.mxu0 0
        %7227 = vmatpush1.bf16.msra.mxu0 0
        %7228 = vmatprep.subr.bf16.mxu0 0
        %7229 = vmatpush1.bf16.msra.mxu0 0
        %7230 = vmatprep.subr.bf16.mxu0 0
        %7231 = vmatpush1.bf16.msra.mxu0 0
        %7232 = vmatprep.subr.bf16.mxu0 0
        %7233 = vmatpush1.bf16.msra.mxu0 0
        %7234 = vmatprep.subr.bf16.mxu0 0
        %7235 = vmatpush1.bf16.msra.mxu0 0
        %7236 = vmatprep.subr.bf16.mxu0 0
        %7237 = vmatpush1.bf16.msra.mxu0 0
        %7238 = vmatprep.subr.bf16.mxu0 0
        %7239 = vmatpush1.bf16.msra.mxu0 0
        %7240 = vmatprep.subr.bf16.mxu0 0
        %7241 = vmatpush1.bf16.msra.mxu0 0
        %7242 = vmatprep.subr.bf16.mxu0 0
        %7243 = vmatpush1.bf16.msra.mxu0 0
        %7244 = vmatprep.subr.bf16.mxu0 0
        %7245 = vmatpush1.bf16.msra.mxu0 0
        %7246 = vmatprep.subr.bf16.mxu0 0
        %7247 = vmatpush1.bf16.msra.mxu0 0
        %7248 = vmatprep.subr.bf16.mxu0 0
        %7249 = vmatpush1.bf16.msra.mxu0 0
        %7250 = vmatprep.mubr.bf16.mxu0 0
        %7251 = vmatmul.mubr.bf16.gmra.mrb[0].mxu0 %v7207
        %v7252 = vpop.f32.mrb[0].mxu0
        %v7253 = vadd.f32 0.0, %v7252
        %v7254 = vpop.f32.mrb[0].mxu0
        %v7255 = vpop.f32.mrb[0].mxu0
        %v7256 = vadd.f32 0.0, %v7255
        %v7257 = vpop.f32.mrb[0].mxu0
        %7258 = vmatprep.mubr.bf16.mxu0 0
        %7259 = vmatmul.mubr.bf16.gmra.mrb[0].mxu0 %v7210
        %v7260 = vpop.f32.mrb[0].mxu0
        %v7261 = vadd.f32 0.0, %v7260
        %v7262 = vpop.f32.mrb[0].mxu0
        %v7263 = vpop.f32.mrb[0].mxu0
        %v7264 = vadd.f32 0.0, %v7263
        %v7265 = vpop.f32.mrb[0].mxu0
        %7266 = vmatprep.mubr.bf16.mxu0 0
        %7267 = vmatmul.mubr.bf16.gmra.mrb[0].mxu0 %v7213
        %v7268 = vpop.f32.mrb[0].mxu0
        %v7269 = vadd.f32 0.0, %v7268
        %v7270 = vpop.f32.mrb[0].mxu0
        %v7271 = vpop.f32.mrb[0].mxu0
        %v7272 = vadd.f32 0.0, %v7271
        %v7273 = vpop.f32.mrb[0].mxu0
        %7274 = vmatprep.mubr.bf16.mxu0 0
        %7275 = vmatmul.mubr.bf16.gmra.mrb[0].mxu0 %v7216
        %v7276 = vpop.f32.mrb[0].mxu0
        %v7277 = vadd.f32 0.0, %v7276
        %v7278 = vpop.f32.mrb[0].mxu0
        %v7279 = vpop.f32.mrb[0].mxu0
        %v7280 = vadd.f32 0.0, %v7279
        %v7281 = vpop.f32.mrb[0].mxu0
        %7282 = vdwg.mxu0
        %v7285 = vunpack.c.l.b16 %v7183
        %v7286 = vunpack.c.l.b16 %v7184
        %v7287 = vpack.c.b16 %v7286, %v7285
        %v7290 = vsel %vm7131, %v7179, 0
        %v7293 = vsel %vm7131, %v7180, 0
        %v7296 = vsel %vm7131, %v7181, 0
        %v7299 = vsel %vm7131, %v7182, 0
        %7301 = vmatprep.subr.bf16.mxu0 0
        %7302 = vmatpush1.bf16.msra.mxu0 %v7287
        %7303 = vmatprep.subr.bf16.mxu0 0
        %7304 = vmatpush1.bf16.msra.mxu0 0
        %7305 = vmatprep.subr.bf16.mxu0 0
        %7306 = vmatpush1.bf16.msra.mxu0 0
        %7307 = vmatprep.subr.bf16.mxu0 0
        %7308 = vmatpush1.bf16.msra.mxu0 0
        %7309 = vmatprep.subr.bf16.mxu0 0
        %7310 = vmatpush1.bf16.msra.mxu0 0
        %7311 = vmatprep.subr.bf16.mxu0 0
        %7312 = vmatpush1.bf16.msra.mxu0 0
        %7313 = vmatprep.subr.bf16.mxu0 0
        %7314 = vmatpush1.bf16.msra.mxu0 0
        %7315 = vmatprep.subr.bf16.mxu0 0
        %7316 = vmatpush1.bf16.msra.mxu0 0
        %7317 = vmatprep.subr.bf16.mxu0 0
        %7318 = vmatpush1.bf16.msra.mxu0 0
        %7319 = vmatprep.subr.bf16.mxu0 0
        %7320 = vmatpush1.bf16.msra.mxu0 0
        %7321 = vmatprep.subr.bf16.mxu0 0
        %7322 = vmatpush1.bf16.msra.mxu0 0
        %7323 = vmatprep.subr.bf16.mxu0 0
        %7324 = vmatpush1.bf16.msra.mxu0 0
        %7325 = vmatprep.subr.bf16.mxu0 0
        %7326 = vmatpush1.bf16.msra.mxu0 0
        %7327 = vmatprep.subr.bf16.mxu0 0
        %7328 = vmatpush1.bf16.msra.mxu0 0
        %7329 = vmatprep.subr.bf16.mxu0 0
        %7330 = vmatpush1.bf16.msra.mxu0 0
        %7331 = vmatprep.subr.bf16.mxu0 0
        %7332 = vmatpush1.bf16.msra.mxu0 0
        %7333 = vmatprep.mubr.bf16.mxu0 0
        %7334 = vmatmul.mubr.bf16.gmra.mrb[0].mxu0 %v7290
        %v7335 = vpop.f32.mrb[0].mxu0
        %v7336 = vadd.f32 %v7253, %v7335
        %v7337 = vpop.f32.mrb[0].mxu0
        %v7338 = vpop.f32.mrb[0].mxu0
        %v7339 = vadd.f32 %v7256, %v7338
        %v7340 = vpop.f32.mrb[0].mxu0
        %7341 = vmatprep.mubr.bf16.mxu0 0
        %7342 = vmatmul.mubr.bf16.gmra.mrb[0].mxu0 %v7293
        %v7343 = vpop.f32.mrb[0].mxu0
        %v7344 = vadd.f32 %v7261, %v7343
        %v7345 = vpop.f32.mrb[0].mxu0
        %v7346 = vpop.f32.mrb[0].mxu0
        %v7347 = vadd.f32 %v7264, %v7346
        %v7348 = vpop.f32.mrb[0].mxu0
        %7349 = vmatprep.mubr.bf16.mxu0 0
        %7350 = vmatmul.mubr.bf16.gmra.mrb[0].mxu0 %v7296
        %v7351 = vpop.f32.mrb[0].mxu0
        %v7352 = vadd.f32 %v7269, %v7351
        %v7353 = vpop.f32.mrb[0].mxu0
        %v7354 = vpop.f32.mrb[0].mxu0
        %v7355 = vadd.f32 %v7272, %v7354
        %v7356 = vpop.f32.mrb[0].mxu0
        %7357 = vmatprep.mubr.bf16.mxu0 0
        %7358 = vmatmul.mubr.bf16.gmra.mrb[0].mxu0 %v7299
        %v7359 = vpop.f32.mrb[0].mxu0
        %v7360 = vadd.f32 %v7277, %v7359
        %v7361 = vpop.f32.mrb[0].mxu0
        %v7362 = vpop.f32.mrb[0].mxu0
        %v7363 = vadd.f32 %v7280, %v7362
        %v7364 = vpop.f32.mrb[0].mxu0
        %7365 = vdwg.mxu0
        %v7366 = vld [vmem:[#allocation5 + $0x9] sm:$0xff]
        %v7367 = vld [vmem:[#allocation5 + $0x21] sm:$0xff]
        %v7368 = vld [vmem:[#allocation5 + $0x39] sm:$0xff]
        %v7369 = vld [vmem:[#allocation5 + $0x51] sm:$0xff]
        %v7370 = vld [vmem:[#allocation5 + $0x69] sm:$0xff]
        %v7371 = vld [vmem:[#allocation5 + $0x81] sm:$0xff]
        %v7372 = vld [vmem:[#allocation5 + $0x99] sm:$0xff]
        %v7373 = vld [vmem:[#allocation5 + $0xb1] sm:$0xff]
        %v7374 = vpack.c.bf16 %v7367, %v7366
        %v7375 = vpack.c.bf16 %v7369, %v7368
        %v7376 = vpack.c.bf16 %v7371, %v7370
        %v7377 = vpack.c.bf16 %v7373, %v7372
        %s7378 = scalar_lea.vmem %s7, 16
        %v7379 = vld [vmem:[%s7378] sm:$0xf]
        %v7380 = vld [vmem:[%s7378 + $0x4] sm:$0xf]
        %v7383 = vunpack.c.l.b16 %v7379
        %v7384 = vunpack.c.l.b16 %v7380
        %v7385 = vpack.c.b16 %v7384, %v7383
        %v7388 = vsel %vm7131, %v7374, 0
        %v7391 = vsel %vm7131, %v7375, 0
        %v7394 = vsel %vm7131, %v7376, 0
        %v7397 = vsel %vm7131, %v7377, 0
        %7399 = vmatprep.subr.bf16.mxu0 0
        %7400 = vmatpush1.bf16.msra.mxu0 %v7385
        %7401 = vmatprep.subr.bf16.mxu0 0
        %7402 = vmatpush1.bf16.msra.mxu0 0
        %7403 = vmatprep.subr.bf16.mxu0 0
        %7404 = vmatpush1.bf16.msra.mxu0 0
        %7405 = vmatprep.subr.bf16.mxu0 0
        %7406 = vmatpush1.bf16.msra.mxu0 0
        %7407 = vmatprep.subr.bf16.mxu0 0
        %7408 = vmatpush1.bf16.msra.mxu0 0
        %7409 = vmatprep.subr.bf16.mxu0 0
        %7410 = vmatpush1.bf16.msra.mxu0 0
        %7411 = vmatprep.subr.bf16.mxu0 0
        %7412 = vmatpush1.bf16.msra.mxu0 0
        %7413 = vmatprep.subr.bf16.mxu0 0
        %7414 = vmatpush1.bf16.msra.mxu0 0
        %7415 = vmatprep.subr.bf16.mxu0 0
        %7416 = vmatpush1.bf16.msra.mxu0 0
        %7417 = vmatprep.subr.bf16.mxu0 0
        %7418 = vmatpush1.bf16.msra.mxu0 0
        %7419 = vmatprep.subr.bf16.mxu0 0
        %7420 = vmatpush1.bf16.msra.mxu0 0
        %7421 = vmatprep.subr.bf16.mxu0 0
        %7422 = vmatpush1.bf16.msra.mxu0 0
        %7423 = vmatprep.subr.bf16.mxu0 0
        %7424 = vmatpush1.bf16.msra.mxu0 0
        %7425 = vmatprep.subr.bf16.mxu0 0
        %7426 = vmatpush1.bf16.msra.mxu0 0
        %7427 = vmatprep.subr.bf16.mxu0 0
        %7428 = vmatpush1.bf16.msra.mxu0 0
        %7429 = vmatprep.subr.bf16.mxu0 0
        %7430 = vmatpush1.bf16.msra.mxu0 0
        %7431 = vmatprep.mubr.bf16.mxu0 0
        %7432 = vmatmul.mubr.bf16.gmra.mrb[0].mxu0 %v7388
        %v7433 = vpop.f32.mrb[0].mxu0
        %v7434 = vadd.f32 0.0, %v7433
        %v7435 = vpop.f32.mrb[0].mxu0
        %v7436 = vpop.f32.mrb[0].mxu0
        %v7437 = vadd.f32 0.0, %v7436
        %v7438 = vpop.f32.mrb[0].mxu0
        %7439 = vmatprep.mubr.bf16.mxu0 0
        %7440 = vmatmul.mubr.bf16.gmra.mrb[0].mxu0 %v7391
        %v7441 = vpop.f32.mrb[0].mxu0
        %v7442 = vadd.f32 0.0, %v7441
        %v7443 = vpop.f32.mrb[0].mxu0
        %v7444 = vpop.f32.mrb[0].mxu0
        %v7445 = vadd.f32 0.0, %v7444
        %v7446 = vpop.f32.mrb[0].mxu0
        %7447 = vmatprep.mubr.bf16.mxu0 0
        %7448 = vmatmul.mubr.bf16.gmra.mrb[0].mxu0 %v7394
        %v7449 = vpop.f32.mrb[0].mxu0
        %v7450 = vadd.f32 0.0, %v7449
        %v7451 = vpop.f32.mrb[0].mxu0
        %v7452 = vpop.f32.mrb[0].mxu0
        %v7453 = vadd.f32 0.0, %v7452
        %v7454 = vpop.f32.mrb[0].mxu0
        %7455 = vmatprep.mubr.bf16.mxu0 0
        %7456 = vmatmul.mubr.bf16.gmra.mrb[0].mxu0 %v7397
        %v7457 = vpop.f32.mrb[0].mxu0
        %v7458 = vadd.f32 0.0, %v7457
        %v7459 = vpop.f32.mrb[0].mxu0
        %v7460 = vpop.f32.mrb[0].mxu0
        %v7461 = vadd.f32 0.0, %v7460
        %v7462 = vpop.f32.mrb[0].mxu0
        %7463 = vdwg.mxu0
        %v7464 = vadd.f32 %v7336, %v7434
        %v7465 = vadd.f32 %v7339, %v7437
        %v7466 = vadd.f32 %v7344, %v7442
        %v7467 = vadd.f32 %v7347, %v7445
        %v7468 = vadd.f32 %v7352, %v7450
        %v7469 = vadd.f32 %v7355, %v7453
        %v7470 = vadd.f32 %v7360, %v7458
        %v7471 = vadd.f32 %v7363, %v7461
        %v7472 = vld [vmem:[%s7162 + $0x7] sm:$0xff]
        %v7473 = vld [vmem:[%s7162 + $0x1f] sm:$0xff]
        %v7474 = vld [vmem:[%s7162 + $0x37] sm:$0xff]
        %v7475 = vld [vmem:[%s7162 + $0x4f] sm:$0xff]
        %v7476 = vld [vmem:[%s7162 + $0x67] sm:$0xff]
        %v7477 = vld [vmem:[%s7162 + $0x7f] sm:$0xff]
        %v7478 = vld [vmem:[%s7162 + $0x97] sm:$0xff]
        %v7479 = vld [vmem:[%s7162 + $0xaf] sm:$0xff]
        %v7480 = vpack.c.bf16 %v7473, %v7472
        %v7481 = vpack.c.bf16 %v7475, %v7474
        %v7482 = vpack.c.bf16 %v7477, %v7476
        %v7483 = vpack.c.bf16 %v7479, %v7478
        %s7484 = scalar_lea.vmem %s7, 24
        %v7485 = vld [vmem:[%s7484] sm:$0xf]
        %v7486 = vld [vmem:[%s7484 + $0x4] sm:$0xf]
        %v7489 = vunpack.c.l.b16 %v7485
        %v7490 = vunpack.c.l.b16 %v7486
        %v7491 = vpack.c.b16 %v7490, %v7489
        %v7494 = vsel %vm7131, %v7480, 0
        %v7497 = vsel %vm7131, %v7481, 0
        %v7500 = vsel %vm7131, %v7482, 0
        %v7503 = vsel %vm7131, %v7483, 0
        %7505 = vmatprep.subr.bf16.mxu0 0
        %7506 = vmatpush1.bf16.msra.mxu0 %v7491
        %7507 = vmatprep.subr.bf16.mxu0 0
        %7508 = vmatpush1.bf16.msra.mxu0 0
        %7509 = vmatprep.subr.bf16.mxu0 0
        %7510 = vmatpush1.bf16.msra.mxu0 0
        %7511 = vmatprep.subr.bf16.mxu0 0
        %7512 = vmatpush1.bf16.msra.mxu0 0
        %7513 = vmatprep.subr.bf16.mxu0 0
        %7514 = vmatpush1.bf16.msra.mxu0 0
        %7515 = vmatprep.subr.bf16.mxu0 0
        %7516 = vmatpush1.bf16.msra.mxu0 0
        %7517 = vmatprep.subr.bf16.mxu0 0
        %7518 = vmatpush1.bf16.msra.mxu0 0
        %7519 = vmatprep.subr.bf16.mxu0 0
        %7520 = vmatpush1.bf16.msra.mxu0 0
        %7521 = vmatprep.subr.bf16.mxu0 0
        %7522 = vmatpush1.bf16.msra.mxu0 0
        %7523 = vmatprep.subr.bf16.mxu0 0
        %7524 = vmatpush1.bf16.msra.mxu0 0
        %7525 = vmatprep.subr.bf16.mxu0 0
        %7526 = vmatpush1.bf16.msra.mxu0 0
        %7527 = vmatprep.subr.bf16.mxu0 0
        %7528 = vmatpush1.bf16.msra.mxu0 0
        %7529 = vmatprep.subr.bf16.mxu0 0
        %7530 = vmatpush1.bf16.msra.mxu0 0
        %7531 = vmatprep.subr.bf16.mxu0 0
        %7532 = vmatpush1.bf16.msra.mxu0 0
        %7533 = vmatprep.subr.bf16.mxu0 0
        %7534 = vmatpush1.bf16.msra.mxu0 0
        %7535 = vmatprep.subr.bf16.mxu0 0
        %7536 = vmatpush1.bf16.msra.mxu0 0
        %7537 = vmatprep.mubr.bf16.mxu0 0
        %7538 = vmatmul.mubr.bf16.gmra.mrb[0].mxu0 %v7494
        %v7539 = vpop.f32.mrb[0].mxu0
        %v7540 = vadd.f32 0.0, %v7539
        %v7541 = vpop.f32.mrb[0].mxu0
        %v7542 = vpop.f32.mrb[0].mxu0
        %v7543 = vadd.f32 0.0, %v7542
        %v7544 = vpop.f32.mrb[0].mxu0
        %7545 = vmatprep.mubr.bf16.mxu0 0
        %7546 = vmatmul.mubr.bf16.gmra.mrb[0].mxu0 %v7497
        %v7547 = vpop.f32.mrb[0].mxu0
        %v7548 = vadd.f32 0.0, %v7547
        %v7549 = vpop.f32.mrb[0].mxu0
        %v7550 = vpop.f32.mrb[0].mxu0
        %v7551 = vadd.f32 0.0, %v7550
        %v7552 = vpop.f32.mrb[0].mxu0
        %7553 = vmatprep.mubr.bf16.mxu0 0
        %7554 = vmatmul.mubr.bf16.gmra.mrb[0].mxu0 %v7500
        %v7555 = vpop.f32.mrb[0].mxu0
        %v7556 = vadd.f32 0.0, %v7555
        %v7557 = vpop.f32.mrb[0].mxu0
        %v7558 = vpop.f32.mrb[0].mxu0
        %v7559 = vadd.f32 0.0, %v7558
        %v7560 = vpop.f32.mrb[0].mxu0
        %7561 = vmatprep.mubr.bf16.mxu0 0
        %7562 = vmatmul.mubr.bf16.gmra.mrb[0].mxu0 %v7503
        %v7563 = vpop.f32.mrb[0].mxu0
        %v7564 = vadd.f32 0.0, %v7563
        %v7565 = vpop.f32.mrb[0].mxu0
        %v7566 = vpop.f32.mrb[0].mxu0
        %v7567 = vadd.f32 0.0, %v7566
        %v7568 = vpop.f32.mrb[0].mxu0
        %7569 = vdwg.mxu0
        %v7570 = vadd.f32 %v7464, %v7540
        %v7571 = vadd.f32 %v7465, %v7543
        %v7572 = vadd.f32 %v7466, %v7548
        %v7573 = vadd.f32 %v7467, %v7551
        %v7574 = vadd.f32 %v7468, %v7556
        %v7575 = vadd.f32 %v7469, %v7559
        %v7576 = vadd.f32 %v7470, %v7564
        %v7577 = vadd.f32 %v7471, %v7567
        %v7578 = vld [vmem:[%s7162 + $0x8] sm:$0xff]
        %v7579 = vld [vmem:[%s7162 + $0x20] sm:$0xff]
        %v7580 = vld [vmem:[%s7162 + $0x38] sm:$0xff]
        %v7581 = vld [vmem:[%s7162 + $0x50] sm:$0xff]
        %v7582 = vld [vmem:[%s7162 + $0x68] sm:$0xff]
        %v7583 = vld [vmem:[%s7162 + $0x80] sm:$0xff]
        %v7584 = vld [vmem:[%s7162 + $0x98] sm:$0xff]
        %v7585 = vld [vmem:[%s7162 + $0xb0] sm:$0xff]
        %v7586 = vpack.c.bf16 %v7579, %v7578
        %v7587 = vpack.c.bf16 %v7581, %v7580
        %v7588 = vpack.c.bf16 %v7583, %v7582
        %v7589 = vpack.c.bf16 %v7585, %v7584
        %s7590 = scalar_lea.vmem %s7, 32
        %v7591 = vld [vmem:[%s7590] sm:$0xf]
        %v7592 = vld [vmem:[%s7590 + $0x4] sm:$0xf]
        %v7595 = vunpack.c.l.b16 %v7591
        %v7596 = vunpack.c.l.b16 %v7592
        %v7597 = vpack.c.b16 %v7596, %v7595
        %v7600 = vsel %vm7131, %v7586, 0
        %v7603 = vsel %vm7131, %v7587, 0
        %v7606 = vsel %vm7131, %v7588, 0
        %v7609 = vsel %vm7131, %v7589, 0
        %7611 = vmatprep.subr.bf16.mxu0 0
        %7612 = vmatpush1.bf16.msra.mxu0 %v7597
        %7613 = vmatprep.subr.bf16.mxu0 0
        %7614 = vmatpush1.bf16.msra.mxu0 0
        %7615 = vmatprep.subr.bf16.mxu0 0
        %7616 = vmatpush1.bf16.msra.mxu0 0
        %7617 = vmatprep.subr.bf16.mxu0 0
        %7618 = vmatpush1.bf16.msra.mxu0 0
        %7619 = vmatprep.subr.bf16.mxu0 0
        %7620 = vmatpush1.bf16.msra.mxu0 0
        %7621 = vmatprep.subr.bf16.mxu0 0
        %7622 = vmatpush1.bf16.msra.mxu0 0
        %7623 = vmatprep.subr.bf16.mxu0 0
        %7624 = vmatpush1.bf16.msra.mxu0 0
        %7625 = vmatprep.subr.bf16.mxu0 0
        %7626 = vmatpush1.bf16.msra.mxu0 0
        %7627 = vmatprep.subr.bf16.mxu0 0
        %7628 = vmatpush1.bf16.msra.mxu0 0
        %7629 = vmatprep.subr.bf16.mxu0 0
        %7630 = vmatpush1.bf16.msra.mxu0 0
        %7631 = vmatprep.subr.bf16.mxu0 0
        %7632 = vmatpush1.bf16.msra.mxu0 0
        %7633 = vmatprep.subr.bf16.mxu0 0
        %7634 = vmatpush1.bf16.msra.mxu0 0
        %7635 = vmatprep.subr.bf16.mxu0 0
        %7636 = vmatpush1.bf16.msra.mxu0 0
        %7637 = vmatprep.subr.bf16.mxu0 0
        %7638 = vmatpush1.bf16.msra.mxu0 0
        %7639 = vmatprep.subr.bf16.mxu0 0
        %7640 = vmatpush1.bf16.msra.mxu0 0
        %7641 = vmatprep.subr.bf16.mxu0 0
        %7642 = vmatpush1.bf16.msra.mxu0 0
        %7643 = vmatprep.mubr.bf16.mxu0 0
        %7644 = vmatmul.mubr.bf16.gmra.mrb[0].mxu0 %v7600
        %v7645 = vpop.f32.mrb[0].mxu0
        %v7646 = vadd.f32 0.0, %v7645
        %v7647 = vpop.f32.mrb[0].mxu0
        %v7648 = vpop.f32.mrb[0].mxu0
        %v7649 = vadd.f32 0.0, %v7648
        %v7650 = vpop.f32.mrb[0].mxu0
        %7651 = vmatprep.mubr.bf16.mxu0 0
        %7652 = vmatmul.mubr.bf16.gmra.mrb[0].mxu0 %v7603
        %v7653 = vpop.f32.mrb[0].mxu0
        %v7654 = vadd.f32 0.0, %v7653
        %v7655 = vpop.f32.mrb[0].mxu0
        %v7656 = vpop.f32.mrb[0].mxu0
        %v7657 = vadd.f32 0.0, %v7656
        %v7658 = vpop.f32.mrb[0].mxu0
        %7659 = vmatprep.mubr.bf16.mxu0 0
        %7660 = vmatmul.mubr.bf16.gmra.mrb[0].mxu0 %v7606
        %v7661 = vpop.f32.mrb[0].mxu0
        %v7662 = vadd.f32 0.0, %v7661
        %v7663 = vpop.f32.mrb[0].mxu0
        %v7664 = vpop.f32.mrb[0].mxu0
        %v7665 = vadd.f32 0.0, %v7664
        %v7666 = vpop.f32.mrb[0].mxu0
        %7667 = vmatprep.mubr.bf16.mxu0 0
        %7668 = vmatmul.mubr.bf16.gmra.mrb[0].mxu0 %v7609
        %v7669 = vpop.f32.mrb[0].mxu0
        %v7670 = vadd.f32 0.0, %v7669
        %v7671 = vpop.f32.mrb[0].mxu0
        %v7672 = vpop.f32.mrb[0].mxu0
        %v7673 = vadd.f32 0.0, %v7672
        %v7674 = vpop.f32.mrb[0].mxu0
        %7675 = vdwg.mxu0
        %v7676 = vadd.f32 %v7570, %v7646
        %v7677 = vadd.f32 %v7571, %v7649
        %v7678 = vadd.f32 %v7572, %v7654
        %v7679 = vadd.f32 %v7573, %v7657
        %v7680 = vadd.f32 %v7574, %v7662
        %v7681 = vadd.f32 %v7575, %v7665
        %v7682 = vadd.f32 %v7576, %v7670
        %v7683 = vadd.f32 %v7577, %v7673
        %v7684 = vld [vmem:[%s7162 + $0x9] sm:$0xff]
        %v7685 = vld [vmem:[%s7162 + $0x21] sm:$0xff]
        %v7686 = vld [vmem:[%s7162 + $0x39] sm:$0xff]
        %v7687 = vld [vmem:[%s7162 + $0x51] sm:$0xff]
        %v7688 = vld [vmem:[%s7162 + $0x69] sm:$0xff]
        %v7689 = vld [vmem:[%s7162 + $0x81] sm:$0xff]
        %v7690 = vld [vmem:[%s7162 + $0x99] sm:$0xff]
        %v7691 = vld [vmem:[%s7162 + $0xb1] sm:$0xff]
        %v7692 = vpack.c.bf16 %v7685, %v7684
        %v7693 = vpack.c.bf16 %v7687, %v7686
        %v7694 = vpack.c.bf16 %v7689, %v7688
        %v7695 = vpack.c.bf16 %v7691, %v7690
        %s7696 = scalar_lea.vmem %s7, 40
        %v7697 = vld [vmem:[%s7696] sm:$0xf]
        %v7698 = vld [vmem:[%s7696 + $0x4] sm:$0xf]
        %v7701 = vunpack.c.l.b16 %v7697
        %v7702 = vunpack.c.l.b16 %v7698
        %v7703 = vpack.c.b16 %v7702, %v7701
        %v7706 = vsel %vm7131, %v7692, 0
        %v7709 = vsel %vm7131, %v7693, 0
        %v7712 = vsel %vm7131, %v7694, 0
        %v7715 = vsel %vm7131, %v7695, 0
        %7717 = vmatprep.subr.bf16.mxu0 0
        %7718 = vmatpush1.bf16.msra.mxu0 %v7703
        %7719 = vmatprep.subr.bf16.mxu0 0
        %7720 = vmatpush1.bf16.msra.mxu0 0
        %7721 = vmatprep.subr.bf16.mxu0 0
        %7722 = vmatpush1.bf16.msra.mxu0 0
        %7723 = vmatprep.subr.bf16.mxu0 0
        %7724 = vmatpush1.bf16.msra.mxu0 0
        %7725 = vmatprep.subr.bf16.mxu0 0
        %7726 = vmatpush1.bf16.msra.mxu0 0
        %7727 = vmatprep.subr.bf16.mxu0 0
        %7728 = vmatpush1.bf16.msra.mxu0 0
        %7729 = vmatprep.subr.bf16.mxu0 0
        %7730 = vmatpush1.bf16.msra.mxu0 0
        %7731 = vmatprep.subr.bf16.mxu0 0
        %7732 = vmatpush1.bf16.msra.mxu0 0
        %7733 = vmatprep.subr.bf16.mxu0 0
        %7734 = vmatpush1.bf16.msra.mxu0 0
        %7735 = vmatprep.subr.bf16.mxu0 0
        %7736 = vmatpush1.bf16.msra.mxu0 0
        %7737 = vmatprep.subr.bf16.mxu0 0
        %7738 = vmatpush1.bf16.msra.mxu0 0
        %7739 = vmatprep.subr.bf16.mxu0 0
        %7740 = vmatpush1.bf16.msra.mxu0 0
        %7741 = vmatprep.subr.bf16.mxu0 0
        %7742 = vmatpush1.bf16.msra.mxu0 0
        %7743 = vmatprep.subr.bf16.mxu0 0
        %7744 = vmatpush1.bf16.msra.mxu0 0
        %7745 = vmatprep.subr.bf16.mxu0 0
        %7746 = vmatpush1.bf16.msra.mxu0 0
        %7747 = vmatprep.subr.bf16.mxu0 0
        %7748 = vmatpush1.bf16.msra.mxu0 0
        %7749 = vmatprep.mubr.bf16.mxu0 0
        %7750 = vmatmul.mubr.bf16.gmra.mrb[0].mxu0 %v7706
        %v7751 = vpop.f32.mrb[0].mxu0
        %v7752 = vadd.f32 0.0, %v7751
        %v7753 = vpop.f32.mrb[0].mxu0
        %v7754 = vpop.f32.mrb[0].mxu0
        %v7755 = vadd.f32 0.0, %v7754
        %v7756 = vpop.f32.mrb[0].mxu0
        %7757 = vmatprep.mubr.bf16.mxu0 0
        %7758 = vmatmul.mubr.bf16.gmra.mrb[0].mxu0 %v7709
        %v7759 = vpop.f32.mrb[0].mxu0
        %v7760 = vadd.f32 0.0, %v7759
        %v7761 = vpop.f32.mrb[0].mxu0
        %v7762 = vpop.f32.mrb[0].mxu0
        %v7763 = vadd.f32 0.0, %v7762
        %v7764 = vpop.f32.mrb[0].mxu0
        %7765 = vmatprep.mubr.bf16.mxu0 0
        %7766 = vmatmul.mubr.bf16.gmra.mrb[0].mxu0 %v7712
        %v7767 = vpop.f32.mrb[0].mxu0
        %v7768 = vadd.f32 0.0, %v7767
        %v7769 = vpop.f32.mrb[0].mxu0
        %v7770 = vpop.f32.mrb[0].mxu0
        %v7771 = vadd.f32 0.0, %v7770
        %v7772 = vpop.f32.mrb[0].mxu0
        %7773 = vmatprep.mubr.bf16.mxu0 0
        %7774 = vmatmul.mubr.bf16.gmra.mrb[0].mxu0 %v7715
        %v7775 = vpop.f32.mrb[0].mxu0
        %v7776 = vadd.f32 0.0, %v7775
        %v7777 = vpop.f32.mrb[0].mxu0
        %v7778 = vpop.f32.mrb[0].mxu0
        %v7779 = vadd.f32 0.0, %v7778
        %v7780 = vpop.f32.mrb[0].mxu0
        %7781 = vdwg.mxu0
        %v7782 = vadd.f32 %v7676, %v7752
        %v7783 = vadd.f32 %v7677, %v7755
        %v7784 = vadd.f32 %v7678, %v7760
        %v7785 = vadd.f32 %v7679, %v7763
        %v7786 = vadd.f32 %v7680, %v7768
        %v7787 = vadd.f32 %v7681, %v7771
        %v7788 = vadd.f32 %v7682, %v7776
        %v7789 = vadd.f32 %v7683, %v7779
        %s7790 = scalar_lea.vmem [#allocation5], 48
        %v7791 = vld [vmem:[%s7790 + $0x7] sm:$0xff]
        %v7792 = vld [vmem:[%s7790 + $0x1f] sm:$0xff]
        %v7793 = vld [vmem:[%s7790 + $0x37] sm:$0xff]
        %v7794 = vld [vmem:[%s7790 + $0x4f] sm:$0xff]
        %v7795 = vld [vmem:[%s7790 + $0x67] sm:$0xff]
        %v7796 = vld [vmem:[%s7790 + $0x7f] sm:$0xff]
        %v7797 = vld [vmem:[%s7790 + $0x97] sm:$0xff]
        %v7798 = vld [vmem:[%s7790 + $0xaf] sm:$0xff]
        %v7799 = vpack.c.bf16 %v7792, %v7791
        %v7800 = vpack.c.bf16 %v7794, %v7793
        %v7801 = vpack.c.bf16 %v7796, %v7795
        %v7802 = vpack.c.bf16 %v7798, %v7797
        %s7803 = scalar_lea.vmem %s7, 48
        %v7804 = vld [vmem:[%s7803] sm:$0xf]
        %v7805 = vld [vmem:[%s7803 + $0x4] sm:$0xf]
        %v7808 = vunpack.c.l.b16 %v7804
        %v7809 = vunpack.c.l.b16 %v7805
        %v7810 = vpack.c.b16 %v7809, %v7808
        %v7813 = vsel %vm7131, %v7799, 0
        %v7816 = vsel %vm7131, %v7800, 0
        %v7819 = vsel %vm7131, %v7801, 0
        %v7822 = vsel %vm7131, %v7802, 0
        %7824 = vmatprep.subr.bf16.mxu0 0
        %7825 = vmatpush1.bf16.msra.mxu0 %v7810
        %7826 = vmatprep.subr.bf16.mxu0 0
        %7827 = vmatpush1.bf16.msra.mxu0 0
        %7828 = vmatprep.subr.bf16.mxu0 0
        %7829 = vmatpush1.bf16.msra.mxu0 0
        %7830 = vmatprep.subr.bf16.mxu0 0
        %7831 = vmatpush1.bf16.msra.mxu0 0
        %7832 = vmatprep.subr.bf16.mxu0 0
        %7833 = vmatpush1.bf16.msra.mxu0 0
        %7834 = vmatprep.subr.bf16.mxu0 0
        %7835 = vmatpush1.bf16.msra.mxu0 0
        %7836 = vmatprep.subr.bf16.mxu0 0
        %7837 = vmatpush1.bf16.msra.mxu0 0
        %7838 = vmatprep.subr.bf16.mxu0 0
        %7839 = vmatpush1.bf16.msra.mxu0 0
        %7840 = vmatprep.subr.bf16.mxu0 0
        %7841 = vmatpush1.bf16.msra.mxu0 0
        %7842 = vmatprep.subr.bf16.mxu0 0
        %7843 = vmatpush1.bf16.msra.mxu0 0
        %7844 = vmatprep.subr.bf16.mxu0 0
        %7845 = vmatpush1.bf16.msra.mxu0 0
        %7846 = vmatprep.subr.bf16.mxu0 0
        %7847 = vmatpush1.bf16.msra.mxu0 0
        %7848 = vmatprep.subr.bf16.mxu0 0
        %7849 = vmatpush1.bf16.msra.mxu0 0
        %7850 = vmatprep.subr.bf16.mxu0 0
        %7851 = vmatpush1.bf16.msra.mxu0 0
        %7852 = vmatprep.subr.bf16.mxu0 0
        %7853 = vmatpush1.bf16.msra.mxu0 0
        %7854 = vmatprep.subr.bf16.mxu0 0
        %7855 = vmatpush1.bf16.msra.mxu0 0
        %7856 = vmatprep.mubr.bf16.mxu0 0
        %7857 = vmatmul.mubr.bf16.gmra.mrb[0].mxu0 %v7813
        %v7858 = vpop.f32.mrb[0].mxu0
        %v7859 = vadd.f32 0.0, %v7858
        %v7860 = vpop.f32.mrb[0].mxu0
        %v7861 = vpop.f32.mrb[0].mxu0
        %v7862 = vadd.f32 0.0, %v7861
        %v7863 = vpop.f32.mrb[0].mxu0
        %7864 = vmatprep.mubr.bf16.mxu0 0
        %7865 = vmatmul.mubr.bf16.gmra.mrb[0].mxu0 %v7816
        %v7866 = vpop.f32.mrb[0].mxu0
        %v7867 = vadd.f32 0.0, %v7866
        %v7868 = vpop.f32.mrb[0].mxu0
        %v7869 = vpop.f32.mrb[0].mxu0
        %v7870 = vadd.f32 0.0, %v7869
        %v7871 = vpop.f32.mrb[0].mxu0
        %7872 = vmatprep.mubr.bf16.mxu0 0
        %7873 = vmatmul.mubr.bf16.gmra.mrb[0].mxu0 %v7819
        %v7874 = vpop.f32.mrb[0].mxu0
        %v7875 = vadd.f32 0.0, %v7874
        %v7876 = vpop.f32.mrb[0].mxu0
        %v7877 = vpop.f32.mrb[0].mxu0
        %v7878 = vadd.f32 0.0, %v7877
        %v7879 = vpop.f32.mrb[0].mxu0
        %7880 = vmatprep.mubr.bf16.mxu0 0
        %7881 = vmatmul.mubr.bf16.gmra.mrb[0].mxu0 %v7822
        %v7882 = vpop.f32.mrb[0].mxu0
        %v7883 = vadd.f32 0.0, %v7882
        %v7884 = vpop.f32.mrb[0].mxu0
        %v7885 = vpop.f32.mrb[0].mxu0
        %v7886 = vadd.f32 0.0, %v7885
        %v7887 = vpop.f32.mrb[0].mxu0
        %7888 = vdwg.mxu0
        %v7889 = vadd.f32 %v7782, %v7859
        %v7890 = vadd.f32 %v7783, %v7862
        %v7891 = vadd.f32 %v7784, %v7867
        %v7892 = vadd.f32 %v7785, %v7870
        %v7893 = vadd.f32 %v7786, %v7875
        %v7894 = vadd.f32 %v7787, %v7878
        %v7895 = vadd.f32 %v7788, %v7883
        %v7896 = vadd.f32 %v7789, %v7886
        %v7897 = vld [vmem:[%s7790 + $0x8] sm:$0xff]
        %v7898 = vld [vmem:[%s7790 + $0x20] sm:$0xff]
        %v7899 = vld [vmem:[%s7790 + $0x38] sm:$0xff]
        %v7900 = vld [vmem:[%s7790 + $0x50] sm:$0xff]
        %v7901 = vld [vmem:[%s7790 + $0x68] sm:$0xff]
        %v7902 = vld [vmem:[%s7790 + $0x80] sm:$0xff]
        %v7903 = vld [vmem:[%s7790 + $0x98] sm:$0xff]
        %v7904 = vld [vmem:[%s7790 + $0xb0] sm:$0xff]
        %v7905 = vpack.c.bf16 %v7898, %v7897
        %v7906 = vpack.c.bf16 %v7900, %v7899
        %v7907 = vpack.c.bf16 %v7902, %v7901
        %v7908 = vpack.c.bf16 %v7904, %v7903
        %s7909 = scalar_lea.vmem %s7, 56
        %v7910 = vld [vmem:[%s7909] sm:$0xf]
        %v7911 = vld [vmem:[%s7909 + $0x4] sm:$0xf]
        %v7914 = vunpack.c.l.b16 %v7910
        %v7915 = vunpack.c.l.b16 %v7911
        %v7916 = vpack.c.b16 %v7915, %v7914
        %v7919 = vsel %vm7131, %v7905, 0
        %v7922 = vsel %vm7131, %v7906, 0
        %v7925 = vsel %vm7131, %v7907, 0
        %v7928 = vsel %vm7131, %v7908, 0
        %7930 = vmatprep.subr.bf16.mxu0 0
        %7931 = vmatpush1.bf16.msra.mxu0 %v7916
        %7932 = vmatprep.subr.bf16.mxu0 0
        %7933 = vmatpush1.bf16.msra.mxu0 0
        %7934 = vmatprep.subr.bf16.mxu0 0
        %7935 = vmatpush1.bf16.msra.mxu0 0
        %7936 = vmatprep.subr.bf16.mxu0 0
        %7937 = vmatpush1.bf16.msra.mxu0 0
        %7938 = vmatprep.subr.bf16.mxu0 0
        %7939 = vmatpush1.bf16.msra.mxu0 0
        %7940 = vmatprep.subr.bf16.mxu0 0
        %7941 = vmatpush1.bf16.msra.mxu0 0
        %7942 = vmatprep.subr.bf16.mxu0 0
        %7943 = vmatpush1.bf16.msra.mxu0 0
        %7944 = vmatprep.subr.bf16.mxu0 0
        %7945 = vmatpush1.bf16.msra.mxu0 0
        %7946 = vmatprep.subr.bf16.mxu0 0
        %7947 = vmatpush1.bf16.msra.mxu0 0
        %7948 = vmatprep.subr.bf16.mxu0 0
        %7949 = vmatpush1.bf16.msra.mxu0 0
        %7950 = vmatprep.subr.bf16.mxu0 0
        %7951 = vmatpush1.bf16.msra.mxu0 0
        %7952 = vmatprep.subr.bf16.mxu0 0
        %7953 = vmatpush1.bf16.msra.mxu0 0
        %7954 = vmatprep.subr.bf16.mxu0 0
        %7955 = vmatpush1.bf16.msra.mxu0 0
        %7956 = vmatprep.subr.bf16.mxu0 0
        %7957 = vmatpush1.bf16.msra.mxu0 0
        %7958 = vmatprep.subr.bf16.mxu0 0
        %7959 = vmatpush1.bf16.msra.mxu0 0
        %7960 = vmatprep.subr.bf16.mxu0 0
        %7961 = vmatpush1.bf16.msra.mxu0 0
        %7962 = vmatprep.mubr.bf16.mxu0 0
        %7963 = vmatmul.mubr.bf16.gmra.mrb[0].mxu0 %v7919
        %v7964 = vpop.f32.mrb[0].mxu0
        %v7965 = vadd.f32 0.0, %v7964
        %v7966 = vpop.f32.mrb[0].mxu0
        %v7967 = vpop.f32.mrb[0].mxu0
        %v7968 = vadd.f32 0.0, %v7967
        %v7969 = vpop.f32.mrb[0].mxu0
        %7970 = vmatprep.mubr.bf16.mxu0 0
        %7971 = vmatmul.mubr.bf16.gmra.mrb[0].mxu0 %v7922
        %v7972 = vpop.f32.mrb[0].mxu0
        %v7973 = vadd.f32 0.0, %v7972
        %v7974 = vpop.f32.mrb[0].mxu0
        %v7975 = vpop.f32.mrb[0].mxu0
        %v7976 = vadd.f32 0.0, %v7975
        %v7977 = vpop.f32.mrb[0].mxu0
        %7978 = vmatprep.mubr.bf16.mxu0 0
        %7979 = vmatmul.mubr.bf16.gmra.mrb[0].mxu0 %v7925
        %v7980 = vpop.f32.mrb[0].mxu0
        %v7981 = vadd.f32 0.0, %v7980
        %v7982 = vpop.f32.mrb[0].mxu0
        %v7983 = vpop.f32.mrb[0].mxu0
        %v7984 = vadd.f32 0.0, %v7983
        %v7985 = vpop.f32.mrb[0].mxu0
        %7986 = vmatprep.mubr.bf16.mxu0 0
        %7987 = vmatmul.mubr.bf16.gmra.mrb[0].mxu0 %v7928
        %v7988 = vpop.f32.mrb[0].mxu0
        %v7989 = vadd.f32 0.0, %v7988
        %v7990 = vpop.f32.mrb[0].mxu0
        %v7991 = vpop.f32.mrb[0].mxu0
        %v7992 = vadd.f32 0.0, %v7991
        %v7993 = vpop.f32.mrb[0].mxu0
        %7994 = vdwg.mxu0
        %v7995 = vadd.f32 %v7889, %v7965
        %v7996 = vadd.f32 %v7890, %v7968
        %v7997 = vadd.f32 %v7891, %v7973
        %v7998 = vadd.f32 %v7892, %v7976
        %v7999 = vadd.f32 %v7893, %v7981
        %v8000 = vadd.f32 %v7894, %v7984
        %v8001 = vadd.f32 %v7895, %v7989
        %v8002 = vadd.f32 %v7896, %v7992
        %v8003 = vld [vmem:[%s7790 + $0x9] sm:$0xff]
        %v8004 = vld [vmem:[%s7790 + $0x21] sm:$0xff]
        %v8005 = vld [vmem:[%s7790 + $0x39] sm:$0xff]
        %v8006 = vld [vmem:[%s7790 + $0x51] sm:$0xff]
        %v8007 = vld [vmem:[%s7790 + $0x69] sm:$0xff]
        %v8008 = vld [vmem:[%s7790 + $0x81] sm:$0xff]
        %v8009 = vld [vmem:[%s7790 + $0x99] sm:$0xff]
        %v8010 = vld [vmem:[%s7790 + $0xb1] sm:$0xff]
        %v8011 = vpack.c.bf16 %v8004, %v8003
        %v8012 = vpack.c.bf16 %v8006, %v8005
        %v8013 = vpack.c.bf16 %v8008, %v8007
        %v8014 = vpack.c.bf16 %v8010, %v8009
        %s8015 = scalar_lea.vmem %s7, 64
        %v8016 = vld [vmem:[%s8015] sm:$0xf]
        %v8017 = vld [vmem:[%s8015 + $0x4] sm:$0xf]
        %v8020 = vunpack.c.l.b16 %v8016
        %v8021 = vunpack.c.l.b16 %v8017
        %v8022 = vpack.c.b16 %v8021, %v8020
        %v8025 = vsel %vm7131, %v8011, 0
        %v8028 = vsel %vm7131, %v8012, 0
        %v8031 = vsel %vm7131, %v8013, 0
        %v8034 = vsel %vm7131, %v8014, 0
        %8036 = vmatprep.subr.bf16.mxu0 0
        %8037 = vmatpush1.bf16.msra.mxu0 %v8022
        %8038 = vmatprep.subr.bf16.mxu0 0
        %8039 = vmatpush1.bf16.msra.mxu0 0
        %8040 = vmatprep.subr.bf16.mxu0 0
        %8041 = vmatpush1.bf16.msra.mxu0 0
        %8042 = vmatprep.subr.bf16.mxu0 0
        %8043 = vmatpush1.bf16.msra.mxu0 0
        %8044 = vmatprep.subr.bf16.mxu0 0
        %8045 = vmatpush1.bf16.msra.mxu0 0
        %8046 = vmatprep.subr.bf16.mxu0 0
        %8047 = vmatpush1.bf16.msra.mxu0 0
        %8048 = vmatprep.subr.bf16.mxu0 0
        %8049 = vmatpush1.bf16.msra.mxu0 0
        %8050 = vmatprep.subr.bf16.mxu0 0
        %8051 = vmatpush1.bf16.msra.mxu0 0
        %8052 = vmatprep.subr.bf16.mxu0 0
        %8053 = vmatpush1.bf16.msra.mxu0 0
        %8054 = vmatprep.subr.bf16.mxu0 0
        %8055 = vmatpush1.bf16.msra.mxu0 0
        %8056 = vmatprep.subr.bf16.mxu0 0
        %8057 = vmatpush1.bf16.msra.mxu0 0
        %8058 = vmatprep.subr.bf16.mxu0 0
        %8059 = vmatpush1.bf16.msra.mxu0 0
        %8060 = vmatprep.subr.bf16.mxu0 0
        %8061 = vmatpush1.bf16.msra.mxu0 0
        %8062 = vmatprep.subr.bf16.mxu0 0
        %8063 = vmatpush1.bf16.msra.mxu0 0
        %8064 = vmatprep.subr.bf16.mxu0 0
        %8065 = vmatpush1.bf16.msra.mxu0 0
        %8066 = vmatprep.subr.bf16.mxu0 0
        %8067 = vmatpush1.bf16.msra.mxu0 0
        %8068 = vmatprep.mubr.bf16.mxu0 0
        %8069 = vmatmul.mubr.bf16.gmra.mrb[0].mxu0 %v8025
        %v8070 = vpop.f32.mrb[0].mxu0
        %v8071 = vadd.f32 0.0, %v8070
        %v8072 = vpop.f32.mrb[0].mxu0
        %v8073 = vpop.f32.mrb[0].mxu0
        %v8074 = vadd.f32 0.0, %v8073
        %v8075 = vpop.f32.mrb[0].mxu0
        %8076 = vmatprep.mubr.bf16.mxu0 0
        %8077 = vmatmul.mubr.bf16.gmra.mrb[0].mxu0 %v8028
        %v8078 = vpop.f32.mrb[0].mxu0
        %v8079 = vadd.f32 0.0, %v8078
        %v8080 = vpop.f32.mrb[0].mxu0
        %v8081 = vpop.f32.mrb[0].mxu0
        %v8082 = vadd.f32 0.0, %v8081
        %v8083 = vpop.f32.mrb[0].mxu0
        %8084 = vmatprep.mubr.bf16.mxu0 0
        %8085 = vmatmul.mubr.bf16.gmra.mrb[0].mxu0 %v8031
        %v8086 = vpop.f32.mrb[0].mxu0
        %v8087 = vadd.f32 0.0, %v8086
        %v8088 = vpop.f32.mrb[0].mxu0
        %v8089 = vpop.f32.mrb[0].mxu0
        %v8090 = vadd.f32 0.0, %v8089
        %v8091 = vpop.f32.mrb[0].mxu0
        %8092 = vmatprep.mubr.bf16.mxu0 0
        %8093 = vmatmul.mubr.bf16.gmra.mrb[0].mxu0 %v8034
        %v8094 = vpop.f32.mrb[0].mxu0
        %v8095 = vadd.f32 0.0, %v8094
        %v8096 = vpop.f32.mrb[0].mxu0
        %v8097 = vpop.f32.mrb[0].mxu0
        %v8098 = vadd.f32 0.0, %v8097
        %v8099 = vpop.f32.mrb[0].mxu0
        %8100 = vdwg.mxu0
        %v8101 = vadd.f32 %v7995, %v8071
        %v8102 = vadd.f32 %v7996, %v8074
        %v8103 = vadd.f32 %v7997, %v8079
        %v8104 = vadd.f32 %v7998, %v8082
        %v8105 = vadd.f32 %v7999, %v8087
        %v8106 = vadd.f32 %v8000, %v8090
        %v8107 = vadd.f32 %v8001, %v8095
        %v8108 = vadd.f32 %v8002, %v8098
        %v8109 = vld [vmem:[%s8] sm:$0x1]
        %v8111 = vlaneseq
        %v8112 = vshrl.u32 %v8111, 7
        %v8113 = vsub.s32 0, %v8112
        %v8114 = vrot.slane %v8109, %v8113
        %v8116 = vadd.f32 %v8101, %v8114
        %v8117 = vadd.f32 %v8102, %v8114
        %v8118 = vadd.f32 %v8103, %v8114
        %v8119 = vadd.f32 %v8104, %v8114
        %v8120 = vadd.f32 %v8105, %v8114
        %v8121 = vadd.f32 %v8106, %v8114
        %v8122 = vadd.f32 %v8107, %v8114
        %v8123 = vadd.f32 %v8108, %v8114
        %v8124 = vmax.f32 %v8116, 0.0
        %v8125 = vmax.f32 %v8117, 0.0
        %v8126 = vmax.f32 %v8118, 0.0
        %v8127 = vmax.f32 %v8119, 0.0
        %v8128 = vmax.f32 %v8120, 0.0
        %v8129 = vmax.f32 %v8121, 0.0
        %v8130 = vmax.f32 %v8122, 0.0
        %v8131 = vmax.f32 %v8123, 0.0
        %8132 = vst.msk [vmem:[#allocation7] sm:$0xff] %vm7131, %v8124
        %8133 = vst.msk [vmem:[#allocation7 + $0x8] sm:$0xff] %vm7131, %v8125
        %8134 = vst.msk [vmem:[#allocation7 + $0x10] sm:$0xff] %vm7131, %v8126
        %8135 = vst.msk [vmem:[#allocation7 + $0x18] sm:$0xff] %vm7131, %v8127
        %8136 = vst.msk [vmem:[#allocation7 + $0x20] sm:$0xff] %vm7131, %v8128
        %8137 = vst.msk [vmem:[#allocation7 + $0x28] sm:$0xff] %vm7131, %v8129
        %8138 = vst.msk [vmem:[#allocation7 + $0x30] sm:$0xff] %vm7131, %v8130
        %8139 = vst.msk [vmem:[#allocation7 + $0x38] sm:$0xff] %vm7131, %v8131
        %v8140 = vld [vmem:[#allocation7] ss:$2 sm:$0xf]
        %s8141 = scalar_lea.vmem [#allocation7], 8
        %v8142 = vld [vmem:[%s8141] ss:$2 sm:$0xf]
        %s8143 = scalar_lea.vmem [#allocation7], 16
        %v8144 = vld [vmem:[%s8143] ss:$2 sm:$0xf]
        %s8145 = scalar_lea.vmem [#allocation7], 24
        %v8146 = vld [vmem:[%s8145] ss:$2 sm:$0xf]
        %s8147 = scalar_lea.vmem [#allocation7], 32
        %v8148 = vld [vmem:[%s8147] ss:$2 sm:$0xf]
        %s8149 = scalar_lea.vmem [#allocation7], 40
        %v8150 = vld [vmem:[%s8149] ss:$2 sm:$0xf]
        %s8151 = scalar_lea.vmem [#allocation7], 48
        %v8152 = vld [vmem:[%s8151] ss:$2 sm:$0xf]
        %s8153 = scalar_lea.vmem [#allocation7], 56
        %v8154 = vld [vmem:[%s8153] ss:$2 sm:$0xf]
        %s8155 = scalar_lea.vmem [#allocation7], 1
        %v8156 = vld [vmem:[%s8155] ss:$2 sm:$0xf]
        %s8157 = scalar_lea.vmem [#allocation7], 9
        %v8158 = vld [vmem:[%s8157] ss:$2 sm:$0xf]
        %s8159 = scalar_lea.vmem [#allocation7], 17
        %v8160 = vld [vmem:[%s8159] ss:$2 sm:$0xf]
        %s8161 = scalar_lea.vmem [#allocation7], 25
        %v8162 = vld [vmem:[%s8161] ss:$2 sm:$0xf]
        %s8163 = scalar_lea.vmem [#allocation7], 33
        %v8164 = vld [vmem:[%s8163] ss:$2 sm:$0xf]
        %s8165 = scalar_lea.vmem [#allocation7], 41
        %v8166 = vld [vmem:[%s8165] ss:$2 sm:$0xf]
        %s8167 = scalar_lea.vmem [#allocation7], 49
        %v8168 = vld [vmem:[%s8167] ss:$2 sm:$0xf]
        %s8169 = scalar_lea.vmem [#allocation7], 57
        %v8170 = vld [vmem:[%s8169] ss:$2 sm:$0xf]
        %v8171 = vmax.f32 %v8140, %v8156
        %v8172 = vmax.f32 %v8142, %v8158
        %v8173 = vmax.f32 %v8144, %v8160
        %v8174 = vmax.f32 %v8146, %v8162
        %v8175 = vmax.f32 %v8148, %v8164
        %v8176 = vmax.f32 %v8150, %v8166
        %v8177 = vmax.f32 %v8152, %v8168
        %v8178 = vmax.f32 %v8154, %v8170
        %v8179 = vmax.f32 %v8171, %v8172
        %v8180 = vmax.f32 %v8173, %v8174
        %v8181 = vmax.f32 %v8175, %v8176
        %v8182 = vmax.f32 %v8177, %v8178
        %vm8183 = vcmask 125952
        %8184 = vst.msk [vmem:[#allocation8] sm:$0xf] %vm8183, %v8179
        %8185 = vst.msk [vmem:[#allocation8 + $0x4] sm:$0xf] %vm8183, %v8180
        %8186 = vst.msk [vmem:[#allocation8 + $0x8] sm:$0xf] %vm8183, %v8181
        %8187 = vst.msk [vmem:[#allocation8 + $0xc] sm:$0xf] %vm8183, %v8182
        %v8188 = vld [vmem:[#allocation8] sm:$0x1]
        %v8189 = vpack.c.bf16 %v8188, %v8188
        %v8190 = vld [vmem:[%s9] sm:$0xf]
        %v8191 = vld [vmem:[%s9 + $0x4] sm:$0xf]
        %v8192 = vld [vmem:[#allocation8 + $0x1] sm:$0x1]
        %v8193 = vpack.c.bf16 %v8192, %v8192
        %s8194 = scalar_lea.vmem %s9, 8
        %v8195 = vld [vmem:[%s8194] sm:$0xf]
        %v8196 = vld [vmem:[%s8194 + $0x4] sm:$0xf]
        %v8199 = vunpack.c.l.b16 %v8195
        %v8200 = vunpack.c.l.b16 %v8196
        %v8201 = vpack.c.b16 %v8200, %v8199
        %v8204 = vsel %vm7131, %v8193, 0
        %8206 = vmatprep.subr.bf16.mxu0 0
        %8207 = vmatpush1.bf16.msra.mxu0 %v8201
        %8208 = vmatprep.subr.bf16.mxu0 0
        %8209 = vmatpush1.bf16.msra.mxu0 0
        %8210 = vmatprep.subr.bf16.mxu0 0
        %8211 = vmatpush1.bf16.msra.mxu0 0
        %8212 = vmatprep.subr.bf16.mxu0 0
        %8213 = vmatpush1.bf16.msra.mxu0 0
        %8214 = vmatprep.subr.bf16.mxu0 0
        %8215 = vmatpush1.bf16.msra.mxu0 0
        %8216 = vmatprep.subr.bf16.mxu0 0
        %8217 = vmatpush1.bf16.msra.mxu0 0
        %8218 = vmatprep.subr.bf16.mxu0 0
        %8219 = vmatpush1.bf16.msra.mxu0 0
        %8220 = vmatprep.subr.bf16.mxu0 0
        %8221 = vmatpush1.bf16.msra.mxu0 0
        %8222 = vmatprep.subr.bf16.mxu0 0
        %8223 = vmatpush1.bf16.msra.mxu0 0
        %8224 = vmatprep.subr.bf16.mxu0 0
        %8225 = vmatpush1.bf16.msra.mxu0 0
        %8226 = vmatprep.subr.bf16.mxu0 0
        %8227 = vmatpush1.bf16.msra.mxu0 0
        %8228 = vmatprep.subr.bf16.mxu0 0
        %8229 = vmatpush1.bf16.msra.mxu0 0
        %8230 = vmatprep.subr.bf16.mxu0 0
        %8231 = vmatpush1.bf16.msra.mxu0 0
        %8232 = vmatprep.subr.bf16.mxu0 0
        %8233 = vmatpush1.bf16.msra.mxu0 0
        %8234 = vmatprep.subr.bf16.mxu0 0
        %8235 = vmatpush1.bf16.msra.mxu0 0
        %8236 = vmatprep.subr.bf16.mxu0 0
        %8237 = vmatpush1.bf16.msra.mxu0 0
        %8238 = vmatprep.mubr.bf16.mxu0 0
        %8239 = vmatmul.mubr.bf16.gmra.mrb[0].mxu0 %v8204
        %v8240 = vpop.f32.mrb[0].mxu0
        %v8241 = vadd.f32 0.0, %v8240
        %v8242 = vpop.f32.mrb[0].mxu0
        %v8243 = vpop.f32.mrb[0].mxu0
        %v8244 = vpop.f32.mrb[0].mxu0
        %8245 = vdwg.mxu0
        %v8248 = vunpack.c.l.b16 %v8190
        %v8249 = vunpack.c.l.b16 %v8191
        %v8250 = vpack.c.b16 %v8249, %v8248
        %v8253 = vsel %vm7131, %v8189, 0
        %8255 = vmatprep.subr.bf16.mxu0 0
        %8256 = vmatpush1.bf16.msra.mxu0 %v8250
        %8257 = vmatprep.subr.bf16.mxu0 0
        %8258 = vmatpush1.bf16.msra.mxu0 0
        %8259 = vmatprep.subr.bf16.mxu0 0
        %8260 = vmatpush1.bf16.msra.mxu0 0
        %8261 = vmatprep.subr.bf16.mxu0 0
        %8262 = vmatpush1.bf16.msra.mxu0 0
        %8263 = vmatprep.subr.bf16.mxu0 0
        %8264 = vmatpush1.bf16.msra.mxu0 0
        %8265 = vmatprep.subr.bf16.mxu0 0
        %8266 = vmatpush1.bf16.msra.mxu0 0
        %8267 = vmatprep.subr.bf16.mxu0 0
        %8268 = vmatpush1.bf16.msra.mxu0 0
        %8269 = vmatprep.subr.bf16.mxu0 0
        %8270 = vmatpush1.bf16.msra.mxu0 0
        %8271 = vmatprep.subr.bf16.mxu0 0
        %8272 = vmatpush1.bf16.msra.mxu0 0
        %8273 = vmatprep.subr.bf16.mxu0 0
        %8274 = vmatpush1.bf16.msra.mxu0 0
        %8275 = vmatprep.subr.bf16.mxu0 0
        %8276 = vmatpush1.bf16.msra.mxu0 0
        %8277 = vmatprep.subr.bf16.mxu0 0
        %8278 = vmatpush1.bf16.msra.mxu0 0
        %8279 = vmatprep.subr.bf16.mxu0 0
        %8280 = vmatpush1.bf16.msra.mxu0 0
        %8281 = vmatprep.subr.bf16.mxu0 0
        %8282 = vmatpush1.bf16.msra.mxu0 0
        %8283 = vmatprep.subr.bf16.mxu0 0
        %8284 = vmatpush1.bf16.msra.mxu0 0
        %8285 = vmatprep.subr.bf16.mxu0 0
        %8286 = vmatpush1.bf16.msra.mxu0 0
        %8287 = vmatprep.mubr.bf16.mxu0 0
        %8288 = vmatmul.mubr.bf16.gmra.mrb[0].mxu0 %v8253
        %v8289 = vpop.f32.mrb[0].mxu0
        %v8290 = vadd.f32 %v8241, %v8289
        %v8291 = vpop.f32.mrb[0].mxu0
        %v8292 = vpop.f32.mrb[0].mxu0
        %v8293 = vpop.f32.mrb[0].mxu0
        %8294 = vdwg.mxu0
        %v8295 = vld [vmem:[#allocation8 + $0x2] sm:$0x1]
        %v8296 = vpack.c.bf16 %v8295, %v8295
        %s8297 = scalar_lea.vmem %s9, 16
        %v8298 = vld [vmem:[%s8297] sm:$0xf]
        %v8299 = vld [vmem:[%s8297 + $0x4] sm:$0xf]
        %v8302 = vunpack.c.l.b16 %v8298
        %v8303 = vunpack.c.l.b16 %v8299
        %v8304 = vpack.c.b16 %v8303, %v8302
        %v8307 = vsel %vm7131, %v8296, 0
        %8309 = vmatprep.subr.bf16.mxu0 0
        %8310 = vmatpush1.bf16.msra.mxu0 %v8304
        %8311 = vmatprep.subr.bf16.mxu0 0
        %8312 = vmatpush1.bf16.msra.mxu0 0
        %8313 = vmatprep.subr.bf16.mxu0 0
        %8314 = vmatpush1.bf16.msra.mxu0 0
        %8315 = vmatprep.subr.bf16.mxu0 0
        %8316 = vmatpush1.bf16.msra.mxu0 0
        %8317 = vmatprep.subr.bf16.mxu0 0
        %8318 = vmatpush1.bf16.msra.mxu0 0
        %8319 = vmatprep.subr.bf16.mxu0 0
        %8320 = vmatpush1.bf16.msra.mxu0 0
        %8321 = vmatprep.subr.bf16.mxu0 0
        %8322 = vmatpush1.bf16.msra.mxu0 0
        %8323 = vmatprep.subr.bf16.mxu0 0
        %8324 = vmatpush1.bf16.msra.mxu0 0
        %8325 = vmatprep.subr.bf16.mxu0 0
        %8326 = vmatpush1.bf16.msra.mxu0 0
        %8327 = vmatprep.subr.bf16.mxu0 0
        %8328 = vmatpush1.bf16.msra.mxu0 0
        %8329 = vmatprep.subr.bf16.mxu0 0
        %8330 = vmatpush1.bf16.msra.mxu0 0
        %8331 = vmatprep.subr.bf16.mxu0 0
        %8332 = vmatpush1.bf16.msra.mxu0 0
        %8333 = vmatprep.subr.bf16.mxu0 0
        %8334 = vmatpush1.bf16.msra.mxu0 0
        %8335 = vmatprep.subr.bf16.mxu0 0
        %8336 = vmatpush1.bf16.msra.mxu0 0
        %8337 = vmatprep.subr.bf16.mxu0 0
        %8338 = vmatpush1.bf16.msra.mxu0 0
        %8339 = vmatprep.subr.bf16.mxu0 0
        %8340 = vmatpush1.bf16.msra.mxu0 0
        %8341 = vmatprep.mubr.bf16.mxu0 0
        %8342 = vmatmul.mubr.bf16.gmra.mrb[0].mxu0 %v8307
        %v8343 = vpop.f32.mrb[0].mxu0
        %v8344 = vadd.f32 0.0, %v8343
        %v8345 = vpop.f32.mrb[0].mxu0
        %v8346 = vpop.f32.mrb[0].mxu0
        %v8347 = vpop.f32.mrb[0].mxu0
        %8348 = vdwg.mxu0
        %v8349 = vadd.f32 %v8290, %v8344
        %v8350 = vld [vmem:[#allocation8 + $0x3] sm:$0x1]
        %v8351 = vpack.c.bf16 %v8350, %v8350
        %s8352 = scalar_lea.vmem %s9, 24
        %v8353 = vld [vmem:[%s8352] sm:$0xf]
        %v8354 = vld [vmem:[%s8352 + $0x4] sm:$0xf]
        %v8357 = vunpack.c.l.b16 %v8353
        %v8358 = vunpack.c.l.b16 %v8354
        %v8359 = vpack.c.b16 %v8358, %v8357
        %v8362 = vsel %vm7131, %v8351, 0
        %8364 = vmatprep.subr.bf16.mxu0 0
        %8365 = vmatpush1.bf16.msra.mxu0 %v8359
        %8366 = vmatprep.subr.bf16.mxu0 0
        %8367 = vmatpush1.bf16.msra.mxu0 0
        %8368 = vmatprep.subr.bf16.mxu0 0
        %8369 = vmatpush1.bf16.msra.mxu0 0
        %8370 = vmatprep.subr.bf16.mxu0 0
        %8371 = vmatpush1.bf16.msra.mxu0 0
        %8372 = vmatprep.subr.bf16.mxu0 0
        %8373 = vmatpush1.bf16.msra.mxu0 0
        %8374 = vmatprep.subr.bf16.mxu0 0
        %8375 = vmatpush1.bf16.msra.mxu0 0
        %8376 = vmatprep.subr.bf16.mxu0 0
        %8377 = vmatpush1.bf16.msra.mxu0 0
        %8378 = vmatprep.subr.bf16.mxu0 0
        %8379 = vmatpush1.bf16.msra.mxu0 0
        %8380 = vmatprep.subr.bf16.mxu0 0
        %8381 = vmatpush1.bf16.msra.mxu0 0
        %8382 = vmatprep.subr.bf16.mxu0 0
        %8383 = vmatpush1.bf16.msra.mxu0 0
        %8384 = vmatprep.subr.bf16.mxu0 0
        %8385 = vmatpush1.bf16.msra.mxu0 0
        %8386 = vmatprep.subr.bf16.mxu0 0
        %8387 = vmatpush1.bf16.msra.mxu0 0
        %8388 = vmatprep.subr.bf16.mxu0 0
        %8389 = vmatpush1.bf16.msra.mxu0 0
        %8390 = vmatprep.subr.bf16.mxu0 0
        %8391 = vmatpush1.bf16.msra.mxu0 0
        %8392 = vmatprep.subr.bf16.mxu0 0
        %8393 = vmatpush1.bf16.msra.mxu0 0
        %8394 = vmatprep.subr.bf16.mxu0 0
        %8395 = vmatpush1.bf16.msra.mxu0 0
        %8396 = vmatprep.mubr.bf16.mxu0 0
        %8397 = vmatmul.mubr.bf16.gmra.mrb[0].mxu0 %v8362
        %v8398 = vpop.f32.mrb[0].mxu0
        %v8399 = vadd.f32 0.0, %v8398
        %v8400 = vpop.f32.mrb[0].mxu0
        %v8401 = vpop.f32.mrb[0].mxu0
        %v8402 = vpop.f32.mrb[0].mxu0
        %8403 = vdwg.mxu0
        %v8404 = vadd.f32 %v8349, %v8399
        %s8405 = scalar_lea.vmem [#allocation8], 4
        %v8406 = vld [vmem:[%s8405] sm:$0x1]
        %v8407 = vpack.c.bf16 %v8406, %v8406
        %s8408 = scalar_lea.vmem %s9, 32
        %v8409 = vld [vmem:[%s8408] sm:$0xf]
        %v8410 = vld [vmem:[%s8408 + $0x4] sm:$0xf]
        %v8413 = vunpack.c.l.b16 %v8409
        %v8414 = vunpack.c.l.b16 %v8410
        %v8415 = vpack.c.b16 %v8414, %v8413
        %v8418 = vsel %vm7131, %v8407, 0
        %8420 = vmatprep.subr.bf16.mxu0 0
        %8421 = vmatpush1.bf16.msra.mxu0 %v8415
        %8422 = vmatprep.subr.bf16.mxu0 0
        %8423 = vmatpush1.bf16.msra.mxu0 0
        %8424 = vmatprep.subr.bf16.mxu0 0
        %8425 = vmatpush1.bf16.msra.mxu0 0
        %8426 = vmatprep.subr.bf16.mxu0 0
        %8427 = vmatpush1.bf16.msra.mxu0 0
        %8428 = vmatprep.subr.bf16.mxu0 0
        %8429 = vmatpush1.bf16.msra.mxu0 0
        %8430 = vmatprep.subr.bf16.mxu0 0
        %8431 = vmatpush1.bf16.msra.mxu0 0
        %8432 = vmatprep.subr.bf16.mxu0 0
        %8433 = vmatpush1.bf16.msra.mxu0 0
        %8434 = vmatprep.subr.bf16.mxu0 0
        %8435 = vmatpush1.bf16.msra.mxu0 0
        %8436 = vmatprep.subr.bf16.mxu0 0
        %8437 = vmatpush1.bf16.msra.mxu0 0
        %8438 = vmatprep.subr.bf16.mxu0 0
        %8439 = vmatpush1.bf16.msra.mxu0 0
        %8440 = vmatprep.subr.bf16.mxu0 0
        %8441 = vmatpush1.bf16.msra.mxu0 0
        %8442 = vmatprep.subr.bf16.mxu0 0
        %8443 = vmatpush1.bf16.msra.mxu0 0
        %8444 = vmatprep.subr.bf16.mxu0 0
        %8445 = vmatpush1.bf16.msra.mxu0 0
        %8446 = vmatprep.subr.bf16.mxu0 0
        %8447 = vmatpush1.bf16.msra.mxu0 0
        %8448 = vmatprep.subr.bf16.mxu0 0
        %8449 = vmatpush1.bf16.msra.mxu0 0
        %8450 = vmatprep.subr.bf16.mxu0 0
        %8451 = vmatpush1.bf16.msra.mxu0 0
        %8452 = vmatprep.mubr.bf16.mxu0 0
        %8453 = vmatmul.mubr.bf16.gmra.mrb[0].mxu0 %v8418
        %v8454 = vpop.f32.mrb[0].mxu0
        %v8455 = vadd.f32 0.0, %v8454
        %v8456 = vpop.f32.mrb[0].mxu0
        %v8457 = vpop.f32.mrb[0].mxu0
        %v8458 = vpop.f32.mrb[0].mxu0
        %8459 = vdwg.mxu0
        %v8460 = vadd.f32 %v8404, %v8455
        %v8461 = vld [vmem:[%s8405 + $0x1] sm:$0x1]
        %v8462 = vpack.c.bf16 %v8461, %v8461
        %s8463 = scalar_lea.vmem %s9, 40
        %v8464 = vld [vmem:[%s8463] sm:$0xf]
        %v8465 = vld [vmem:[%s8463 + $0x4] sm:$0xf]
        %v8468 = vunpack.c.l.b16 %v8464
        %v8469 = vunpack.c.l.b16 %v8465
        %v8470 = vpack.c.b16 %v8469, %v8468
        %v8473 = vsel %vm7131, %v8462, 0
        %8475 = vmatprep.subr.bf16.mxu0 0
        %8476 = vmatpush1.bf16.msra.mxu0 %v8470
        %8477 = vmatprep.subr.bf16.mxu0 0
        %8478 = vmatpush1.bf16.msra.mxu0 0
        %8479 = vmatprep.subr.bf16.mxu0 0
        %8480 = vmatpush1.bf16.msra.mxu0 0
        %8481 = vmatprep.subr.bf16.mxu0 0
        %8482 = vmatpush1.bf16.msra.mxu0 0
        %8483 = vmatprep.subr.bf16.mxu0 0
        %8484 = vmatpush1.bf16.msra.mxu0 0
        %8485 = vmatprep.subr.bf16.mxu0 0
        %8486 = vmatpush1.bf16.msra.mxu0 0
        %8487 = vmatprep.subr.bf16.mxu0 0
        %8488 = vmatpush1.bf16.msra.mxu0 0
        %8489 = vmatprep.subr.bf16.mxu0 0
        %8490 = vmatpush1.bf16.msra.mxu0 0
        %8491 = vmatprep.subr.bf16.mxu0 0
        %8492 = vmatpush1.bf16.msra.mxu0 0
        %8493 = vmatprep.subr.bf16.mxu0 0
        %8494 = vmatpush1.bf16.msra.mxu0 0
        %8495 = vmatprep.subr.bf16.mxu0 0
        %8496 = vmatpush1.bf16.msra.mxu0 0
        %8497 = vmatprep.subr.bf16.mxu0 0
        %8498 = vmatpush1.bf16.msra.mxu0 0
        %8499 = vmatprep.subr.bf16.mxu0 0
        %8500 = vmatpush1.bf16.msra.mxu0 0
        %8501 = vmatprep.subr.bf16.mxu0 0
        %8502 = vmatpush1.bf16.msra.mxu0 0
        %8503 = vmatprep.subr.bf16.mxu0 0
        %8504 = vmatpush1.bf16.msra.mxu0 0
        %8505 = vmatprep.subr.bf16.mxu0 0
        %8506 = vmatpush1.bf16.msra.mxu0 0
        %8507 = vmatprep.mubr.bf16.mxu0 0
        %8508 = vmatmul.mubr.bf16.gmra.mrb[0].mxu0 %v8473
        %v8509 = vpop.f32.mrb[0].mxu0
        %v8510 = vadd.f32 0.0, %v8509
        %v8511 = vpop.f32.mrb[0].mxu0
        %v8512 = vpop.f32.mrb[0].mxu0
        %v8513 = vpop.f32.mrb[0].mxu0
        %8514 = vdwg.mxu0
        %v8515 = vadd.f32 %v8460, %v8510
        %v8516 = vld [vmem:[%s8405 + $0x2] sm:$0x1]
        %v8517 = vpack.c.bf16 %v8516, %v8516
        %s8518 = scalar_lea.vmem %s9, 48
        %v8519 = vld [vmem:[%s8518] sm:$0xf]
        %v8520 = vld [vmem:[%s8518 + $0x4] sm:$0xf]
        %v8523 = vunpack.c.l.b16 %v8519
        %v8524 = vunpack.c.l.b16 %v8520
        %v8525 = vpack.c.b16 %v8524, %v8523
        %v8528 = vsel %vm7131, %v8517, 0
        %8530 = vmatprep.subr.bf16.mxu0 0
        %8531 = vmatpush1.bf16.msra.mxu0 %v8525
        %8532 = vmatprep.subr.bf16.mxu0 0
        %8533 = vmatpush1.bf16.msra.mxu0 0
        %8534 = vmatprep.subr.bf16.mxu0 0
        %8535 = vmatpush1.bf16.msra.mxu0 0
        %8536 = vmatprep.subr.bf16.mxu0 0
        %8537 = vmatpush1.bf16.msra.mxu0 0
        %8538 = vmatprep.subr.bf16.mxu0 0
        %8539 = vmatpush1.bf16.msra.mxu0 0
        %8540 = vmatprep.subr.bf16.mxu0 0
        %8541 = vmatpush1.bf16.msra.mxu0 0
        %8542 = vmatprep.subr.bf16.mxu0 0
        %8543 = vmatpush1.bf16.msra.mxu0 0
        %8544 = vmatprep.subr.bf16.mxu0 0
        %8545 = vmatpush1.bf16.msra.mxu0 0
        %8546 = vmatprep.subr.bf16.mxu0 0
        %8547 = vmatpush1.bf16.msra.mxu0 0
        %8548 = vmatprep.subr.bf16.mxu0 0
        %8549 = vmatpush1.bf16.msra.mxu0 0
        %8550 = vmatprep.subr.bf16.mxu0 0
        %8551 = vmatpush1.bf16.msra.mxu0 0
        %8552 = vmatprep.subr.bf16.mxu0 0
        %8553 = vmatpush1.bf16.msra.mxu0 0
        %8554 = vmatprep.subr.bf16.mxu0 0
        %8555 = vmatpush1.bf16.msra.mxu0 0
        %8556 = vmatprep.subr.bf16.mxu0 0
        %8557 = vmatpush1.bf16.msra.mxu0 0
        %8558 = vmatprep.subr.bf16.mxu0 0
        %8559 = vmatpush1.bf16.msra.mxu0 0
        %8560 = vmatprep.subr.bf16.mxu0 0
        %8561 = vmatpush1.bf16.msra.mxu0 0
        %8562 = vmatprep.mubr.bf16.mxu0 0
        %8563 = vmatmul.mubr.bf16.gmra.mrb[0].mxu0 %v8528
        %v8564 = vpop.f32.mrb[0].mxu0
        %v8565 = vadd.f32 0.0, %v8564
        %v8566 = vpop.f32.mrb[0].mxu0
        %v8567 = vpop.f32.mrb[0].mxu0
        %v8568 = vpop.f32.mrb[0].mxu0
        %8569 = vdwg.mxu0
        %v8570 = vadd.f32 %v8515, %v8565
        %v8571 = vld [vmem:[%s8405 + $0x3] sm:$0x1]
        %v8572 = vpack.c.bf16 %v8571, %v8571
        %s8573 = scalar_lea.vmem %s9, 56
        %v8574 = vld [vmem:[%s8573] sm:$0xf]
        %v8575 = vld [vmem:[%s8573 + $0x4] sm:$0xf]
        %v8578 = vunpack.c.l.b16 %v8574
        %v8579 = vunpack.c.l.b16 %v8575
        %v8580 = vpack.c.b16 %v8579, %v8578
        %v8583 = vsel %vm7131, %v8572, 0
        %8585 = vmatprep.subr.bf16.mxu0 0
        %8586 = vmatpush1.bf16.msra.mxu0 %v8580
        %8587 = vmatprep.subr.bf16.mxu0 0
        %8588 = vmatpush1.bf16.msra.mxu0 0
        %8589 = vmatprep.subr.bf16.mxu0 0
        %8590 = vmatpush1.bf16.msra.mxu0 0
        %8591 = vmatprep.subr.bf16.mxu0 0
        %8592 = vmatpush1.bf16.msra.mxu0 0
        %8593 = vmatprep.subr.bf16.mxu0 0
        %8594 = vmatpush1.bf16.msra.mxu0 0
        %8595 = vmatprep.subr.bf16.mxu0 0
        %8596 = vmatpush1.bf16.msra.mxu0 0
        %8597 = vmatprep.subr.bf16.mxu0 0
        %8598 = vmatpush1.bf16.msra.mxu0 0
        %8599 = vmatprep.subr.bf16.mxu0 0
        %8600 = vmatpush1.bf16.msra.mxu0 0
        %8601 = vmatprep.subr.bf16.mxu0 0
        %8602 = vmatpush1.bf16.msra.mxu0 0
        %8603 = vmatprep.subr.bf16.mxu0 0
        %8604 = vmatpush1.bf16.msra.mxu0 0
        %8605 = vmatprep.subr.bf16.mxu0 0
        %8606 = vmatpush1.bf16.msra.mxu0 0
        %8607 = vmatprep.subr.bf16.mxu0 0
        %8608 = vmatpush1.bf16.msra.mxu0 0
        %8609 = vmatprep.subr.bf16.mxu0 0
        %8610 = vmatpush1.bf16.msra.mxu0 0
        %8611 = vmatprep.subr.bf16.mxu0 0
        %8612 = vmatpush1.bf16.msra.mxu0 0
        %8613 = vmatprep.subr.bf16.mxu0 0
        %8614 = vmatpush1.bf16.msra.mxu0 0
        %8615 = vmatprep.subr.bf16.mxu0 0
        %8616 = vmatpush1.bf16.msra.mxu0 0
        %8617 = vmatprep.mubr.bf16.mxu0 0
        %8618 = vmatmul.mubr.bf16.gmra.mrb[0].mxu0 %v8583
        %v8619 = vpop.f32.mrb[0].mxu0
        %v8620 = vadd.f32 0.0, %v8619
        %v8621 = vpop.f32.mrb[0].mxu0
        %v8622 = vpop.f32.mrb[0].mxu0
        %v8623 = vpop.f32.mrb[0].mxu0
        %8624 = vdwg.mxu0
        %v8625 = vadd.f32 %v8570, %v8620
        %s8626 = scalar_lea.vmem [#allocation8], 8
        %v8627 = vld [vmem:[%s8626] sm:$0x1]
        %v8628 = vpack.c.bf16 %v8627, %v8627
        %s8629 = scalar_lea.vmem %s9, 64
        %v8630 = vld [vmem:[%s8629] sm:$0xf]
        %v8631 = vld [vmem:[%s8629 + $0x4] sm:$0xf]
        %v8634 = vunpack.c.l.b16 %v8630
        %v8635 = vunpack.c.l.b16 %v8631
        %v8636 = vpack.c.b16 %v8635, %v8634
        %v8639 = vsel %vm7131, %v8628, 0
        %8641 = vmatprep.subr.bf16.mxu0 0
        %8642 = vmatpush1.bf16.msra.mxu0 %v8636
        %8643 = vmatprep.subr.bf16.mxu0 0
        %8644 = vmatpush1.bf16.msra.mxu0 0
        %8645 = vmatprep.subr.bf16.mxu0 0
        %8646 = vmatpush1.bf16.msra.mxu0 0
        %8647 = vmatprep.subr.bf16.mxu0 0
        %8648 = vmatpush1.bf16.msra.mxu0 0
        %8649 = vmatprep.subr.bf16.mxu0 0
        %8650 = vmatpush1.bf16.msra.mxu0 0
        %8651 = vmatprep.subr.bf16.mxu0 0
        %8652 = vmatpush1.bf16.msra.mxu0 0
        %8653 = vmatprep.subr.bf16.mxu0 0
        %8654 = vmatpush1.bf16.msra.mxu0 0
        %8655 = vmatprep.subr.bf16.mxu0 0
        %8656 = vmatpush1.bf16.msra.mxu0 0
        %8657 = vmatprep.subr.bf16.mxu0 0
        %8658 = vmatpush1.bf16.msra.mxu0 0
        %8659 = vmatprep.subr.bf16.mxu0 0
        %8660 = vmatpush1.bf16.msra.mxu0 0
        %8661 = vmatprep.subr.bf16.mxu0 0
        %8662 = vmatpush1.bf16.msra.mxu0 0
        %8663 = vmatprep.subr.bf16.mxu0 0
        %8664 = vmatpush1.bf16.msra.mxu0 0
        %8665 = vmatprep.subr.bf16.mxu0 0
        %8666 = vmatpush1.bf16.msra.mxu0 0
        %8667 = vmatprep.subr.bf16.mxu0 0
        %8668 = vmatpush1.bf16.msra.mxu0 0
        %8669 = vmatprep.subr.bf16.mxu0 0
        %8670 = vmatpush1.bf16.msra.mxu0 0
        %8671 = vmatprep.subr.bf16.mxu0 0
        %8672 = vmatpush1.bf16.msra.mxu0 0
        %8673 = vmatprep.mubr.bf16.mxu0 0
        %8674 = vmatmul.mubr.bf16.gmra.mrb[0].mxu0 %v8639
        %v8675 = vpop.f32.mrb[0].mxu0
        %v8676 = vadd.f32 0.0, %v8675
        %v8677 = vpop.f32.mrb[0].mxu0
        %v8678 = vpop.f32.mrb[0].mxu0
        %v8679 = vpop.f32.mrb[0].mxu0
        %8680 = vdwg.mxu0
        %v8681 = vadd.f32 %v8625, %v8676
        %v8682 = vld [vmem:[%s8626 + $0x1] sm:$0x1]
        %v8683 = vpack.c.bf16 %v8682, %v8682
        %s8684 = scalar_lea.vmem %s9, 72
        %v8685 = vld [vmem:[%s8684] sm:$0xf]
        %v8686 = vld [vmem:[%s8684 + $0x4] sm:$0xf]
        %v8689 = vunpack.c.l.b16 %v8685
        %v8690 = vunpack.c.l.b16 %v8686
        %v8691 = vpack.c.b16 %v8690, %v8689
        %v8694 = vsel %vm7131, %v8683, 0
        %8696 = vmatprep.subr.bf16.mxu0 0
        %8697 = vmatpush1.bf16.msra.mxu0 %v8691
        %8698 = vmatprep.subr.bf16.mxu0 0
        %8699 = vmatpush1.bf16.msra.mxu0 0
        %8700 = vmatprep.subr.bf16.mxu0 0
        %8701 = vmatpush1.bf16.msra.mxu0 0
        %8702 = vmatprep.subr.bf16.mxu0 0
        %8703 = vmatpush1.bf16.msra.mxu0 0
        %8704 = vmatprep.subr.bf16.mxu0 0
        %8705 = vmatpush1.bf16.msra.mxu0 0
        %8706 = vmatprep.subr.bf16.mxu0 0
        %8707 = vmatpush1.bf16.msra.mxu0 0
        %8708 = vmatprep.subr.bf16.mxu0 0
        %8709 = vmatpush1.bf16.msra.mxu0 0
        %8710 = vmatprep.subr.bf16.mxu0 0
        %8711 = vmatpush1.bf16.msra.mxu0 0
        %8712 = vmatprep.subr.bf16.mxu0 0
        %8713 = vmatpush1.bf16.msra.mxu0 0
        %8714 = vmatprep.subr.bf16.mxu0 0
        %8715 = vmatpush1.bf16.msra.mxu0 0
        %8716 = vmatprep.subr.bf16.mxu0 0
        %8717 = vmatpush1.bf16.msra.mxu0 0
        %8718 = vmatprep.subr.bf16.mxu0 0
        %8719 = vmatpush1.bf16.msra.mxu0 0
        %8720 = vmatprep.subr.bf16.mxu0 0
        %8721 = vmatpush1.bf16.msra.mxu0 0
        %8722 = vmatprep.subr.bf16.mxu0 0
        %8723 = vmatpush1.bf16.msra.mxu0 0
        %8724 = vmatprep.subr.bf16.mxu0 0
        %8725 = vmatpush1.bf16.msra.mxu0 0
        %8726 = vmatprep.subr.bf16.mxu0 0
        %8727 = vmatpush1.bf16.msra.mxu0 0
        %8728 = vmatprep.mubr.bf16.mxu0 0
        %8729 = vmatmul.mubr.bf16.gmra.mrb[0].mxu0 %v8694
        %v8730 = vpop.f32.mrb[0].mxu0
        %v8731 = vadd.f32 0.0, %v8730
        %v8732 = vpop.f32.mrb[0].mxu0
        %v8733 = vpop.f32.mrb[0].mxu0
        %v8734 = vpop.f32.mrb[0].mxu0
        %8735 = vdwg.mxu0
        %v8736 = vadd.f32 %v8681, %v8731
        %v8737 = vld [vmem:[%s8626 + $0x2] sm:$0x1]
        %v8738 = vpack.c.bf16 %v8737, %v8737
        %s8739 = scalar_lea.vmem %s9, 80
        %v8740 = vld [vmem:[%s8739] sm:$0xf]
        %v8741 = vld [vmem:[%s8739 + $0x4] sm:$0xf]
        %v8744 = vunpack.c.l.b16 %v8740
        %v8745 = vunpack.c.l.b16 %v8741
        %v8746 = vpack.c.b16 %v8745, %v8744
        %v8749 = vsel %vm7131, %v8738, 0
        %8751 = vmatprep.subr.bf16.mxu0 0
        %8752 = vmatpush1.bf16.msra.mxu0 %v8746
        %8753 = vmatprep.subr.bf16.mxu0 0
        %8754 = vmatpush1.bf16.msra.mxu0 0
        %8755 = vmatprep.subr.bf16.mxu0 0
        %8756 = vmatpush1.bf16.msra.mxu0 0
        %8757 = vmatprep.subr.bf16.mxu0 0
        %8758 = vmatpush1.bf16.msra.mxu0 0
        %8759 = vmatprep.subr.bf16.mxu0 0
        %8760 = vmatpush1.bf16.msra.mxu0 0
        %8761 = vmatprep.subr.bf16.mxu0 0
        %8762 = vmatpush1.bf16.msra.mxu0 0
        %8763 = vmatprep.subr.bf16.mxu0 0
        %8764 = vmatpush1.bf16.msra.mxu0 0
        %8765 = vmatprep.subr.bf16.mxu0 0
        %8766 = vmatpush1.bf16.msra.mxu0 0
        %8767 = vmatprep.subr.bf16.mxu0 0
        %8768 = vmatpush1.bf16.msra.mxu0 0
        %8769 = vmatprep.subr.bf16.mxu0 0
        %8770 = vmatpush1.bf16.msra.mxu0 0
        %8771 = vmatprep.subr.bf16.mxu0 0
        %8772 = vmatpush1.bf16.msra.mxu0 0
        %8773 = vmatprep.subr.bf16.mxu0 0
        %8774 = vmatpush1.bf16.msra.mxu0 0
        %8775 = vmatprep.subr.bf16.mxu0 0
        %8776 = vmatpush1.bf16.msra.mxu0 0
        %8777 = vmatprep.subr.bf16.mxu0 0
        %8778 = vmatpush1.bf16.msra.mxu0 0
        %8779 = vmatprep.subr.bf16.mxu0 0
        %8780 = vmatpush1.bf16.msra.mxu0 0
        %8781 = vmatprep.subr.bf16.mxu0 0
        %8782 = vmatpush1.bf16.msra.mxu0 0
        %8783 = vmatprep.mubr.bf16.mxu0 0
        %8784 = vmatmul.mubr.bf16.gmra.mrb[0].mxu0 %v8749
        %v8785 = vpop.f32.mrb[0].mxu0
        %v8786 = vadd.f32 0.0, %v8785
        %v8787 = vpop.f32.mrb[0].mxu0
        %v8788 = vpop.f32.mrb[0].mxu0
        %v8789 = vpop.f32.mrb[0].mxu0
        %8790 = vdwg.mxu0
        %v8791 = vadd.f32 %v8736, %v8786
        %v8792 = vld [vmem:[%s8626 + $0x3] sm:$0x1]
        %v8793 = vpack.c.bf16 %v8792, %v8792
        %s8794 = scalar_lea.vmem %s9, 88
        %v8795 = vld [vmem:[%s8794] sm:$0xf]
        %v8796 = vld [vmem:[%s8794 + $0x4] sm:$0xf]
        %v8799 = vunpack.c.l.b16 %v8795
        %v8800 = vunpack.c.l.b16 %v8796
        %v8801 = vpack.c.b16 %v8800, %v8799
        %v8804 = vsel %vm7131, %v8793, 0
        %8806 = vmatprep.subr.bf16.mxu0 0
        %8807 = vmatpush1.bf16.msra.mxu0 %v8801
        %8808 = vmatprep.subr.bf16.mxu0 0
        %8809 = vmatpush1.bf16.msra.mxu0 0
        %8810 = vmatprep.subr.bf16.mxu0 0
        %8811 = vmatpush1.bf16.msra.mxu0 0
        %8812 = vmatprep.subr.bf16.mxu0 0
        %8813 = vmatpush1.bf16.msra.mxu0 0
        %8814 = vmatprep.subr.bf16.mxu0 0
        %8815 = vmatpush1.bf16.msra.mxu0 0
        %8816 = vmatprep.subr.bf16.mxu0 0
        %8817 = vmatpush1.bf16.msra.mxu0 0
        %8818 = vmatprep.subr.bf16.mxu0 0
        %8819 = vmatpush1.bf16.msra.mxu0 0
        %8820 = vmatprep.subr.bf16.mxu0 0
        %8821 = vmatpush1.bf16.msra.mxu0 0
        %8822 = vmatprep.subr.bf16.mxu0 0
        %8823 = vmatpush1.bf16.msra.mxu0 0
        %8824 = vmatprep.subr.bf16.mxu0 0
        %8825 = vmatpush1.bf16.msra.mxu0 0
        %8826 = vmatprep.subr.bf16.mxu0 0
        %8827 = vmatpush1.bf16.msra.mxu0 0
        %8828 = vmatprep.subr.bf16.mxu0 0
        %8829 = vmatpush1.bf16.msra.mxu0 0
        %8830 = vmatprep.subr.bf16.mxu0 0
        %8831 = vmatpush1.bf16.msra.mxu0 0
        %8832 = vmatprep.subr.bf16.mxu0 0
        %8833 = vmatpush1.bf16.msra.mxu0 0
        %8834 = vmatprep.subr.bf16.mxu0 0
        %8835 = vmatpush1.bf16.msra.mxu0 0
        %8836 = vmatprep.subr.bf16.mxu0 0
        %8837 = vmatpush1.bf16.msra.mxu0 0
        %8838 = vmatprep.mubr.bf16.mxu0 0
        %8839 = vmatmul.mubr.bf16.gmra.mrb[0].mxu0 %v8804
        %v8840 = vpop.f32.mrb[0].mxu0
        %v8841 = vadd.f32 0.0, %v8840
        %v8842 = vpop.f32.mrb[0].mxu0
        %v8843 = vpop.f32.mrb[0].mxu0
        %v8844 = vpop.f32.mrb[0].mxu0
        %8845 = vdwg.mxu0
        %v8846 = vadd.f32 %v8791, %v8841
        %s8847 = scalar_lea.vmem [#allocation8], 12
        %v8848 = vld [vmem:[%s8847] sm:$0x1]
        %v8849 = vpack.c.bf16 %v8848, %v8848
        %s8850 = scalar_lea.vmem %s9, 96
        %v8851 = vld [vmem:[%s8850] sm:$0xf]
        %v8852 = vld [vmem:[%s8850 + $0x4] sm:$0xf]
        %v8855 = vunpack.c.l.b16 %v8851
        %v8856 = vunpack.c.l.b16 %v8852
        %v8857 = vpack.c.b16 %v8856, %v8855
        %v8860 = vsel %vm7131, %v8849, 0
        %8862 = vmatprep.subr.bf16.mxu0 0
        %8863 = vmatpush1.bf16.msra.mxu0 %v8857
        %8864 = vmatprep.subr.bf16.mxu0 0
        %8865 = vmatpush1.bf16.msra.mxu0 0
        %8866 = vmatprep.subr.bf16.mxu0 0
        %8867 = vmatpush1.bf16.msra.mxu0 0
        %8868 = vmatprep.subr.bf16.mxu0 0
        %8869 = vmatpush1.bf16.msra.mxu0 0
        %8870 = vmatprep.subr.bf16.mxu0 0
        %8871 = vmatpush1.bf16.msra.mxu0 0
        %8872 = vmatprep.subr.bf16.mxu0 0
        %8873 = vmatpush1.bf16.msra.mxu0 0
        %8874 = vmatprep.subr.bf16.mxu0 0
        %8875 = vmatpush1.bf16.msra.mxu0 0
        %8876 = vmatprep.subr.bf16.mxu0 0
        %8877 = vmatpush1.bf16.msra.mxu0 0
        %8878 = vmatprep.subr.bf16.mxu0 0
        %8879 = vmatpush1.bf16.msra.mxu0 0
        %8880 = vmatprep.subr.bf16.mxu0 0
        %8881 = vmatpush1.bf16.msra.mxu0 0
        %8882 = vmatprep.subr.bf16.mxu0 0
        %8883 = vmatpush1.bf16.msra.mxu0 0
        %8884 = vmatprep.subr.bf16.mxu0 0
        %8885 = vmatpush1.bf16.msra.mxu0 0
        %8886 = vmatprep.subr.bf16.mxu0 0
        %8887 = vmatpush1.bf16.msra.mxu0 0
        %8888 = vmatprep.subr.bf16.mxu0 0
        %8889 = vmatpush1.bf16.msra.mxu0 0
        %8890 = vmatprep.subr.bf16.mxu0 0
        %8891 = vmatpush1.bf16.msra.mxu0 0
        %8892 = vmatprep.subr.bf16.mxu0 0
        %8893 = vmatpush1.bf16.msra.mxu0 0
        %8894 = vmatprep.mubr.bf16.mxu0 0
        %8895 = vmatmul.mubr.bf16.gmra.mrb[0].mxu0 %v8860
        %v8896 = vpop.f32.mrb[0].mxu0
        %v8897 = vadd.f32 0.0, %v8896
        %v8898 = vpop.f32.mrb[0].mxu0
        %v8899 = vpop.f32.mrb[0].mxu0
        %v8900 = vpop.f32.mrb[0].mxu0
        %8901 = vdwg.mxu0
        %v8902 = vadd.f32 %v8846, %v8897
        %v8903 = vld [vmem:[%s8847 + $0x1] sm:$0x1]
        %v8904 = vpack.c.bf16 %v8903, %v8903
        %s8905 = scalar_lea.vmem %s9, 104
        %v8906 = vld [vmem:[%s8905] sm:$0xf]
        %v8907 = vld [vmem:[%s8905 + $0x4] sm:$0xf]
        %v8910 = vunpack.c.l.b16 %v8906
        %v8911 = vunpack.c.l.b16 %v8907
        %v8912 = vpack.c.b16 %v8911, %v8910
        %v8915 = vsel %vm7131, %v8904, 0
        %8917 = vmatprep.subr.bf16.mxu0 0
        %8918 = vmatpush1.bf16.msra.mxu0 %v8912
        %8919 = vmatprep.subr.bf16.mxu0 0
        %8920 = vmatpush1.bf16.msra.mxu0 0
        %8921 = vmatprep.subr.bf16.mxu0 0
        %8922 = vmatpush1.bf16.msra.mxu0 0
        %8923 = vmatprep.subr.bf16.mxu0 0
        %8924 = vmatpush1.bf16.msra.mxu0 0
        %8925 = vmatprep.subr.bf16.mxu0 0
        %8926 = vmatpush1.bf16.msra.mxu0 0
        %8927 = vmatprep.subr.bf16.mxu0 0
        %8928 = vmatpush1.bf16.msra.mxu0 0
        %8929 = vmatprep.subr.bf16.mxu0 0
        %8930 = vmatpush1.bf16.msra.mxu0 0
        %8931 = vmatprep.subr.bf16.mxu0 0
        %8932 = vmatpush1.bf16.msra.mxu0 0
        %8933 = vmatprep.subr.bf16.mxu0 0
        %8934 = vmatpush1.bf16.msra.mxu0 0
        %8935 = vmatprep.subr.bf16.mxu0 0
        %8936 = vmatpush1.bf16.msra.mxu0 0
        %8937 = vmatprep.subr.bf16.mxu0 0
        %8938 = vmatpush1.bf16.msra.mxu0 0
        %8939 = vmatprep.subr.bf16.mxu0 0
        %8940 = vmatpush1.bf16.msra.mxu0 0
        %8941 = vmatprep.subr.bf16.mxu0 0
        %8942 = vmatpush1.bf16.msra.mxu0 0
        %8943 = vmatprep.subr.bf16.mxu0 0
        %8944 = vmatpush1.bf16.msra.mxu0 0
        %8945 = vmatprep.subr.bf16.mxu0 0
        %8946 = vmatpush1.bf16.msra.mxu0 0
        %8947 = vmatprep.subr.bf16.mxu0 0
        %8948 = vmatpush1.bf16.msra.mxu0 0
        %8949 = vmatprep.mubr.bf16.mxu0 0
        %8950 = vmatmul.mubr.bf16.gmra.mrb[0].mxu0 %v8915
        %v8951 = vpop.f32.mrb[0].mxu0
        %v8952 = vadd.f32 0.0, %v8951
        %v8953 = vpop.f32.mrb[0].mxu0
        %v8954 = vpop.f32.mrb[0].mxu0
        %v8955 = vpop.f32.mrb[0].mxu0
        %8956 = vdwg.mxu0
        %v8957 = vadd.f32 %v8902, %v8952
        %v8958 = vld [vmem:[%s8847 + $0x2] sm:$0x1]
        %v8959 = vpack.c.bf16 %v8958, %v8958
        %s8960 = scalar_lea.vmem %s9, 112
        %v8961 = vld [vmem:[%s8960] sm:$0xf]
        %v8962 = vld [vmem:[%s8960 + $0x4] sm:$0xf]
        %v8965 = vunpack.c.l.b16 %v8961
        %v8966 = vunpack.c.l.b16 %v8962
        %v8967 = vpack.c.b16 %v8966, %v8965
        %v8970 = vsel %vm7131, %v8959, 0
        %8972 = vmatprep.subr.bf16.mxu0 0
        %8973 = vmatpush1.bf16.msra.mxu0 %v8967
        %8974 = vmatprep.subr.bf16.mxu0 0
        %8975 = vmatpush1.bf16.msra.mxu0 0
        %8976 = vmatprep.subr.bf16.mxu0 0
        %8977 = vmatpush1.bf16.msra.mxu0 0
        %8978 = vmatprep.subr.bf16.mxu0 0
        %8979 = vmatpush1.bf16.msra.mxu0 0
        %8980 = vmatprep.subr.bf16.mxu0 0
        %8981 = vmatpush1.bf16.msra.mxu0 0
        %8982 = vmatprep.subr.bf16.mxu0 0
        %8983 = vmatpush1.bf16.msra.mxu0 0
        %8984 = vmatprep.subr.bf16.mxu0 0
        %8985 = vmatpush1.bf16.msra.mxu0 0
        %8986 = vmatprep.subr.bf16.mxu0 0
        %8987 = vmatpush1.bf16.msra.mxu0 0
        %8988 = vmatprep.subr.bf16.mxu0 0
        %8989 = vmatpush1.bf16.msra.mxu0 0
        %8990 = vmatprep.subr.bf16.mxu0 0
        %8991 = vmatpush1.bf16.msra.mxu0 0
        %8992 = vmatprep.subr.bf16.mxu0 0
        %8993 = vmatpush1.bf16.msra.mxu0 0
        %8994 = vmatprep.subr.bf16.mxu0 0
        %8995 = vmatpush1.bf16.msra.mxu0 0
        %8996 = vmatprep.subr.bf16.mxu0 0
        %8997 = vmatpush1.bf16.msra.mxu0 0
        %8998 = vmatprep.subr.bf16.mxu0 0
        %8999 = vmatpush1.bf16.msra.mxu0 0
        %9000 = vmatprep.subr.bf16.mxu0 0
        %9001 = vmatpush1.bf16.msra.mxu0 0
        %9002 = vmatprep.subr.bf16.mxu0 0
        %9003 = vmatpush1.bf16.msra.mxu0 0
        %9004 = vmatprep.mubr.bf16.mxu0 0
        %9005 = vmatmul.mubr.bf16.gmra.mrb[0].mxu0 %v8970
        %v9006 = vpop.f32.mrb[0].mxu0
        %v9007 = vadd.f32 0.0, %v9006
        %v9008 = vpop.f32.mrb[0].mxu0
        %v9009 = vpop.f32.mrb[0].mxu0
        %v9010 = vpop.f32.mrb[0].mxu0
        %9011 = vdwg.mxu0
        %v9012 = vadd.f32 %v8957, %v9007
        %v9013 = vld [vmem:[%s8847 + $0x3] sm:$0x1]
        %v9014 = vpack.c.bf16 %v9013, %v9013
        %s9015 = scalar_lea.vmem %s9, 120
        %v9016 = vld [vmem:[%s9015] sm:$0xf]
        %v9017 = vld [vmem:[%s9015 + $0x4] sm:$0xf]
        %v9020 = vunpack.c.l.b16 %v9016
        %v9021 = vunpack.c.l.b16 %v9017
        %v9022 = vpack.c.b16 %v9021, %v9020
        %v9025 = vsel %vm7131, %v9014, 0
        %9027 = vmatprep.subr.bf16.mxu0 0
        %9028 = vmatpush1.bf16.msra.mxu0 %v9022
        %9029 = vmatprep.subr.bf16.mxu0 0
        %9030 = vmatpush1.bf16.msra.mxu0 0
        %9031 = vmatprep.subr.bf16.mxu0 0
        %9032 = vmatpush1.bf16.msra.mxu0 0
        %9033 = vmatprep.subr.bf16.mxu0 0
        %9034 = vmatpush1.bf16.msra.mxu0 0
        %9035 = vmatprep.subr.bf16.mxu0 0
        %9036 = vmatpush1.bf16.msra.mxu0 0
        %9037 = vmatprep.subr.bf16.mxu0 0
        %9038 = vmatpush1.bf16.msra.mxu0 0
        %9039 = vmatprep.subr.bf16.mxu0 0
        %9040 = vmatpush1.bf16.msra.mxu0 0
        %9041 = vmatprep.subr.bf16.mxu0 0
        %9042 = vmatpush1.bf16.msra.mxu0 0
        %9043 = vmatprep.subr.bf16.mxu0 0
        %9044 = vmatpush1.bf16.msra.mxu0 0
        %9045 = vmatprep.subr.bf16.mxu0 0
        %9046 = vmatpush1.bf16.msra.mxu0 0
        %9047 = vmatprep.subr.bf16.mxu0 0
        %9048 = vmatpush1.bf16.msra.mxu0 0
        %9049 = vmatprep.subr.bf16.mxu0 0
        %9050 = vmatpush1.bf16.msra.mxu0 0
        %9051 = vmatprep.subr.bf16.mxu0 0
        %9052 = vmatpush1.bf16.msra.mxu0 0
        %9053 = vmatprep.subr.bf16.mxu0 0
        %9054 = vmatpush1.bf16.msra.mxu0 0
        %9055 = vmatprep.subr.bf16.mxu0 0
        %9056 = vmatpush1.bf16.msra.mxu0 0
        %9057 = vmatprep.subr.bf16.mxu0 0
        %9058 = vmatpush1.bf16.msra.mxu0 0
        %9059 = vmatprep.mubr.bf16.mxu0 0
        %9060 = vmatmul.mubr.bf16.gmra.mrb[0].mxu0 %v9025
        %v9061 = vpop.f32.mrb[0].mxu0
        %v9062 = vadd.f32 0.0, %v9061
        %v9063 = vpop.f32.mrb[0].mxu0
        %v9064 = vpop.f32.mrb[0].mxu0
        %v9065 = vpop.f32.mrb[0].mxu0
        %9066 = vdwg.mxu0
        %v9067 = vadd.f32 %v9012, %v9062
        %v9068 = vld [vmem:[%s10] sm:$0x1]
        %v9069 = vadd.f32 %v9067, %v9068
        %v9070 = vmax.f32 %v9069, 0.0
        %v9071 = vpack.c.bf16 %v9070, %v9070
        %v9072 = vld [vmem:[%s11] sm:$0xf]
        %v9073 = vld [vmem:[%s11 + $0x4] sm:$0xf]
        %v9074 = vld [vmem:[%s11 + $0x8] sm:$0xf]
        %v9075 = vld [vmem:[%s11 + $0xc] sm:$0xf]
        %v9076 = vld [vmem:[%s11 + $0x10] sm:$0xf]
        %v9077 = vld [vmem:[%s11 + $0x14] sm:$0xf]
        %v9078 = vld [vmem:[%s11 + $0x18] sm:$0xf]
        %v9079 = vld [vmem:[%s11 + $0x1c] sm:$0xf]
        %v9080 = vld [vmem:[%s12] sm:$0x1]
        %v9089 = vunpack.c.l.b16 %v9072
        %v9090 = vunpack.c.l.b16 %v9073
        %v9091 = vunpack.c.l.b16 %v9074
        %v9092 = vunpack.c.l.b16 %v9075
        %v9093 = vunpack.c.l.b16 %v9076
        %v9094 = vunpack.c.l.b16 %v9077
        %v9095 = vunpack.c.l.b16 %v9078
        %v9096 = vunpack.c.l.b16 %v9079
        %v9097 = vpack.c.b16 %v9090, %v9089
        %v9098 = vpack.c.b16 %v9092, %v9091
        %v9099 = vpack.c.b16 %v9094, %v9093
        %v9100 = vpack.c.b16 %v9096, %v9095
        %vm9105 = vcmask 523264
        %v9107 = vsel %vm9105, %v9071, 0
        %9109 = vmatprep.subr.bf16.mxu0 0
        %9110 = vmatpush1.bf16.msra.mxu0 %v9097
        %9111 = vmatprep.subr.bf16.mxu0 0
        %9112 = vmatpush1.bf16.msra.mxu0 %v9098
        %9113 = vmatprep.subr.bf16.mxu0 0
        %9114 = vmatpush1.bf16.msra.mxu0 %v9099
        %9115 = vmatprep.subr.bf16.mxu0 0
        %9116 = vmatpush1.bf16.msra.mxu0 %v9100
        %9117 = vmatprep.subr.bf16.mxu0 0
        %9118 = vmatpush1.bf16.msra.mxu0 0
        %9119 = vmatprep.subr.bf16.mxu0 0
        %9120 = vmatpush1.bf16.msra.mxu0 0
        %9121 = vmatprep.subr.bf16.mxu0 0
        %9122 = vmatpush1.bf16.msra.mxu0 0
        %9123 = vmatprep.subr.bf16.mxu0 0
        %9124 = vmatpush1.bf16.msra.mxu0 0
        %9125 = vmatprep.subr.bf16.mxu0 0
        %9126 = vmatpush1.bf16.msra.mxu0 0
        %9127 = vmatprep.subr.bf16.mxu0 0
        %9128 = vmatpush1.bf16.msra.mxu0 0
        %9129 = vmatprep.subr.bf16.mxu0 0
        %9130 = vmatpush1.bf16.msra.mxu0 0
        %9131 = vmatprep.subr.bf16.mxu0 0
        %9132 = vmatpush1.bf16.msra.mxu0 0
        %9133 = vmatprep.subr.bf16.mxu0 0
        %9134 = vmatpush1.bf16.msra.mxu0 0
        %9135 = vmatprep.subr.bf16.mxu0 0
        %9136 = vmatpush1.bf16.msra.mxu0 0
        %9137 = vmatprep.subr.bf16.mxu0 0
        %9138 = vmatpush1.bf16.msra.mxu0 0
        %9139 = vmatprep.subr.bf16.mxu0 0
        %9140 = vmatpush1.bf16.msra.mxu0 0
        %9141 = vmatprep.mubr.bf16.mxu0 0
        %9142 = vmatmul.mubr.bf16.gmra.mrb[0].mxu0 %v9107
        %v9143 = vpop.f32.mrb[0].mxu0
        %v9144 = vadd.f32 %v9080, %v9143
        %v9145 = vpop.f32.mrb[0].mxu0
        %v9146 = vpop.f32.mrb[0].mxu0
        %v9147 = vpop.f32.mrb[0].mxu0
        %9148 = vdwg.mxu0
        %v9149 = vmax.f32 %v9144, 0.0
        %v9150 = vpack.c.bf16 %v9149, %v9149
        %v9151 = vld [vmem:[%s13] sm:$0xf]
        %v9152 = vld [vmem:[%s13 + $0x4] sm:$0xf]
        %v9153 = vld [vmem:[%s13 + $0x8] sm:$0xf]
        %v9154 = vld [vmem:[%s13 + $0xc] sm:$0xf]
        %v9155 = vld [vmem:[%s13 + $0x10] sm:$0xf]
        %v9156 = vld [vmem:[%s13 + $0x14] sm:$0xf]
        %v9157 = vld [vmem:[%s13 + $0x18] sm:$0xf]
        %v9158 = vld [vmem:[%s13 + $0x1c] sm:$0xf]
        %v9159 = vld [vmem:[%s14] sm:$0x1]
        %v9168 = vunpack.c.l.b16 %v9151
        %v9169 = vunpack.c.l.b16 %v9152
        %v9170 = vunpack.c.l.b16 %v9153
        %v9171 = vunpack.c.l.b16 %v9154
        %v9172 = vunpack.c.l.b16 %v9155
        %v9173 = vunpack.c.l.b16 %v9156
        %v9174 = vunpack.c.l.b16 %v9157
        %v9175 = vunpack.c.l.b16 %v9158
        %v9176 = vpack.c.b16 %v9169, %v9168
        %v9177 = vpack.c.b16 %v9171, %v9170
        %v9178 = vpack.c.b16 %v9173, %v9172
        %v9179 = vpack.c.b16 %v9175, %v9174
        %v9185 = vsel %vm9105, %v9150, 0
        %9187 = vmatprep.subr.bf16.mxu0 0
        %9188 = vmatpush1.bf16.msra.mxu0 %v9176
        %9189 = vmatprep.subr.bf16.mxu0 0
        %9190 = vmatpush1.bf16.msra.mxu0 %v9177
        %9191 = vmatprep.subr.bf16.mxu0 0
        %9192 = vmatpush1.bf16.msra.mxu0 %v9178
        %9193 = vmatprep.subr.bf16.mxu0 0
        %9194 = vmatpush1.bf16.msra.mxu0 %v9179
        %9195 = vmatprep.subr.bf16.mxu0 0
        %9196 = vmatpush1.bf16.msra.mxu0 0
        %9197 = vmatprep.subr.bf16.mxu0 0
        %9198 = vmatpush1.bf16.msra.mxu0 0
        %9199 = vmatprep.subr.bf16.mxu0 0
        %9200 = vmatpush1.bf16.msra.mxu0 0
        %9201 = vmatprep.subr.bf16.mxu0 0
        %9202 = vmatpush1.bf16.msra.mxu0 0
        %9203 = vmatprep.subr.bf16.mxu0 0
        %9204 = vmatpush1.bf16.msra.mxu0 0
        %9205 = vmatprep.subr.bf16.mxu0 0
        %9206 = vmatpush1.bf16.msra.mxu0 0
        %9207 = vmatprep.subr.bf16.mxu0 0
        %9208 = vmatpush1.bf16.msra.mxu0 0
        %9209 = vmatprep.subr.bf16.mxu0 0
        %9210 = vmatpush1.bf16.msra.mxu0 0
        %9211 = vmatprep.subr.bf16.mxu0 0
        %9212 = vmatpush1.bf16.msra.mxu0 0
        %9213 = vmatprep.subr.bf16.mxu0 0
        %9214 = vmatpush1.bf16.msra.mxu0 0
        %9215 = vmatprep.subr.bf16.mxu0 0
        %9216 = vmatpush1.bf16.msra.mxu0 0
        %9217 = vmatprep.subr.bf16.mxu0 0
        %9218 = vmatpush1.bf16.msra.mxu0 0
        %9219 = vmatprep.mubr.bf16.mxu0 0
        %9220 = vmatmul.mubr.bf16.gmra.mrb[0].mxu0 %v9185
        %v9221 = vpop.f32.mrb[0].mxu0
        %v9222 = vadd.f32 %v9159, %v9221
        %v9223 = vpop.f32.mrb[0].mxu0
        %v9224 = vpop.f32.mrb[0].mxu0
        %v9225 = vpop.f32.mrb[0].mxu0
        %9226 = vdwg.mxu0
        %vm9227 = vcmask 73728
        %9228 = vst.msk [vmem:[%s486] sm:$0x1] %vm9227, %v9222
        %s9229 = sand.u32 %s357, 1
        %s9230 = scalar_lea.sflag [#allocation10], %s9229
        %s9231 = sand.u32 %s357, 1
        %s9232 = scalar_lea.vmem [#allocation9], %s9231
        // Predicated region
        $region81: #{tpu_custom_call.1} parent=79 // pred_check
          %p9233 = pneg %p367
        $region82: #{tpu_custom_call.1} parent=79 // pred_check_branch
          %9235 = sbr.rel (%p9233) target = $region84
        $region83: #{tpu_custom_call.1} parent=79 // pred_region
          %s9237 = ssub.s32 16, 16
          %9238 = vsyncadd %s9230, %s9237
          %s9239 = smul.addr %s29, 16
          %s9240 = scalar_lea.hbm %s15, %s9239
          %s9242 = sshll.u32 %s9232, 4
          %s9243 = int_to_ptr.vmem [resolvable:$true] %s9242
          %9245 = dma.vmem_to_hbm [thread:$0]  %s9243, 16, %s9240, %s9230
        $region84: #{tpu_custom_call.1} parent=79 // pred_fallthru
          _
      $region80: #{tpu_custom_call.1} parent=5 // pred_fallthru
        _
      %p9246 = scmp.le.s32.totalorder 2, %s24
      // Predicated region
      $region85: #{tpu_custom_call.1} parent=5 // pred_check
        %p9247 = pneg %p9246
      $region86: #{tpu_custom_call.1} parent=5 // pred_check_branch
        %9249 = sbr.rel (%p9247) target = $region88
      $region87: #{tpu_custom_call.1} parent=5 // pred_region
        %s9250 = ssub.s32 %s24, 2
        // Predicated region
        $region89: #{tpu_custom_call.1} parent=87 // pred_check
          %p9251 = pneg %p373
        $region90: #{tpu_custom_call.1} parent=87 // pred_check_branch
          %9253 = sbr.rel (%p9251) target = $region92
        $region91: #{tpu_custom_call.1} parent=87 // pred_region
          %s9254 = sand.u32 %s358, 1
          %s9255 = scalar_lea.sflag [#allocation10], %s9254
          %s9256 = sand.u32 %s358, 1
          %s9257 = scalar_lea.vmem [#allocation9], %s9256
          %9258 = dma.done %s9255, 16
        $region92: #{tpu_custom_call.1} parent=87 // pred_fallthru
          _
      $region88: #{tpu_custom_call.1} parent=5 // pred_fallthru
        _
    $region6: #{tpu_custom_call.1} parent=1 // loop_footer
      %s28 = sadd.s32 1, %s24
    $region7: #{tpu_custom_call.1} parent=1 // loop_footer_branch
      %23 = sbr.rel target = $region3
    $region8: #{tpu_custom_call.1} parent=1 // loop_exit
      _
    %9259 = vsyncpa [#allocation10], 1
    %s9260 = scalar_lea.sflag [#allocation10], 1
    %9261 = vsyncpa %s9260, 1

</llo_original>
